<compile_context>
chip_gen: v7x
topology: tpu7x:2x2x1
jax: 0.10.0
libtpu: 0.0.40
codegen_flags: <defaults>
</compile_context>

<pallas_src>
import functools

import jax
import jax.numpy as jnp
from jax.experimental import pallas as pl
from jax.experimental.pallas import tpu as pltpu


# ---------------------------------------------------------------------------
# Fully fused kernel: depth x (qkv -> windowed attention -> proj) -> LayerNorm
# ---------------------------------------------------------------------------

def _attention_block_kernel(x_ref, wq_ref, wk_ref, wv_ref, bq_ref, bk_ref,
                            bv_ref, bias_ref, wproj_ref, bproj_ref, g_ref,
                            b_ref, o_ref, *, depth, num_heads, eps):
    f32 = jnp.float32
    bf16 = jnp.bfloat16

    # running activation for this batch element, kept on-chip across layers
    x = x_ref[0].astype(f32)                                      # (HW, C)

    for d in range(depth):                                        # static unroll
        xb = x.astype(bf16)                                       # one cast per layer
        acc = None
        for h in range(num_heads):                                # static unroll
            # per-head projections (scale already folded into wq / bq)
            q = jnp.dot(xb, wq_ref[d, h], preferred_element_type=f32) + bq_ref[d, h]
            k = jnp.dot(xb, wk_ref[d, h], preferred_element_type=f32) + bk_ref[d, h]
            v = jnp.dot(xb, wv_ref[d, h], preferred_element_type=f32) + bv_ref[d, h]

            # scores = q @ k^T  (+ neighborhood mask / relative positional bias)
            s = jax.lax.dot_general(
                q.astype(bf16), k.astype(bf16),
                (((1,), (1,)), ((), ())),
                preferred_element_type=f32)                       # (HW, HW)
            s = s + bias_ref[d, h].astype(f32)

            # f32 softmax over the (masked) neighborhood
            m = jnp.max(s, axis=-1, keepdims=True)
            p = jnp.exp(s - m)
            inv = pl.reciprocal(jnp.sum(p, axis=-1, keepdims=True), approx=True)
            p = p * inv

            ctx = jnp.dot(p.astype(bf16), v.astype(bf16),
                          preferred_element_type=f32)             # (HW, hd)

            # fold the per-head output projection into the f32 accumulator
            contrib = jnp.dot(ctx.astype(bf16), wproj_ref[d, h],
                              preferred_element_type=f32)         # (HW, C)
            acc = contrib if acc is None else acc + contrib

        x = acc + bproj_ref[d]                                    # (HW, C)

    # fused LayerNorm over channels (f32 math, v5e-safe)
    mean = jnp.mean(x, axis=-1, keepdims=True)
    var = jnp.mean(jnp.square(x - mean), axis=-1, keepdims=True)
    xn = (x - mean) * jax.lax.rsqrt(var + eps)
    o_ref[0] = (xn * g_ref[...] + b_ref[...]).astype(o_ref.dtype)


def attention_block_fused(x, params, num_heads, eps=1e-5):
    B, HW, C = x.shape
    nh = num_heads
    hd = C // nh
    depth = params["wq"].shape[0]
    kernel = functools.partial(_attention_block_kernel, depth=depth,
                               num_heads=nh, eps=eps)
    const4 = lambda b: (0, 0, 0, 0)
    return pl.pallas_call(
        kernel,
        out_shape=jax.ShapeDtypeStruct((B, HW, C), jnp.float32),
        grid=(B,),
        in_specs=[
            pl.BlockSpec((1, HW, C), lambda b: (b, 0, 0)),        # x (per batch)
            pl.BlockSpec((depth, nh, C, hd), const4),             # wq (resident)
            pl.BlockSpec((depth, nh, C, hd), const4),             # wk
            pl.BlockSpec((depth, nh, C, hd), const4),             # wv
            pl.BlockSpec((depth, nh, 1, hd), const4),             # bq
            pl.BlockSpec((depth, nh, 1, hd), const4),             # bk
            pl.BlockSpec((depth, nh, 1, hd), const4),             # bv
            pl.BlockSpec((depth, nh, HW, HW), const4),            # bias (resident)
            pl.BlockSpec((depth, nh, hd, C), const4),             # wproj
            pl.BlockSpec((depth, 1, C), lambda b: (0, 0, 0)),     # bproj
            pl.BlockSpec((1, C), lambda b: (0, 0)),               # ln gamma
            pl.BlockSpec((1, C), lambda b: (0, 0)),               # ln beta
        ],
        out_specs=pl.BlockSpec((1, HW, C), lambda b: (b, 0, 0)),
        compiler_params=pltpu.CompilerParams(
            dimension_semantics=("parallel",),
            vmem_limit_bytes=32 * 1024 * 1024),
    )(x, params["wq"], params["wk"], params["wv"], params["bq"], params["bk"],
      params["bv"], params["bias"], params["wproj"], params["bproj"],
      params["ln_g"], params["ln_b"])


# ---------------------------------------------------------------------------
# Glue: dense neighborhood bias (NATTEN clamped-window + rpb indexing)
# ---------------------------------------------------------------------------

def build_neighborhood_bias(rpb, H, W, ks):
    """Dense (num_heads, H*W, H*W) additive bias: rpb where in-window (clamped
    k x k neighborhood), -1e30 otherwise."""
    def axis_idx(L):
        i = jnp.arange(L)
        start = jnp.clip(i - ks // 2, 0, L - ks)                  # clamped window start
        a = jnp.arange(L)
        mask = (a[None, :] >= start[:, None]) & (a[None, :] < start[:, None] + ks)
        rel = jnp.clip(a[None, :] - i[:, None] + (ks - 1), 0, 2 * ks - 2)
        return mask, rel

    rmask, ridx = axis_idx(H)
    cmask, cidx = axis_idx(W)
    mask = rmask[:, None, :, None] & cmask[None, :, None, :]             # (H,W,H,W)
    bias = rpb[:, ridx[:, None, :, None], cidx[None, :, None, :]]         # (nh,H,W,H,W)
    bias = jnp.where(mask[None], bias, jnp.float32(-1e30))
    return bias.reshape(rpb.shape[0], H * W, H * W)


# ---------------------------------------------------------------------------
# One-time (offline) parameter preparation: fold scale, split per head,
# stack per layer, cast matmul operands to bf16
# ---------------------------------------------------------------------------

def prepare_params(raw, H, W, num_heads, kernel_size):
    wq, wk, wv, bq, bk, bv, bias, wproj, bproj = ([] for _ in range(9))
    for lp in raw["layers"]:
        dim = lp["proj_w"].shape[0]
        hd = dim // num_heads
        scale = float(hd) ** -0.5
        qkv_w = lp["qkv_w"].reshape(dim, 3, num_heads, hd)        # (Cin, 3, nh, hd)
        qkv_b = lp["qkv_b"].reshape(3, num_heads, hd)
        wq.append(jnp.transpose(qkv_w[:, 0], (1, 0, 2)) * scale)  # (nh, Cin, hd)
        wk.append(jnp.transpose(qkv_w[:, 1], (1, 0, 2)))
        wv.append(jnp.transpose(qkv_w[:, 2], (1, 0, 2)))
        bq.append((qkv_b[0] * scale).reshape(num_heads, 1, hd))
        bk.append(qkv_b[1].reshape(num_heads, 1, hd))
        bv.append(qkv_b[2].reshape(num_heads, 1, hd))
        wproj.append(lp["proj_w"].reshape(num_heads, hd, dim))     # (nh, hd, Cout)
        bproj.append(lp["proj_b"].reshape(1, dim))
        bias.append(build_neighborhood_bias(lp["rpb"], H, W, kernel_size))

    stk = lambda xs, dt: jnp.stack(xs).astype(dt)
    dim = raw["ln_g"].shape[0]
    return dict(
        wq=stk(wq, jnp.bfloat16), wk=stk(wk, jnp.bfloat16), wv=stk(wv, jnp.bfloat16),
        bq=stk(bq, jnp.float32), bk=stk(bk, jnp.float32), bv=stk(bv, jnp.float32),
        bias=stk(bias, jnp.bfloat16),
        wproj=stk(wproj, jnp.bfloat16), bproj=stk(bproj, jnp.float32),
        ln_g=raw["ln_g"].reshape(1, dim).astype(jnp.float32),
        ln_b=raw["ln_b"].reshape(1, dim).astype(jnp.float32))


# ---------------------------------------------------------------------------
# Module forward (matches torch: NCHW -> NHWC, attn layers, LayerNorm, back)
# ---------------------------------------------------------------------------

def attention_block(x_nchw, params, num_heads):
    x = jnp.transpose(x_nchw, (0, 2, 3, 1))                       # NHWC
    B, H, W, C = x.shape
    x = x.reshape(B, H * W, C)
    x = attention_block_fused(x, params, num_heads)               # one fused kernel
    x = x.reshape(B, H, W, C)
    return jnp.transpose(x, (0, 3, 1, 2))


# ---------------------------------------------------------------------------
# Deterministic parameter init (synthetic, torch-like layout)
# ---------------------------------------------------------------------------

def init_params(key, dim, num_heads, kernel_size, depth):
    layers = []
    for _ in range(depth):
        key, k1, k2, k3 = jax.random.split(key, 4)
        layers.append(dict(
            qkv_w=0.02 * jax.random.normal(k1, (dim, 3 * dim), jnp.float32),
            qkv_b=jnp.zeros((3 * dim,), jnp.float32),
            proj_w=0.02 * jax.random.normal(k2, (dim, dim), jnp.float32),
            proj_b=jnp.zeros((dim,), jnp.float32),
            rpb=0.02 * jax.random.normal(
                k3, (num_heads, 2 * kernel_size - 1, 2 * kernel_size - 1),
                jnp.float32),
        ))
    return dict(layers=layers,
                ln_g=jnp.ones((dim,), jnp.float32),
                ln_b=jnp.zeros((dim,), jnp.float32))


if __name__ == "__main__":
    B, dim, H, W = 2, 32, 8, 8
    num_heads, kernel_size, depth = 4, 3, 2

    key = jax.random.PRNGKey(0)
    key, kx = jax.random.split(key)
    x = jax.random.normal(kx, (B, dim, H, W), jnp.float32)        # NCHW like torch
    raw_params = init_params(key, dim, num_heads, kernel_size, depth)
    params = prepare_params(raw_params, H, W, num_heads, kernel_size)

    fn = jax.jit(functools.partial(attention_block, num_heads=num_heads))
    out = fn(x, params)
    jax.block_until_ready(out)
    assert out.shape == (B, dim, H, W)
    assert bool(jnp.all(jnp.isfinite(out)))
    print("KERNEL_OK")
</pallas_src>

<mosaic_0001>
module attributes {stable_mosaic.version = 11 : i64} {
  func.func @_attention_block_kernel(%arg0: i32, %arg1: memref<1x64x32xf32, #tpu.memory_space<vmem>>, %arg2: memref<2x4x32x8xbf16, #tpu.memory_space<vmem>>, %arg3: memref<2x4x32x8xbf16, #tpu.memory_space<vmem>>, %arg4: memref<2x4x32x8xbf16, #tpu.memory_space<vmem>>, %arg5: memref<2x4x1x8xf32, #tpu.memory_space<vmem>>, %arg6: memref<2x4x1x8xf32, #tpu.memory_space<vmem>>, %arg7: memref<2x4x1x8xf32, #tpu.memory_space<vmem>>, %arg8: memref<2x4x64x64xbf16, #tpu.memory_space<vmem>>, %arg9: memref<2x4x8x32xbf16, #tpu.memory_space<vmem>>, %arg10: memref<2x1x32xf32, #tpu.memory_space<vmem>>, %arg11: memref<1x32xf32, #tpu.memory_space<vmem>>, %arg12: memref<1x32xf32, #tpu.memory_space<vmem>>, %arg13: memref<1x64x32xf32, #tpu.memory_space<vmem>>) attributes {dimension_semantics = [#tpu.dimension_semantics<parallel>], iteration_bounds = array<i64: 2>, scalar_prefetch = 0 : i64, scratch_operands = 0 : i64, tpu.core_type = #tpu.core_type<tc>, window_params = [{transform_indices = @transform_0, window_bounds = array<i64: 1, 64, 32>}, {pipeline_mode = #tpu.pipeline_mode<synchronous>, transform_indices = @transform_1, window_bounds = array<i64: 2, 4, 32, 8>}, {pipeline_mode = #tpu.pipeline_mode<synchronous>, transform_indices = @transform_2, window_bounds = array<i64: 2, 4, 32, 8>}, {pipeline_mode = #tpu.pipeline_mode<synchronous>, transform_indices = @transform_3, window_bounds = array<i64: 2, 4, 32, 8>}, {pipeline_mode = #tpu.pipeline_mode<synchronous>, transform_indices = @transform_4, window_bounds = array<i64: 2, 4, 1, 8>}, {pipeline_mode = #tpu.pipeline_mode<synchronous>, transform_indices = @transform_5, window_bounds = array<i64: 2, 4, 1, 8>}, {pipeline_mode = #tpu.pipeline_mode<synchronous>, transform_indices = @transform_6, window_bounds = array<i64: 2, 4, 1, 8>}, {pipeline_mode = #tpu.pipeline_mode<synchronous>, transform_indices = @transform_7, window_bounds = array<i64: 2, 4, 64, 64>}, {pipeline_mode = #tpu.pipeline_mode<synchronous>, transform_indices = @transform_8, window_bounds = array<i64: 2, 4, 8, 32>}, {pipeline_mode = #tpu.pipeline_mode<synchronous>, transform_indices = @transform_9, window_bounds = array<i64: 2, 1, 32>}, {pipeline_mode = #tpu.pipeline_mode<synchronous>, transform_indices = @transform_10, window_bounds = array<i64: 1, 32>}, {pipeline_mode = #tpu.pipeline_mode<synchronous>, transform_indices = @transform_11, window_bounds = array<i64: 1, 32>}, {transform_indices = @transform_12, window_bounds = array<i64: 1, 64, 32>}]} {
    %c0 = arith.constant 0 : index
    %c0_0 = arith.constant 0 : index
    %c0_1 = arith.constant 0 : index
    %0 = vector.load %arg1[%c0, %c0_0, %c0_1] : memref<1x64x32xf32, #tpu.memory_space<vmem>>, vector<1x64x32xf32>
    %1 = vector.shape_cast %0 : vector<1x64x32xf32> to vector<64x32xf32>
    %2 = arith.truncf %1 : vector<64x32xf32> to vector<64x32xbf16>
    %c0_2 = arith.constant 0 : index
    %c0_3 = arith.constant 0 : index
    %c0_4 = arith.constant 0 : index
    %c0_5 = arith.constant 0 : index
    %3 = vector.load %arg2[%c0_2, %c0_3, %c0_4, %c0_5] : memref<2x4x32x8xbf16, #tpu.memory_space<vmem>>, vector<1x1x32x8xbf16>
    %4 = vector.shape_cast %3 : vector<1x1x32x8xbf16> to vector<32x8xbf16>
    %cst = arith.constant dense<0.000000e+00> : vector<64x8xf32>
    %5 = tpu.matmul %2, %4, %cst {dimension_numbers = #tpu.dot_dimension_numbers<[1], [0], [0], [1], [0, 0, 1, 1], [], []>} : vector<64x32xbf16>, vector<32x8xbf16>, vector<64x8xf32> -> vector<64x8xf32>
    %c0_6 = arith.constant 0 : index
    %c0_7 = arith.constant 0 : index
    %c0_8 = arith.constant 0 : index
    %c0_9 = arith.constant 0 : index
    %6 = vector.load %arg5[%c0_6, %c0_7, %c0_8, %c0_9] : memref<2x4x1x8xf32, #tpu.memory_space<vmem>>, vector<1x1x1x8xf32>
    %7 = vector.shape_cast %6 : vector<1x1x1x8xf32> to vector<1x8xf32>
    %8 = vector.broadcast %7 : vector<1x8xf32> to vector<64x8xf32>
    %9 = arith.addf %5, %8 : vector<64x8xf32>
    %c0_10 = arith.constant 0 : index
    %c0_11 = arith.constant 0 : index
    %c0_12 = arith.constant 0 : index
    %c0_13 = arith.constant 0 : index
    %10 = vector.load %arg3[%c0_10, %c0_11, %c0_12, %c0_13] : memref<2x4x32x8xbf16, #tpu.memory_space<vmem>>, vector<1x1x32x8xbf16>
    %11 = vector.shape_cast %10 : vector<1x1x32x8xbf16> to vector<32x8xbf16>
    %cst_14 = arith.constant dense<0.000000e+00> : vector<64x8xf32>
    %12 = tpu.matmul %2, %11, %cst_14 {dimension_numbers = #tpu.dot_dimension_numbers<[1], [0], [0], [1], [0, 0, 1, 1], [], []>} : vector<64x32xbf16>, vector<32x8xbf16>, vector<64x8xf32> -> vector<64x8xf32>
    %c0_15 = arith.constant 0 : index
    %c0_16 = arith.constant 0 : index
    %c0_17 = arith.constant 0 : index
    %c0_18 = arith.constant 0 : index
    %13 = vector.load %arg6[%c0_15, %c0_16, %c0_17, %c0_18] : memref<2x4x1x8xf32, #tpu.memory_space<vmem>>, vector<1x1x1x8xf32>
    %14 = vector.shape_cast %13 : vector<1x1x1x8xf32> to vector<1x8xf32>
    %15 = vector.broadcast %14 : vector<1x8xf32> to vector<64x8xf32>
    %16 = arith.addf %12, %15 : vector<64x8xf32>
    %c0_19 = arith.constant 0 : index
    %c0_20 = arith.constant 0 : index
    %c0_21 = arith.constant 0 : index
    %c0_22 = arith.constant 0 : index
    %17 = vector.load %arg4[%c0_19, %c0_20, %c0_21, %c0_22] : memref<2x4x32x8xbf16, #tpu.memory_space<vmem>>, vector<1x1x32x8xbf16>
    %18 = vector.shape_cast %17 : vector<1x1x32x8xbf16> to vector<32x8xbf16>
    %cst_23 = arith.constant dense<0.000000e+00> : vector<64x8xf32>
    %19 = tpu.matmul %2, %18, %cst_23 {dimension_numbers = #tpu.dot_dimension_numbers<[1], [0], [0], [1], [0, 0, 1, 1], [], []>} : vector<64x32xbf16>, vector<32x8xbf16>, vector<64x8xf32> -> vector<64x8xf32>
    %c0_24 = arith.constant 0 : index
    %c0_25 = arith.constant 0 : index
    %c0_26 = arith.constant 0 : index
    %c0_27 = arith.constant 0 : index
    %20 = vector.load %arg7[%c0_24, %c0_25, %c0_26, %c0_27] : memref<2x4x1x8xf32, #tpu.memory_space<vmem>>, vector<1x1x1x8xf32>
    %21 = vector.shape_cast %20 : vector<1x1x1x8xf32> to vector<1x8xf32>
    %22 = vector.broadcast %21 : vector<1x8xf32> to vector<64x8xf32>
    %23 = arith.addf %19, %22 : vector<64x8xf32>
    %24 = arith.truncf %9 : vector<64x8xf32> to vector<64x8xbf16>
    %25 = arith.truncf %16 : vector<64x8xf32> to vector<64x8xbf16>
    %cst_28 = arith.constant dense<0.000000e+00> : vector<64x64xf32>
    %26 = tpu.matmul %24, %25, %cst_28 {dimension_numbers = #tpu.dot_dimension_numbers<[1], [1], [0], [0], [0, 0, 1, 0], [], []>} : vector<64x8xbf16>, vector<64x8xbf16>, vector<64x64xf32> -> vector<64x64xf32>
    %c0_29 = arith.constant 0 : index
    %c0_30 = arith.constant 0 : index
    %c0_31 = arith.constant 0 : index
    %c0_32 = arith.constant 0 : index
    %27 = vector.load %arg8[%c0_29, %c0_30, %c0_31, %c0_32] : memref<2x4x64x64xbf16, #tpu.memory_space<vmem>>, vector<1x1x64x64xbf16>
    %28 = vector.shape_cast %27 : vector<1x1x64x64xbf16> to vector<64x64xbf16>
    %29 = arith.extf %28 : vector<64x64xbf16> to vector<64x64xf32>
    %30 = arith.addf %26, %29 : vector<64x64xf32>
    %cst_33 = arith.constant dense<0xFF800000> : vector<64xf32>
    %31 = vector.multi_reduction <maximumf>, %30, %cst_33 [1] : vector<64x64xf32> to vector<64xf32>
    %32 = vector.shape_cast %31 : vector<64xf32> to vector<64x1xf32>
    %33 = vector.broadcast %32 : vector<64x1xf32> to vector<64x64xf32>
    %34 = arith.subf %30, %33 : vector<64x64xf32>
    %35 = math.exp %34 : vector<64x64xf32>
    %cst_34 = arith.constant dense<0.000000e+00> : vector<64xf32>
    %36 = vector.multi_reduction <add>, %35, %cst_34 [1] : vector<64x64xf32> to vector<64xf32>
    %37 = vector.shape_cast %36 : vector<64xf32> to vector<64x1xf32>
    %38 = tpu.reciprocal %37 {approx = true} : vector<64x1xf32> -> vector<64x1xf32>
    %39 = vector.broadcast %38 : vector<64x1xf32> to vector<64x64xf32>
    %40 = arith.mulf %35, %39 : vector<64x64xf32>
    %41 = arith.truncf %40 : vector<64x64xf32> to vector<64x64xbf16>
    %42 = arith.truncf %23 : vector<64x8xf32> to vector<64x8xbf16>
    %cst_35 = arith.constant dense<0.000000e+00> : vector<64x8xf32>
    %43 = tpu.matmul %41, %42, %cst_35 {dimension_numbers = #tpu.dot_dimension_numbers<[1], [0], [0], [1], [0, 0, 1, 1], [], []>} : vector<64x64xbf16>, vector<64x8xbf16>, vector<64x8xf32> -> vector<64x8xf32>
    %44 = arith.truncf %43 : vector<64x8xf32> to vector<64x8xbf16>
    %c0_36 = arith.constant 0 : index
    %c0_37 = arith.constant 0 : index
    %c0_38 = arith.constant 0 : index
    %c0_39 = arith.constant 0 : index
    %45 = vector.load %arg9[%c0_36, %c0_37, %c0_38, %c0_39] : memref<2x4x8x32xbf16, #tpu.memory_space<vmem>>, vector<1x1x8x32xbf16>
    %46 = vector.shape_cast %45 : vector<1x1x8x32xbf16> to vector<8x32xbf16>
    %cst_40 = arith.constant dense<0.000000e+00> : vector<64x32xf32>
    %47 = tpu.matmul %44, %46, %cst_40 {dimension_numbers = #tpu.dot_dimension_numbers<[1], [0], [0], [1], [0, 0, 1, 1], [], []>} : vector<64x8xbf16>, vector<8x32xbf16>, vector<64x32xf32> -> vector<64x32xf32>
    %c0_41 = arith.constant 0 : index
    %c1 = arith.constant 1 : index
    %c0_42 = arith.constant 0 : index
    %c0_43 = arith.constant 0 : index
    %48 = vector.load %arg2[%c0_41, %c1, %c0_42, %c0_43] : memref<2x4x32x8xbf16, #tpu.memory_space<vmem>>, vector<1x1x32x8xbf16>
    %49 = vector.shape_cast %48 : vector<1x1x32x8xbf16> to vector<32x8xbf16>
    %cst_44 = arith.constant dense<0.000000e+00> : vector<64x8xf32>
    %50 = tpu.matmul %2, %49, %cst_44 {dimension_numbers = #tpu.dot_dimension_numbers<[1], [0], [0], [1], [0, 0, 1, 1], [], []>} : vector<64x32xbf16>, vector<32x8xbf16>, vector<64x8xf32> -> vector<64x8xf32>
    %c0_45 = arith.constant 0 : index
    %c1_46 = arith.constant 1 : index
    %c0_47 = arith.constant 0 : index
    %c0_48 = arith.constant 0 : index
    %51 = vector.load %arg5[%c0_45, %c1_46, %c0_47, %c0_48] : memref<2x4x1x8xf32, #tpu.memory_space<vmem>>, vector<1x1x1x8xf32>
    %52 = vector.shape_cast %51 : vector<1x1x1x8xf32> to vector<1x8xf32>
    %53 = vector.broadcast %52 : vector<1x8xf32> to vector<64x8xf32>
    %54 = arith.addf %50, %53 : vector<64x8xf32>
    %c0_49 = arith.constant 0 : index
    %c1_50 = arith.constant 1 : index
    %c0_51 = arith.constant 0 : index
    %c0_52 = arith.constant 0 : index
    %55 = vector.load %arg3[%c0_49, %c1_50, %c0_51, %c0_52] : memref<2x4x32x8xbf16, #tpu.memory_space<vmem>>, vector<1x1x32x8xbf16>
    %56 = vector.shape_cast %55 : vector<1x1x32x8xbf16> to vector<32x8xbf16>
    %cst_53 = arith.constant dense<0.000000e+00> : vector<64x8xf32>
    %57 = tpu.matmul %2, %56, %cst_53 {dimension_numbers = #tpu.dot_dimension_numbers<[1], [0], [0], [1], [0, 0, 1, 1], [], []>} : vector<64x32xbf16>, vector<32x8xbf16>, vector<64x8xf32> -> vector<64x8xf32>
    %c0_54 = arith.constant 0 : index
    %c1_55 = arith.constant 1 : index
    %c0_56 = arith.constant 0 : index
    %c0_57 = arith.constant 0 : index
    %58 = vector.load %arg6[%c0_54, %c1_55, %c0_56, %c0_57] : memref<2x4x1x8xf32, #tpu.memory_space<vmem>>, vector<1x1x1x8xf32>
    %59 = vector.shape_cast %58 : vector<1x1x1x8xf32> to vector<1x8xf32>
    %60 = vector.broadcast %59 : vector<1x8xf32> to vector<64x8xf32>
    %61 = arith.addf %57, %60 : vector<64x8xf32>
    %c0_58 = arith.constant 0 : index
    %c1_59 = arith.constant 1 : index
    %c0_60 = arith.constant 0 : index
    %c0_61 = arith.constant 0 : index
    %62 = vector.load %arg4[%c0_58, %c1_59, %c0_60, %c0_61] : memref<2x4x32x8xbf16, #tpu.memory_space<vmem>>, vector<1x1x32x8xbf16>
    %63 = vector.shape_cast %62 : vector<1x1x32x8xbf16> to vector<32x8xbf16>
    %cst_62 = arith.constant dense<0.000000e+00> : vector<64x8xf32>
    %64 = tpu.matmul %2, %63, %cst_62 {dimension_numbers = #tpu.dot_dimension_numbers<[1], [0], [0], [1], [0, 0, 1, 1], [], []>} : vector<64x32xbf16>, vector<32x8xbf16>, vector<64x8xf32> -> vector<64x8xf32>
    %c0_63 = arith.constant 0 : index
    %c1_64 = arith.constant 1 : index
    %c0_65 = arith.constant 0 : index
    %c0_66 = arith.constant 0 : index
    %65 = vector.load %arg7[%c0_63, %c1_64, %c0_65, %c0_66] : memref<2x4x1x8xf32, #tpu.memory_space<vmem>>, vector<1x1x1x8xf32>
    %66 = vector.shape_cast %65 : vector<1x1x1x8xf32> to vector<1x8xf32>
    %67 = vector.broadcast %66 : vector<1x8xf32> to vector<64x8xf32>
    %68 = arith.addf %64, %67 : vector<64x8xf32>
    %69 = arith.truncf %54 : vector<64x8xf32> to vector<64x8xbf16>
    %70 = arith.truncf %61 : vector<64x8xf32> to vector<64x8xbf16>
    %cst_67 = arith.constant dense<0.000000e+00> : vector<64x64xf32>
    %71 = tpu.matmul %69, %70, %cst_67 {dimension_numbers = #tpu.dot_dimension_numbers<[1], [1], [0], [0], [0, 0, 1, 0], [], []>} : vector<64x8xbf16>, vector<64x8xbf16>, vector<64x64xf32> -> vector<64x64xf32>
    %c0_68 = arith.constant 0 : index
    %c1_69 = arith.constant 1 : index
    %c0_70 = arith.constant 0 : index
    %c0_71 = arith.constant 0 : index
    %72 = vector.load %arg8[%c0_68, %c1_69, %c0_70, %c0_71] : memref<2x4x64x64xbf16, #tpu.memory_space<vmem>>, vector<1x1x64x64xbf16>
    %73 = vector.shape_cast %72 : vector<1x1x64x64xbf16> to vector<64x64xbf16>
    %74 = arith.extf %73 : vector<64x64xbf16> to vector<64x64xf32>
    %75 = arith.addf %71, %74 : vector<64x64xf32>
    %cst_72 = arith.constant dense<0xFF800000> : vector<64xf32>
    %76 = vector.multi_reduction <maximumf>, %75, %cst_72 [1] : vector<64x64xf32> to vector<64xf32>
    %77 = vector.shape_cast %76 : vector<64xf32> to vector<64x1xf32>
    %78 = vector.broadcast %77 : vector<64x1xf32> to vector<64x64xf32>
    %79 = arith.subf %75, %78 : vector<64x64xf32>
    %80 = math.exp %79 : vector<64x64xf32>
    %cst_73 = arith.constant dense<0.000000e+00> : vector<64xf32>
    %81 = vector.multi_reduction <add>, %80, %cst_73 [1] : vector<64x64xf32> to vector<64xf32>
    %82 = vector.shape_cast %81 : vector<64xf32> to vector<64x1xf32>
    %83 = tpu.reciprocal %82 {approx = true} : vector<64x1xf32> -> vector<64x1xf32>
    %84 = vector.broadcast %83 : vector<64x1xf32> to vector<64x64xf32>
    %85 = arith.mulf %80, %84 : vector<64x64xf32>
    %86 = arith.truncf %85 : vector<64x64xf32> to vector<64x64xbf16>
    %87 = arith.truncf %68 : vector<64x8xf32> to vector<64x8xbf16>
    %cst_74 = arith.constant dense<0.000000e+00> : vector<64x8xf32>
    %88 = tpu.matmul %86, %87, %cst_74 {dimension_numbers = #tpu.dot_dimension_numbers<[1], [0], [0], [1], [0, 0, 1, 1], [], []>} : vector<64x64xbf16>, vector<64x8xbf16>, vector<64x8xf32> -> vector<64x8xf32>
    %89 = arith.truncf %88 : vector<64x8xf32> to vector<64x8xbf16>
    %c0_75 = arith.constant 0 : index
    %c1_76 = arith.constant 1 : index
    %c0_77 = arith.constant 0 : index
    %c0_78 = arith.constant 0 : index
    %90 = vector.load %arg9[%c0_75, %c1_76, %c0_77, %c0_78] : memref<2x4x8x32xbf16, #tpu.memory_space<vmem>>, vector<1x1x8x32xbf16>
    %91 = vector.shape_cast %90 : vector<1x1x8x32xbf16> to vector<8x32xbf16>
    %cst_79 = arith.constant dense<0.000000e+00> : vector<64x32xf32>
    %92 = tpu.matmul %89, %91, %cst_79 {dimension_numbers = #tpu.dot_dimension_numbers<[1], [0], [0], [1], [0, 0, 1, 1], [], []>} : vector<64x8xbf16>, vector<8x32xbf16>, vector<64x32xf32> -> vector<64x32xf32>
    %93 = arith.addf %47, %92 : vector<64x32xf32>
    %c0_80 = arith.constant 0 : index
    %c2 = arith.constant 2 : index
    %c0_81 = arith.constant 0 : index
    %c0_82 = arith.constant 0 : index
    %94 = vector.load %arg2[%c0_80, %c2, %c0_81, %c0_82] : memref<2x4x32x8xbf16, #tpu.memory_space<vmem>>, vector<1x1x32x8xbf16>
    %95 = vector.shape_cast %94 : vector<1x1x32x8xbf16> to vector<32x8xbf16>
    %cst_83 = arith.constant dense<0.000000e+00> : vector<64x8xf32>
    %96 = tpu.matmul %2, %95, %cst_83 {dimension_numbers = #tpu.dot_dimension_numbers<[1], [0], [0], [1], [0, 0, 1, 1], [], []>} : vector<64x32xbf16>, vector<32x8xbf16>, vector<64x8xf32> -> vector<64x8xf32>
    %c0_84 = arith.constant 0 : index
    %c2_85 = arith.constant 2 : index
    %c0_86 = arith.constant 0 : index
    %c0_87 = arith.constant 0 : index
    %97 = vector.load %arg5[%c0_84, %c2_85, %c0_86, %c0_87] : memref<2x4x1x8xf32, #tpu.memory_space<vmem>>, vector<1x1x1x8xf32>
    %98 = vector.shape_cast %97 : vector<1x1x1x8xf32> to vector<1x8xf32>
    %99 = vector.broadcast %98 : vector<1x8xf32> to vector<64x8xf32>
    %100 = arith.addf %96, %99 : vector<64x8xf32>
    %c0_88 = arith.constant 0 : index
    %c2_89 = arith.constant 2 : index
    %c0_90 = arith.constant 0 : index
    %c0_91 = arith.constant 0 : index
    %101 = vector.load %arg3[%c0_88, %c2_89, %c0_90, %c0_91] : memref<2x4x32x8xbf16, #tpu.memory_space<vmem>>, vector<1x1x32x8xbf16>
    %102 = vector.shape_cast %101 : vector<1x1x32x8xbf16> to vector<32x8xbf16>
    %cst_92 = arith.constant dense<0.000000e+00> : vector<64x8xf32>
    %103 = tpu.matmul %2, %102, %cst_92 {dimension_numbers = #tpu.dot_dimension_numbers<[1], [0], [0], [1], [0, 0, 1, 1], [], []>} : vector<64x32xbf16>, vector<32x8xbf16>, vector<64x8xf32> -> vector<64x8xf32>
    %c0_93 = arith.constant 0 : index
    %c2_94 = arith.constant 2 : index
    %c0_95 = arith.constant 0 : index
    %c0_96 = arith.constant 0 : index
    %104 = vector.load %arg6[%c0_93, %c2_94, %c0_95, %c0_96] : memref<2x4x1x8xf32, #tpu.memory_space<vmem>>, vector<1x1x1x8xf32>
    %105 = vector.shape_cast %104 : vector<1x1x1x8xf32> to vector<1x8xf32>
    %106 = vector.broadcast %105 : vector<1x8xf32> to vector<64x8xf32>
    %107 = arith.addf %103, %106 : vector<64x8xf32>
    %c0_97 = arith.constant 0 : index
    %c2_98 = arith.constant 2 : index
    %c0_99 = arith.constant 0 : index
    %c0_100 = arith.constant 0 : index
    %108 = vector.load %arg4[%c0_97, %c2_98, %c0_99, %c0_100] : memref<2x4x32x8xbf16, #tpu.memory_space<vmem>>, vector<1x1x32x8xbf16>
    %109 = vector.shape_cast %108 : vector<1x1x32x8xbf16> to vector<32x8xbf16>
    %cst_101 = arith.constant dense<0.000000e+00> : vector<64x8xf32>
    %110 = tpu.matmul %2, %109, %cst_101 {dimension_numbers = #tpu.dot_dimension_numbers<[1], [0], [0], [1], [0, 0, 1, 1], [], []>} : vector<64x32xbf16>, vector<32x8xbf16>, vector<64x8xf32> -> vector<64x8xf32>
    %c0_102 = arith.constant 0 : index
    %c2_103 = arith.constant 2 : index
    %c0_104 = arith.constant 0 : index
    %c0_105 = arith.constant 0 : index
    %111 = vector.load %arg7[%c0_102, %c2_103, %c0_104, %c0_105] : memref<2x4x1x8xf32, #tpu.memory_space<vmem>>, vector<1x1x1x8xf32>
    %112 = vector.shape_cast %111 : vector<1x1x1x8xf32> to vector<1x8xf32>
    %113 = vector.broadcast %112 : vector<1x8xf32> to vector<64x8xf32>
    %114 = arith.addf %110, %113 : vector<64x8xf32>
    %115 = arith.truncf %100 : vector<64x8xf32> to vector<64x8xbf16>
    %116 = arith.truncf %107 : vector<64x8xf32> to vector<64x8xbf16>
    %cst_106 = arith.constant dense<0.000000e+00> : vector<64x64xf32>
    %117 = tpu.matmul %115, %116, %cst_106 {dimension_numbers = #tpu.dot_dimension_numbers<[1], [1], [0], [0], [0, 0, 1, 0], [], []>} : vector<64x8xbf16>, vector<64x8xbf16>, vector<64x64xf32> -> vector<64x64xf32>
    %c0_107 = arith.constant 0 : index
    %c2_108 = arith.constant 2 : index
    %c0_109 = arith.constant 0 : index
    %c0_110 = arith.constant 0 : index
    %118 = vector.load %arg8[%c0_107, %c2_108, %c0_109, %c0_110] : memref<2x4x64x64xbf16, #tpu.memory_space<vmem>>, vector<1x1x64x64xbf16>
    %119 = vector.shape_cast %118 : vector<1x1x64x64xbf16> to vector<64x64xbf16>
    %120 = arith.extf %119 : vector<64x64xbf16> to vector<64x64xf32>
    %121 = arith.addf %117, %120 : vector<64x64xf32>
    %cst_111 = arith.constant dense<0xFF800000> : vector<64xf32>
    %122 = vector.multi_reduction <maximumf>, %121, %cst_111 [1] : vector<64x64xf32> to vector<64xf32>
    %123 = vector.shape_cast %122 : vector<64xf32> to vector<64x1xf32>
    %124 = vector.broadcast %123 : vector<64x1xf32> to vector<64x64xf32>
    %125 = arith.subf %121, %124 : vector<64x64xf32>
    %126 = math.exp %125 : vector<64x64xf32>
    %cst_112 = arith.constant dense<0.000000e+00> : vector<64xf32>
    %127 = vector.multi_reduction <add>, %126, %cst_112 [1] : vector<64x64xf32> to vector<64xf32>
    %128 = vector.shape_cast %127 : vector<64xf32> to vector<64x1xf32>
    %129 = tpu.reciprocal %128 {approx = true} : vector<64x1xf32> -> vector<64x1xf32>
    %130 = vector.broadcast %129 : vector<64x1xf32> to vector<64x64xf32>
    %131 = arith.mulf %126, %130 : vector<64x64xf32>
    %132 = arith.truncf %131 : vector<64x64xf32> to vector<64x64xbf16>
    %133 = arith.truncf %114 : vector<64x8xf32> to vector<64x8xbf16>
    %cst_113 = arith.constant dense<0.000000e+00> : vector<64x8xf32>
    %134 = tpu.matmul %132, %133, %cst_113 {dimension_numbers = #tpu.dot_dimension_numbers<[1], [0], [0], [1], [0, 0, 1, 1], [], []>} : vector<64x64xbf16>, vector<64x8xbf16>, vector<64x8xf32> -> vector<64x8xf32>
    %135 = arith.truncf %134 : vector<64x8xf32> to vector<64x8xbf16>
    %c0_114 = arith.constant 0 : index
    %c2_115 = arith.constant 2 : index
    %c0_116 = arith.constant 0 : index
    %c0_117 = arith.constant 0 : index
    %136 = vector.load %arg9[%c0_114, %c2_115, %c0_116, %c0_117] : memref<2x4x8x32xbf16, #tpu.memory_space<vmem>>, vector<1x1x8x32xbf16>
    %137 = vector.shape_cast %136 : vector<1x1x8x32xbf16> to vector<8x32xbf16>
    %cst_118 = arith.constant dense<0.000000e+00> : vector<64x32xf32>
    %138 = tpu.matmul %135, %137, %cst_118 {dimension_numbers = #tpu.dot_dimension_numbers<[1], [0], [0], [1], [0, 0, 1, 1], [], []>} : vector<64x8xbf16>, vector<8x32xbf16>, vector<64x32xf32> -> vector<64x32xf32>
    %139 = arith.addf %93, %138 : vector<64x32xf32>
    %c0_119 = arith.constant 0 : index
    %c3 = arith.constant 3 : index
    %c0_120 = arith.constant 0 : index
    %c0_121 = arith.constant 0 : index
    %140 = vector.load %arg2[%c0_119, %c3, %c0_120, %c0_121] : memref<2x4x32x8xbf16, #tpu.memory_space<vmem>>, vector<1x1x32x8xbf16>
    %141 = vector.shape_cast %140 : vector<1x1x32x8xbf16> to vector<32x8xbf16>
    %cst_122 = arith.constant dense<0.000000e+00> : vector<64x8xf32>
    %142 = tpu.matmul %2, %141, %cst_122 {dimension_numbers = #tpu.dot_dimension_numbers<[1], [0], [0], [1], [0, 0, 1, 1], [], []>} : vector<64x32xbf16>, vector<32x8xbf16>, vector<64x8xf32> -> vector<64x8xf32>
    %c0_123 = arith.constant 0 : index
    %c3_124 = arith.constant 3 : index
    %c0_125 = arith.constant 0 : index
    %c0_126 = arith.constant 0 : index
    %143 = vector.load %arg5[%c0_123, %c3_124, %c0_125, %c0_126] : memref<2x4x1x8xf32, #tpu.memory_space<vmem>>, vector<1x1x1x8xf32>
    %144 = vector.shape_cast %143 : vector<1x1x1x8xf32> to vector<1x8xf32>
    %145 = vector.broadcast %144 : vector<1x8xf32> to vector<64x8xf32>
    %146 = arith.addf %142, %145 : vector<64x8xf32>
    %c0_127 = arith.constant 0 : index
    %c3_128 = arith.constant 3 : index
    %c0_129 = arith.constant 0 : index
    %c0_130 = arith.constant 0 : index
    %147 = vector.load %arg3[%c0_127, %c3_128, %c0_129, %c0_130] : memref<2x4x32x8xbf16, #tpu.memory_space<vmem>>, vector<1x1x32x8xbf16>
    %148 = vector.shape_cast %147 : vector<1x1x32x8xbf16> to vector<32x8xbf16>
    %cst_131 = arith.constant dense<0.000000e+00> : vector<64x8xf32>
    %149 = tpu.matmul %2, %148, %cst_131 {dimension_numbers = #tpu.dot_dimension_numbers<[1], [0], [0], [1], [0, 0, 1, 1], [], []>} : vector<64x32xbf16>, vector<32x8xbf16>, vector<64x8xf32> -> vector<64x8xf32>
    %c0_132 = arith.constant 0 : index
    %c3_133 = arith.constant 3 : index
    %c0_134 = arith.constant 0 : index
    %c0_135 = arith.constant 0 : index
    %150 = vector.load %arg6[%c0_132, %c3_133, %c0_134, %c0_135] : memref<2x4x1x8xf32, #tpu.memory_space<vmem>>, vector<1x1x1x8xf32>
    %151 = vector.shape_cast %150 : vector<1x1x1x8xf32> to vector<1x8xf32>
    %152 = vector.broadcast %151 : vector<1x8xf32> to vector<64x8xf32>
    %153 = arith.addf %149, %152 : vector<64x8xf32>
    %c0_136 = arith.constant 0 : index
    %c3_137 = arith.constant 3 : index
    %c0_138 = arith.constant 0 : index
    %c0_139 = arith.constant 0 : index
    %154 = vector.load %arg4[%c0_136, %c3_137, %c0_138, %c0_139] : memref<2x4x32x8xbf16, #tpu.memory_space<vmem>>, vector<1x1x32x8xbf16>
    %155 = vector.shape_cast %154 : vector<1x1x32x8xbf16> to vector<32x8xbf16>
    %cst_140 = arith.constant dense<0.000000e+00> : vector<64x8xf32>
    %156 = tpu.matmul %2, %155, %cst_140 {dimension_numbers = #tpu.dot_dimension_numbers<[1], [0], [0], [1], [0, 0, 1, 1], [], []>} : vector<64x32xbf16>, vector<32x8xbf16>, vector<64x8xf32> -> vector<64x8xf32>
    %c0_141 = arith.constant 0 : index
    %c3_142 = arith.constant 3 : index
    %c0_143 = arith.constant 0 : index
    %c0_144 = arith.constant 0 : index
    %157 = vector.load %arg7[%c0_141, %c3_142, %c0_143, %c0_144] : memref<2x4x1x8xf32, #tpu.memory_space<vmem>>, vector<1x1x1x8xf32>
    %158 = vector.shape_cast %157 : vector<1x1x1x8xf32> to vector<1x8xf32>
    %159 = vector.broadcast %158 : vector<1x8xf32> to vector<64x8xf32>
    %160 = arith.addf %156, %159 : vector<64x8xf32>
    %161 = arith.truncf %146 : vector<64x8xf32> to vector<64x8xbf16>
    %162 = arith.truncf %153 : vector<64x8xf32> to vector<64x8xbf16>
    %cst_145 = arith.constant dense<0.000000e+00> : vector<64x64xf32>
    %163 = tpu.matmul %161, %162, %cst_145 {dimension_numbers = #tpu.dot_dimension_numbers<[1], [1], [0], [0], [0, 0, 1, 0], [], []>} : vector<64x8xbf16>, vector<64x8xbf16>, vector<64x64xf32> -> vector<64x64xf32>
    %c0_146 = arith.constant 0 : index
    %c3_147 = arith.constant 3 : index
    %c0_148 = arith.constant 0 : index
    %c0_149 = arith.constant 0 : index
    %164 = vector.load %arg8[%c0_146, %c3_147, %c0_148, %c0_149] : memref<2x4x64x64xbf16, #tpu.memory_space<vmem>>, vector<1x1x64x64xbf16>
    %165 = vector.shape_cast %164 : vector<1x1x64x64xbf16> to vector<64x64xbf16>
    %166 = arith.extf %165 : vector<64x64xbf16> to vector<64x64xf32>
    %167 = arith.addf %163, %166 : vector<64x64xf32>
    %cst_150 = arith.constant dense<0xFF800000> : vector<64xf32>
    %168 = vector.multi_reduction <maximumf>, %167, %cst_150 [1] : vector<64x64xf32> to vector<64xf32>
    %169 = vector.shape_cast %168 : vector<64xf32> to vector<64x1xf32>
    %170 = vector.broadcast %169 : vector<64x1xf32> to vector<64x64xf32>
    %171 = arith.subf %167, %170 : vector<64x64xf32>
    %172 = math.exp %171 : vector<64x64xf32>
    %cst_151 = arith.constant dense<0.000000e+00> : vector<64xf32>
    %173 = vector.multi_reduction <add>, %172, %cst_151 [1] : vector<64x64xf32> to vector<64xf32>
    %174 = vector.shape_cast %173 : vector<64xf32> to vector<64x1xf32>
    %175 = tpu.reciprocal %174 {approx = true} : vector<64x1xf32> -> vector<64x1xf32>
    %176 = vector.broadcast %175 : vector<64x1xf32> to vector<64x64xf32>
    %177 = arith.mulf %172, %176 : vector<64x64xf32>
    %178 = arith.truncf %177 : vector<64x64xf32> to vector<64x64xbf16>
    %179 = arith.truncf %160 : vector<64x8xf32> to vector<64x8xbf16>
    %cst_152 = arith.constant dense<0.000000e+00> : vector<64x8xf32>
    %180 = tpu.matmul %178, %179, %cst_152 {dimension_numbers = #tpu.dot_dimension_numbers<[1], [0], [0], [1], [0, 0, 1, 1], [], []>} : vector<64x64xbf16>, vector<64x8xbf16>, vector<64x8xf32> -> vector<64x8xf32>
    %181 = arith.truncf %180 : vector<64x8xf32> to vector<64x8xbf16>
    %c0_153 = arith.constant 0 : index
    %c3_154 = arith.constant 3 : index
    %c0_155 = arith.constant 0 : index
    %c0_156 = arith.constant 0 : index
    %182 = vector.load %arg9[%c0_153, %c3_154, %c0_155, %c0_156] : memref<2x4x8x32xbf16, #tpu.memory_space<vmem>>, vector<1x1x8x32xbf16>
    %183 = vector.shape_cast %182 : vector<1x1x8x32xbf16> to vector<8x32xbf16>
    %cst_157 = arith.constant dense<0.000000e+00> : vector<64x32xf32>
    %184 = tpu.matmul %181, %183, %cst_157 {dimension_numbers = #tpu.dot_dimension_numbers<[1], [0], [0], [1], [0, 0, 1, 1], [], []>} : vector<64x8xbf16>, vector<8x32xbf16>, vector<64x32xf32> -> vector<64x32xf32>
    %185 = arith.addf %139, %184 : vector<64x32xf32>
    %c0_158 = arith.constant 0 : index
    %c0_159 = arith.constant 0 : index
    %c0_160 = arith.constant 0 : index
    %186 = vector.load %arg10[%c0_158, %c0_159, %c0_160] : memref<2x1x32xf32, #tpu.memory_space<vmem>>, vector<1x1x32xf32>
    %187 = vector.shape_cast %186 : vector<1x1x32xf32> to vector<1x32xf32>
    %188 = vector.broadcast %187 : vector<1x32xf32> to vector<64x32xf32>
    %189 = arith.addf %185, %188 : vector<64x32xf32>
    %190 = arith.truncf %189 : vector<64x32xf32> to vector<64x32xbf16>
    %c1_161 = arith.constant 1 : index
    %c0_162 = arith.constant 0 : index
    %c0_163 = arith.constant 0 : index
    %c0_164 = arith.constant 0 : index
    %191 = vector.load %arg2[%c1_161, %c0_162, %c0_163, %c0_164] : memref<2x4x32x8xbf16, #tpu.memory_space<vmem>>, vector<1x1x32x8xbf16>
    %192 = vector.shape_cast %191 : vector<1x1x32x8xbf16> to vector<32x8xbf16>
    %cst_165 = arith.constant dense<0.000000e+00> : vector<64x8xf32>
    %193 = tpu.matmul %190, %192, %cst_165 {dimension_numbers = #tpu.dot_dimension_numbers<[1], [0], [0], [1], [0, 0, 1, 1], [], []>} : vector<64x32xbf16>, vector<32x8xbf16>, vector<64x8xf32> -> vector<64x8xf32>
    %c1_166 = arith.constant 1 : index
    %c0_167 = arith.constant 0 : index
    %c0_168 = arith.constant 0 : index
    %c0_169 = arith.constant 0 : index
    %194 = vector.load %arg5[%c1_166, %c0_167, %c0_168, %c0_169] : memref<2x4x1x8xf32, #tpu.memory_space<vmem>>, vector<1x1x1x8xf32>
    %195 = vector.shape_cast %194 : vector<1x1x1x8xf32> to vector<1x8xf32>
    %196 = vector.broadcast %195 : vector<1x8xf32> to vector<64x8xf32>
    %197 = arith.addf %193, %196 : vector<64x8xf32>
    %c1_170 = arith.constant 1 : index
    %c0_171 = arith.constant 0 : index
    %c0_172 = arith.constant 0 : index
    %c0_173 = arith.constant 0 : index
    %198 = vector.load %arg3[%c1_170, %c0_171, %c0_172, %c0_173] : memref<2x4x32x8xbf16, #tpu.memory_space<vmem>>, vector<1x1x32x8xbf16>
    %199 = vector.shape_cast %198 : vector<1x1x32x8xbf16> to vector<32x8xbf16>
    %cst_174 = arith.constant dense<0.000000e+00> : vector<64x8xf32>
    %200 = tpu.matmul %190, %199, %cst_174 {dimension_numbers = #tpu.dot_dimension_numbers<[1], [0], [0], [1], [0, 0, 1, 1], [], []>} : vector<64x32xbf16>, vector<32x8xbf16>, vector<64x8xf32> -> vector<64x8xf32>
    %c1_175 = arith.constant 1 : index
    %c0_176 = arith.constant 0 : index
    %c0_177 = arith.constant 0 : index
    %c0_178 = arith.constant 0 : index
    %201 = vector.load %arg6[%c1_175, %c0_176, %c0_177, %c0_178] : memref<2x4x1x8xf32, #tpu.memory_space<vmem>>, vector<1x1x1x8xf32>
    %202 = vector.shape_cast %201 : vector<1x1x1x8xf32> to vector<1x8xf32>
    %203 = vector.broadcast %202 : vector<1x8xf32> to vector<64x8xf32>
    %204 = arith.addf %200, %203 : vector<64x8xf32>
    %c1_179 = arith.constant 1 : index
    %c0_180 = arith.constant 0 : index
    %c0_181 = arith.constant 0 : index
    %c0_182 = arith.constant 0 : index
    %205 = vector.load %arg4[%c1_179, %c0_180, %c0_181, %c0_182] : memref<2x4x32x8xbf16, #tpu.memory_space<vmem>>, vector<1x1x32x8xbf16>
    %206 = vector.shape_cast %205 : vector<1x1x32x8xbf16> to vector<32x8xbf16>
    %cst_183 = arith.constant dense<0.000000e+00> : vector<64x8xf32>
    %207 = tpu.matmul %190, %206, %cst_183 {dimension_numbers = #tpu.dot_dimension_numbers<[1], [0], [0], [1], [0, 0, 1, 1], [], []>} : vector<64x32xbf16>, vector<32x8xbf16>, vector<64x8xf32> -> vector<64x8xf32>
    %c1_184 = arith.constant 1 : index
    %c0_185 = arith.constant 0 : index
    %c0_186 = arith.constant 0 : index
    %c0_187 = arith.constant 0 : index
    %208 = vector.load %arg7[%c1_184, %c0_185, %c0_186, %c0_187] : memref<2x4x1x8xf32, #tpu.memory_space<vmem>>, vector<1x1x1x8xf32>
    %209 = vector.shape_cast %208 : vector<1x1x1x8xf32> to vector<1x8xf32>
    %210 = vector.broadcast %209 : vector<1x8xf32> to vector<64x8xf32>
    %211 = arith.addf %207, %210 : vector<64x8xf32>
    %212 = arith.truncf %197 : vector<64x8xf32> to vector<64x8xbf16>
    %213 = arith.truncf %204 : vector<64x8xf32> to vector<64x8xbf16>
    %cst_188 = arith.constant dense<0.000000e+00> : vector<64x64xf32>
    %214 = tpu.matmul %212, %213, %cst_188 {dimension_numbers = #tpu.dot_dimension_numbers<[1], [1], [0], [0], [0, 0, 1, 0], [], []>} : vector<64x8xbf16>, vector<64x8xbf16>, vector<64x64xf32> -> vector<64x64xf32>
    %c1_189 = arith.constant 1 : index
    %c0_190 = arith.constant 0 : index
    %c0_191 = arith.constant 0 : index
    %c0_192 = arith.constant 0 : index
    %215 = vector.load %arg8[%c1_189, %c0_190, %c0_191, %c0_192] : memref<2x4x64x64xbf16, #tpu.memory_space<vmem>>, vector<1x1x64x64xbf16>
    %216 = vector.shape_cast %215 : vector<1x1x64x64xbf16> to vector<64x64xbf16>
    %217 = arith.extf %216 : vector<64x64xbf16> to vector<64x64xf32>
    %218 = arith.addf %214, %217 : vector<64x64xf32>
    %cst_193 = arith.constant dense<0xFF800000> : vector<64xf32>
    %219 = vector.multi_reduction <maximumf>, %218, %cst_193 [1] : vector<64x64xf32> to vector<64xf32>
    %220 = vector.shape_cast %219 : vector<64xf32> to vector<64x1xf32>
    %221 = vector.broadcast %220 : vector<64x1xf32> to vector<64x64xf32>
    %222 = arith.subf %218, %221 : vector<64x64xf32>
    %223 = math.exp %222 : vector<64x64xf32>
    %cst_194 = arith.constant dense<0.000000e+00> : vector<64xf32>
    %224 = vector.multi_reduction <add>, %223, %cst_194 [1] : vector<64x64xf32> to vector<64xf32>
    %225 = vector.shape_cast %224 : vector<64xf32> to vector<64x1xf32>
    %226 = tpu.reciprocal %225 {approx = true} : vector<64x1xf32> -> vector<64x1xf32>
    %227 = vector.broadcast %226 : vector<64x1xf32> to vector<64x64xf32>
    %228 = arith.mulf %223, %227 : vector<64x64xf32>
    %229 = arith.truncf %228 : vector<64x64xf32> to vector<64x64xbf16>
    %230 = arith.truncf %211 : vector<64x8xf32> to vector<64x8xbf16>
    %cst_195 = arith.constant dense<0.000000e+00> : vector<64x8xf32>
    %231 = tpu.matmul %229, %230, %cst_195 {dimension_numbers = #tpu.dot_dimension_numbers<[1], [0], [0], [1], [0, 0, 1, 1], [], []>} : vector<64x64xbf16>, vector<64x8xbf16>, vector<64x8xf32> -> vector<64x8xf32>
    %232 = arith.truncf %231 : vector<64x8xf32> to vector<64x8xbf16>
    %c1_196 = arith.constant 1 : index
    %c0_197 = arith.constant 0 : index
    %c0_198 = arith.constant 0 : index
    %c0_199 = arith.constant 0 : index
    %233 = vector.load %arg9[%c1_196, %c0_197, %c0_198, %c0_199] : memref<2x4x8x32xbf16, #tpu.memory_space<vmem>>, vector<1x1x8x32xbf16>
    %234 = vector.shape_cast %233 : vector<1x1x8x32xbf16> to vector<8x32xbf16>
    %cst_200 = arith.constant dense<0.000000e+00> : vector<64x32xf32>
    %235 = tpu.matmul %232, %234, %cst_200 {dimension_numbers = #tpu.dot_dimension_numbers<[1], [0], [0], [1], [0, 0, 1, 1], [], []>} : vector<64x8xbf16>, vector<8x32xbf16>, vector<64x32xf32> -> vector<64x32xf32>
    %c1_201 = arith.constant 1 : index
    %c1_202 = arith.constant 1 : index
    %c0_203 = arith.constant 0 : index
    %c0_204 = arith.constant 0 : index
    %236 = vector.load %arg2[%c1_201, %c1_202, %c0_203, %c0_204] : memref<2x4x32x8xbf16, #tpu.memory_space<vmem>>, vector<1x1x32x8xbf16>
    %237 = vector.shape_cast %236 : vector<1x1x32x8xbf16> to vector<32x8xbf16>
    %cst_205 = arith.constant dense<0.000000e+00> : vector<64x8xf32>
    %238 = tpu.matmul %190, %237, %cst_205 {dimension_numbers = #tpu.dot_dimension_numbers<[1], [0], [0], [1], [0, 0, 1, 1], [], []>} : vector<64x32xbf16>, vector<32x8xbf16>, vector<64x8xf32> -> vector<64x8xf32>
    %c1_206 = arith.constant 1 : index
    %c1_207 = arith.constant 1 : index
    %c0_208 = arith.constant 0 : index
    %c0_209 = arith.constant 0 : index
    %239 = vector.load %arg5[%c1_206, %c1_207, %c0_208, %c0_209] : memref<2x4x1x8xf32, #tpu.memory_space<vmem>>, vector<1x1x1x8xf32>
    %240 = vector.shape_cast %239 : vector<1x1x1x8xf32> to vector<1x8xf32>
    %241 = vector.broadcast %240 : vector<1x8xf32> to vector<64x8xf32>
    %242 = arith.addf %238, %241 : vector<64x8xf32>
    %c1_210 = arith.constant 1 : index
    %c1_211 = arith.constant 1 : index
    %c0_212 = arith.constant 0 : index
    %c0_213 = arith.constant 0 : index
    %243 = vector.load %arg3[%c1_210, %c1_211, %c0_212, %c0_213] : memref<2x4x32x8xbf16, #tpu.memory_space<vmem>>, vector<1x1x32x8xbf16>
    %244 = vector.shape_cast %243 : vector<1x1x32x8xbf16> to vector<32x8xbf16>
    %cst_214 = arith.constant dense<0.000000e+00> : vector<64x8xf32>
    %245 = tpu.matmul %190, %244, %cst_214 {dimension_numbers = #tpu.dot_dimension_numbers<[1], [0], [0], [1], [0, 0, 1, 1], [], []>} : vector<64x32xbf16>, vector<32x8xbf16>, vector<64x8xf32> -> vector<64x8xf32>
    %c1_215 = arith.constant 1 : index
    %c1_216 = arith.constant 1 : index
    %c0_217 = arith.constant 0 : index
    %c0_218 = arith.constant 0 : index
    %246 = vector.load %arg6[%c1_215, %c1_216, %c0_217, %c0_218] : memref<2x4x1x8xf32, #tpu.memory_space<vmem>>, vector<1x1x1x8xf32>
    %247 = vector.shape_cast %246 : vector<1x1x1x8xf32> to vector<1x8xf32>
    %248 = vector.broadcast %247 : vector<1x8xf32> to vector<64x8xf32>
    %249 = arith.addf %245, %248 : vector<64x8xf32>
    %c1_219 = arith.constant 1 : index
    %c1_220 = arith.constant 1 : index
    %c0_221 = arith.constant 0 : index
    %c0_222 = arith.constant 0 : index
    %250 = vector.load %arg4[%c1_219, %c1_220, %c0_221, %c0_222] : memref<2x4x32x8xbf16, #tpu.memory_space<vmem>>, vector<1x1x32x8xbf16>
    %251 = vector.shape_cast %250 : vector<1x1x32x8xbf16> to vector<32x8xbf16>
    %cst_223 = arith.constant dense<0.000000e+00> : vector<64x8xf32>
    %252 = tpu.matmul %190, %251, %cst_223 {dimension_numbers = #tpu.dot_dimension_numbers<[1], [0], [0], [1], [0, 0, 1, 1], [], []>} : vector<64x32xbf16>, vector<32x8xbf16>, vector<64x8xf32> -> vector<64x8xf32>
    %c1_224 = arith.constant 1 : index
    %c1_225 = arith.constant 1 : index
    %c0_226 = arith.constant 0 : index
    %c0_227 = arith.constant 0 : index
    %253 = vector.load %arg7[%c1_224, %c1_225, %c0_226, %c0_227] : memref<2x4x1x8xf32, #tpu.memory_space<vmem>>, vector<1x1x1x8xf32>
    %254 = vector.shape_cast %253 : vector<1x1x1x8xf32> to vector<1x8xf32>
    %255 = vector.broadcast %254 : vector<1x8xf32> to vector<64x8xf32>
    %256 = arith.addf %252, %255 : vector<64x8xf32>
    %257 = arith.truncf %242 : vector<64x8xf32> to vector<64x8xbf16>
    %258 = arith.truncf %249 : vector<64x8xf32> to vector<64x8xbf16>
    %cst_228 = arith.constant dense<0.000000e+00> : vector<64x64xf32>
    %259 = tpu.matmul %257, %258, %cst_228 {dimension_numbers = #tpu.dot_dimension_numbers<[1], [1], [0], [0], [0, 0, 1, 0], [], []>} : vector<64x8xbf16>, vector<64x8xbf16>, vector<64x64xf32> -> vector<64x64xf32>
    %c1_229 = arith.constant 1 : index
    %c1_230 = arith.constant 1 : index
    %c0_231 = arith.constant 0 : index
    %c0_232 = arith.constant 0 : index
    %260 = vector.load %arg8[%c1_229, %c1_230, %c0_231, %c0_232] : memref<2x4x64x64xbf16, #tpu.memory_space<vmem>>, vector<1x1x64x64xbf16>
    %261 = vector.shape_cast %260 : vector<1x1x64x64xbf16> to vector<64x64xbf16>
    %262 = arith.extf %261 : vector<64x64xbf16> to vector<64x64xf32>
    %263 = arith.addf %259, %262 : vector<64x64xf32>
    %cst_233 = arith.constant dense<0xFF800000> : vector<64xf32>
    %264 = vector.multi_reduction <maximumf>, %263, %cst_233 [1] : vector<64x64xf32> to vector<64xf32>
    %265 = vector.shape_cast %264 : vector<64xf32> to vector<64x1xf32>
    %266 = vector.broadcast %265 : vector<64x1xf32> to vector<64x64xf32>
    %267 = arith.subf %263, %266 : vector<64x64xf32>
    %268 = math.exp %267 : vector<64x64xf32>
    %cst_234 = arith.constant dense<0.000000e+00> : vector<64xf32>
    %269 = vector.multi_reduction <add>, %268, %cst_234 [1] : vector<64x64xf32> to vector<64xf32>
    %270 = vector.shape_cast %269 : vector<64xf32> to vector<64x1xf32>
    %271 = tpu.reciprocal %270 {approx = true} : vector<64x1xf32> -> vector<64x1xf32>
    %272 = vector.broadcast %271 : vector<64x1xf32> to vector<64x64xf32>
    %273 = arith.mulf %268, %272 : vector<64x64xf32>
    %274 = arith.truncf %273 : vector<64x64xf32> to vector<64x64xbf16>
    %275 = arith.truncf %256 : vector<64x8xf32> to vector<64x8xbf16>
    %cst_235 = arith.constant dense<0.000000e+00> : vector<64x8xf32>
    %276 = tpu.matmul %274, %275, %cst_235 {dimension_numbers = #tpu.dot_dimension_numbers<[1], [0], [0], [1], [0, 0, 1, 1], [], []>} : vector<64x64xbf16>, vector<64x8xbf16>, vector<64x8xf32> -> vector<64x8xf32>
    %277 = arith.truncf %276 : vector<64x8xf32> to vector<64x8xbf16>
    %c1_236 = arith.constant 1 : index
    %c1_237 = arith.constant 1 : index
    %c0_238 = arith.constant 0 : index
    %c0_239 = arith.constant 0 : index
    %278 = vector.load %arg9[%c1_236, %c1_237, %c0_238, %c0_239] : memref<2x4x8x32xbf16, #tpu.memory_space<vmem>>, vector<1x1x8x32xbf16>
    %279 = vector.shape_cast %278 : vector<1x1x8x32xbf16> to vector<8x32xbf16>
    %cst_240 = arith.constant dense<0.000000e+00> : vector<64x32xf32>
    %280 = tpu.matmul %277, %279, %cst_240 {dimension_numbers = #tpu.dot_dimension_numbers<[1], [0], [0], [1], [0, 0, 1, 1], [], []>} : vector<64x8xbf16>, vector<8x32xbf16>, vector<64x32xf32> -> vector<64x32xf32>
    %281 = arith.addf %235, %280 : vector<64x32xf32>
    %c1_241 = arith.constant 1 : index
    %c2_242 = arith.constant 2 : index
    %c0_243 = arith.constant 0 : index
    %c0_244 = arith.constant 0 : index
    %282 = vector.load %arg2[%c1_241, %c2_242, %c0_243, %c0_244] : memref<2x4x32x8xbf16, #tpu.memory_space<vmem>>, vector<1x1x32x8xbf16>
    %283 = vector.shape_cast %282 : vector<1x1x32x8xbf16> to vector<32x8xbf16>
    %cst_245 = arith.constant dense<0.000000e+00> : vector<64x8xf32>
    %284 = tpu.matmul %190, %283, %cst_245 {dimension_numbers = #tpu.dot_dimension_numbers<[1], [0], [0], [1], [0, 0, 1, 1], [], []>} : vector<64x32xbf16>, vector<32x8xbf16>, vector<64x8xf32> -> vector<64x8xf32>
    %c1_246 = arith.constant 1 : index
    %c2_247 = arith.constant 2 : index
    %c0_248 = arith.constant 0 : index
    %c0_249 = arith.constant 0 : index
    %285 = vector.load %arg5[%c1_246, %c2_247, %c0_248, %c0_249] : memref<2x4x1x8xf32, #tpu.memory_space<vmem>>, vector<1x1x1x8xf32>
    %286 = vector.shape_cast %285 : vector<1x1x1x8xf32> to vector<1x8xf32>
    %287 = vector.broadcast %286 : vector<1x8xf32> to vector<64x8xf32>
    %288 = arith.addf %284, %287 : vector<64x8xf32>
    %c1_250 = arith.constant 1 : index
    %c2_251 = arith.constant 2 : index
    %c0_252 = arith.constant 0 : index
    %c0_253 = arith.constant 0 : index
    %289 = vector.load %arg3[%c1_250, %c2_251, %c0_252, %c0_253] : memref<2x4x32x8xbf16, #tpu.memory_space<vmem>>, vector<1x1x32x8xbf16>
    %290 = vector.shape_cast %289 : vector<1x1x32x8xbf16> to vector<32x8xbf16>
    %cst_254 = arith.constant dense<0.000000e+00> : vector<64x8xf32>
    %291 = tpu.matmul %190, %290, %cst_254 {dimension_numbers = #tpu.dot_dimension_numbers<[1], [0], [0], [1], [0, 0, 1, 1], [], []>} : vector<64x32xbf16>, vector<32x8xbf16>, vector<64x8xf32> -> vector<64x8xf32>
    %c1_255 = arith.constant 1 : index
    %c2_256 = arith.constant 2 : index
    %c0_257 = arith.constant 0 : index
    %c0_258 = arith.constant 0 : index
    %292 = vector.load %arg6[%c1_255, %c2_256, %c0_257, %c0_258] : memref<2x4x1x8xf32, #tpu.memory_space<vmem>>, vector<1x1x1x8xf32>
    %293 = vector.shape_cast %292 : vector<1x1x1x8xf32> to vector<1x8xf32>
    %294 = vector.broadcast %293 : vector<1x8xf32> to vector<64x8xf32>
    %295 = arith.addf %291, %294 : vector<64x8xf32>
    %c1_259 = arith.constant 1 : index
    %c2_260 = arith.constant 2 : index
    %c0_261 = arith.constant 0 : index
    %c0_262 = arith.constant 0 : index
    %296 = vector.load %arg4[%c1_259, %c2_260, %c0_261, %c0_262] : memref<2x4x32x8xbf16, #tpu.memory_space<vmem>>, vector<1x1x32x8xbf16>
    %297 = vector.shape_cast %296 : vector<1x1x32x8xbf16> to vector<32x8xbf16>
    %cst_263 = arith.constant dense<0.000000e+00> : vector<64x8xf32>
    %298 = tpu.matmul %190, %297, %cst_263 {dimension_numbers = #tpu.dot_dimension_numbers<[1], [0], [0], [1], [0, 0, 1, 1], [], []>} : vector<64x32xbf16>, vector<32x8xbf16>, vector<64x8xf32> -> vector<64x8xf32>
    %c1_264 = arith.constant 1 : index
    %c2_265 = arith.constant 2 : index
    %c0_266 = arith.constant 0 : index
    %c0_267 = arith.constant 0 : index
    %299 = vector.load %arg7[%c1_264, %c2_265, %c0_266, %c0_267] : memref<2x4x1x8xf32, #tpu.memory_space<vmem>>, vector<1x1x1x8xf32>
    %300 = vector.shape_cast %299 : vector<1x1x1x8xf32> to vector<1x8xf32>
    %301 = vector.broadcast %300 : vector<1x8xf32> to vector<64x8xf32>
    %302 = arith.addf %298, %301 : vector<64x8xf32>
    %303 = arith.truncf %288 : vector<64x8xf32> to vector<64x8xbf16>
    %304 = arith.truncf %295 : vector<64x8xf32> to vector<64x8xbf16>
    %cst_268 = arith.constant dense<0.000000e+00> : vector<64x64xf32>
    %305 = tpu.matmul %303, %304, %cst_268 {dimension_numbers = #tpu.dot_dimension_numbers<[1], [1], [0], [0], [0, 0, 1, 0], [], []>} : vector<64x8xbf16>, vector<64x8xbf16>, vector<64x64xf32> -> vector<64x64xf32>
    %c1_269 = arith.constant 1 : index
    %c2_270 = arith.constant 2 : index
    %c0_271 = arith.constant 0 : index
    %c0_272 = arith.constant 0 : index
    %306 = vector.load %arg8[%c1_269, %c2_270, %c0_271, %c0_272] : memref<2x4x64x64xbf16, #tpu.memory_space<vmem>>, vector<1x1x64x64xbf16>
    %307 = vector.shape_cast %306 : vector<1x1x64x64xbf16> to vector<64x64xbf16>
    %308 = arith.extf %307 : vector<64x64xbf16> to vector<64x64xf32>
    %309 = arith.addf %305, %308 : vector<64x64xf32>
    %cst_273 = arith.constant dense<0xFF800000> : vector<64xf32>
    %310 = vector.multi_reduction <maximumf>, %309, %cst_273 [1] : vector<64x64xf32> to vector<64xf32>
    %311 = vector.shape_cast %310 : vector<64xf32> to vector<64x1xf32>
    %312 = vector.broadcast %311 : vector<64x1xf32> to vector<64x64xf32>
    %313 = arith.subf %309, %312 : vector<64x64xf32>
    %314 = math.exp %313 : vector<64x64xf32>
    %cst_274 = arith.constant dense<0.000000e+00> : vector<64xf32>
    %315 = vector.multi_reduction <add>, %314, %cst_274 [1] : vector<64x64xf32> to vector<64xf32>
    %316 = vector.shape_cast %315 : vector<64xf32> to vector<64x1xf32>
    %317 = tpu.reciprocal %316 {approx = true} : vector<64x1xf32> -> vector<64x1xf32>
    %318 = vector.broadcast %317 : vector<64x1xf32> to vector<64x64xf32>
    %319 = arith.mulf %314, %318 : vector<64x64xf32>
    %320 = arith.truncf %319 : vector<64x64xf32> to vector<64x64xbf16>
    %321 = arith.truncf %302 : vector<64x8xf32> to vector<64x8xbf16>
    %cst_275 = arith.constant dense<0.000000e+00> : vector<64x8xf32>
    %322 = tpu.matmul %320, %321, %cst_275 {dimension_numbers = #tpu.dot_dimension_numbers<[1], [0], [0], [1], [0, 0, 1, 1], [], []>} : vector<64x64xbf16>, vector<64x8xbf16>, vector<64x8xf32> -> vector<64x8xf32>
    %323 = arith.truncf %322 : vector<64x8xf32> to vector<64x8xbf16>
    %c1_276 = arith.constant 1 : index
    %c2_277 = arith.constant 2 : index
    %c0_278 = arith.constant 0 : index
    %c0_279 = arith.constant 0 : index
    %324 = vector.load %arg9[%c1_276, %c2_277, %c0_278, %c0_279] : memref<2x4x8x32xbf16, #tpu.memory_space<vmem>>, vector<1x1x8x32xbf16>
    %325 = vector.shape_cast %324 : vector<1x1x8x32xbf16> to vector<8x32xbf16>
    %cst_280 = arith.constant dense<0.000000e+00> : vector<64x32xf32>
    %326 = tpu.matmul %323, %325, %cst_280 {dimension_numbers = #tpu.dot_dimension_numbers<[1], [0], [0], [1], [0, 0, 1, 1], [], []>} : vector<64x8xbf16>, vector<8x32xbf16>, vector<64x32xf32> -> vector<64x32xf32>
    %327 = arith.addf %281, %326 : vector<64x32xf32>
    %c1_281 = arith.constant 1 : index
    %c3_282 = arith.constant 3 : index
    %c0_283 = arith.constant 0 : index
    %c0_284 = arith.constant 0 : index
    %328 = vector.load %arg2[%c1_281, %c3_282, %c0_283, %c0_284] : memref<2x4x32x8xbf16, #tpu.memory_space<vmem>>, vector<1x1x32x8xbf16>
    %329 = vector.shape_cast %328 : vector<1x1x32x8xbf16> to vector<32x8xbf16>
    %cst_285 = arith.constant dense<0.000000e+00> : vector<64x8xf32>
    %330 = tpu.matmul %190, %329, %cst_285 {dimension_numbers = #tpu.dot_dimension_numbers<[1], [0], [0], [1], [0, 0, 1, 1], [], []>} : vector<64x32xbf16>, vector<32x8xbf16>, vector<64x8xf32> -> vector<64x8xf32>
    %c1_286 = arith.constant 1 : index
    %c3_287 = arith.constant 3 : index
    %c0_288 = arith.constant 0 : index
    %c0_289 = arith.constant 0 : index
    %331 = vector.load %arg5[%c1_286, %c3_287, %c0_288, %c0_289] : memref<2x4x1x8xf32, #tpu.memory_space<vmem>>, vector<1x1x1x8xf32>
    %332 = vector.shape_cast %331 : vector<1x1x1x8xf32> to vector<1x8xf32>
    %333 = vector.broadcast %332 : vector<1x8xf32> to vector<64x8xf32>
    %334 = arith.addf %330, %333 : vector<64x8xf32>
    %c1_290 = arith.constant 1 : index
    %c3_291 = arith.constant 3 : index
    %c0_292 = arith.constant 0 : index
    %c0_293 = arith.constant 0 : index
    %335 = vector.load %arg3[%c1_290, %c3_291, %c0_292, %c0_293] : memref<2x4x32x8xbf16, #tpu.memory_space<vmem>>, vector<1x1x32x8xbf16>
    %336 = vector.shape_cast %335 : vector<1x1x32x8xbf16> to vector<32x8xbf16>
    %cst_294 = arith.constant dense<0.000000e+00> : vector<64x8xf32>
    %337 = tpu.matmul %190, %336, %cst_294 {dimension_numbers = #tpu.dot_dimension_numbers<[1], [0], [0], [1], [0, 0, 1, 1], [], []>} : vector<64x32xbf16>, vector<32x8xbf16>, vector<64x8xf32> -> vector<64x8xf32>
    %c1_295 = arith.constant 1 : index
    %c3_296 = arith.constant 3 : index
    %c0_297 = arith.constant 0 : index
    %c0_298 = arith.constant 0 : index
    %338 = vector.load %arg6[%c1_295, %c3_296, %c0_297, %c0_298] : memref<2x4x1x8xf32, #tpu.memory_space<vmem>>, vector<1x1x1x8xf32>
    %339 = vector.shape_cast %338 : vector<1x1x1x8xf32> to vector<1x8xf32>
    %340 = vector.broadcast %339 : vector<1x8xf32> to vector<64x8xf32>
    %341 = arith.addf %337, %340 : vector<64x8xf32>
    %c1_299 = arith.constant 1 : index
    %c3_300 = arith.constant 3 : index
    %c0_301 = arith.constant 0 : index
    %c0_302 = arith.constant 0 : index
    %342 = vector.load %arg4[%c1_299, %c3_300, %c0_301, %c0_302] : memref<2x4x32x8xbf16, #tpu.memory_space<vmem>>, vector<1x1x32x8xbf16>
    %343 = vector.shape_cast %342 : vector<1x1x32x8xbf16> to vector<32x8xbf16>
    %cst_303 = arith.constant dense<0.000000e+00> : vector<64x8xf32>
    %344 = tpu.matmul %190, %343, %cst_303 {dimension_numbers = #tpu.dot_dimension_numbers<[1], [0], [0], [1], [0, 0, 1, 1], [], []>} : vector<64x32xbf16>, vector<32x8xbf16>, vector<64x8xf32> -> vector<64x8xf32>
    %c1_304 = arith.constant 1 : index
    %c3_305 = arith.constant 3 : index
    %c0_306 = arith.constant 0 : index
    %c0_307 = arith.constant 0 : index
    %345 = vector.load %arg7[%c1_304, %c3_305, %c0_306, %c0_307] : memref<2x4x1x8xf32, #tpu.memory_space<vmem>>, vector<1x1x1x8xf32>
    %346 = vector.shape_cast %345 : vector<1x1x1x8xf32> to vector<1x8xf32>
    %347 = vector.broadcast %346 : vector<1x8xf32> to vector<64x8xf32>
    %348 = arith.addf %344, %347 : vector<64x8xf32>
    %349 = arith.truncf %334 : vector<64x8xf32> to vector<64x8xbf16>
    %350 = arith.truncf %341 : vector<64x8xf32> to vector<64x8xbf16>
    %cst_308 = arith.constant dense<0.000000e+00> : vector<64x64xf32>
    %351 = tpu.matmul %349, %350, %cst_308 {dimension_numbers = #tpu.dot_dimension_numbers<[1], [1], [0], [0], [0, 0, 1, 0], [], []>} : vector<64x8xbf16>, vector<64x8xbf16>, vector<64x64xf32> -> vector<64x64xf32>
    %c1_309 = arith.constant 1 : index
    %c3_310 = arith.constant 3 : index
    %c0_311 = arith.constant 0 : index
    %c0_312 = arith.constant 0 : index
    %352 = vector.load %arg8[%c1_309, %c3_310, %c0_311, %c0_312] : memref<2x4x64x64xbf16, #tpu.memory_space<vmem>>, vector<1x1x64x64xbf16>
    %353 = vector.shape_cast %352 : vector<1x1x64x64xbf16> to vector<64x64xbf16>
    %354 = arith.extf %353 : vector<64x64xbf16> to vector<64x64xf32>
    %355 = arith.addf %351, %354 : vector<64x64xf32>
    %cst_313 = arith.constant dense<0xFF800000> : vector<64xf32>
    %356 = vector.multi_reduction <maximumf>, %355, %cst_313 [1] : vector<64x64xf32> to vector<64xf32>
    %357 = vector.shape_cast %356 : vector<64xf32> to vector<64x1xf32>
    %358 = vector.broadcast %357 : vector<64x1xf32> to vector<64x64xf32>
    %359 = arith.subf %355, %358 : vector<64x64xf32>
    %360 = math.exp %359 : vector<64x64xf32>
    %cst_314 = arith.constant dense<0.000000e+00> : vector<64xf32>
    %361 = vector.multi_reduction <add>, %360, %cst_314 [1] : vector<64x64xf32> to vector<64xf32>
    %362 = vector.shape_cast %361 : vector<64xf32> to vector<64x1xf32>
    %363 = tpu.reciprocal %362 {approx = true} : vector<64x1xf32> -> vector<64x1xf32>
    %364 = vector.broadcast %363 : vector<64x1xf32> to vector<64x64xf32>
    %365 = arith.mulf %360, %364 : vector<64x64xf32>
    %366 = arith.truncf %365 : vector<64x64xf32> to vector<64x64xbf16>
    %367 = arith.truncf %348 : vector<64x8xf32> to vector<64x8xbf16>
    %cst_315 = arith.constant dense<0.000000e+00> : vector<64x8xf32>
    %368 = tpu.matmul %366, %367, %cst_315 {dimension_numbers = #tpu.dot_dimension_numbers<[1], [0], [0], [1], [0, 0, 1, 1], [], []>} : vector<64x64xbf16>, vector<64x8xbf16>, vector<64x8xf32> -> vector<64x8xf32>
    %369 = arith.truncf %368 : vector<64x8xf32> to vector<64x8xbf16>
    %c1_316 = arith.constant 1 : index
    %c3_317 = arith.constant 3 : index
    %c0_318 = arith.constant 0 : index
    %c0_319 = arith.constant 0 : index
    %370 = vector.load %arg9[%c1_316, %c3_317, %c0_318, %c0_319] : memref<2x4x8x32xbf16, #tpu.memory_space<vmem>>, vector<1x1x8x32xbf16>
    %371 = vector.shape_cast %370 : vector<1x1x8x32xbf16> to vector<8x32xbf16>
    %cst_320 = arith.constant dense<0.000000e+00> : vector<64x32xf32>
    %372 = tpu.matmul %369, %371, %cst_320 {dimension_numbers = #tpu.dot_dimension_numbers<[1], [0], [0], [1], [0, 0, 1, 1], [], []>} : vector<64x8xbf16>, vector<8x32xbf16>, vector<64x32xf32> -> vector<64x32xf32>
    %373 = arith.addf %327, %372 : vector<64x32xf32>
    %c1_321 = arith.constant 1 : index
    %c0_322 = arith.constant 0 : index
    %c0_323 = arith.constant 0 : index
    %374 = vector.load %arg10[%c1_321, %c0_322, %c0_323] : memref<2x1x32xf32, #tpu.memory_space<vmem>>, vector<1x1x32xf32>
    %375 = vector.shape_cast %374 : vector<1x1x32xf32> to vector<1x32xf32>
    %376 = vector.broadcast %375 : vector<1x32xf32> to vector<64x32xf32>
    %377 = arith.addf %373, %376 : vector<64x32xf32>
    %cst_324 = arith.constant dense<0.000000e+00> : vector<64xf32>
    %378 = vector.multi_reduction <add>, %377, %cst_324 [1] : vector<64x32xf32> to vector<64xf32>
    %379 = vector.shape_cast %378 : vector<64xf32> to vector<64x1xf32>
    %cst_325 = arith.constant 3.200000e+01 : f32
    %380 = vector.broadcast %cst_325 : f32 to vector<64x1xf32>
    %381 = arith.divf %379, %380 : vector<64x1xf32>
    %382 = vector.broadcast %381 : vector<64x1xf32> to vector<64x32xf32>
    %383 = arith.subf %377, %382 : vector<64x32xf32>
    %384 = arith.mulf %383, %383 : vector<64x32xf32>
    %cst_326 = arith.constant dense<0.000000e+00> : vector<64xf32>
    %385 = vector.multi_reduction <add>, %384, %cst_326 [1] : vector<64x32xf32> to vector<64xf32>
    %386 = vector.shape_cast %385 : vector<64xf32> to vector<64x1xf32>
    %cst_327 = arith.constant 3.200000e+01 : f32
    %387 = vector.broadcast %cst_327 : f32 to vector<64x1xf32>
    %388 = arith.divf %386, %387 : vector<64x1xf32>
    %389 = vector.broadcast %381 : vector<64x1xf32> to vector<64x32xf32>
    %390 = arith.subf %377, %389 : vector<64x32xf32>
    %cst_328 = arith.constant 9.99999974E-6 : f32
    %391 = vector.broadcast %cst_328 : f32 to vector<64x1xf32>
    %392 = arith.addf %388, %391 : vector<64x1xf32>
    %393 = math.rsqrt %392 : vector<64x1xf32>
    %394 = vector.broadcast %393 : vector<64x1xf32> to vector<64x32xf32>
    %395 = arith.mulf %390, %394 : vector<64x32xf32>
    %c0_329 = arith.constant 0 : index
    %c0_330 = arith.constant 0 : index
    %396 = vector.load %arg11[%c0_329, %c0_330] : memref<1x32xf32, #tpu.memory_space<vmem>>, vector<1x32xf32>
    %397 = vector.broadcast %396 : vector<1x32xf32> to vector<64x32xf32>
    %398 = arith.mulf %395, %397 : vector<64x32xf32>
    %c0_331 = arith.constant 0 : index
    %c0_332 = arith.constant 0 : index
    %399 = vector.load %arg12[%c0_331, %c0_332] : memref<1x32xf32, #tpu.memory_space<vmem>>, vector<1x32xf32>
    %400 = vector.broadcast %399 : vector<1x32xf32> to vector<64x32xf32>
    %401 = arith.addf %398, %400 : vector<64x32xf32>
    %c0_333 = arith.constant 0 : index
    %c0_334 = arith.constant 0 : index
    %c0_335 = arith.constant 0 : index
    %402 = vector.load %arg13[%c0_333, %c0_334, %c0_335] : memref<1x64x32xf32, #tpu.memory_space<vmem>>, vector<1x64x32xf32>
    %403 = vector.shape_cast %402 : vector<1x64x32xf32> to vector<64x32xf32>
    %404 = vector.shape_cast %401 : vector<64x32xf32> to vector<1x64x32xf32>
    tpu.vector_store %arg13[%c0_333, %c0_334, %c0_335], %404 {strides = array<i32>} : memref<1x64x32xf32, #tpu.memory_space<vmem>>, vector<1x64x32xf32>,
    return
  }
  func.func @transform_0(%arg0: i32) -> (i32, i32, i32) {
    %c0_i32 = arith.constant 0 : i32
    %c0_i32_0 = arith.constant 0 : i32
    %c0_i32_1 = arith.constant 0 : i32
    return %arg0, %c0_i32, %c0_i32_0 : i32, i32, i32
  }
  func.func @transform_1(%arg0: i32) -> (i32, i32, i32, i32) {
    %c0_i32 = arith.constant 0 : i32
    %c0_i32_0 = arith.constant 0 : i32
    %c0_i32_1 = arith.constant 0 : i32
    %c0_i32_2 = arith.constant 0 : i32
    %c0_i32_3 = arith.constant 0 : i32
    return %c0_i32, %c0_i32_0, %c0_i32_1, %c0_i32_2 : i32, i32, i32, i32
  }
  func.func @transform_2(%arg0: i32) -> (i32, i32, i32, i32) {
    %c0_i32 = arith.constant 0 : i32
    %c0_i32_0 = arith.constant 0 : i32
    %c0_i32_1 = arith.constant 0 : i32
    %c0_i32_2 = arith.constant 0 : i32
    %c0_i32_3 = arith.constant 0 : i32
    return %c0_i32, %c0_i32_0, %c0_i32_1, %c0_i32_2 : i32, i32, i32, i32
  }
  func.func @transform_3(%arg0: i32) -> (i32, i32, i32, i32) {
    %c0_i32 = arith.constant 0 : i32
    %c0_i32_0 = arith.constant 0 : i32
    %c0_i32_1 = arith.constant 0 : i32
    %c0_i32_2 = arith.constant 0 : i32
    %c0_i32_3 = arith.constant 0 : i32
    return %c0_i32, %c0_i32_0, %c0_i32_1, %c0_i32_2 : i32, i32, i32, i32
  }
  func.func @transform_4(%arg0: i32) -> (i32, i32, i32, i32) {
    %c0_i32 = arith.constant 0 : i32
    %c0_i32_0 = arith.constant 0 : i32
    %c0_i32_1 = arith.constant 0 : i32
    %c0_i32_2 = arith.constant 0 : i32
    %c0_i32_3 = arith.constant 0 : i32
    return %c0_i32, %c0_i32_0, %c0_i32_1, %c0_i32_2 : i32, i32, i32, i32
  }
  func.func @transform_5(%arg0: i32) -> (i32, i32, i32, i32) {
    %c0_i32 = arith.constant 0 : i32
    %c0_i32_0 = arith.constant 0 : i32
    %c0_i32_1 = arith.constant 0 : i32
    %c0_i32_2 = arith.constant 0 : i32
    %c0_i32_3 = arith.constant 0 : i32
    return %c0_i32, %c0_i32_0, %c0_i32_1, %c0_i32_2 : i32, i32, i32, i32
  }
  func.func @transform_6(%arg0: i32) -> (i32, i32, i32, i32) {
    %c0_i32 = arith.constant 0 : i32
    %c0_i32_0 = arith.constant 0 : i32
    %c0_i32_1 = arith.constant 0 : i32
    %c0_i32_2 = arith.constant 0 : i32
    %c0_i32_3 = arith.constant 0 : i32
    return %c0_i32, %c0_i32_0, %c0_i32_1, %c0_i32_2 : i32, i32, i32, i32
  }
  func.func @transform_7(%arg0: i32) -> (i32, i32, i32, i32) {
    %c0_i32 = arith.constant 0 : i32
    %c0_i32_0 = arith.constant 0 : i32
    %c0_i32_1 = arith.constant 0 : i32
    %c0_i32_2 = arith.constant 0 : i32
    %c0_i32_3 = arith.constant 0 : i32
    return %c0_i32, %c0_i32_0, %c0_i32_1, %c0_i32_2 : i32, i32, i32, i32
  }
  func.func @transform_8(%arg0: i32) -> (i32, i32, i32, i32) {
    %c0_i32 = arith.constant 0 : i32
    %c0_i32_0 = arith.constant 0 : i32
    %c0_i32_1 = arith.constant 0 : i32
    %c0_i32_2 = arith.constant 0 : i32
    %c0_i32_3 = arith.constant 0 : i32
    return %c0_i32, %c0_i32_0, %c0_i32_1, %c0_i32_2 : i32, i32, i32, i32
  }
  func.func @transform_9(%arg0: i32) -> (i32, i32, i32) {
    %c0_i32 = arith.constant 0 : i32
    %c0_i32_0 = arith.constant 0 : i32
    %c0_i32_1 = arith.constant 0 : i32
    %c0_i32_2 = arith.constant 0 : i32
    return %c0_i32, %c0_i32_0, %c0_i32_1 : i32, i32, i32
  }
  func.func @transform_10(%arg0: i32) -> (i32, i32) {
    %c0_i32 = arith.constant 0 : i32
    %c0_i32_0 = arith.constant 0 : i32
    %c0_i32_1 = arith.constant 0 : i32
    return %c0_i32, %c0_i32_0 : i32, i32
  }
  func.func @transform_11(%arg0: i32) -> (i32, i32) {
    %c0_i32 = arith.constant 0 : i32
    %c0_i32_0 = arith.constant 0 : i32
    %c0_i32_1 = arith.constant 0 : i32
    return %c0_i32, %c0_i32_0 : i32, i32
  }
  func.func @transform_12(%arg0: i32) -> (i32, i32, i32) {
    %c0_i32 = arith.constant 0 : i32
    %c0_i32_0 = arith.constant 0 : i32
    %c0_i32_1 = arith.constant 0 : i32
    return %arg0, %c0_i32, %c0_i32_0 : i32, i32, i32
  }
}

</mosaic_0001>

<llo_original>
// kernel: attention_block.1
$region0: #{attention_block.1}
  #allocation0 [shape = 'u32[]', space=smem, size = 0x4, offset = 0x4, fixed_abs, tag = 'smem constant byte address 0x4 - core index']
  #allocation1 [shape = 'u32[144,128]{1,0:T(1,128)}', space=vmem, size = 0x12000, scoped, tag = 'internal scratch']
  %s0 = inlined_call_operand.vmem [shape: f32[2,64,32], index: 0, kind: input, shape index: {}]
  %s1 = inlined_call_operand.vmem [shape: bf16[2,4,32,8], index: 1, kind: input, shape index: {}]
  %s2 = inlined_call_operand.vmem [shape: bf16[2,4,32,8], index: 2, kind: input, shape index: {}]
  %s3 = inlined_call_operand.vmem [shape: bf16[2,4,32,8], index: 3, kind: input, shape index: {}]
  %s4 = inlined_call_operand.hbm [shape: f32[2,4,1,8], index: 4, kind: input, shape index: {}]
  %s5 = inlined_call_operand.hbm [shape: f32[2,4,1,8], index: 5, kind: input, shape index: {}]
  %s6 = inlined_call_operand.hbm [shape: f32[2,4,1,8], index: 6, kind: input, shape index: {}]
  %s7 = inlined_call_operand.vmem [shape: bf16[2,4,64,64], index: 7, kind: input, shape index: {}]
  %s8 = inlined_call_operand.vmem [shape: bf16[2,4,8,32], index: 8, kind: input, shape index: {}]
  %s9 = inlined_call_operand.vmem [shape: f32[2,1,32], index: 9, kind: input, shape index: {}]
  %s10 = inlined_call_operand.hbm [shape: f32[1,32], index: 10, kind: input, shape index: {}]
  %s11 = inlined_call_operand.hbm [shape: f32[1,32], index: 11, kind: input, shape index: {}]
  %s12 = inlined_call_operand.hbm [shape: f32[2,64,32], index: 12, kind: output, shape index: {}]
  %s13 = sld [smem:[#allocation0]]
  $region101: #{attention_block.1} parent=0
    _
  %s15 = ssub.s32 1, %s13
  %s16 = scalar_select 0, %s15, %s13
  $region1: #{attention_block.1} parent=0
    #allocation2 [shape = 'u8[4096]{0}', space=vmem, size = 0x1000, scoped, tag = 'input window, operand 4, single buffered']
    #allocation3 [shape = 's32[2]{0}', space=sflag, size = 0x8, scoped, tag = 'scoped memory for attention_block.1']
    #allocation4 [shape = 's32[2]{0}', space=sflag, size = 0x8, scoped, tag = 'scoped memory for attention_block.1']
    #allocation5 [shape = 'u8[4096]{0}', space=vmem, size = 0x1000, scoped, tag = 'input window, operand 5, single buffered']
    #allocation6 [shape = 's32[1]{0}', space=sflag, size = 0x4, scoped, tag = 'scoped memory for attention_block.1']
    #allocation7 [shape = 'u8[4096]{0}', space=vmem, size = 0x1000, scoped, tag = 'input window, operand 6, single buffered']
    #allocation8 [shape = 'u8[512]{0}', space=vmem, size = 0x400, scoped, tag = 'input window, operand 10, single buffered']
    #allocation9 [shape = 's32[1]{0}', space=sflag, size = 0x4, scoped, tag = 'scoped memory for attention_block.1']
    #allocation10 [shape = 'u8[512]{0}', space=vmem, size = 0x400, scoped, tag = 'input window, operand 11, single buffered']
    #allocation11 [shape = 'u8[65536]{0}', space=vmem, size = 0x10000, scoped, tag = 'output window, operand 0']
    %17 = vsyncpa [#allocation3], 0
    %18 = vsyncpa [#allocation6], 0
    %19 = vsyncpa [#allocation9], 0
    %20 = vsyncpa [#allocation4], 0
    %s21 = scalar_lea.sflag [#allocation4], 1
    %22 = vsyncpa %s21, 0
    loop: start=0, step=1, limit=4
    $region2: #{attention_block.1} parent=1 // loop_pre_header
      _
    $region3: #{attention_block.1} parent=1 // loop_header
      %s24 = sphi 0, %s28
      %p25 = scmp.ge.s32.totalorder %s24, 4
      %s34 = sphi 0, %s36
      %s37 = sphi 0, %s34
      %s38 = sphi 0, %s37
      %s54 = sphi 0, %s38
      %s58 = sphi 0, %s58
      %s60 = sphi 0, %s58
      %s61 = sphi 0, %s60
      %s75 = sphi 0, %s61
      %s79 = sphi 0, %s79
      %s81 = sphi 0, %s79
      %s82 = sphi 0, %s81
      %s96 = sphi 0, %s82
      %s100 = sphi 0, %s100
      %s102 = sphi 0, %s100
      %s103 = sphi 0, %s102
      %s117 = sphi 0, %s103
      %s121 = sphi 0, %s121
      %s123 = sphi 0, %s121
      %s124 = sphi 0, %s123
      %s138 = sphi 0, %s124
      %s142 = sphi 0, %s142
      %s144 = sphi 0, %s142
      %s145 = sphi 0, %s144
      %s159 = sphi 0, %s145
      %s163 = sphi 0, %s163
      %s165 = sphi 0, %s163
      %s166 = sphi 0, %s165
      %s180 = sphi 0, %s166
      %s184 = sphi 0, %s184
      %s186 = sphi 0, %s184
      %s187 = sphi 0, %s186
      %s201 = sphi 0, %s187
      %s205 = sphi 0, %s205
      %s207 = sphi 0, %s205
      %s208 = sphi 0, %s207
      %s222 = sphi 0, %s208
      %s226 = sphi 0, %s226
      %s228 = sphi 0, %s226
      %s229 = sphi 0, %s228
      %s243 = sphi 0, %s229
      %s247 = sphi 0, %s247
      %s249 = sphi 0, %s247
      %s250 = sphi 0, %s249
      %s264 = sphi 0, %s250
      %s268 = sphi 0, %s268
      %s270 = sphi 0, %s268
      %s271 = sphi 0, %s270
      %s285 = sphi 0, %s271
      %s291 = sphi 0, %s293
      %s294 = sphi 0, %s291
      %s295 = sphi 0, %s294
      %s311 = sphi 0, %s295
    $region4: #{attention_block.1} parent=1 // loop_header_branch
      %27 = sbr.rel (%p25) target = $region8
    $region5: #{attention_block.1} parent=1 // loop_body
      %s29 = ssub.s32 %s24, 1
      %s30 = ssub.s32 %s24, 2
      %s31 = sadd.s32 %s24, 1
      %s32 = ssub.s32 %s24, %s31
      %p33 = scmp.eq.s32.totalorder %s32, 0
      %s35 = sadd.s32 %s34, 1
      %s36 = scalar_select %p33, %s34, %s35
      %p39 = pneg %p33
      %p40 = scmp.eq.s32.totalorder %s24, 1
      %p41 = por %p39, %p40
      %p42 = scmp.ne.s32.totalorder %s34, %s37
      %p43 = scmp.eq.s32.totalorder %s24, 0
      %p44 = por %p42, %p43
      %p45 = scmp.ne.s32.totalorder %s34, %s37
      %p46 = scmp.eq.s32.totalorder %s29, 1
      %p47 = por %p45, %p46
      %p48 = scmp.ne.s32.totalorder %s37, %s38
      %p49 = scmp.eq.s32.totalorder %s29, 0
      %p50 = por %p48, %p49
      %p51 = scmp.ne.s32.totalorder %s37, %s38
      %p52 = scmp.eq.s32.totalorder %s30, 1
      %p53 = por %p51, %p52
      %p55 = scmp.ne.s32.totalorder %s38, %s54
      %p56 = scmp.eq.s32.totalorder %s30, 0
      %p57 = por %p55, %p56
      %s59 = sadd.s32 %s58, 1
      %p62 = scmp.eq.s32.totalorder %s24, 1
      %p63 = scmp.ne.s32.totalorder %s58, %s60
      %p64 = scmp.eq.s32.totalorder %s24, 0
      %p65 = por %p63, %p64
      %p66 = scmp.ne.s32.totalorder %s58, %s60
      %p67 = scmp.eq.s32.totalorder %s29, 1
      %p68 = por %p66, %p67
      %p69 = scmp.ne.s32.totalorder %s60, %s61
      %p70 = scmp.eq.s32.totalorder %s29, 0
      %p71 = por %p69, %p70
      %p72 = scmp.ne.s32.totalorder %s60, %s61
      %p73 = scmp.eq.s32.totalorder %s30, 1
      %p74 = por %p72, %p73
      %p76 = scmp.ne.s32.totalorder %s61, %s75
      %p77 = scmp.eq.s32.totalorder %s30, 0
      %p78 = por %p76, %p77
      %s80 = sadd.s32 %s79, 1
      %p83 = scmp.eq.s32.totalorder %s24, 1
      %p84 = scmp.ne.s32.totalorder %s79, %s81
      %p85 = scmp.eq.s32.totalorder %s24, 0
      %p86 = por %p84, %p85
      %p87 = scmp.ne.s32.totalorder %s79, %s81
      %p88 = scmp.eq.s32.totalorder %s29, 1
      %p89 = por %p87, %p88
      %p90 = scmp.ne.s32.totalorder %s81, %s82
      %p91 = scmp.eq.s32.totalorder %s29, 0
      %p92 = por %p90, %p91
      %p93 = scmp.ne.s32.totalorder %s81, %s82
      %p94 = scmp.eq.s32.totalorder %s30, 1
      %p95 = por %p93, %p94
      %p97 = scmp.ne.s32.totalorder %s82, %s96
      %p98 = scmp.eq.s32.totalorder %s30, 0
      %p99 = por %p97, %p98
      %s101 = sadd.s32 %s100, 1
      %p104 = scmp.eq.s32.totalorder %s24, 1
      %p105 = scmp.ne.s32.totalorder %s100, %s102
      %p106 = scmp.eq.s32.totalorder %s24, 0
      %p107 = por %p105, %p106
      %p108 = scmp.ne.s32.totalorder %s100, %s102
      %p109 = scmp.eq.s32.totalorder %s29, 1
      %p110 = por %p108, %p109
      %p111 = scmp.ne.s32.totalorder %s102, %s103
      %p112 = scmp.eq.s32.totalorder %s29, 0
      %p113 = por %p111, %p112
      %p114 = scmp.ne.s32.totalorder %s102, %s103
      %p115 = scmp.eq.s32.totalorder %s30, 1
      %p116 = por %p114, %p115
      %p118 = scmp.ne.s32.totalorder %s103, %s117
      %p119 = scmp.eq.s32.totalorder %s30, 0
      %p120 = por %p118, %p119
      %s122 = sadd.s32 %s121, 1
      %p125 = scmp.eq.s32.totalorder %s24, 1
      %p126 = scmp.ne.s32.totalorder %s121, %s123
      %p127 = scmp.eq.s32.totalorder %s24, 0
      %p128 = por %p126, %p127
      %p129 = scmp.ne.s32.totalorder %s121, %s123
      %p130 = scmp.eq.s32.totalorder %s29, 1
      %p131 = por %p129, %p130
      %p132 = scmp.ne.s32.totalorder %s123, %s124
      %p133 = scmp.eq.s32.totalorder %s29, 0
      %p134 = por %p132, %p133
      %p135 = scmp.ne.s32.totalorder %s123, %s124
      %p136 = scmp.eq.s32.totalorder %s30, 1
      %p137 = por %p135, %p136
      %p139 = scmp.ne.s32.totalorder %s124, %s138
      %p140 = scmp.eq.s32.totalorder %s30, 0
      %p141 = por %p139, %p140
      %s143 = sadd.s32 %s142, 1
      %p146 = scmp.eq.s32.totalorder %s24, 1
      %p147 = scmp.ne.s32.totalorder %s142, %s144
      %p148 = scmp.eq.s32.totalorder %s24, 0
      %p149 = por %p147, %p148
      %p150 = scmp.ne.s32.totalorder %s142, %s144
      %p151 = scmp.eq.s32.totalorder %s29, 1
      %p152 = por %p150, %p151
      %p153 = scmp.ne.s32.totalorder %s144, %s145
      %p154 = scmp.eq.s32.totalorder %s29, 0
      %p155 = por %p153, %p154
      %p156 = scmp.ne.s32.totalorder %s144, %s145
      %p157 = scmp.eq.s32.totalorder %s30, 1
      %p158 = por %p156, %p157
      %p160 = scmp.ne.s32.totalorder %s145, %s159
      %p161 = scmp.eq.s32.totalorder %s30, 0
      %p162 = por %p160, %p161
      %s164 = sadd.s32 %s163, 1
      %p167 = scmp.eq.s32.totalorder %s24, 1
      %p168 = scmp.ne.s32.totalorder %s163, %s165
      %p169 = scmp.eq.s32.totalorder %s24, 0
      %p170 = por %p168, %p169
      %p171 = scmp.ne.s32.totalorder %s163, %s165
      %p172 = scmp.eq.s32.totalorder %s29, 1
      %p173 = por %p171, %p172
      %p174 = scmp.ne.s32.totalorder %s165, %s166
      %p175 = scmp.eq.s32.totalorder %s29, 0
      %p176 = por %p174, %p175
      %p177 = scmp.ne.s32.totalorder %s165, %s166
      %p178 = scmp.eq.s32.totalorder %s30, 1
      %p179 = por %p177, %p178
      %p181 = scmp.ne.s32.totalorder %s166, %s180
      %p182 = scmp.eq.s32.totalorder %s30, 0
      %p183 = por %p181, %p182
      %s185 = sadd.s32 %s184, 1
      %p188 = scmp.eq.s32.totalorder %s24, 1
      %p189 = scmp.ne.s32.totalorder %s184, %s186
      %p190 = scmp.eq.s32.totalorder %s24, 0
      %p191 = por %p189, %p190
      %p192 = scmp.ne.s32.totalorder %s184, %s186
      %p193 = scmp.eq.s32.totalorder %s29, 1
      %p194 = por %p192, %p193
      %p195 = scmp.ne.s32.totalorder %s186, %s187
      %p196 = scmp.eq.s32.totalorder %s29, 0
      %p197 = por %p195, %p196
      %p198 = scmp.ne.s32.totalorder %s186, %s187
      %p199 = scmp.eq.s32.totalorder %s30, 1
      %p200 = por %p198, %p199
      %p202 = scmp.ne.s32.totalorder %s187, %s201
      %p203 = scmp.eq.s32.totalorder %s30, 0
      %p204 = por %p202, %p203
      %s206 = sadd.s32 %s205, 1
      %p209 = scmp.eq.s32.totalorder %s24, 1
      %p210 = scmp.ne.s32.totalorder %s205, %s207
      %p211 = scmp.eq.s32.totalorder %s24, 0
      %p212 = por %p210, %p211
      %p213 = scmp.ne.s32.totalorder %s205, %s207
      %p214 = scmp.eq.s32.totalorder %s29, 1
      %p215 = por %p213, %p214
      %p216 = scmp.ne.s32.totalorder %s207, %s208
      %p217 = scmp.eq.s32.totalorder %s29, 0
      %p218 = por %p216, %p217
      %p219 = scmp.ne.s32.totalorder %s207, %s208
      %p220 = scmp.eq.s32.totalorder %s30, 1
      %p221 = por %p219, %p220
      %p223 = scmp.ne.s32.totalorder %s208, %s222
      %p224 = scmp.eq.s32.totalorder %s30, 0
      %p225 = por %p223, %p224
      %s227 = sadd.s32 %s226, 1
      %p230 = scmp.eq.s32.totalorder %s24, 1
      %p231 = scmp.ne.s32.totalorder %s226, %s228
      %p232 = scmp.eq.s32.totalorder %s24, 0
      %p233 = por %p231, %p232
      %p234 = scmp.ne.s32.totalorder %s226, %s228
      %p235 = scmp.eq.s32.totalorder %s29, 1
      %p236 = por %p234, %p235
      %p237 = scmp.ne.s32.totalorder %s228, %s229
      %p238 = scmp.eq.s32.totalorder %s29, 0
      %p239 = por %p237, %p238
      %p240 = scmp.ne.s32.totalorder %s228, %s229
      %p241 = scmp.eq.s32.totalorder %s30, 1
      %p242 = por %p240, %p241
      %p244 = scmp.ne.s32.totalorder %s229, %s243
      %p245 = scmp.eq.s32.totalorder %s30, 0
      %p246 = por %p244, %p245
      %s248 = sadd.s32 %s247, 1
      %p251 = scmp.eq.s32.totalorder %s24, 1
      %p252 = scmp.ne.s32.totalorder %s247, %s249
      %p253 = scmp.eq.s32.totalorder %s24, 0
      %p254 = por %p252, %p253
      %p255 = scmp.ne.s32.totalorder %s247, %s249
      %p256 = scmp.eq.s32.totalorder %s29, 1
      %p257 = por %p255, %p256
      %p258 = scmp.ne.s32.totalorder %s249, %s250
      %p259 = scmp.eq.s32.totalorder %s29, 0
      %p260 = por %p258, %p259
      %p261 = scmp.ne.s32.totalorder %s249, %s250
      %p262 = scmp.eq.s32.totalorder %s30, 1
      %p263 = por %p261, %p262
      %p265 = scmp.ne.s32.totalorder %s250, %s264
      %p266 = scmp.eq.s32.totalorder %s30, 0
      %p267 = por %p265, %p266
      %s269 = sadd.s32 %s268, 1
      %p272 = scmp.eq.s32.totalorder %s24, 1
      %p273 = scmp.ne.s32.totalorder %s268, %s270
      %p274 = scmp.eq.s32.totalorder %s24, 0
      %p275 = por %p273, %p274
      %p276 = scmp.ne.s32.totalorder %s268, %s270
      %p277 = scmp.eq.s32.totalorder %s29, 1
      %p278 = por %p276, %p277
      %p279 = scmp.ne.s32.totalorder %s270, %s271
      %p280 = scmp.eq.s32.totalorder %s29, 0
      %p281 = por %p279, %p280
      %p282 = scmp.ne.s32.totalorder %s270, %s271
      %p283 = scmp.eq.s32.totalorder %s30, 1
      %p284 = por %p282, %p283
      %p286 = scmp.ne.s32.totalorder %s271, %s285
      %p287 = scmp.eq.s32.totalorder %s30, 0
      %p288 = por %p286, %p287
      %s289 = ssub.s32 %s24, %s31
      %p290 = scmp.eq.s32.totalorder %s289, 0
      %s292 = sadd.s32 %s291, 1
      %s293 = scalar_select %p290, %s291, %s292
      %p296 = pneg %p290
      %p297 = scmp.eq.s32.totalorder %s24, 1
      %p298 = por %p296, %p297
      %p299 = scmp.ne.s32.totalorder %s291, %s294
      %p300 = scmp.eq.s32.totalorder %s24, 0
      %p301 = por %p299, %p300
      %p302 = scmp.ne.s32.totalorder %s291, %s294
      %p303 = scmp.eq.s32.totalorder %s29, 1
      %p304 = por %p302, %p303
      %p305 = scmp.ne.s32.totalorder %s294, %s295
      %p306 = scmp.eq.s32.totalorder %s29, 0
      %p307 = por %p305, %p306
      %p308 = scmp.ne.s32.totalorder %s294, %s295
      %p309 = scmp.eq.s32.totalorder %s30, 1
      %p310 = por %p308, %p309
      %p312 = scmp.ne.s32.totalorder %s295, %s311
      %p313 = scmp.eq.s32.totalorder %s30, 0
      %p314 = por %p312, %p313
      %p315 = scmp.le.s32.totalorder 1, %s24
      %p316 = scmp.lt.s32.totalorder %s24, 3
      %p317 = pnand %p315, %p316
      %p318 = pneg %p317
      // Predicated region
      $region9: #{attention_block.1} parent=5 // pred_check
        _
      $region10: #{attention_block.1} parent=5 // pred_check_branch
        %320 = sbr.rel (%p317) target = $region12
      $region11: #{attention_block.1} parent=5 // pred_region
        %s321 = ssub.s32 %s24, 1
        // Predicated region
        $region13: #{attention_block.1} parent=11 // pred_check
          %p322 = pneg %p71
        $region14: #{attention_block.1} parent=11 // pred_check_branch
          %324 = sbr.rel (%p322) target = $region16
        $region15: #{attention_block.1} parent=11 // pred_region
          _
        $region16: #{attention_block.1} parent=11 // pred_fallthru
          _
        // Predicated region
        $region17: #{attention_block.1} parent=11 // pred_check
          %p325 = pneg %p92
        $region18: #{attention_block.1} parent=11 // pred_check_branch
          %327 = sbr.rel (%p325) target = $region20
        $region19: #{attention_block.1} parent=11 // pred_region
          _
        $region20: #{attention_block.1} parent=11 // pred_fallthru
          _
        // Predicated region
        $region21: #{attention_block.1} parent=11 // pred_check
          %p328 = pneg %p113
        $region22: #{attention_block.1} parent=11 // pred_check_branch
          %330 = sbr.rel (%p328) target = $region24
        $region23: #{attention_block.1} parent=11 // pred_region
          _
        $region24: #{attention_block.1} parent=11 // pred_fallthru
          _
        // Predicated region
        $region25: #{attention_block.1} parent=11 // pred_check
          %p331 = pneg %p134
        $region26: #{attention_block.1} parent=11 // pred_check_branch
          %333 = sbr.rel (%p331) target = $region28
        $region27: #{attention_block.1} parent=11 // pred_region
          %s335 = ssub.s32 128, 128
          %336 = vsyncadd [#allocation3], %s335
          %s337 = sshll.u32 [#allocation2], 4
          %s338 = int_to_ptr.vmem [resolvable:$true] %s337
          %343 = dma.hbm_to_vmem [thread:$0]  %s4, 128, %s338, [#allocation3], 16, 16, 1
        $region28: #{attention_block.1} parent=11 // pred_fallthru
          _
        // Predicated region
        $region29: #{attention_block.1} parent=11 // pred_check
          %p344 = pneg %p155
        $region30: #{attention_block.1} parent=11 // pred_check_branch
          %346 = sbr.rel (%p344) target = $region32
        $region31: #{attention_block.1} parent=11 // pred_region
          %s348 = ssub.s32 128, 128
          %349 = vsyncadd [#allocation6], %s348
          %s350 = sshll.u32 [#allocation5], 4
          %s351 = int_to_ptr.vmem [resolvable:$true] %s350
          %356 = dma.hbm_to_vmem [thread:$0]  %s5, 128, %s351, [#allocation6], 16, 16, 1
        $region32: #{attention_block.1} parent=11 // pred_fallthru
          _
        // Predicated region
        $region33: #{attention_block.1} parent=11 // pred_check
          %p357 = pneg %p176
        $region34: #{attention_block.1} parent=11 // pred_check_branch
          %359 = sbr.rel (%p357) target = $region36
        $region35: #{attention_block.1} parent=11 // pred_region
          %s361 = ssub.s32 128, 128
          %362 = vsyncadd [#allocation6], %s361
          %s363 = sshll.u32 [#allocation7], 4
          %s364 = int_to_ptr.vmem [resolvable:$true] %s363
          %369 = dma.hbm_to_vmem [thread:$0]  %s6, 128, %s364, [#allocation6], 16, 16, 1
        $region36: #{attention_block.1} parent=11 // pred_fallthru
          _
        // Predicated region
        $region37: #{attention_block.1} parent=11 // pred_check
          %p370 = pneg %p197
        $region38: #{attention_block.1} parent=11 // pred_check_branch
          %372 = sbr.rel (%p370) target = $region40
        $region39: #{attention_block.1} parent=11 // pred_region
          _
        $region40: #{attention_block.1} parent=11 // pred_fallthru
          _
        // Predicated region
        $region41: #{attention_block.1} parent=11 // pred_check
          %p373 = pneg %p218
        $region42: #{attention_block.1} parent=11 // pred_check_branch
          %375 = sbr.rel (%p373) target = $region44
        $region43: #{attention_block.1} parent=11 // pred_region
          _
        $region44: #{attention_block.1} parent=11 // pred_fallthru
          _
        // Predicated region
        $region45: #{attention_block.1} parent=11 // pred_check
          %p376 = pneg %p239
        $region46: #{attention_block.1} parent=11 // pred_check_branch
          %378 = sbr.rel (%p376) target = $region48
        $region47: #{attention_block.1} parent=11 // pred_region
          _
        $region48: #{attention_block.1} parent=11 // pred_fallthru
          _
        // Predicated region
        $region49: #{attention_block.1} parent=11 // pred_check
          %p379 = pneg %p260
        $region50: #{attention_block.1} parent=11 // pred_check_branch
          %381 = sbr.rel (%p379) target = $region52
        $region51: #{attention_block.1} parent=11 // pred_region
          %s383 = ssub.s32 16, 16
          %384 = vsyncadd [#allocation9], %s383
          %s386 = sshll.u32 [#allocation8], 4
          %s387 = int_to_ptr.vmem [resolvable:$true] %s386
          %389 = dma.hbm_to_vmem [thread:$0]  %s10, 16, %s387, [#allocation9]
        $region52: #{attention_block.1} parent=11 // pred_fallthru
          _
        // Predicated region
        $region53: #{attention_block.1} parent=11 // pred_check
          %p390 = pneg %p281
        $region54: #{attention_block.1} parent=11 // pred_check_branch
          %392 = sbr.rel (%p390) target = $region56
        $region55: #{attention_block.1} parent=11 // pred_region
          %s394 = ssub.s32 16, 16
          %395 = vsyncadd [#allocation9], %s394
          %s397 = sshll.u32 [#allocation10], 4
          %s398 = int_to_ptr.vmem [resolvable:$true] %s397
          %400 = dma.hbm_to_vmem [thread:$0]  %s11, 16, %s398, [#allocation9]
        $region56: #{attention_block.1} parent=11 // pred_fallthru
          _
      $region12: #{attention_block.1} parent=5 // pred_fallthru
        _
      %p401 = scmp.lt.s32.totalorder %s24, 2
      // Predicated region
      $region57: #{attention_block.1} parent=5 // pred_check
        %p402 = pneg %p401
      $region58: #{attention_block.1} parent=5 // pred_check_branch
        %404 = sbr.rel (%p402) target = $region60
      $region59: #{attention_block.1} parent=5 // pred_region
        // Predicated region
        $region61: #{attention_block.1} parent=59 // pred_check
          %p405 = pneg %p44
        $region62: #{attention_block.1} parent=59 // pred_check_branch
          %407 = sbr.rel (%p405) target = $region64
        $region63: #{attention_block.1} parent=59 // pred_region
          %p408 = scmp.lt.s32.totalorder %s24, 1
          %s409 = scalar_select %p408, %s24, 1
          %s410 = smul.addr %s409, 8
          %s411 = smul.addr %s410, 8
          %s412 = scalar_lea.vmem %s0, %s411
        $region64: #{attention_block.1} parent=59 // pred_fallthru
          _
      $region60: #{attention_block.1} parent=5 // pred_fallthru
        _
      %p413 = scmp.le.s32.totalorder 1, %s24
      %p414 = scmp.lt.s32.totalorder %s24, 3
      %p415 = pnand %p413, %p414
      %p416 = pneg %p415
      // Predicated region
      $region65: #{attention_block.1} parent=5 // pred_check
        _
      $region66: #{attention_block.1} parent=5 // pred_check_branch
        %418 = sbr.rel (%p415) target = $region68
      $region67: #{attention_block.1} parent=5 // pred_region
        %s419 = ssub.s32 %s24, 1
        // Predicated region
        $region69: #{attention_block.1} parent=67 // pred_check
          %p420 = pneg %p134
        $region70: #{attention_block.1} parent=67 // pred_check_branch
          %422 = sbr.rel (%p420) target = $region72
        $region71: #{attention_block.1} parent=67 // pred_region
          %423 = dma.done [#allocation3], 128
        $region72: #{attention_block.1} parent=67 // pred_fallthru
          _
        // Predicated region
        $region73: #{attention_block.1} parent=67 // pred_check
          %p424 = pneg %p155
        $region74: #{attention_block.1} parent=67 // pred_check_branch
          %426 = sbr.rel (%p424) target = $region76
        $region75: #{attention_block.1} parent=67 // pred_region
          %427 = dma.done [#allocation6], 128
        $region76: #{attention_block.1} parent=67 // pred_fallthru
          _
        // Predicated region
        $region77: #{attention_block.1} parent=67 // pred_check
          %p428 = pneg %p176
        $region78: #{attention_block.1} parent=67 // pred_check_branch
          %430 = sbr.rel (%p428) target = $region80
        $region79: #{attention_block.1} parent=67 // pred_region
          %431 = dma.done [#allocation6], 128
        $region80: #{attention_block.1} parent=67 // pred_fallthru
          _
        // Predicated region
        $region81: #{attention_block.1} parent=67 // pred_check
          %p432 = pneg %p260
        $region82: #{attention_block.1} parent=67 // pred_check_branch
          %434 = sbr.rel (%p432) target = $region84
        $region83: #{attention_block.1} parent=67 // pred_region
          %435 = dma.done [#allocation9], 16
        $region84: #{attention_block.1} parent=67 // pred_fallthru
          _
        // Predicated region
        $region85: #{attention_block.1} parent=67 // pred_check
          %p436 = pneg %p281
        $region86: #{attention_block.1} parent=67 // pred_check_branch
          %438 = sbr.rel (%p436) target = $region88
        $region87: #{attention_block.1} parent=67 // pred_region
          %439 = dma.done [#allocation9], 16
        $region88: #{attention_block.1} parent=67 // pred_fallthru
          _
        %p440 = scmp.lt.s32.totalorder %s29, 1
        %s441 = scalar_select %p440, %s29, 1
        %s442 = smul.addr %s441, 8
        %s443 = smul.addr %s442, 8
        %s444 = scalar_lea.vmem %s0, %s443
        %p445 = pneg %p50
        %p446 = pneg %p47
        %p447 = pneg %p71
        %p448 = pneg %p68
        %p449 = pneg %p92
        %p450 = pneg %p89
        %p451 = pneg %p113
        %p452 = pneg %p110
        %p453 = pneg %p134
        %p454 = pneg %p131
        %p455 = pneg %p155
        %p456 = pneg %p152
        %p457 = pneg %p176
        %p458 = pneg %p173
        %p459 = pneg %p197
        %p460 = pneg %p194
        %p461 = pneg %p218
        %p462 = pneg %p215
        %p463 = pneg %p239
        %p464 = pneg %p236
        %p465 = pneg %p260
        %p466 = pneg %p257
        %p467 = pneg %p281
        %p468 = pneg %p278
        %p469 = pneg %p307
        %p470 = pneg %p304
        %s471 = sand.u32 %s294, 1
        %s472 = scalar_lea.sflag [#allocation4], %s471
        %s473 = sand.u32 %s294, 1
        %s474 = smul.addr %s473, 64
        %s475 = scalar_lea.vmem [#allocation11], %s474
        %p476 = scmp.lt.s32.totalorder %s29, 1
        %s477 = scalar_select %p476, %s29, 1
        %s478 = smul.addr %s477, 8
        %s479 = smul.addr %s478, 8
        %s480 = scalar_lea.vmem %s0, %s479
        %v482 = vld [vmem:[%s480] sm:$0xff]
        %v483 = vld [vmem:[%s480 + $0x8] sm:$0xff]
        %v484 = vld [vmem:[%s480 + $0x10] sm:$0xff]
        %v485 = vld [vmem:[%s480 + $0x18] sm:$0xff]
        %v486 = vld [vmem:[%s480 + $0x20] sm:$0xff]
        %v487 = vld [vmem:[%s480 + $0x28] sm:$0xff]
        %v488 = vld [vmem:[%s480 + $0x30] sm:$0xff]
        %v489 = vld [vmem:[%s480 + $0x38] sm:$0xff]
        %v490 = vpack.c.bf16 %v483, %v482
        %v491 = vpack.c.bf16 %v485, %v484
        %v492 = vpack.c.bf16 %v487, %v486
        %v493 = vpack.c.bf16 %v489, %v488
        %v494 = vld [vmem:[%s1] sm:$0xf]
        %v495 = vld [vmem:[%s1 + $0x4] sm:$0xf]
        %v496 = vld [vmem:[%s1 + $0x8] sm:$0xf]
        %v497 = vld [vmem:[%s1 + $0xc] sm:$0xf]
        %v498 = vld [vmem:[#allocation2] sm:$0x1]
        %v500 = vlaneseq
        %v501 = vshrl.u32 %v500, 7
        %v502 = vsub.s32 0, %v501
        %v503 = vrot.slane %v498, %v502
        %v509 = vunpack.c.l.b16 %v494
        %v510 = vunpack.c.l.b16 %v495
        %v511 = vunpack.c.l.b16 %v496
        %v512 = vunpack.c.l.b16 %v497
        %v513 = vpack.c.b16 %v510, %v509
        %v514 = vpack.c.b16 %v512, %v511
        %vm517 = vcmask 261120
        %v519 = vsel %vm517, %v490, 0
        %v522 = vsel %vm517, %v491, 0
        %v525 = vsel %vm517, %v492, 0
        %v528 = vsel %vm517, %v493, 0
        %530 = vmatprep.subr.bf16.mxu0 0
        %531 = vmatpush1.bf16.msra.mxu0 %v513
        %532 = vmatprep.subr.bf16.mxu0 0
        %533 = vmatpush1.bf16.msra.mxu0 %v514
        %534 = vmatprep.subr.bf16.mxu0 0
        %535 = vmatpush1.bf16.msra.mxu0 0
        %536 = vmatprep.subr.bf16.mxu0 0
        %537 = vmatpush1.bf16.msra.mxu0 0
        %538 = vmatprep.subr.bf16.mxu0 0
        %539 = vmatpush1.bf16.msra.mxu0 0
        %540 = vmatprep.subr.bf16.mxu0 0
        %541 = vmatpush1.bf16.msra.mxu0 0
        %542 = vmatprep.subr.bf16.mxu0 0
        %543 = vmatpush1.bf16.msra.mxu0 0
        %544 = vmatprep.subr.bf16.mxu0 0
        %545 = vmatpush1.bf16.msra.mxu0 0
        %546 = vmatprep.subr.bf16.mxu0 0
        %547 = vmatpush1.bf16.msra.mxu0 0
        %548 = vmatprep.subr.bf16.mxu0 0
        %549 = vmatpush1.bf16.msra.mxu0 0
        %550 = vmatprep.subr.bf16.mxu0 0
        %551 = vmatpush1.bf16.msra.mxu0 0
        %552 = vmatprep.subr.bf16.mxu0 0
        %553 = vmatpush1.bf16.msra.mxu0 0
        %554 = vmatprep.subr.bf16.mxu0 0
        %555 = vmatpush1.bf16.msra.mxu0 0
        %556 = vmatprep.subr.bf16.mxu0 0
        %557 = vmatpush1.bf16.msra.mxu0 0
        %558 = vmatprep.subr.bf16.mxu0 0
        %559 = vmatpush1.bf16.msra.mxu0 0
        %560 = vmatprep.subr.bf16.mxu0 0
        %561 = vmatpush1.bf16.msra.mxu0 0
        %562 = vmatprep.mubr.bf16.mxu0 0
        %563 = vmatmul.mubr.bf16.gmra.mrb[0].mxu0 %v519
        %v564 = vpop.f32.mrb[0].mxu0
        %v565 = vadd.f32 %v503, %v564
        %v566 = vpop.f32.mrb[0].mxu0
        %v567 = vpop.f32.mrb[0].mxu0
        %v568 = vadd.f32 %v503, %v567
        %v569 = vpop.f32.mrb[0].mxu0
        %570 = vmatprep.mubr.bf16.mxu0 0
        %571 = vmatmul.mubr.bf16.gmra.mrb[0].mxu0 %v522
        %v572 = vpop.f32.mrb[0].mxu0
        %v573 = vadd.f32 %v503, %v572
        %v574 = vpop.f32.mrb[0].mxu0
        %v575 = vpop.f32.mrb[0].mxu0
        %v576 = vadd.f32 %v503, %v575
        %v577 = vpop.f32.mrb[0].mxu0
        %578 = vmatprep.mubr.bf16.mxu0 0
        %579 = vmatmul.mubr.bf16.gmra.mrb[0].mxu0 %v525
        %v580 = vpop.f32.mrb[0].mxu0
        %v581 = vadd.f32 %v503, %v580
        %v582 = vpop.f32.mrb[0].mxu0
        %v583 = vpop.f32.mrb[0].mxu0
        %v584 = vadd.f32 %v503, %v583
        %v585 = vpop.f32.mrb[0].mxu0
        %586 = vmatprep.mubr.bf16.mxu0 0
        %587 = vmatmul.mubr.bf16.gmra.mrb[0].mxu0 %v528
        %v588 = vpop.f32.mrb[0].mxu0
        %v589 = vadd.f32 %v503, %v588
        %v590 = vpop.f32.mrb[0].mxu0
        %v591 = vpop.f32.mrb[0].mxu0
        %v592 = vadd.f32 %v503, %v591
        %v593 = vpop.f32.mrb[0].mxu0
        %594 = vdwg.mxu0
        %v595 = vld [vmem:[%s2] sm:$0xf]
        %v596 = vld [vmem:[%s2 + $0x4] sm:$0xf]
        %v597 = vld [vmem:[%s2 + $0x8] sm:$0xf]
        %v598 = vld [vmem:[%s2 + $0xc] sm:$0xf]
        %v599 = vld [vmem:[#allocation5] sm:$0x1]
        %v601 = vlaneseq
        %v602 = vshrl.u32 %v601, 7
        %v603 = vsub.s32 0, %v602
        %v604 = vrot.slane %v599, %v603
        %v610 = vunpack.c.l.b16 %v595
        %v611 = vunpack.c.l.b16 %v596
        %v612 = vunpack.c.l.b16 %v597
        %v613 = vunpack.c.l.b16 %v598
        %v614 = vpack.c.b16 %v611, %v610
        %v615 = vpack.c.b16 %v613, %v612
        %618 = vmatprep.subr.bf16.mxu0 0
        %619 = vmatpush1.bf16.msra.mxu0 %v614
        %620 = vmatprep.subr.bf16.mxu0 0
        %621 = vmatpush1.bf16.msra.mxu0 %v615
        %622 = vmatprep.subr.bf16.mxu0 0
        %623 = vmatpush1.bf16.msra.mxu0 0
        %624 = vmatprep.subr.bf16.mxu0 0
        %625 = vmatpush1.bf16.msra.mxu0 0
        %626 = vmatprep.subr.bf16.mxu0 0
        %627 = vmatpush1.bf16.msra.mxu0 0
        %628 = vmatprep.subr.bf16.mxu0 0
        %629 = vmatpush1.bf16.msra.mxu0 0
        %630 = vmatprep.subr.bf16.mxu0 0
        %631 = vmatpush1.bf16.msra.mxu0 0
        %632 = vmatprep.subr.bf16.mxu0 0
        %633 = vmatpush1.bf16.msra.mxu0 0
        %634 = vmatprep.subr.bf16.mxu0 0
        %635 = vmatpush1.bf16.msra.mxu0 0
        %636 = vmatprep.subr.bf16.mxu0 0
        %637 = vmatpush1.bf16.msra.mxu0 0
        %638 = vmatprep.subr.bf16.mxu0 0
        %639 = vmatpush1.bf16.msra.mxu0 0
        %640 = vmatprep.subr.bf16.mxu0 0
        %641 = vmatpush1.bf16.msra.mxu0 0
        %642 = vmatprep.subr.bf16.mxu0 0
        %643 = vmatpush1.bf16.msra.mxu0 0
        %644 = vmatprep.subr.bf16.mxu0 0
        %645 = vmatpush1.bf16.msra.mxu0 0
        %646 = vmatprep.subr.bf16.mxu0 0
        %647 = vmatpush1.bf16.msra.mxu0 0
        %648 = vmatprep.subr.bf16.mxu0 0
        %649 = vmatpush1.bf16.msra.mxu0 0
        %650 = vmatprep.mubr.bf16.mxu0 0
        %651 = vmatmul.mubr.bf16.gmra.mrb[0].mxu0 %v519
        %v652 = vpop.f32.mrb[0].mxu0
        %v653 = vadd.f32 %v604, %v652
        %v654 = vpop.f32.mrb[0].mxu0
        %v655 = vpop.f32.mrb[0].mxu0
        %v656 = vadd.f32 %v604, %v655
        %v657 = vpop.f32.mrb[0].mxu0
        %658 = vmatprep.mubr.bf16.mxu0 0
        %659 = vmatmul.mubr.bf16.gmra.mrb[0].mxu0 %v522
        %v660 = vpop.f32.mrb[0].mxu0
        %v661 = vadd.f32 %v604, %v660
        %v662 = vpop.f32.mrb[0].mxu0
        %v663 = vpop.f32.mrb[0].mxu0
        %v664 = vadd.f32 %v604, %v663
        %v665 = vpop.f32.mrb[0].mxu0
        %666 = vmatprep.mubr.bf16.mxu0 0
        %667 = vmatmul.mubr.bf16.gmra.mrb[0].mxu0 %v525
        %v668 = vpop.f32.mrb[0].mxu0
        %v669 = vadd.f32 %v604, %v668
        %v670 = vpop.f32.mrb[0].mxu0
        %v671 = vpop.f32.mrb[0].mxu0
        %v672 = vadd.f32 %v604, %v671
        %v673 = vpop.f32.mrb[0].mxu0
        %674 = vmatprep.mubr.bf16.mxu0 0
        %675 = vmatmul.mubr.bf16.gmra.mrb[0].mxu0 %v528
        %v676 = vpop.f32.mrb[0].mxu0
        %v677 = vadd.f32 %v604, %v676
        %v678 = vpop.f32.mrb[0].mxu0
        %v679 = vpop.f32.mrb[0].mxu0
        %v680 = vadd.f32 %v604, %v679
        %v681 = vpop.f32.mrb[0].mxu0
        %682 = vdwg.mxu0
        %v683 = vld [vmem:[%s3] sm:$0xf]
        %v684 = vld [vmem:[%s3 + $0x4] sm:$0xf]
        %v685 = vld [vmem:[%s3 + $0x8] sm:$0xf]
        %v686 = vld [vmem:[%s3 + $0xc] sm:$0xf]
        %v687 = vld [vmem:[#allocation7] sm:$0x1]
        %v689 = vlaneseq
        %v690 = vshrl.u32 %v689, 7
        %v691 = vsub.s32 0, %v690
        %v692 = vrot.slane %v687, %v691
        %v698 = vunpack.c.l.b16 %v683
        %v699 = vunpack.c.l.b16 %v684
        %v700 = vunpack.c.l.b16 %v685
        %v701 = vunpack.c.l.b16 %v686
        %v702 = vpack.c.b16 %v699, %v698
        %v703 = vpack.c.b16 %v701, %v700
        %706 = vmatprep.subr.bf16.mxu0 0
        %707 = vmatpush1.bf16.msra.mxu0 %v702
        %708 = vmatprep.subr.bf16.mxu0 0
        %709 = vmatpush1.bf16.msra.mxu0 %v703
        %710 = vmatprep.subr.bf16.mxu0 0
        %711 = vmatpush1.bf16.msra.mxu0 0
        %712 = vmatprep.subr.bf16.mxu0 0
        %713 = vmatpush1.bf16.msra.mxu0 0
        %714 = vmatprep.subr.bf16.mxu0 0
        %715 = vmatpush1.bf16.msra.mxu0 0
        %716 = vmatprep.subr.bf16.mxu0 0
        %717 = vmatpush1.bf16.msra.mxu0 0
        %718 = vmatprep.subr.bf16.mxu0 0
        %719 = vmatpush1.bf16.msra.mxu0 0
        %720 = vmatprep.subr.bf16.mxu0 0
        %721 = vmatpush1.bf16.msra.mxu0 0
        %722 = vmatprep.subr.bf16.mxu0 0
        %723 = vmatpush1.bf16.msra.mxu0 0
        %724 = vmatprep.subr.bf16.mxu0 0
        %725 = vmatpush1.bf16.msra.mxu0 0
        %726 = vmatprep.subr.bf16.mxu0 0
        %727 = vmatpush1.bf16.msra.mxu0 0
        %728 = vmatprep.subr.bf16.mxu0 0
        %729 = vmatpush1.bf16.msra.mxu0 0
        %730 = vmatprep.subr.bf16.mxu0 0
        %731 = vmatpush1.bf16.msra.mxu0 0
        %732 = vmatprep.subr.bf16.mxu0 0
        %733 = vmatpush1.bf16.msra.mxu0 0
        %734 = vmatprep.subr.bf16.mxu0 0
        %735 = vmatpush1.bf16.msra.mxu0 0
        %736 = vmatprep.subr.bf16.mxu0 0
        %737 = vmatpush1.bf16.msra.mxu0 0
        %738 = vmatprep.mubr.bf16.mxu0 0
        %739 = vmatmul.mubr.bf16.gmra.mrb[0].mxu0 %v519
        %v740 = vpop.f32.mrb[0].mxu0
        %v741 = vadd.f32 %v692, %v740
        %v742 = vpop.f32.mrb[0].mxu0
        %v743 = vpop.f32.mrb[0].mxu0
        %v744 = vadd.f32 %v692, %v743
        %v745 = vpop.f32.mrb[0].mxu0
        %746 = vmatprep.mubr.bf16.mxu0 0
        %747 = vmatmul.mubr.bf16.gmra.mrb[0].mxu0 %v522
        %v748 = vpop.f32.mrb[0].mxu0
        %v749 = vadd.f32 %v692, %v748
        %v750 = vpop.f32.mrb[0].mxu0
        %v751 = vpop.f32.mrb[0].mxu0
        %v752 = vadd.f32 %v692, %v751
        %v753 = vpop.f32.mrb[0].mxu0
        %754 = vmatprep.mubr.bf16.mxu0 0
        %755 = vmatmul.mubr.bf16.gmra.mrb[0].mxu0 %v525
        %v756 = vpop.f32.mrb[0].mxu0
        %v757 = vadd.f32 %v692, %v756
        %v758 = vpop.f32.mrb[0].mxu0
        %v759 = vpop.f32.mrb[0].mxu0
        %v760 = vadd.f32 %v692, %v759
        %v761 = vpop.f32.mrb[0].mxu0
        %762 = vmatprep.mubr.bf16.mxu0 0
        %763 = vmatmul.mubr.bf16.gmra.mrb[0].mxu0 %v528
        %v764 = vpop.f32.mrb[0].mxu0
        %v765 = vadd.f32 %v692, %v764
        %v766 = vpop.f32.mrb[0].mxu0
        %v767 = vpop.f32.mrb[0].mxu0
        %v768 = vadd.f32 %v692, %v767
        %v769 = vpop.f32.mrb[0].mxu0
        %770 = vdwg.mxu0
        %v771 = vpack.c.bf16 %v568, %v565
        %v772 = vpack.c.bf16 %v576, %v573
        %v773 = vpack.c.bf16 %v584, %v581
        %v774 = vpack.c.bf16 %v592, %v589
        %v775 = vpack.c.bf16 %v656, %v653
        %v776 = vpack.c.bf16 %v664, %v661
        %v777 = vpack.c.bf16 %v672, %v669
        %v778 = vpack.c.bf16 %v680, %v677
        %v779 = vld [vmem:[%s7] sm:$0xf]
        %v780 = vld [vmem:[%s7 + $0x4] sm:$0xf]
        %v781 = vld [vmem:[%s7 + $0x8] sm:$0xf]
        %v782 = vld [vmem:[%s7 + $0xc] sm:$0xf]
        %v783 = vld [vmem:[%s7 + $0x10] sm:$0xf]
        %v784 = vld [vmem:[%s7 + $0x14] sm:$0xf]
        %v785 = vld [vmem:[%s7 + $0x18] sm:$0xf]
        %v786 = vld [vmem:[%s7 + $0x1c] sm:$0xf]
        %v787 = vunpack.c.l.bf16 %v779
        %v788 = vunpack.c.l.bf16 %v780
        %v789 = vunpack.c.l.bf16 %v781
        %v790 = vunpack.c.l.bf16 %v782
        %v791 = vunpack.c.l.bf16 %v783
        %v792 = vunpack.c.l.bf16 %v784
        %v793 = vunpack.c.l.bf16 %v785
        %v794 = vunpack.c.l.bf16 %v786
        %vm795 = vcmask 64512
        %v797 = vsel %vm795, %v771, 0
        %v800 = vsel %vm795, %v772, 0
        %v803 = vsel %vm795, %v773, 0
        %v806 = vsel %vm795, %v774, 0
        %v809 = vsel %vm795, %v775, 0
        %v812 = vsel %vm795, %v776, 0
        %v815 = vsel %vm795, %v777, 0
        %v818 = vsel %vm795, %v778, 0
        %820 = vmatprep.subr.bf16.mxu0 0
        %821 = vmatpush1.bf16.xpose.msra.mxu0 %v809
        %822 = vmatprep.subr.bf16.mxu0 0
        %823 = vmatpush1.bf16.xpose.msra.mxu0 %v812
        %824 = vmatprep.subr.bf16.mxu0 0
        %825 = vmatpush1.bf16.xpose.msra.mxu0 %v815
        %826 = vmatprep.subr.bf16.mxu0 0
        %827 = vmatpush1.bf16.xpose.msra.mxu0 %v818
        %828 = vmatprep.subr.bf16.mxu0 0
        %829 = vmatpush1.bf16.xpose.msra.mxu0 0
        %830 = vmatprep.subr.bf16.mxu0 0
        %831 = vmatpush1.bf16.xpose.msra.mxu0 0
        %832 = vmatprep.subr.bf16.mxu0 0
        %833 = vmatpush1.bf16.xpose.msra.mxu0 0
        %834 = vmatprep.subr.bf16.mxu0 0
        %835 = vmatpush1.bf16.xpose.msra.mxu0 0
        %836 = vmatprep.subr.bf16.mxu0 0
        %837 = vmatpush1.bf16.xpose.msra.mxu0 0
        %838 = vmatprep.subr.bf16.mxu0 0
        %839 = vmatpush1.bf16.xpose.msra.mxu0 0
        %840 = vmatprep.subr.bf16.mxu0 0
        %841 = vmatpush1.bf16.xpose.msra.mxu0 0
        %842 = vmatprep.subr.bf16.mxu0 0
        %843 = vmatpush1.bf16.xpose.msra.mxu0 0
        %844 = vmatprep.subr.bf16.mxu0 0
        %845 = vmatpush1.bf16.xpose.msra.mxu0 0
        %846 = vmatprep.subr.bf16.mxu0 0
        %847 = vmatpush1.bf16.xpose.msra.mxu0 0
        %848 = vmatprep.subr.bf16.mxu0 0
        %849 = vmatpush1.bf16.xpose.msra.mxu0 0
        %850 = vmatprep.subr.bf16.mxu0 0
        %851 = vmatpush1.bf16.xpose.msra.mxu0 0
        %852 = vmatprep.mubr.bf16.mxu0 0
        %853 = vmatmul.mubr.bf16.gmra.mrb[0].mxu0 %v797
        %v854 = vpop.f32.mrb[0].mxu0
        %v855 = vadd.f32 %v787, %v854
        %v856 = vpop.f32.mrb[0].mxu0
        %v857 = vpop.f32.mrb[0].mxu0
        %v858 = vadd.f32 %v788, %v857
        %v859 = vpop.f32.mrb[0].mxu0
        %860 = vmatprep.mubr.bf16.mxu0 0
        %861 = vmatmul.mubr.bf16.gmra.mrb[0].mxu0 %v800
        %v862 = vpop.f32.mrb[0].mxu0
        %v863 = vadd.f32 %v789, %v862
        %v864 = vpop.f32.mrb[0].mxu0
        %v865 = vpop.f32.mrb[0].mxu0
        %v866 = vadd.f32 %v790, %v865
        %v867 = vpop.f32.mrb[0].mxu0
        %868 = vmatprep.mubr.bf16.mxu0 0
        %869 = vmatmul.mubr.bf16.gmra.mrb[0].mxu0 %v803
        %v870 = vpop.f32.mrb[0].mxu0
        %v871 = vadd.f32 %v791, %v870
        %v872 = vpop.f32.mrb[0].mxu0
        %v873 = vpop.f32.mrb[0].mxu0
        %v874 = vadd.f32 %v792, %v873
        %v875 = vpop.f32.mrb[0].mxu0
        %876 = vmatprep.mubr.bf16.mxu0 0
        %877 = vmatmul.mubr.bf16.gmra.mrb[0].mxu0 %v806
        %v878 = vpop.f32.mrb[0].mxu0
        %v879 = vadd.f32 %v793, %v878
        %v880 = vpop.f32.mrb[0].mxu0
        %v881 = vpop.f32.mrb[0].mxu0
        %v882 = vadd.f32 %v794, %v881
        %v883 = vpop.f32.mrb[0].mxu0
        %884 = vdwg.mxu0
        %vm885 = vcmask 523264
        %v886 = vsel %vm885, %v855, -inf
        %887 = vmax.xlane.f32.xlu0 %v886
        %v888 = vpop.xlane.xlu0 %887
        %v889 = vsel %vm885, %v858, -inf
        %890 = vmax.xlane.f32.xlu0 %v889
        %v891 = vpop.xlane.xlu0 %890
        %v892 = vsel %vm885, %v863, -inf
        %893 = vmax.xlane.f32.xlu0 %v892
        %v894 = vpop.xlane.xlu0 %893
        %v895 = vsel %vm885, %v866, -inf
        %896 = vmax.xlane.f32.xlu0 %v895
        %v897 = vpop.xlane.xlu0 %896
        %v898 = vsel %vm885, %v871, -inf
        %899 = vmax.xlane.f32.xlu0 %v898
        %v900 = vpop.xlane.xlu0 %899
        %v901 = vsel %vm885, %v874, -inf
        %902 = vmax.xlane.f32.xlu0 %v901
        %v903 = vpop.xlane.xlu0 %902
        %v904 = vsel %vm885, %v879, -inf
        %905 = vmax.xlane.f32.xlu0 %v904
        %v906 = vpop.xlane.xlu0 %905
        %v907 = vsel %vm885, %v882, -inf
        %908 = vmax.xlane.f32.xlu0 %v907
        %v909 = vpop.xlane.xlu0 %908
        %v910 = vsub.f32 %v855, %v888
        %v911 = vsub.f32 %v858, %v891
        %v912 = vsub.f32 %v863, %v894
        %v913 = vsub.f32 %v866, %v897
        %v914 = vsub.f32 %v871, %v900
        %v915 = vsub.f32 %v874, %v903
        %v916 = vsub.f32 %v879, %v906
        %v917 = vsub.f32 %v882, %v909
        %v918 = vmul.f32 %v910, 1.442695
        %v919 = vpow.pop %v918
        %v920 = vmul.f32 %v911, 1.442695
        %v921 = vpow.pop %v920
        %v922 = vmul.f32 %v912, 1.442695
        %v923 = vpow.pop %v922
        %v924 = vmul.f32 %v913, 1.442695
        %v925 = vpow.pop %v924
        %v926 = vmul.f32 %v914, 1.442695
        %v927 = vpow.pop %v926
        %v928 = vmul.f32 %v915, 1.442695
        %v929 = vpow.pop %v928
        %v930 = vmul.f32 %v916, 1.442695
        %v931 = vpow.pop %v930
        %v932 = vmul.f32 %v917, 1.442695
        %v933 = vpow.pop %v932
        %v934 = vsel %vm885, %v919, 0.0
        %935 = vadd.xlane.f32.xlu0 %v934
        %v936 = vpop.xlane.xlu0 %935
        %v937 = vsel %vm885, %v921, 0.0
        %938 = vadd.xlane.f32.xlu0 %v937
        %v939 = vpop.xlane.xlu0 %938
        %v940 = vsel %vm885, %v923, 0.0
        %941 = vadd.xlane.f32.xlu0 %v940
        %v942 = vpop.xlane.xlu0 %941
        %v943 = vsel %vm885, %v925, 0.0
        %944 = vadd.xlane.f32.xlu0 %v943
        %v945 = vpop.xlane.xlu0 %944
        %v946 = vsel %vm885, %v927, 0.0
        %947 = vadd.xlane.f32.xlu0 %v946
        %v948 = vpop.xlane.xlu0 %947
        %v949 = vsel %vm885, %v929, 0.0
        %950 = vadd.xlane.f32.xlu0 %v949
        %v951 = vpop.xlane.xlu0 %950
        %v952 = vsel %vm885, %v931, 0.0
        %953 = vadd.xlane.f32.xlu0 %v952
        %v954 = vpop.xlane.xlu0 %953
        %v955 = vsel %vm885, %v933, 0.0
        %956 = vadd.xlane.f32.xlu0 %v955
        %v957 = vpop.xlane.xlu0 %956
        %v958 = vrcp.pop %v936
        %v959 = vrcp.pop %v939
        %v960 = vrcp.pop %v942
        %v961 = vrcp.pop %v945
        %v962 = vrcp.pop %v948
        %v963 = vrcp.pop %v951
        %v964 = vrcp.pop %v954
        %v965 = vrcp.pop %v957
        %v966 = vmul.f32 %v919, %v958
        %v967 = vmul.f32 %v921, %v959
        %v968 = vmul.f32 %v923, %v960
        %v969 = vmul.f32 %v925, %v961
        %v970 = vmul.f32 %v927, %v962
        %v971 = vmul.f32 %v929, %v963
        %v972 = vmul.f32 %v931, %v964
        %v973 = vmul.f32 %v933, %v965
        %v974 = vpack.c.bf16 %v967, %v966
        %v975 = vpack.c.bf16 %v969, %v968
        %v976 = vpack.c.bf16 %v971, %v970
        %v977 = vpack.c.bf16 %v973, %v972
        %v978 = vpack.c.bf16 %v744, %v741
        %v979 = vpack.c.bf16 %v752, %v749
        %v980 = vpack.c.bf16 %v760, %v757
        %v981 = vpack.c.bf16 %v768, %v765
        %v983 = vsel %vm885, %v974, 0
        %v986 = vsel %vm885, %v975, 0
        %v989 = vsel %vm885, %v976, 0
        %v992 = vsel %vm885, %v977, 0
        %994 = vmatprep.subr.bf16.mxu0 0
        %995 = vmatpush1.bf16.msra.mxu0 %v978
        %996 = vmatprep.subr.bf16.mxu0 0
        %997 = vmatpush1.bf16.msra.mxu0 %v979
        %998 = vmatprep.subr.bf16.mxu0 0
        %999 = vmatpush1.bf16.msra.mxu0 %v980
        %1000 = vmatprep.subr.bf16.mxu0 0
        %1001 = vmatpush1.bf16.msra.mxu0 %v981
        %1002 = vmatprep.subr.bf16.mxu0 0
        %1003 = vmatpush1.bf16.msra.mxu0 0
        %1004 = vmatprep.subr.bf16.mxu0 0
        %1005 = vmatpush1.bf16.msra.mxu0 0
        %1006 = vmatprep.subr.bf16.mxu0 0
        %1007 = vmatpush1.bf16.msra.mxu0 0
        %1008 = vmatprep.subr.bf16.mxu0 0
        %1009 = vmatpush1.bf16.msra.mxu0 0
        %1010 = vmatprep.subr.bf16.mxu0 0
        %1011 = vmatpush1.bf16.msra.mxu0 0
        %1012 = vmatprep.subr.bf16.mxu0 0
        %1013 = vmatpush1.bf16.msra.mxu0 0
        %1014 = vmatprep.subr.bf16.mxu0 0
        %1015 = vmatpush1.bf16.msra.mxu0 0
        %1016 = vmatprep.subr.bf16.mxu0 0
        %1017 = vmatpush1.bf16.msra.mxu0 0
        %1018 = vmatprep.subr.bf16.mxu0 0
        %1019 = vmatpush1.bf16.msra.mxu0 0
        %1020 = vmatprep.subr.bf16.mxu0 0
        %1021 = vmatpush1.bf16.msra.mxu0 0
        %1022 = vmatprep.subr.bf16.mxu0 0
        %1023 = vmatpush1.bf16.msra.mxu0 0
        %1024 = vmatprep.subr.bf16.mxu0 0
        %1025 = vmatpush1.bf16.msra.mxu0 0
        %1026 = vmatprep.mubr.bf16.mxu0 0
        %1027 = vmatmul.mubr.bf16.gmra.mrb[0].mxu0 %v983
        %v1028 = vpop.f32.mrb[0].mxu0
        %v1029 = vadd.f32 0.0, %v1028
        %v1030 = vpop.f32.mrb[0].mxu0
        %v1031 = vpop.f32.mrb[0].mxu0
        %v1032 = vadd.f32 0.0, %v1031
        %v1033 = vpop.f32.mrb[0].mxu0
        %1034 = vmatprep.mubr.bf16.mxu0 0
        %1035 = vmatmul.mubr.bf16.gmra.mrb[0].mxu0 %v986
        %v1036 = vpop.f32.mrb[0].mxu0
        %v1037 = vadd.f32 0.0, %v1036
        %v1038 = vpop.f32.mrb[0].mxu0
        %v1039 = vpop.f32.mrb[0].mxu0
        %v1040 = vadd.f32 0.0, %v1039
        %v1041 = vpop.f32.mrb[0].mxu0
        %1042 = vmatprep.mubr.bf16.mxu0 0
        %1043 = vmatmul.mubr.bf16.gmra.mrb[0].mxu0 %v989
        %v1044 = vpop.f32.mrb[0].mxu0
        %v1045 = vadd.f32 0.0, %v1044
        %v1046 = vpop.f32.mrb[0].mxu0
        %v1047 = vpop.f32.mrb[0].mxu0
        %v1048 = vadd.f32 0.0, %v1047
        %v1049 = vpop.f32.mrb[0].mxu0
        %1050 = vmatprep.mubr.bf16.mxu0 0
        %1051 = vmatmul.mubr.bf16.gmra.mrb[0].mxu0 %v992
        %v1052 = vpop.f32.mrb[0].mxu0
        %v1053 = vadd.f32 0.0, %v1052
        %v1054 = vpop.f32.mrb[0].mxu0
        %v1055 = vpop.f32.mrb[0].mxu0
        %v1056 = vadd.f32 0.0, %v1055
        %v1057 = vpop.f32.mrb[0].mxu0
        %1058 = vdwg.mxu0
        %v1059 = vpack.c.bf16 %v1032, %v1029
        %v1060 = vpack.c.bf16 %v1040, %v1037
        %v1061 = vpack.c.bf16 %v1048, %v1045
        %v1062 = vpack.c.bf16 %v1056, %v1053
        %v1063 = vld [vmem:[%s8] sm:$0xf]
        %s1064 = scalar_lea.vmem %s1, 16
        %v1065 = vld [vmem:[%s1064] sm:$0xf]
        %v1066 = vld [vmem:[%s1064 + $0x4] sm:$0xf]
        %v1067 = vld [vmem:[%s1064 + $0x8] sm:$0xf]
        %v1068 = vld [vmem:[%s1064 + $0xc] sm:$0xf]
        %s1069 = scalar_lea.vmem [#allocation2], 1
        %v1070 = vld [vmem:[%s1069] sm:$0x1]
        %v1072 = vlaneseq
        %v1073 = vshrl.u32 %v1072, 7
        %v1074 = vsub.s32 0, %v1073
        %v1075 = vrot.slane %v1070, %v1074
        %v1081 = vunpack.c.l.b16 %v1065
        %v1082 = vunpack.c.l.b16 %v1066
        %v1083 = vunpack.c.l.b16 %v1067
        %v1084 = vunpack.c.l.b16 %v1068
        %v1085 = vpack.c.b16 %v1082, %v1081
        %v1086 = vpack.c.b16 %v1084, %v1083
        %1089 = vmatprep.subr.bf16.mxu0 0
        %1090 = vmatpush1.bf16.msra.mxu0 %v1085
        %1091 = vmatprep.subr.bf16.mxu0 0
        %1092 = vmatpush1.bf16.msra.mxu0 %v1086
        %1093 = vmatprep.subr.bf16.mxu0 0
        %1094 = vmatpush1.bf16.msra.mxu0 0
        %1095 = vmatprep.subr.bf16.mxu0 0
        %1096 = vmatpush1.bf16.msra.mxu0 0
        %1097 = vmatprep.subr.bf16.mxu0 0
        %1098 = vmatpush1.bf16.msra.mxu0 0
        %1099 = vmatprep.subr.bf16.mxu0 0
        %1100 = vmatpush1.bf16.msra.mxu0 0
        %1101 = vmatprep.subr.bf16.mxu0 0
        %1102 = vmatpush1.bf16.msra.mxu0 0
        %1103 = vmatprep.subr.bf16.mxu0 0
        %1104 = vmatpush1.bf16.msra.mxu0 0
        %1105 = vmatprep.subr.bf16.mxu0 0
        %1106 = vmatpush1.bf16.msra.mxu0 0
        %1107 = vmatprep.subr.bf16.mxu0 0
        %1108 = vmatpush1.bf16.msra.mxu0 0
        %1109 = vmatprep.subr.bf16.mxu0 0
        %1110 = vmatpush1.bf16.msra.mxu0 0
        %1111 = vmatprep.subr.bf16.mxu0 0
        %1112 = vmatpush1.bf16.msra.mxu0 0
        %1113 = vmatprep.subr.bf16.mxu0 0
        %1114 = vmatpush1.bf16.msra.mxu0 0
        %1115 = vmatprep.subr.bf16.mxu0 0
        %1116 = vmatpush1.bf16.msra.mxu0 0
        %1117 = vmatprep.subr.bf16.mxu0 0
        %1118 = vmatpush1.bf16.msra.mxu0 0
        %1119 = vmatprep.subr.bf16.mxu0 0
        %1120 = vmatpush1.bf16.msra.mxu0 0
        %1121 = vmatprep.mubr.bf16.mxu0 0
        %1122 = vmatmul.mubr.bf16.gmra.mrb[0].mxu0 %v519
        %v1123 = vpop.f32.mrb[0].mxu0
        %v1124 = vadd.f32 %v1075, %v1123
        %v1125 = vpop.f32.mrb[0].mxu0
        %v1126 = vpop.f32.mrb[0].mxu0
        %v1127 = vadd.f32 %v1075, %v1126
        %v1128 = vpop.f32.mrb[0].mxu0
        %1129 = vmatprep.mubr.bf16.mxu0 0
        %1130 = vmatmul.mubr.bf16.gmra.mrb[0].mxu0 %v522
        %v1131 = vpop.f32.mrb[0].mxu0
        %v1132 = vadd.f32 %v1075, %v1131
        %v1133 = vpop.f32.mrb[0].mxu0
        %v1134 = vpop.f32.mrb[0].mxu0
        %v1135 = vadd.f32 %v1075, %v1134
        %v1136 = vpop.f32.mrb[0].mxu0
        %1137 = vmatprep.mubr.bf16.mxu0 0
        %1138 = vmatmul.mubr.bf16.gmra.mrb[0].mxu0 %v525
        %v1139 = vpop.f32.mrb[0].mxu0
        %v1140 = vadd.f32 %v1075, %v1139
        %v1141 = vpop.f32.mrb[0].mxu0
        %v1142 = vpop.f32.mrb[0].mxu0
        %v1143 = vadd.f32 %v1075, %v1142
        %v1144 = vpop.f32.mrb[0].mxu0
        %1145 = vmatprep.mubr.bf16.mxu0 0
        %1146 = vmatmul.mubr.bf16.gmra.mrb[0].mxu0 %v528
        %v1147 = vpop.f32.mrb[0].mxu0
        %v1148 = vadd.f32 %v1075, %v1147
        %v1149 = vpop.f32.mrb[0].mxu0
        %v1150 = vpop.f32.mrb[0].mxu0
        %v1151 = vadd.f32 %v1075, %v1150
        %v1152 = vpop.f32.mrb[0].mxu0
        %1153 = vdwg.mxu0
        %s1154 = scalar_lea.vmem %s2, 16
        %v1155 = vld [vmem:[%s1154] sm:$0xf]
        %v1156 = vld [vmem:[%s1154 + $0x4] sm:$0xf]
        %v1157 = vld [vmem:[%s1154 + $0x8] sm:$0xf]
        %v1158 = vld [vmem:[%s1154 + $0xc] sm:$0xf]
        %s1159 = scalar_lea.vmem [#allocation5], 1
        %v1160 = vld [vmem:[%s1159] sm:$0x1]
        %v1162 = vlaneseq
        %v1163 = vshrl.u32 %v1162, 7
        %v1164 = vsub.s32 0, %v1163
        %v1165 = vrot.slane %v1160, %v1164
        %v1171 = vunpack.c.l.b16 %v1155
        %v1172 = vunpack.c.l.b16 %v1156
        %v1173 = vunpack.c.l.b16 %v1157
        %v1174 = vunpack.c.l.b16 %v1158
        %v1175 = vpack.c.b16 %v1172, %v1171
        %v1176 = vpack.c.b16 %v1174, %v1173
        %1179 = vmatprep.subr.bf16.mxu0 0
        %1180 = vmatpush1.bf16.msra.mxu0 %v1175
        %1181 = vmatprep.subr.bf16.mxu0 0
        %1182 = vmatpush1.bf16.msra.mxu0 %v1176
        %1183 = vmatprep.subr.bf16.mxu0 0
        %1184 = vmatpush1.bf16.msra.mxu0 0
        %1185 = vmatprep.subr.bf16.mxu0 0
        %1186 = vmatpush1.bf16.msra.mxu0 0
        %1187 = vmatprep.subr.bf16.mxu0 0
        %1188 = vmatpush1.bf16.msra.mxu0 0
        %1189 = vmatprep.subr.bf16.mxu0 0
        %1190 = vmatpush1.bf16.msra.mxu0 0
        %1191 = vmatprep.subr.bf16.mxu0 0
        %1192 = vmatpush1.bf16.msra.mxu0 0
        %1193 = vmatprep.subr.bf16.mxu0 0
        %1194 = vmatpush1.bf16.msra.mxu0 0
        %1195 = vmatprep.subr.bf16.mxu0 0
        %1196 = vmatpush1.bf16.msra.mxu0 0
        %1197 = vmatprep.subr.bf16.mxu0 0
        %1198 = vmatpush1.bf16.msra.mxu0 0
        %1199 = vmatprep.subr.bf16.mxu0 0
        %1200 = vmatpush1.bf16.msra.mxu0 0
        %1201 = vmatprep.subr.bf16.mxu0 0
        %1202 = vmatpush1.bf16.msra.mxu0 0
        %1203 = vmatprep.subr.bf16.mxu0 0
        %1204 = vmatpush1.bf16.msra.mxu0 0
        %1205 = vmatprep.subr.bf16.mxu0 0
        %1206 = vmatpush1.bf16.msra.mxu0 0
        %1207 = vmatprep.subr.bf16.mxu0 0
        %1208 = vmatpush1.bf16.msra.mxu0 0
        %1209 = vmatprep.subr.bf16.mxu0 0
        %1210 = vmatpush1.bf16.msra.mxu0 0
        %1211 = vmatprep.mubr.bf16.mxu0 0
        %1212 = vmatmul.mubr.bf16.gmra.mrb[0].mxu0 %v519
        %v1213 = vpop.f32.mrb[0].mxu0
        %v1214 = vadd.f32 %v1165, %v1213
        %v1215 = vpop.f32.mrb[0].mxu0
        %v1216 = vpop.f32.mrb[0].mxu0
        %v1217 = vadd.f32 %v1165, %v1216
        %v1218 = vpop.f32.mrb[0].mxu0
        %1219 = vmatprep.mubr.bf16.mxu0 0
        %1220 = vmatmul.mubr.bf16.gmra.mrb[0].mxu0 %v522
        %v1221 = vpop.f32.mrb[0].mxu0
        %v1222 = vadd.f32 %v1165, %v1221
        %v1223 = vpop.f32.mrb[0].mxu0
        %v1224 = vpop.f32.mrb[0].mxu0
        %v1225 = vadd.f32 %v1165, %v1224
        %v1226 = vpop.f32.mrb[0].mxu0
        %1227 = vmatprep.mubr.bf16.mxu0 0
        %1228 = vmatmul.mubr.bf16.gmra.mrb[0].mxu0 %v525
        %v1229 = vpop.f32.mrb[0].mxu0
        %v1230 = vadd.f32 %v1165, %v1229
        %v1231 = vpop.f32.mrb[0].mxu0
        %v1232 = vpop.f32.mrb[0].mxu0
        %v1233 = vadd.f32 %v1165, %v1232
        %v1234 = vpop.f32.mrb[0].mxu0
        %1235 = vmatprep.mubr.bf16.mxu0 0
        %1236 = vmatmul.mubr.bf16.gmra.mrb[0].mxu0 %v528
        %v1237 = vpop.f32.mrb[0].mxu0
        %v1238 = vadd.f32 %v1165, %v1237
        %v1239 = vpop.f32.mrb[0].mxu0
        %v1240 = vpop.f32.mrb[0].mxu0
        %v1241 = vadd.f32 %v1165, %v1240
        %v1242 = vpop.f32.mrb[0].mxu0
        %1243 = vdwg.mxu0
        %s1244 = scalar_lea.vmem %s3, 16
        %v1245 = vld [vmem:[%s1244] sm:$0xf]
        %v1246 = vld [vmem:[%s1244 + $0x4] sm:$0xf]
        %v1247 = vld [vmem:[%s1244 + $0x8] sm:$0xf]
        %v1248 = vld [vmem:[%s1244 + $0xc] sm:$0xf]
        %s1249 = scalar_lea.vmem [#allocation7], 1
        %v1250 = vld [vmem:[%s1249] sm:$0x1]
        %v1252 = vlaneseq
        %v1253 = vshrl.u32 %v1252, 7
        %v1254 = vsub.s32 0, %v1253
        %v1255 = vrot.slane %v1250, %v1254
        %v1261 = vunpack.c.l.b16 %v1245
        %v1262 = vunpack.c.l.b16 %v1246
        %v1263 = vunpack.c.l.b16 %v1247
        %v1264 = vunpack.c.l.b16 %v1248
        %v1265 = vpack.c.b16 %v1262, %v1261
        %v1266 = vpack.c.b16 %v1264, %v1263
        %1269 = vmatprep.subr.bf16.mxu0 0
        %1270 = vmatpush1.bf16.msra.mxu0 %v1265
        %1271 = vmatprep.subr.bf16.mxu0 0
        %1272 = vmatpush1.bf16.msra.mxu0 %v1266
        %1273 = vmatprep.subr.bf16.mxu0 0
        %1274 = vmatpush1.bf16.msra.mxu0 0
        %1275 = vmatprep.subr.bf16.mxu0 0
        %1276 = vmatpush1.bf16.msra.mxu0 0
        %1277 = vmatprep.subr.bf16.mxu0 0
        %1278 = vmatpush1.bf16.msra.mxu0 0
        %1279 = vmatprep.subr.bf16.mxu0 0
        %1280 = vmatpush1.bf16.msra.mxu0 0
        %1281 = vmatprep.subr.bf16.mxu0 0
        %1282 = vmatpush1.bf16.msra.mxu0 0
        %1283 = vmatprep.subr.bf16.mxu0 0
        %1284 = vmatpush1.bf16.msra.mxu0 0
        %1285 = vmatprep.subr.bf16.mxu0 0
        %1286 = vmatpush1.bf16.msra.mxu0 0
        %1287 = vmatprep.subr.bf16.mxu0 0
        %1288 = vmatpush1.bf16.msra.mxu0 0
        %1289 = vmatprep.subr.bf16.mxu0 0
        %1290 = vmatpush1.bf16.msra.mxu0 0
        %1291 = vmatprep.subr.bf16.mxu0 0
        %1292 = vmatpush1.bf16.msra.mxu0 0
        %1293 = vmatprep.subr.bf16.mxu0 0
        %1294 = vmatpush1.bf16.msra.mxu0 0
        %1295 = vmatprep.subr.bf16.mxu0 0
        %1296 = vmatpush1.bf16.msra.mxu0 0
        %1297 = vmatprep.subr.bf16.mxu0 0
        %1298 = vmatpush1.bf16.msra.mxu0 0
        %1299 = vmatprep.subr.bf16.mxu0 0
        %1300 = vmatpush1.bf16.msra.mxu0 0
        %1301 = vmatprep.mubr.bf16.mxu0 0
        %1302 = vmatmul.mubr.bf16.gmra.mrb[0].mxu0 %v519
        %v1303 = vpop.f32.mrb[0].mxu0
        %v1304 = vadd.f32 %v1255, %v1303
        %v1305 = vpop.f32.mrb[0].mxu0
        %v1306 = vpop.f32.mrb[0].mxu0
        %v1307 = vadd.f32 %v1255, %v1306
        %v1308 = vpop.f32.mrb[0].mxu0
        %1309 = vmatprep.mubr.bf16.mxu0 0
        %1310 = vmatmul.mubr.bf16.gmra.mrb[0].mxu0 %v522
        %v1311 = vpop.f32.mrb[0].mxu0
        %v1312 = vadd.f32 %v1255, %v1311
        %v1313 = vpop.f32.mrb[0].mxu0
        %v1314 = vpop.f32.mrb[0].mxu0
        %v1315 = vadd.f32 %v1255, %v1314
        %v1316 = vpop.f32.mrb[0].mxu0
        %1317 = vmatprep.mubr.bf16.mxu0 0
        %1318 = vmatmul.mubr.bf16.gmra.mrb[0].mxu0 %v525
        %v1319 = vpop.f32.mrb[0].mxu0
        %v1320 = vadd.f32 %v1255, %v1319
        %v1321 = vpop.f32.mrb[0].mxu0
        %v1322 = vpop.f32.mrb[0].mxu0
        %v1323 = vadd.f32 %v1255, %v1322
        %v1324 = vpop.f32.mrb[0].mxu0
        %1325 = vmatprep.mubr.bf16.mxu0 0
        %1326 = vmatmul.mubr.bf16.gmra.mrb[0].mxu0 %v528
        %v1327 = vpop.f32.mrb[0].mxu0
        %v1328 = vadd.f32 %v1255, %v1327
        %v1329 = vpop.f32.mrb[0].mxu0
        %v1330 = vpop.f32.mrb[0].mxu0
        %v1331 = vadd.f32 %v1255, %v1330
        %v1332 = vpop.f32.mrb[0].mxu0
        %1333 = vdwg.mxu0
        %v1334 = vpack.c.bf16 %v1127, %v1124
        %v1335 = vpack.c.bf16 %v1135, %v1132
        %v1336 = vpack.c.bf16 %v1143, %v1140
        %v1337 = vpack.c.bf16 %v1151, %v1148
        %v1338 = vpack.c.bf16 %v1217, %v1214
        %v1339 = vpack.c.bf16 %v1225, %v1222
        %v1340 = vpack.c.bf16 %v1233, %v1230
        %v1341 = vpack.c.bf16 %v1241, %v1238
        %s1342 = scalar_lea.vmem %s7, 32
        %v1343 = vld [vmem:[%s1342] sm:$0xf]
        %v1344 = vld [vmem:[%s1342 + $0x4] sm:$0xf]
        %v1345 = vld [vmem:[%s1342 + $0x8] sm:$0xf]
        %v1346 = vld [vmem:[%s1342 + $0xc] sm:$0xf]
        %v1347 = vld [vmem:[%s1342 + $0x10] sm:$0xf]
        %v1348 = vld [vmem:[%s1342 + $0x14] sm:$0xf]
        %v1349 = vld [vmem:[%s1342 + $0x18] sm:$0xf]
        %v1350 = vld [vmem:[%s1342 + $0x1c] sm:$0xf]
        %v1351 = vunpack.c.l.bf16 %v1343
        %v1352 = vunpack.c.l.bf16 %v1344
        %v1353 = vunpack.c.l.bf16 %v1345
        %v1354 = vunpack.c.l.bf16 %v1346
        %v1355 = vunpack.c.l.bf16 %v1347
        %v1356 = vunpack.c.l.bf16 %v1348
        %v1357 = vunpack.c.l.bf16 %v1349
        %v1358 = vunpack.c.l.bf16 %v1350
        %v1360 = vsel %vm795, %v1334, 0
        %v1363 = vsel %vm795, %v1335, 0
        %v1366 = vsel %vm795, %v1336, 0
        %v1369 = vsel %vm795, %v1337, 0
        %v1372 = vsel %vm795, %v1338, 0
        %v1375 = vsel %vm795, %v1339, 0
        %v1378 = vsel %vm795, %v1340, 0
        %v1381 = vsel %vm795, %v1341, 0
        %1383 = vmatprep.subr.bf16.mxu0 0
        %1384 = vmatpush1.bf16.xpose.msra.mxu0 %v1372
        %1385 = vmatprep.subr.bf16.mxu0 0
        %1386 = vmatpush1.bf16.xpose.msra.mxu0 %v1375
        %1387 = vmatprep.subr.bf16.mxu0 0
        %1388 = vmatpush1.bf16.xpose.msra.mxu0 %v1378
        %1389 = vmatprep.subr.bf16.mxu0 0
        %1390 = vmatpush1.bf16.xpose.msra.mxu0 %v1381
        %1391 = vmatprep.subr.bf16.mxu0 0
        %1392 = vmatpush1.bf16.xpose.msra.mxu0 0
        %1393 = vmatprep.subr.bf16.mxu0 0
        %1394 = vmatpush1.bf16.xpose.msra.mxu0 0
        %1395 = vmatprep.subr.bf16.mxu0 0
        %1396 = vmatpush1.bf16.xpose.msra.mxu0 0
        %1397 = vmatprep.subr.bf16.mxu0 0
        %1398 = vmatpush1.bf16.xpose.msra.mxu0 0
        %1399 = vmatprep.subr.bf16.mxu0 0
        %1400 = vmatpush1.bf16.xpose.msra.mxu0 0
        %1401 = vmatprep.subr.bf16.mxu0 0
        %1402 = vmatpush1.bf16.xpose.msra.mxu0 0
        %1403 = vmatprep.subr.bf16.mxu0 0
        %1404 = vmatpush1.bf16.xpose.msra.mxu0 0
        %1405 = vmatprep.subr.bf16.mxu0 0
        %1406 = vmatpush1.bf16.xpose.msra.mxu0 0
        %1407 = vmatprep.subr.bf16.mxu0 0
        %1408 = vmatpush1.bf16.xpose.msra.mxu0 0
        %1409 = vmatprep.subr.bf16.mxu0 0
        %1410 = vmatpush1.bf16.xpose.msra.mxu0 0
        %1411 = vmatprep.subr.bf16.mxu0 0
        %1412 = vmatpush1.bf16.xpose.msra.mxu0 0
        %1413 = vmatprep.subr.bf16.mxu0 0
        %1414 = vmatpush1.bf16.xpose.msra.mxu0 0
        %1415 = vmatprep.mubr.bf16.mxu0 0
        %1416 = vmatmul.mubr.bf16.gmra.mrb[0].mxu0 %v1360
        %v1417 = vpop.f32.mrb[0].mxu0
        %v1418 = vadd.f32 %v1351, %v1417
        %v1419 = vpop.f32.mrb[0].mxu0
        %v1420 = vpop.f32.mrb[0].mxu0
        %v1421 = vadd.f32 %v1352, %v1420
        %v1422 = vpop.f32.mrb[0].mxu0
        %1423 = vmatprep.mubr.bf16.mxu0 0
        %1424 = vmatmul.mubr.bf16.gmra.mrb[0].mxu0 %v1363
        %v1425 = vpop.f32.mrb[0].mxu0
        %v1426 = vadd.f32 %v1353, %v1425
        %v1427 = vpop.f32.mrb[0].mxu0
        %v1428 = vpop.f32.mrb[0].mxu0
        %v1429 = vadd.f32 %v1354, %v1428
        %v1430 = vpop.f32.mrb[0].mxu0
        %1431 = vmatprep.mubr.bf16.mxu0 0
        %1432 = vmatmul.mubr.bf16.gmra.mrb[0].mxu0 %v1366
        %v1433 = vpop.f32.mrb[0].mxu0
        %v1434 = vadd.f32 %v1355, %v1433
        %v1435 = vpop.f32.mrb[0].mxu0
        %v1436 = vpop.f32.mrb[0].mxu0
        %v1437 = vadd.f32 %v1356, %v1436
        %v1438 = vpop.f32.mrb[0].mxu0
        %1439 = vmatprep.mubr.bf16.mxu0 0
        %1440 = vmatmul.mubr.bf16.gmra.mrb[0].mxu0 %v1369
        %v1441 = vpop.f32.mrb[0].mxu0
        %v1442 = vadd.f32 %v1357, %v1441
        %v1443 = vpop.f32.mrb[0].mxu0
        %v1444 = vpop.f32.mrb[0].mxu0
        %v1445 = vadd.f32 %v1358, %v1444
        %v1446 = vpop.f32.mrb[0].mxu0
        %1447 = vdwg.mxu0
        %v1448 = vsel %vm885, %v1418, -inf
        %1449 = vmax.xlane.f32.xlu0 %v1448
        %v1450 = vpop.xlane.xlu0 %1449
        %v1451 = vsel %vm885, %v1421, -inf
        %1452 = vmax.xlane.f32.xlu0 %v1451
        %v1453 = vpop.xlane.xlu0 %1452
        %v1454 = vsel %vm885, %v1426, -inf
        %1455 = vmax.xlane.f32.xlu0 %v1454
        %v1456 = vpop.xlane.xlu0 %1455
        %v1457 = vsel %vm885, %v1429, -inf
        %1458 = vmax.xlane.f32.xlu0 %v1457
        %v1459 = vpop.xlane.xlu0 %1458
        %v1460 = vsel %vm885, %v1434, -inf
        %1461 = vmax.xlane.f32.xlu0 %v1460
        %v1462 = vpop.xlane.xlu0 %1461
        %v1463 = vsel %vm885, %v1437, -inf
        %1464 = vmax.xlane.f32.xlu0 %v1463
        %v1465 = vpop.xlane.xlu0 %1464
        %v1466 = vsel %vm885, %v1442, -inf
        %1467 = vmax.xlane.f32.xlu0 %v1466
        %v1468 = vpop.xlane.xlu0 %1467
        %v1469 = vsel %vm885, %v1445, -inf
        %1470 = vmax.xlane.f32.xlu0 %v1469
        %v1471 = vpop.xlane.xlu0 %1470
        %v1472 = vsub.f32 %v1418, %v1450
        %v1473 = vsub.f32 %v1421, %v1453
        %v1474 = vsub.f32 %v1426, %v1456
        %v1475 = vsub.f32 %v1429, %v1459
        %v1476 = vsub.f32 %v1434, %v1462
        %v1477 = vsub.f32 %v1437, %v1465
        %v1478 = vsub.f32 %v1442, %v1468
        %v1479 = vsub.f32 %v1445, %v1471
        %v1480 = vmul.f32 %v1472, 1.442695
        %v1481 = vpow.pop %v1480
        %v1482 = vmul.f32 %v1473, 1.442695
        %v1483 = vpow.pop %v1482
        %v1484 = vmul.f32 %v1474, 1.442695
        %v1485 = vpow.pop %v1484
        %v1486 = vmul.f32 %v1475, 1.442695
        %v1487 = vpow.pop %v1486
        %v1488 = vmul.f32 %v1476, 1.442695
        %v1489 = vpow.pop %v1488
        %v1490 = vmul.f32 %v1477, 1.442695
        %v1491 = vpow.pop %v1490
        %v1492 = vmul.f32 %v1478, 1.442695
        %v1493 = vpow.pop %v1492
        %v1494 = vmul.f32 %v1479, 1.442695
        %v1495 = vpow.pop %v1494
        %v1496 = vsel %vm885, %v1481, 0.0
        %1497 = vadd.xlane.f32.xlu0 %v1496
        %v1498 = vpop.xlane.xlu0 %1497
        %v1499 = vsel %vm885, %v1483, 0.0
        %1500 = vadd.xlane.f32.xlu0 %v1499
        %v1501 = vpop.xlane.xlu0 %1500
        %v1502 = vsel %vm885, %v1485, 0.0
        %1503 = vadd.xlane.f32.xlu0 %v1502
        %v1504 = vpop.xlane.xlu0 %1503
        %v1505 = vsel %vm885, %v1487, 0.0
        %1506 = vadd.xlane.f32.xlu0 %v1505
        %v1507 = vpop.xlane.xlu0 %1506
        %v1508 = vsel %vm885, %v1489, 0.0
        %1509 = vadd.xlane.f32.xlu0 %v1508
        %v1510 = vpop.xlane.xlu0 %1509
        %v1511 = vsel %vm885, %v1491, 0.0
        %1512 = vadd.xlane.f32.xlu0 %v1511
        %v1513 = vpop.xlane.xlu0 %1512
        %v1514 = vsel %vm885, %v1493, 0.0
        %1515 = vadd.xlane.f32.xlu0 %v1514
        %v1516 = vpop.xlane.xlu0 %1515
        %v1517 = vsel %vm885, %v1495, 0.0
        %1518 = vadd.xlane.f32.xlu0 %v1517
        %v1519 = vpop.xlane.xlu0 %1518
        %v1520 = vrcp.pop %v1498
        %v1521 = vrcp.pop %v1501
        %v1522 = vrcp.pop %v1504
        %v1523 = vrcp.pop %v1507
        %v1524 = vrcp.pop %v1510
        %v1525 = vrcp.pop %v1513
        %v1526 = vrcp.pop %v1516
        %v1527 = vrcp.pop %v1519
        %v1528 = vmul.f32 %v1481, %v1520
        %v1529 = vmul.f32 %v1483, %v1521
        %v1530 = vmul.f32 %v1485, %v1522
        %v1531 = vmul.f32 %v1487, %v1523
        %v1532 = vmul.f32 %v1489, %v1524
        %v1533 = vmul.f32 %v1491, %v1525
        %v1534 = vmul.f32 %v1493, %v1526
        %v1535 = vmul.f32 %v1495, %v1527
        %v1536 = vpack.c.bf16 %v1529, %v1528
        %v1537 = vpack.c.bf16 %v1531, %v1530
        %v1538 = vpack.c.bf16 %v1533, %v1532
        %v1539 = vpack.c.bf16 %v1535, %v1534
        %v1540 = vpack.c.bf16 %v1307, %v1304
        %v1541 = vpack.c.bf16 %v1315, %v1312
        %v1542 = vpack.c.bf16 %v1323, %v1320
        %v1543 = vpack.c.bf16 %v1331, %v1328
        %v1545 = vsel %vm885, %v1536, 0
        %v1548 = vsel %vm885, %v1537, 0
        %v1551 = vsel %vm885, %v1538, 0
        %v1554 = vsel %vm885, %v1539, 0
        %1556 = vmatprep.subr.bf16.mxu0 0
        %1557 = vmatpush1.bf16.msra.mxu0 %v1540
        %1558 = vmatprep.subr.bf16.mxu0 0
        %1559 = vmatpush1.bf16.msra.mxu0 %v1541
        %1560 = vmatprep.subr.bf16.mxu0 0
        %1561 = vmatpush1.bf16.msra.mxu0 %v1542
        %1562 = vmatprep.subr.bf16.mxu0 0
        %1563 = vmatpush1.bf16.msra.mxu0 %v1543
        %1564 = vmatprep.subr.bf16.mxu0 0
        %1565 = vmatpush1.bf16.msra.mxu0 0
        %1566 = vmatprep.subr.bf16.mxu0 0
        %1567 = vmatpush1.bf16.msra.mxu0 0
        %1568 = vmatprep.subr.bf16.mxu0 0
        %1569 = vmatpush1.bf16.msra.mxu0 0
        %1570 = vmatprep.subr.bf16.mxu0 0
        %1571 = vmatpush1.bf16.msra.mxu0 0
        %1572 = vmatprep.subr.bf16.mxu0 0
        %1573 = vmatpush1.bf16.msra.mxu0 0
        %1574 = vmatprep.subr.bf16.mxu0 0
        %1575 = vmatpush1.bf16.msra.mxu0 0
        %1576 = vmatprep.subr.bf16.mxu0 0
        %1577 = vmatpush1.bf16.msra.mxu0 0
        %1578 = vmatprep.subr.bf16.mxu0 0
        %1579 = vmatpush1.bf16.msra.mxu0 0
        %1580 = vmatprep.subr.bf16.mxu0 0
        %1581 = vmatpush1.bf16.msra.mxu0 0
        %1582 = vmatprep.subr.bf16.mxu0 0
        %1583 = vmatpush1.bf16.msra.mxu0 0
        %1584 = vmatprep.subr.bf16.mxu0 0
        %1585 = vmatpush1.bf16.msra.mxu0 0
        %1586 = vmatprep.subr.bf16.mxu0 0
        %1587 = vmatpush1.bf16.msra.mxu0 0
        %1588 = vmatprep.mubr.bf16.mxu0 0
        %1589 = vmatmul.mubr.bf16.gmra.mrb[0].mxu0 %v1545
        %v1590 = vpop.f32.mrb[0].mxu0
        %v1591 = vadd.f32 0.0, %v1590
        %v1592 = vpop.f32.mrb[0].mxu0
        %v1593 = vpop.f32.mrb[0].mxu0
        %v1594 = vadd.f32 0.0, %v1593
        %v1595 = vpop.f32.mrb[0].mxu0
        %1596 = vmatprep.mubr.bf16.mxu0 0
        %1597 = vmatmul.mubr.bf16.gmra.mrb[0].mxu0 %v1548
        %v1598 = vpop.f32.mrb[0].mxu0
        %v1599 = vadd.f32 0.0, %v1598
        %v1600 = vpop.f32.mrb[0].mxu0
        %v1601 = vpop.f32.mrb[0].mxu0
        %v1602 = vadd.f32 0.0, %v1601
        %v1603 = vpop.f32.mrb[0].mxu0
        %1604 = vmatprep.mubr.bf16.mxu0 0
        %1605 = vmatmul.mubr.bf16.gmra.mrb[0].mxu0 %v1551
        %v1606 = vpop.f32.mrb[0].mxu0
        %v1607 = vadd.f32 0.0, %v1606
        %v1608 = vpop.f32.mrb[0].mxu0
        %v1609 = vpop.f32.mrb[0].mxu0
        %v1610 = vadd.f32 0.0, %v1609
        %v1611 = vpop.f32.mrb[0].mxu0
        %1612 = vmatprep.mubr.bf16.mxu0 0
        %1613 = vmatmul.mubr.bf16.gmra.mrb[0].mxu0 %v1554
        %v1614 = vpop.f32.mrb[0].mxu0
        %v1615 = vadd.f32 0.0, %v1614
        %v1616 = vpop.f32.mrb[0].mxu0
        %v1617 = vpop.f32.mrb[0].mxu0
        %v1618 = vadd.f32 0.0, %v1617
        %v1619 = vpop.f32.mrb[0].mxu0
        %1620 = vdwg.mxu0
        %v1621 = vpack.c.bf16 %v1594, %v1591
        %v1622 = vpack.c.bf16 %v1602, %v1599
        %v1623 = vpack.c.bf16 %v1610, %v1607
        %v1624 = vpack.c.bf16 %v1618, %v1615
        %s1625 = scalar_lea.vmem %s8, 4
        %v1626 = vld [vmem:[%s1625] sm:$0xf]
        %v1628 = vsel %vm795, %v1621, 0
        %v1631 = vsel %vm795, %v1622, 0
        %v1634 = vsel %vm795, %v1623, 0
        %v1637 = vsel %vm795, %v1624, 0
        %vm1639 = vcmask 1043456
        %v1641 = vsel %vm1639, %v1626, 0
        %1643 = vmatprep.subr.bf16.mxu0 0
        %1644 = vmatpush1.bf16.msra.mxu0 %v1641
        %1645 = vmatprep.subr.bf16.mxu0 0
        %1646 = vmatpush1.bf16.msra.mxu0 0
        %1647 = vmatprep.subr.bf16.mxu0 0
        %1648 = vmatpush1.bf16.msra.mxu0 0
        %1649 = vmatprep.subr.bf16.mxu0 0
        %1650 = vmatpush1.bf16.msra.mxu0 0
        %1651 = vmatprep.subr.bf16.mxu0 0
        %1652 = vmatpush1.bf16.msra.mxu0 0
        %1653 = vmatprep.subr.bf16.mxu0 0
        %1654 = vmatpush1.bf16.msra.mxu0 0
        %1655 = vmatprep.subr.bf16.mxu0 0
        %1656 = vmatpush1.bf16.msra.mxu0 0
        %1657 = vmatprep.subr.bf16.mxu0 0
        %1658 = vmatpush1.bf16.msra.mxu0 0
        %1659 = vmatprep.subr.bf16.mxu0 0
        %1660 = vmatpush1.bf16.msra.mxu0 0
        %1661 = vmatprep.subr.bf16.mxu0 0
        %1662 = vmatpush1.bf16.msra.mxu0 0
        %1663 = vmatprep.subr.bf16.mxu0 0
        %1664 = vmatpush1.bf16.msra.mxu0 0
        %1665 = vmatprep.subr.bf16.mxu0 0
        %1666 = vmatpush1.bf16.msra.mxu0 0
        %1667 = vmatprep.subr.bf16.mxu0 0
        %1668 = vmatpush1.bf16.msra.mxu0 0
        %1669 = vmatprep.subr.bf16.mxu0 0
        %1670 = vmatpush1.bf16.msra.mxu0 0
        %1671 = vmatprep.subr.bf16.mxu0 0
        %1672 = vmatpush1.bf16.msra.mxu0 0
        %1673 = vmatprep.subr.bf16.mxu0 0
        %1674 = vmatpush1.bf16.msra.mxu0 0
        %1675 = vmatprep.mubr.bf16.mxu0 0
        %1676 = vmatmul.mubr.bf16.gmra.mrb[0].mxu0 %v1628
        %v1677 = vpop.f32.mrb[0].mxu0
        %v1678 = vadd.f32 0.0, %v1677
        %v1679 = vpop.f32.mrb[0].mxu0
        %v1680 = vpop.f32.mrb[0].mxu0
        %v1681 = vadd.f32 0.0, %v1680
        %v1682 = vpop.f32.mrb[0].mxu0
        %1683 = vmatprep.mubr.bf16.mxu0 0
        %1684 = vmatmul.mubr.bf16.gmra.mrb[0].mxu0 %v1631
        %v1685 = vpop.f32.mrb[0].mxu0
        %v1686 = vadd.f32 0.0, %v1685
        %v1687 = vpop.f32.mrb[0].mxu0
        %v1688 = vpop.f32.mrb[0].mxu0
        %v1689 = vadd.f32 0.0, %v1688
        %v1690 = vpop.f32.mrb[0].mxu0
        %1691 = vmatprep.mubr.bf16.mxu0 0
        %1692 = vmatmul.mubr.bf16.gmra.mrb[0].mxu0 %v1634
        %v1693 = vpop.f32.mrb[0].mxu0
        %v1694 = vadd.f32 0.0, %v1693
        %v1695 = vpop.f32.mrb[0].mxu0
        %v1696 = vpop.f32.mrb[0].mxu0
        %v1697 = vadd.f32 0.0, %v1696
        %v1698 = vpop.f32.mrb[0].mxu0
        %1699 = vmatprep.mubr.bf16.mxu0 0
        %1700 = vmatmul.mubr.bf16.gmra.mrb[0].mxu0 %v1637
        %v1701 = vpop.f32.mrb[0].mxu0
        %v1702 = vadd.f32 0.0, %v1701
        %v1703 = vpop.f32.mrb[0].mxu0
        %v1704 = vpop.f32.mrb[0].mxu0
        %v1705 = vadd.f32 0.0, %v1704
        %v1706 = vpop.f32.mrb[0].mxu0
        %1707 = vdwg.mxu0
        %v1709 = vsel %vm795, %v1059, 0
        %v1712 = vsel %vm795, %v1060, 0
        %v1715 = vsel %vm795, %v1061, 0
        %v1718 = vsel %vm795, %v1062, 0
        %v1721 = vsel %vm1639, %v1063, 0
        %1723 = vmatprep.subr.bf16.mxu0 0
        %1724 = vmatpush1.bf16.msra.mxu0 %v1721
        %1725 = vmatprep.subr.bf16.mxu0 0
        %1726 = vmatpush1.bf16.msra.mxu0 0
        %1727 = vmatprep.subr.bf16.mxu0 0
        %1728 = vmatpush1.bf16.msra.mxu0 0
        %1729 = vmatprep.subr.bf16.mxu0 0
        %1730 = vmatpush1.bf16.msra.mxu0 0
        %1731 = vmatprep.subr.bf16.mxu0 0
        %1732 = vmatpush1.bf16.msra.mxu0 0
        %1733 = vmatprep.subr.bf16.mxu0 0
        %1734 = vmatpush1.bf16.msra.mxu0 0
        %1735 = vmatprep.subr.bf16.mxu0 0
        %1736 = vmatpush1.bf16.msra.mxu0 0
        %1737 = vmatprep.subr.bf16.mxu0 0
        %1738 = vmatpush1.bf16.msra.mxu0 0
        %1739 = vmatprep.subr.bf16.mxu0 0
        %1740 = vmatpush1.bf16.msra.mxu0 0
        %1741 = vmatprep.subr.bf16.mxu0 0
        %1742 = vmatpush1.bf16.msra.mxu0 0
        %1743 = vmatprep.subr.bf16.mxu0 0
        %1744 = vmatpush1.bf16.msra.mxu0 0
        %1745 = vmatprep.subr.bf16.mxu0 0
        %1746 = vmatpush1.bf16.msra.mxu0 0
        %1747 = vmatprep.subr.bf16.mxu0 0
        %1748 = vmatpush1.bf16.msra.mxu0 0
        %1749 = vmatprep.subr.bf16.mxu0 0
        %1750 = vmatpush1.bf16.msra.mxu0 0
        %1751 = vmatprep.subr.bf16.mxu0 0
        %1752 = vmatpush1.bf16.msra.mxu0 0
        %1753 = vmatprep.subr.bf16.mxu0 0
        %1754 = vmatpush1.bf16.msra.mxu0 0
        %1755 = vmatprep.mubr.bf16.mxu0 0
        %1756 = vmatmul.mubr.bf16.gmra.mrb[0].mxu0 %v1709
        %v1757 = vpop.f32.mrb[0].mxu0
        %v1758 = vadd.f32 %v1678, %v1757
        %v1759 = vpop.f32.mrb[0].mxu0
        %v1760 = vpop.f32.mrb[0].mxu0
        %v1761 = vadd.f32 %v1681, %v1760
        %v1762 = vpop.f32.mrb[0].mxu0
        %1763 = vmatprep.mubr.bf16.mxu0 0
        %1764 = vmatmul.mubr.bf16.gmra.mrb[0].mxu0 %v1712
        %v1765 = vpop.f32.mrb[0].mxu0
        %v1766 = vadd.f32 %v1686, %v1765
        %v1767 = vpop.f32.mrb[0].mxu0
        %v1768 = vpop.f32.mrb[0].mxu0
        %v1769 = vadd.f32 %v1689, %v1768
        %v1770 = vpop.f32.mrb[0].mxu0
        %1771 = vmatprep.mubr.bf16.mxu0 0
        %1772 = vmatmul.mubr.bf16.gmra.mrb[0].mxu0 %v1715
        %v1773 = vpop.f32.mrb[0].mxu0
        %v1774 = vadd.f32 %v1694, %v1773
        %v1775 = vpop.f32.mrb[0].mxu0
        %v1776 = vpop.f32.mrb[0].mxu0
        %v1777 = vadd.f32 %v1697, %v1776
        %v1778 = vpop.f32.mrb[0].mxu0
        %1779 = vmatprep.mubr.bf16.mxu0 0
        %1780 = vmatmul.mubr.bf16.gmra.mrb[0].mxu0 %v1718
        %v1781 = vpop.f32.mrb[0].mxu0
        %v1782 = vadd.f32 %v1702, %v1781
        %v1783 = vpop.f32.mrb[0].mxu0
        %v1784 = vpop.f32.mrb[0].mxu0
        %v1785 = vadd.f32 %v1705, %v1784
        %v1786 = vpop.f32.mrb[0].mxu0
        %1787 = vdwg.mxu0
        %s1788 = scalar_lea.vmem %s1, 32
        %v1789 = vld [vmem:[%s1788] sm:$0xf]
        %v1790 = vld [vmem:[%s1788 + $0x4] sm:$0xf]
        %v1791 = vld [vmem:[%s1788 + $0x8] sm:$0xf]
        %v1792 = vld [vmem:[%s1788 + $0xc] sm:$0xf]
        %s1793 = scalar_lea.vmem [#allocation2], 2
        %v1794 = vld [vmem:[%s1793] sm:$0x1]
        %v1796 = vlaneseq
        %v1797 = vshrl.u32 %v1796, 7
        %v1798 = vsub.s32 0, %v1797
        %v1799 = vrot.slane %v1794, %v1798
        %v1805 = vunpack.c.l.b16 %v1789
        %v1806 = vunpack.c.l.b16 %v1790
        %v1807 = vunpack.c.l.b16 %v1791
        %v1808 = vunpack.c.l.b16 %v1792
        %v1809 = vpack.c.b16 %v1806, %v1805
        %v1810 = vpack.c.b16 %v1808, %v1807
        %1813 = vmatprep.subr.bf16.mxu0 0
        %1814 = vmatpush1.bf16.msra.mxu0 %v1809
        %1815 = vmatprep.subr.bf16.mxu0 0
        %1816 = vmatpush1.bf16.msra.mxu0 %v1810
        %1817 = vmatprep.subr.bf16.mxu0 0
        %1818 = vmatpush1.bf16.msra.mxu0 0
        %1819 = vmatprep.subr.bf16.mxu0 0
        %1820 = vmatpush1.bf16.msra.mxu0 0
        %1821 = vmatprep.subr.bf16.mxu0 0
        %1822 = vmatpush1.bf16.msra.mxu0 0
        %1823 = vmatprep.subr.bf16.mxu0 0
        %1824 = vmatpush1.bf16.msra.mxu0 0
        %1825 = vmatprep.subr.bf16.mxu0 0
        %1826 = vmatpush1.bf16.msra.mxu0 0
        %1827 = vmatprep.subr.bf16.mxu0 0
        %1828 = vmatpush1.bf16.msra.mxu0 0
        %1829 = vmatprep.subr.bf16.mxu0 0
        %1830 = vmatpush1.bf16.msra.mxu0 0
        %1831 = vmatprep.subr.bf16.mxu0 0
        %1832 = vmatpush1.bf16.msra.mxu0 0
        %1833 = vmatprep.subr.bf16.mxu0 0
        %1834 = vmatpush1.bf16.msra.mxu0 0
        %1835 = vmatprep.subr.bf16.mxu0 0
        %1836 = vmatpush1.bf16.msra.mxu0 0
        %1837 = vmatprep.subr.bf16.mxu0 0
        %1838 = vmatpush1.bf16.msra.mxu0 0
        %1839 = vmatprep.subr.bf16.mxu0 0
        %1840 = vmatpush1.bf16.msra.mxu0 0
        %1841 = vmatprep.subr.bf16.mxu0 0
        %1842 = vmatpush1.bf16.msra.mxu0 0
        %1843 = vmatprep.subr.bf16.mxu0 0
        %1844 = vmatpush1.bf16.msra.mxu0 0
        %1845 = vmatprep.mubr.bf16.mxu0 0
        %1846 = vmatmul.mubr.bf16.gmra.mrb[0].mxu0 %v519
        %v1847 = vpop.f32.mrb[0].mxu0
        %v1848 = vadd.f32 %v1799, %v1847
        %v1849 = vpop.f32.mrb[0].mxu0
        %v1850 = vpop.f32.mrb[0].mxu0
        %v1851 = vadd.f32 %v1799, %v1850
        %v1852 = vpop.f32.mrb[0].mxu0
        %1853 = vmatprep.mubr.bf16.mxu0 0
        %1854 = vmatmul.mubr.bf16.gmra.mrb[0].mxu0 %v522
        %v1855 = vpop.f32.mrb[0].mxu0
        %v1856 = vadd.f32 %v1799, %v1855
        %v1857 = vpop.f32.mrb[0].mxu0
        %v1858 = vpop.f32.mrb[0].mxu0
        %v1859 = vadd.f32 %v1799, %v1858
        %v1860 = vpop.f32.mrb[0].mxu0
        %1861 = vmatprep.mubr.bf16.mxu0 0
        %1862 = vmatmul.mubr.bf16.gmra.mrb[0].mxu0 %v525
        %v1863 = vpop.f32.mrb[0].mxu0
        %v1864 = vadd.f32 %v1799, %v1863
        %v1865 = vpop.f32.mrb[0].mxu0
        %v1866 = vpop.f32.mrb[0].mxu0
        %v1867 = vadd.f32 %v1799, %v1866
        %v1868 = vpop.f32.mrb[0].mxu0
        %1869 = vmatprep.mubr.bf16.mxu0 0
        %1870 = vmatmul.mubr.bf16.gmra.mrb[0].mxu0 %v528
        %v1871 = vpop.f32.mrb[0].mxu0
        %v1872 = vadd.f32 %v1799, %v1871
        %v1873 = vpop.f32.mrb[0].mxu0
        %v1874 = vpop.f32.mrb[0].mxu0
        %v1875 = vadd.f32 %v1799, %v1874
        %v1876 = vpop.f32.mrb[0].mxu0
        %1877 = vdwg.mxu0
        %s1878 = scalar_lea.vmem %s2, 32
        %v1879 = vld [vmem:[%s1878] sm:$0xf]
        %v1880 = vld [vmem:[%s1878 + $0x4] sm:$0xf]
        %v1881 = vld [vmem:[%s1878 + $0x8] sm:$0xf]
        %v1882 = vld [vmem:[%s1878 + $0xc] sm:$0xf]
        %s1883 = scalar_lea.vmem [#allocation5], 2
        %v1884 = vld [vmem:[%s1883] sm:$0x1]
        %v1886 = vlaneseq
        %v1887 = vshrl.u32 %v1886, 7
        %v1888 = vsub.s32 0, %v1887
        %v1889 = vrot.slane %v1884, %v1888
        %v1895 = vunpack.c.l.b16 %v1879
        %v1896 = vunpack.c.l.b16 %v1880
        %v1897 = vunpack.c.l.b16 %v1881
        %v1898 = vunpack.c.l.b16 %v1882
        %v1899 = vpack.c.b16 %v1896, %v1895
        %v1900 = vpack.c.b16 %v1898, %v1897
        %1903 = vmatprep.subr.bf16.mxu0 0
        %1904 = vmatpush1.bf16.msra.mxu0 %v1899
        %1905 = vmatprep.subr.bf16.mxu0 0
        %1906 = vmatpush1.bf16.msra.mxu0 %v1900
        %1907 = vmatprep.subr.bf16.mxu0 0
        %1908 = vmatpush1.bf16.msra.mxu0 0
        %1909 = vmatprep.subr.bf16.mxu0 0
        %1910 = vmatpush1.bf16.msra.mxu0 0
        %1911 = vmatprep.subr.bf16.mxu0 0
        %1912 = vmatpush1.bf16.msra.mxu0 0
        %1913 = vmatprep.subr.bf16.mxu0 0
        %1914 = vmatpush1.bf16.msra.mxu0 0
        %1915 = vmatprep.subr.bf16.mxu0 0
        %1916 = vmatpush1.bf16.msra.mxu0 0
        %1917 = vmatprep.subr.bf16.mxu0 0
        %1918 = vmatpush1.bf16.msra.mxu0 0
        %1919 = vmatprep.subr.bf16.mxu0 0
        %1920 = vmatpush1.bf16.msra.mxu0 0
        %1921 = vmatprep.subr.bf16.mxu0 0
        %1922 = vmatpush1.bf16.msra.mxu0 0
        %1923 = vmatprep.subr.bf16.mxu0 0
        %1924 = vmatpush1.bf16.msra.mxu0 0
        %1925 = vmatprep.subr.bf16.mxu0 0
        %1926 = vmatpush1.bf16.msra.mxu0 0
        %1927 = vmatprep.subr.bf16.mxu0 0
        %1928 = vmatpush1.bf16.msra.mxu0 0
        %1929 = vmatprep.subr.bf16.mxu0 0
        %1930 = vmatpush1.bf16.msra.mxu0 0
        %1931 = vmatprep.subr.bf16.mxu0 0
        %1932 = vmatpush1.bf16.msra.mxu0 0
        %1933 = vmatprep.subr.bf16.mxu0 0
        %1934 = vmatpush1.bf16.msra.mxu0 0
        %1935 = vmatprep.mubr.bf16.mxu0 0
        %1936 = vmatmul.mubr.bf16.gmra.mrb[0].mxu0 %v519
        %v1937 = vpop.f32.mrb[0].mxu0
        %v1938 = vadd.f32 %v1889, %v1937
        %v1939 = vpop.f32.mrb[0].mxu0
        %v1940 = vpop.f32.mrb[0].mxu0
        %v1941 = vadd.f32 %v1889, %v1940
        %v1942 = vpop.f32.mrb[0].mxu0
        %1943 = vmatprep.mubr.bf16.mxu0 0
        %1944 = vmatmul.mubr.bf16.gmra.mrb[0].mxu0 %v522
        %v1945 = vpop.f32.mrb[0].mxu0
        %v1946 = vadd.f32 %v1889, %v1945
        %v1947 = vpop.f32.mrb[0].mxu0
        %v1948 = vpop.f32.mrb[0].mxu0
        %v1949 = vadd.f32 %v1889, %v1948
        %v1950 = vpop.f32.mrb[0].mxu0
        %1951 = vmatprep.mubr.bf16.mxu0 0
        %1952 = vmatmul.mubr.bf16.gmra.mrb[0].mxu0 %v525
        %v1953 = vpop.f32.mrb[0].mxu0
        %v1954 = vadd.f32 %v1889, %v1953
        %v1955 = vpop.f32.mrb[0].mxu0
        %v1956 = vpop.f32.mrb[0].mxu0
        %v1957 = vadd.f32 %v1889, %v1956
        %v1958 = vpop.f32.mrb[0].mxu0
        %1959 = vmatprep.mubr.bf16.mxu0 0
        %1960 = vmatmul.mubr.bf16.gmra.mrb[0].mxu0 %v528
        %v1961 = vpop.f32.mrb[0].mxu0
        %v1962 = vadd.f32 %v1889, %v1961
        %v1963 = vpop.f32.mrb[0].mxu0
        %v1964 = vpop.f32.mrb[0].mxu0
        %v1965 = vadd.f32 %v1889, %v1964
        %v1966 = vpop.f32.mrb[0].mxu0
        %1967 = vdwg.mxu0
        %s1968 = scalar_lea.vmem %s3, 32
        %v1969 = vld [vmem:[%s1968] sm:$0xf]
        %v1970 = vld [vmem:[%s1968 + $0x4] sm:$0xf]
        %v1971 = vld [vmem:[%s1968 + $0x8] sm:$0xf]
        %v1972 = vld [vmem:[%s1968 + $0xc] sm:$0xf]
        %s1973 = scalar_lea.vmem [#allocation7], 2
        %v1974 = vld [vmem:[%s1973] sm:$0x1]
        %v1976 = vlaneseq
        %v1977 = vshrl.u32 %v1976, 7
        %v1978 = vsub.s32 0, %v1977
        %v1979 = vrot.slane %v1974, %v1978
        %v1985 = vunpack.c.l.b16 %v1969
        %v1986 = vunpack.c.l.b16 %v1970
        %v1987 = vunpack.c.l.b16 %v1971
        %v1988 = vunpack.c.l.b16 %v1972
        %v1989 = vpack.c.b16 %v1986, %v1985
        %v1990 = vpack.c.b16 %v1988, %v1987
        %1993 = vmatprep.subr.bf16.mxu0 0
        %1994 = vmatpush1.bf16.msra.mxu0 %v1989
        %1995 = vmatprep.subr.bf16.mxu0 0
        %1996 = vmatpush1.bf16.msra.mxu0 %v1990
        %1997 = vmatprep.subr.bf16.mxu0 0
        %1998 = vmatpush1.bf16.msra.mxu0 0
        %1999 = vmatprep.subr.bf16.mxu0 0
        %2000 = vmatpush1.bf16.msra.mxu0 0
        %2001 = vmatprep.subr.bf16.mxu0 0
        %2002 = vmatpush1.bf16.msra.mxu0 0
        %2003 = vmatprep.subr.bf16.mxu0 0
        %2004 = vmatpush1.bf16.msra.mxu0 0
        %2005 = vmatprep.subr.bf16.mxu0 0
        %2006 = vmatpush1.bf16.msra.mxu0 0
        %2007 = vmatprep.subr.bf16.mxu0 0
        %2008 = vmatpush1.bf16.msra.mxu0 0
        %2009 = vmatprep.subr.bf16.mxu0 0
        %2010 = vmatpush1.bf16.msra.mxu0 0
        %2011 = vmatprep.subr.bf16.mxu0 0
        %2012 = vmatpush1.bf16.msra.mxu0 0
        %2013 = vmatprep.subr.bf16.mxu0 0
        %2014 = vmatpush1.bf16.msra.mxu0 0
        %2015 = vmatprep.subr.bf16.mxu0 0
        %2016 = vmatpush1.bf16.msra.mxu0 0
        %2017 = vmatprep.subr.bf16.mxu0 0
        %2018 = vmatpush1.bf16.msra.mxu0 0
        %2019 = vmatprep.subr.bf16.mxu0 0
        %2020 = vmatpush1.bf16.msra.mxu0 0
        %2021 = vmatprep.subr.bf16.mxu0 0
        %2022 = vmatpush1.bf16.msra.mxu0 0
        %2023 = vmatprep.subr.bf16.mxu0 0
        %2024 = vmatpush1.bf16.msra.mxu0 0
        %2025 = vmatprep.mubr.bf16.mxu0 0
        %2026 = vmatmul.mubr.bf16.gmra.mrb[0].mxu0 %v519
        %v2027 = vpop.f32.mrb[0].mxu0
        %v2028 = vadd.f32 %v1979, %v2027
        %v2029 = vpop.f32.mrb[0].mxu0
        %v2030 = vpop.f32.mrb[0].mxu0
        %v2031 = vadd.f32 %v1979, %v2030
        %v2032 = vpop.f32.mrb[0].mxu0
        %2033 = vmatprep.mubr.bf16.mxu0 0
        %2034 = vmatmul.mubr.bf16.gmra.mrb[0].mxu0 %v522
        %v2035 = vpop.f32.mrb[0].mxu0
        %v2036 = vadd.f32 %v1979, %v2035
        %v2037 = vpop.f32.mrb[0].mxu0
        %v2038 = vpop.f32.mrb[0].mxu0
        %v2039 = vadd.f32 %v1979, %v2038
        %v2040 = vpop.f32.mrb[0].mxu0
        %2041 = vmatprep.mubr.bf16.mxu0 0
        %2042 = vmatmul.mubr.bf16.gmra.mrb[0].mxu0 %v525
        %v2043 = vpop.f32.mrb[0].mxu0
        %v2044 = vadd.f32 %v1979, %v2043
        %v2045 = vpop.f32.mrb[0].mxu0
        %v2046 = vpop.f32.mrb[0].mxu0
        %v2047 = vadd.f32 %v1979, %v2046
        %v2048 = vpop.f32.mrb[0].mxu0
        %2049 = vmatprep.mubr.bf16.mxu0 0
        %2050 = vmatmul.mubr.bf16.gmra.mrb[0].mxu0 %v528
        %v2051 = vpop.f32.mrb[0].mxu0
        %v2052 = vadd.f32 %v1979, %v2051
        %v2053 = vpop.f32.mrb[0].mxu0
        %v2054 = vpop.f32.mrb[0].mxu0
        %v2055 = vadd.f32 %v1979, %v2054
        %v2056 = vpop.f32.mrb[0].mxu0
        %2057 = vdwg.mxu0
        %v2058 = vpack.c.bf16 %v1851, %v1848
        %v2059 = vpack.c.bf16 %v1859, %v1856
        %v2060 = vpack.c.bf16 %v1867, %v1864
        %v2061 = vpack.c.bf16 %v1875, %v1872
        %v2062 = vpack.c.bf16 %v1941, %v1938
        %v2063 = vpack.c.bf16 %v1949, %v1946
        %v2064 = vpack.c.bf16 %v1957, %v1954
        %v2065 = vpack.c.bf16 %v1965, %v1962
        %s2066 = scalar_lea.vmem %s7, 64
        %v2067 = vld [vmem:[%s2066] sm:$0xf]
        %v2068 = vld [vmem:[%s2066 + $0x4] sm:$0xf]
        %v2069 = vld [vmem:[%s2066 + $0x8] sm:$0xf]
        %v2070 = vld [vmem:[%s2066 + $0xc] sm:$0xf]
        %v2071 = vld [vmem:[%s2066 + $0x10] sm:$0xf]
        %v2072 = vld [vmem:[%s2066 + $0x14] sm:$0xf]
        %v2073 = vld [vmem:[%s2066 + $0x18] sm:$0xf]
        %v2074 = vld [vmem:[%s2066 + $0x1c] sm:$0xf]
        %v2075 = vunpack.c.l.bf16 %v2067
        %v2076 = vunpack.c.l.bf16 %v2068
        %v2077 = vunpack.c.l.bf16 %v2069
        %v2078 = vunpack.c.l.bf16 %v2070
        %v2079 = vunpack.c.l.bf16 %v2071
        %v2080 = vunpack.c.l.bf16 %v2072
        %v2081 = vunpack.c.l.bf16 %v2073
        %v2082 = vunpack.c.l.bf16 %v2074
        %v2084 = vsel %vm795, %v2058, 0
        %v2087 = vsel %vm795, %v2059, 0
        %v2090 = vsel %vm795, %v2060, 0
        %v2093 = vsel %vm795, %v2061, 0
        %v2096 = vsel %vm795, %v2062, 0
        %v2099 = vsel %vm795, %v2063, 0
        %v2102 = vsel %vm795, %v2064, 0
        %v2105 = vsel %vm795, %v2065, 0
        %2107 = vmatprep.subr.bf16.mxu0 0
        %2108 = vmatpush1.bf16.xpose.msra.mxu0 %v2096
        %2109 = vmatprep.subr.bf16.mxu0 0
        %2110 = vmatpush1.bf16.xpose.msra.mxu0 %v2099
        %2111 = vmatprep.subr.bf16.mxu0 0
        %2112 = vmatpush1.bf16.xpose.msra.mxu0 %v2102
        %2113 = vmatprep.subr.bf16.mxu0 0
        %2114 = vmatpush1.bf16.xpose.msra.mxu0 %v2105
        %2115 = vmatprep.subr.bf16.mxu0 0
        %2116 = vmatpush1.bf16.xpose.msra.mxu0 0
        %2117 = vmatprep.subr.bf16.mxu0 0
        %2118 = vmatpush1.bf16.xpose.msra.mxu0 0
        %2119 = vmatprep.subr.bf16.mxu0 0
        %2120 = vmatpush1.bf16.xpose.msra.mxu0 0
        %2121 = vmatprep.subr.bf16.mxu0 0
        %2122 = vmatpush1.bf16.xpose.msra.mxu0 0
        %2123 = vmatprep.subr.bf16.mxu0 0
        %2124 = vmatpush1.bf16.xpose.msra.mxu0 0
        %2125 = vmatprep.subr.bf16.mxu0 0
        %2126 = vmatpush1.bf16.xpose.msra.mxu0 0
        %2127 = vmatprep.subr.bf16.mxu0 0
        %2128 = vmatpush1.bf16.xpose.msra.mxu0 0
        %2129 = vmatprep.subr.bf16.mxu0 0
        %2130 = vmatpush1.bf16.xpose.msra.mxu0 0
        %2131 = vmatprep.subr.bf16.mxu0 0
        %2132 = vmatpush1.bf16.xpose.msra.mxu0 0
        %2133 = vmatprep.subr.bf16.mxu0 0
        %2134 = vmatpush1.bf16.xpose.msra.mxu0 0
        %2135 = vmatprep.subr.bf16.mxu0 0
        %2136 = vmatpush1.bf16.xpose.msra.mxu0 0
        %2137 = vmatprep.subr.bf16.mxu0 0
        %2138 = vmatpush1.bf16.xpose.msra.mxu0 0
        %2139 = vmatprep.mubr.bf16.mxu0 0
        %2140 = vmatmul.mubr.bf16.gmra.mrb[0].mxu0 %v2084
        %v2141 = vpop.f32.mrb[0].mxu0
        %v2142 = vadd.f32 %v2075, %v2141
        %v2143 = vpop.f32.mrb[0].mxu0
        %v2144 = vpop.f32.mrb[0].mxu0
        %v2145 = vadd.f32 %v2076, %v2144
        %v2146 = vpop.f32.mrb[0].mxu0
        %2147 = vmatprep.mubr.bf16.mxu0 0
        %2148 = vmatmul.mubr.bf16.gmra.mrb[0].mxu0 %v2087
        %v2149 = vpop.f32.mrb[0].mxu0
        %v2150 = vadd.f32 %v2077, %v2149
        %v2151 = vpop.f32.mrb[0].mxu0
        %v2152 = vpop.f32.mrb[0].mxu0
        %v2153 = vadd.f32 %v2078, %v2152
        %v2154 = vpop.f32.mrb[0].mxu0
        %2155 = vmatprep.mubr.bf16.mxu0 0
        %2156 = vmatmul.mubr.bf16.gmra.mrb[0].mxu0 %v2090
        %v2157 = vpop.f32.mrb[0].mxu0
        %v2158 = vadd.f32 %v2079, %v2157
        %v2159 = vpop.f32.mrb[0].mxu0
        %v2160 = vpop.f32.mrb[0].mxu0
        %v2161 = vadd.f32 %v2080, %v2160
        %v2162 = vpop.f32.mrb[0].mxu0
        %2163 = vmatprep.mubr.bf16.mxu0 0
        %2164 = vmatmul.mubr.bf16.gmra.mrb[0].mxu0 %v2093
        %v2165 = vpop.f32.mrb[0].mxu0
        %v2166 = vadd.f32 %v2081, %v2165
        %v2167 = vpop.f32.mrb[0].mxu0
        %v2168 = vpop.f32.mrb[0].mxu0
        %v2169 = vadd.f32 %v2082, %v2168
        %v2170 = vpop.f32.mrb[0].mxu0
        %2171 = vdwg.mxu0
        %v2172 = vsel %vm885, %v2142, -inf
        %2173 = vmax.xlane.f32.xlu0 %v2172
        %v2174 = vpop.xlane.xlu0 %2173
        %v2175 = vsel %vm885, %v2145, -inf
        %2176 = vmax.xlane.f32.xlu0 %v2175
        %v2177 = vpop.xlane.xlu0 %2176
        %v2178 = vsel %vm885, %v2150, -inf
        %2179 = vmax.xlane.f32.xlu0 %v2178
        %v2180 = vpop.xlane.xlu0 %2179
        %v2181 = vsel %vm885, %v2153, -inf
        %2182 = vmax.xlane.f32.xlu0 %v2181
        %v2183 = vpop.xlane.xlu0 %2182
        %v2184 = vsel %vm885, %v2158, -inf
        %2185 = vmax.xlane.f32.xlu0 %v2184
        %v2186 = vpop.xlane.xlu0 %2185
        %v2187 = vsel %vm885, %v2161, -inf
        %2188 = vmax.xlane.f32.xlu0 %v2187
        %v2189 = vpop.xlane.xlu0 %2188
        %v2190 = vsel %vm885, %v2166, -inf
        %2191 = vmax.xlane.f32.xlu0 %v2190
        %v2192 = vpop.xlane.xlu0 %2191
        %v2193 = vsel %vm885, %v2169, -inf
        %2194 = vmax.xlane.f32.xlu0 %v2193
        %v2195 = vpop.xlane.xlu0 %2194
        %v2196 = vsub.f32 %v2142, %v2174
        %v2197 = vsub.f32 %v2145, %v2177
        %v2198 = vsub.f32 %v2150, %v2180
        %v2199 = vsub.f32 %v2153, %v2183
        %v2200 = vsub.f32 %v2158, %v2186
        %v2201 = vsub.f32 %v2161, %v2189
        %v2202 = vsub.f32 %v2166, %v2192
        %v2203 = vsub.f32 %v2169, %v2195
        %v2204 = vmul.f32 %v2196, 1.442695
        %v2205 = vpow.pop %v2204
        %v2206 = vmul.f32 %v2197, 1.442695
        %v2207 = vpow.pop %v2206
        %v2208 = vmul.f32 %v2198, 1.442695
        %v2209 = vpow.pop %v2208
        %v2210 = vmul.f32 %v2199, 1.442695
        %v2211 = vpow.pop %v2210
        %v2212 = vmul.f32 %v2200, 1.442695
        %v2213 = vpow.pop %v2212
        %v2214 = vmul.f32 %v2201, 1.442695
        %v2215 = vpow.pop %v2214
        %v2216 = vmul.f32 %v2202, 1.442695
        %v2217 = vpow.pop %v2216
        %v2218 = vmul.f32 %v2203, 1.442695
        %v2219 = vpow.pop %v2218
        %v2220 = vsel %vm885, %v2205, 0.0
        %2221 = vadd.xlane.f32.xlu0 %v2220
        %v2222 = vpop.xlane.xlu0 %2221
        %v2223 = vsel %vm885, %v2207, 0.0
        %2224 = vadd.xlane.f32.xlu0 %v2223
        %v2225 = vpop.xlane.xlu0 %2224
        %v2226 = vsel %vm885, %v2209, 0.0
        %2227 = vadd.xlane.f32.xlu0 %v2226
        %v2228 = vpop.xlane.xlu0 %2227
        %v2229 = vsel %vm885, %v2211, 0.0
        %2230 = vadd.xlane.f32.xlu0 %v2229
        %v2231 = vpop.xlane.xlu0 %2230
        %v2232 = vsel %vm885, %v2213, 0.0
        %2233 = vadd.xlane.f32.xlu0 %v2232
        %v2234 = vpop.xlane.xlu0 %2233
        %v2235 = vsel %vm885, %v2215, 0.0
        %2236 = vadd.xlane.f32.xlu0 %v2235
        %v2237 = vpop.xlane.xlu0 %2236
        %v2238 = vsel %vm885, %v2217, 0.0
        %2239 = vadd.xlane.f32.xlu0 %v2238
        %v2240 = vpop.xlane.xlu0 %2239
        %v2241 = vsel %vm885, %v2219, 0.0
        %2242 = vadd.xlane.f32.xlu0 %v2241
        %v2243 = vpop.xlane.xlu0 %2242
        %v2244 = vrcp.pop %v2222
        %v2245 = vrcp.pop %v2225
        %v2246 = vrcp.pop %v2228
        %v2247 = vrcp.pop %v2231
        %v2248 = vrcp.pop %v2234
        %v2249 = vrcp.pop %v2237
        %v2250 = vrcp.pop %v2240
        %v2251 = vrcp.pop %v2243
        %v2252 = vmul.f32 %v2205, %v2244
        %v2253 = vmul.f32 %v2207, %v2245
        %v2254 = vmul.f32 %v2209, %v2246
        %v2255 = vmul.f32 %v2211, %v2247
        %v2256 = vmul.f32 %v2213, %v2248
        %v2257 = vmul.f32 %v2215, %v2249
        %v2258 = vmul.f32 %v2217, %v2250
        %v2259 = vmul.f32 %v2219, %v2251
        %v2260 = vpack.c.bf16 %v2253, %v2252
        %v2261 = vpack.c.bf16 %v2255, %v2254
        %v2262 = vpack.c.bf16 %v2257, %v2256
        %v2263 = vpack.c.bf16 %v2259, %v2258
        %v2264 = vpack.c.bf16 %v2031, %v2028
        %v2265 = vpack.c.bf16 %v2039, %v2036
        %v2266 = vpack.c.bf16 %v2047, %v2044
        %v2267 = vpack.c.bf16 %v2055, %v2052
        %v2269 = vsel %vm885, %v2260, 0
        %v2272 = vsel %vm885, %v2261, 0
        %v2275 = vsel %vm885, %v2262, 0
        %v2278 = vsel %vm885, %v2263, 0
        %2280 = vmatprep.subr.bf16.mxu0 0
        %2281 = vmatpush1.bf16.msra.mxu0 %v2264
        %2282 = vmatprep.subr.bf16.mxu0 0
        %2283 = vmatpush1.bf16.msra.mxu0 %v2265
        %2284 = vmatprep.subr.bf16.mxu0 0
        %2285 = vmatpush1.bf16.msra.mxu0 %v2266
        %2286 = vmatprep.subr.bf16.mxu0 0
        %2287 = vmatpush1.bf16.msra.mxu0 %v2267
        %2288 = vmatprep.subr.bf16.mxu0 0
        %2289 = vmatpush1.bf16.msra.mxu0 0
        %2290 = vmatprep.subr.bf16.mxu0 0
        %2291 = vmatpush1.bf16.msra.mxu0 0
        %2292 = vmatprep.subr.bf16.mxu0 0
        %2293 = vmatpush1.bf16.msra.mxu0 0
        %2294 = vmatprep.subr.bf16.mxu0 0
        %2295 = vmatpush1.bf16.msra.mxu0 0
        %2296 = vmatprep.subr.bf16.mxu0 0
        %2297 = vmatpush1.bf16.msra.mxu0 0
        %2298 = vmatprep.subr.bf16.mxu0 0
        %2299 = vmatpush1.bf16.msra.mxu0 0
        %2300 = vmatprep.subr.bf16.mxu0 0
        %2301 = vmatpush1.bf16.msra.mxu0 0
        %2302 = vmatprep.subr.bf16.mxu0 0
        %2303 = vmatpush1.bf16.msra.mxu0 0
        %2304 = vmatprep.subr.bf16.mxu0 0
        %2305 = vmatpush1.bf16.msra.mxu0 0
        %2306 = vmatprep.subr.bf16.mxu0 0
        %2307 = vmatpush1.bf16.msra.mxu0 0
        %2308 = vmatprep.subr.bf16.mxu0 0
        %2309 = vmatpush1.bf16.msra.mxu0 0
        %2310 = vmatprep.subr.bf16.mxu0 0
        %2311 = vmatpush1.bf16.msra.mxu0 0
        %2312 = vmatprep.mubr.bf16.mxu0 0
        %2313 = vmatmul.mubr.bf16.gmra.mrb[0].mxu0 %v2269
        %v2314 = vpop.f32.mrb[0].mxu0
        %v2315 = vadd.f32 0.0, %v2314
        %v2316 = vpop.f32.mrb[0].mxu0
        %v2317 = vpop.f32.mrb[0].mxu0
        %v2318 = vadd.f32 0.0, %v2317
        %v2319 = vpop.f32.mrb[0].mxu0
        %2320 = vmatprep.mubr.bf16.mxu0 0
        %2321 = vmatmul.mubr.bf16.gmra.mrb[0].mxu0 %v2272
        %v2322 = vpop.f32.mrb[0].mxu0
        %v2323 = vadd.f32 0.0, %v2322
        %v2324 = vpop.f32.mrb[0].mxu0
        %v2325 = vpop.f32.mrb[0].mxu0
        %v2326 = vadd.f32 0.0, %v2325
        %v2327 = vpop.f32.mrb[0].mxu0
        %2328 = vmatprep.mubr.bf16.mxu0 0
        %2329 = vmatmul.mubr.bf16.gmra.mrb[0].mxu0 %v2275
        %v2330 = vpop.f32.mrb[0].mxu0
        %v2331 = vadd.f32 0.0, %v2330
        %v2332 = vpop.f32.mrb[0].mxu0
        %v2333 = vpop.f32.mrb[0].mxu0
        %v2334 = vadd.f32 0.0, %v2333
        %v2335 = vpop.f32.mrb[0].mxu0
        %2336 = vmatprep.mubr.bf16.mxu0 0
        %2337 = vmatmul.mubr.bf16.gmra.mrb[0].mxu0 %v2278
        %v2338 = vpop.f32.mrb[0].mxu0
        %v2339 = vadd.f32 0.0, %v2338
        %v2340 = vpop.f32.mrb[0].mxu0
        %v2341 = vpop.f32.mrb[0].mxu0
        %v2342 = vadd.f32 0.0, %v2341
        %v2343 = vpop.f32.mrb[0].mxu0
        %2344 = vdwg.mxu0
        %v2345 = vpack.c.bf16 %v2318, %v2315
        %v2346 = vpack.c.bf16 %v2326, %v2323
        %v2347 = vpack.c.bf16 %v2334, %v2331
        %v2348 = vpack.c.bf16 %v2342, %v2339
        %s2349 = scalar_lea.vmem %s8, 8
        %v2350 = vld [vmem:[%s2349] sm:$0xf]
        %v2352 = vsel %vm795, %v2345, 0
        %v2355 = vsel %vm795, %v2346, 0
        %v2358 = vsel %vm795, %v2347, 0
        %v2361 = vsel %vm795, %v2348, 0
        %v2364 = vsel %vm1639, %v2350, 0
        %2366 = vmatprep.subr.bf16.mxu0 0
        %2367 = vmatpush1.bf16.msra.mxu0 %v2364
        %2368 = vmatprep.subr.bf16.mxu0 0
        %2369 = vmatpush1.bf16.msra.mxu0 0
        %2370 = vmatprep.subr.bf16.mxu0 0
        %2371 = vmatpush1.bf16.msra.mxu0 0
        %2372 = vmatprep.subr.bf16.mxu0 0
        %2373 = vmatpush1.bf16.msra.mxu0 0
        %2374 = vmatprep.subr.bf16.mxu0 0
        %2375 = vmatpush1.bf16.msra.mxu0 0
        %2376 = vmatprep.subr.bf16.mxu0 0
        %2377 = vmatpush1.bf16.msra.mxu0 0
        %2378 = vmatprep.subr.bf16.mxu0 0
        %2379 = vmatpush1.bf16.msra.mxu0 0
        %2380 = vmatprep.subr.bf16.mxu0 0
        %2381 = vmatpush1.bf16.msra.mxu0 0
        %2382 = vmatprep.subr.bf16.mxu0 0
        %2383 = vmatpush1.bf16.msra.mxu0 0
        %2384 = vmatprep.subr.bf16.mxu0 0
        %2385 = vmatpush1.bf16.msra.mxu0 0
        %2386 = vmatprep.subr.bf16.mxu0 0
        %2387 = vmatpush1.bf16.msra.mxu0 0
        %2388 = vmatprep.subr.bf16.mxu0 0
        %2389 = vmatpush1.bf16.msra.mxu0 0
        %2390 = vmatprep.subr.bf16.mxu0 0
        %2391 = vmatpush1.bf16.msra.mxu0 0
        %2392 = vmatprep.subr.bf16.mxu0 0
        %2393 = vmatpush1.bf16.msra.mxu0 0
        %2394 = vmatprep.subr.bf16.mxu0 0
        %2395 = vmatpush1.bf16.msra.mxu0 0
        %2396 = vmatprep.subr.bf16.mxu0 0
        %2397 = vmatpush1.bf16.msra.mxu0 0
        %2398 = vmatprep.mubr.bf16.mxu0 0
        %2399 = vmatmul.mubr.bf16.gmra.mrb[0].mxu0 %v2352
        %v2400 = vpop.f32.mrb[0].mxu0
        %v2401 = vadd.f32 0.0, %v2400
        %v2402 = vpop.f32.mrb[0].mxu0
        %v2403 = vpop.f32.mrb[0].mxu0
        %v2404 = vadd.f32 0.0, %v2403
        %v2405 = vpop.f32.mrb[0].mxu0
        %2406 = vmatprep.mubr.bf16.mxu0 0
        %2407 = vmatmul.mubr.bf16.gmra.mrb[0].mxu0 %v2355
        %v2408 = vpop.f32.mrb[0].mxu0
        %v2409 = vadd.f32 0.0, %v2408
        %v2410 = vpop.f32.mrb[0].mxu0
        %v2411 = vpop.f32.mrb[0].mxu0
        %v2412 = vadd.f32 0.0, %v2411
        %v2413 = vpop.f32.mrb[0].mxu0
        %2414 = vmatprep.mubr.bf16.mxu0 0
        %2415 = vmatmul.mubr.bf16.gmra.mrb[0].mxu0 %v2358
        %v2416 = vpop.f32.mrb[0].mxu0
        %v2417 = vadd.f32 0.0, %v2416
        %v2418 = vpop.f32.mrb[0].mxu0
        %v2419 = vpop.f32.mrb[0].mxu0
        %v2420 = vadd.f32 0.0, %v2419
        %v2421 = vpop.f32.mrb[0].mxu0
        %2422 = vmatprep.mubr.bf16.mxu0 0
        %2423 = vmatmul.mubr.bf16.gmra.mrb[0].mxu0 %v2361
        %v2424 = vpop.f32.mrb[0].mxu0
        %v2425 = vadd.f32 0.0, %v2424
        %v2426 = vpop.f32.mrb[0].mxu0
        %v2427 = vpop.f32.mrb[0].mxu0
        %v2428 = vadd.f32 0.0, %v2427
        %v2429 = vpop.f32.mrb[0].mxu0
        %2430 = vdwg.mxu0
        %v2431 = vadd.f32 %v1758, %v2401
        %v2432 = vadd.f32 %v1761, %v2404
        %v2433 = vadd.f32 %v1766, %v2409
        %v2434 = vadd.f32 %v1769, %v2412
        %v2435 = vadd.f32 %v1774, %v2417
        %v2436 = vadd.f32 %v1777, %v2420
        %v2437 = vadd.f32 %v1782, %v2425
        %v2438 = vadd.f32 %v1785, %v2428
        %s2439 = scalar_lea.vmem %s1, 48
        %v2440 = vld [vmem:[%s2439] sm:$0xf]
        %v2441 = vld [vmem:[%s2439 + $0x4] sm:$0xf]
        %v2442 = vld [vmem:[%s2439 + $0x8] sm:$0xf]
        %v2443 = vld [vmem:[%s2439 + $0xc] sm:$0xf]
        %s2444 = scalar_lea.vmem [#allocation2], 3
        %v2445 = vld [vmem:[%s2444] sm:$0x1]
        %v2447 = vlaneseq
        %v2448 = vshrl.u32 %v2447, 7
        %v2449 = vsub.s32 0, %v2448
        %v2450 = vrot.slane %v2445, %v2449
        %v2456 = vunpack.c.l.b16 %v2440
        %v2457 = vunpack.c.l.b16 %v2441
        %v2458 = vunpack.c.l.b16 %v2442
        %v2459 = vunpack.c.l.b16 %v2443
        %v2460 = vpack.c.b16 %v2457, %v2456
        %v2461 = vpack.c.b16 %v2459, %v2458
        %2464 = vmatprep.subr.bf16.mxu0 0
        %2465 = vmatpush1.bf16.msra.mxu0 %v2460
        %2466 = vmatprep.subr.bf16.mxu0 0
        %2467 = vmatpush1.bf16.msra.mxu0 %v2461
        %2468 = vmatprep.subr.bf16.mxu0 0
        %2469 = vmatpush1.bf16.msra.mxu0 0
        %2470 = vmatprep.subr.bf16.mxu0 0
        %2471 = vmatpush1.bf16.msra.mxu0 0
        %2472 = vmatprep.subr.bf16.mxu0 0
        %2473 = vmatpush1.bf16.msra.mxu0 0
        %2474 = vmatprep.subr.bf16.mxu0 0
        %2475 = vmatpush1.bf16.msra.mxu0 0
        %2476 = vmatprep.subr.bf16.mxu0 0
        %2477 = vmatpush1.bf16.msra.mxu0 0
        %2478 = vmatprep.subr.bf16.mxu0 0
        %2479 = vmatpush1.bf16.msra.mxu0 0
        %2480 = vmatprep.subr.bf16.mxu0 0
        %2481 = vmatpush1.bf16.msra.mxu0 0
        %2482 = vmatprep.subr.bf16.mxu0 0
        %2483 = vmatpush1.bf16.msra.mxu0 0
        %2484 = vmatprep.subr.bf16.mxu0 0
        %2485 = vmatpush1.bf16.msra.mxu0 0
        %2486 = vmatprep.subr.bf16.mxu0 0
        %2487 = vmatpush1.bf16.msra.mxu0 0
        %2488 = vmatprep.subr.bf16.mxu0 0
        %2489 = vmatpush1.bf16.msra.mxu0 0
        %2490 = vmatprep.subr.bf16.mxu0 0
        %2491 = vmatpush1.bf16.msra.mxu0 0
        %2492 = vmatprep.subr.bf16.mxu0 0
        %2493 = vmatpush1.bf16.msra.mxu0 0
        %2494 = vmatprep.subr.bf16.mxu0 0
        %2495 = vmatpush1.bf16.msra.mxu0 0
        %2496 = vmatprep.mubr.bf16.mxu0 0
        %2497 = vmatmul.mubr.bf16.gmra.mrb[0].mxu0 %v519
        %v2498 = vpop.f32.mrb[0].mxu0
        %v2499 = vadd.f32 %v2450, %v2498
        %v2500 = vpop.f32.mrb[0].mxu0
        %v2501 = vpop.f32.mrb[0].mxu0
        %v2502 = vadd.f32 %v2450, %v2501
        %v2503 = vpop.f32.mrb[0].mxu0
        %2504 = vmatprep.mubr.bf16.mxu0 0
        %2505 = vmatmul.mubr.bf16.gmra.mrb[0].mxu0 %v522
        %v2506 = vpop.f32.mrb[0].mxu0
        %v2507 = vadd.f32 %v2450, %v2506
        %v2508 = vpop.f32.mrb[0].mxu0
        %v2509 = vpop.f32.mrb[0].mxu0
        %v2510 = vadd.f32 %v2450, %v2509
        %v2511 = vpop.f32.mrb[0].mxu0
        %2512 = vmatprep.mubr.bf16.mxu0 0
        %2513 = vmatmul.mubr.bf16.gmra.mrb[0].mxu0 %v525
        %v2514 = vpop.f32.mrb[0].mxu0
        %v2515 = vadd.f32 %v2450, %v2514
        %v2516 = vpop.f32.mrb[0].mxu0
        %v2517 = vpop.f32.mrb[0].mxu0
        %v2518 = vadd.f32 %v2450, %v2517
        %v2519 = vpop.f32.mrb[0].mxu0
        %2520 = vmatprep.mubr.bf16.mxu0 0
        %2521 = vmatmul.mubr.bf16.gmra.mrb[0].mxu0 %v528
        %v2522 = vpop.f32.mrb[0].mxu0
        %v2523 = vadd.f32 %v2450, %v2522
        %v2524 = vpop.f32.mrb[0].mxu0
        %v2525 = vpop.f32.mrb[0].mxu0
        %v2526 = vadd.f32 %v2450, %v2525
        %v2527 = vpop.f32.mrb[0].mxu0
        %2528 = vdwg.mxu0
        %s2529 = scalar_lea.vmem %s2, 48
        %v2530 = vld [vmem:[%s2529] sm:$0xf]
        %v2531 = vld [vmem:[%s2529 + $0x4] sm:$0xf]
        %v2532 = vld [vmem:[%s2529 + $0x8] sm:$0xf]
        %v2533 = vld [vmem:[%s2529 + $0xc] sm:$0xf]
        %s2534 = scalar_lea.vmem [#allocation5], 3
        %v2535 = vld [vmem:[%s2534] sm:$0x1]
        %v2537 = vlaneseq
        %v2538 = vshrl.u32 %v2537, 7
        %v2539 = vsub.s32 0, %v2538
        %v2540 = vrot.slane %v2535, %v2539
        %v2546 = vunpack.c.l.b16 %v2530
        %v2547 = vunpack.c.l.b16 %v2531
        %v2548 = vunpack.c.l.b16 %v2532
        %v2549 = vunpack.c.l.b16 %v2533
        %v2550 = vpack.c.b16 %v2547, %v2546
        %v2551 = vpack.c.b16 %v2549, %v2548
        %2554 = vmatprep.subr.bf16.mxu0 0
        %2555 = vmatpush1.bf16.msra.mxu0 %v2550
        %2556 = vmatprep.subr.bf16.mxu0 0
        %2557 = vmatpush1.bf16.msra.mxu0 %v2551
        %2558 = vmatprep.subr.bf16.mxu0 0
        %2559 = vmatpush1.bf16.msra.mxu0 0
        %2560 = vmatprep.subr.bf16.mxu0 0
        %2561 = vmatpush1.bf16.msra.mxu0 0
        %2562 = vmatprep.subr.bf16.mxu0 0
        %2563 = vmatpush1.bf16.msra.mxu0 0
        %2564 = vmatprep.subr.bf16.mxu0 0
        %2565 = vmatpush1.bf16.msra.mxu0 0
        %2566 = vmatprep.subr.bf16.mxu0 0
        %2567 = vmatpush1.bf16.msra.mxu0 0
        %2568 = vmatprep.subr.bf16.mxu0 0
        %2569 = vmatpush1.bf16.msra.mxu0 0
        %2570 = vmatprep.subr.bf16.mxu0 0
        %2571 = vmatpush1.bf16.msra.mxu0 0
        %2572 = vmatprep.subr.bf16.mxu0 0
        %2573 = vmatpush1.bf16.msra.mxu0 0
        %2574 = vmatprep.subr.bf16.mxu0 0
        %2575 = vmatpush1.bf16.msra.mxu0 0
        %2576 = vmatprep.subr.bf16.mxu0 0
        %2577 = vmatpush1.bf16.msra.mxu0 0
        %2578 = vmatprep.subr.bf16.mxu0 0
        %2579 = vmatpush1.bf16.msra.mxu0 0
        %2580 = vmatprep.subr.bf16.mxu0 0
        %2581 = vmatpush1.bf16.msra.mxu0 0
        %2582 = vmatprep.subr.bf16.mxu0 0
        %2583 = vmatpush1.bf16.msra.mxu0 0
        %2584 = vmatprep.subr.bf16.mxu0 0
        %2585 = vmatpush1.bf16.msra.mxu0 0
        %2586 = vmatprep.mubr.bf16.mxu0 0
        %2587 = vmatmul.mubr.bf16.gmra.mrb[0].mxu0 %v519
        %v2588 = vpop.f32.mrb[0].mxu0
        %v2589 = vadd.f32 %v2540, %v2588
        %v2590 = vpop.f32.mrb[0].mxu0
        %v2591 = vpop.f32.mrb[0].mxu0
        %v2592 = vadd.f32 %v2540, %v2591
        %v2593 = vpop.f32.mrb[0].mxu0
        %2594 = vmatprep.mubr.bf16.mxu0 0
        %2595 = vmatmul.mubr.bf16.gmra.mrb[0].mxu0 %v522
        %v2596 = vpop.f32.mrb[0].mxu0
        %v2597 = vadd.f32 %v2540, %v2596
        %v2598 = vpop.f32.mrb[0].mxu0
        %v2599 = vpop.f32.mrb[0].mxu0
        %v2600 = vadd.f32 %v2540, %v2599
        %v2601 = vpop.f32.mrb[0].mxu0
        %2602 = vmatprep.mubr.bf16.mxu0 0
        %2603 = vmatmul.mubr.bf16.gmra.mrb[0].mxu0 %v525
        %v2604 = vpop.f32.mrb[0].mxu0
        %v2605 = vadd.f32 %v2540, %v2604
        %v2606 = vpop.f32.mrb[0].mxu0
        %v2607 = vpop.f32.mrb[0].mxu0
        %v2608 = vadd.f32 %v2540, %v2607
        %v2609 = vpop.f32.mrb[0].mxu0
        %2610 = vmatprep.mubr.bf16.mxu0 0
        %2611 = vmatmul.mubr.bf16.gmra.mrb[0].mxu0 %v528
        %v2612 = vpop.f32.mrb[0].mxu0
        %v2613 = vadd.f32 %v2540, %v2612
        %v2614 = vpop.f32.mrb[0].mxu0
        %v2615 = vpop.f32.mrb[0].mxu0
        %v2616 = vadd.f32 %v2540, %v2615
        %v2617 = vpop.f32.mrb[0].mxu0
        %2618 = vdwg.mxu0
        %s2619 = scalar_lea.vmem %s3, 48
        %v2620 = vld [vmem:[%s2619] sm:$0xf]
        %v2621 = vld [vmem:[%s2619 + $0x4] sm:$0xf]
        %v2622 = vld [vmem:[%s2619 + $0x8] sm:$0xf]
        %v2623 = vld [vmem:[%s2619 + $0xc] sm:$0xf]
        %s2624 = scalar_lea.vmem [#allocation7], 3
        %v2625 = vld [vmem:[%s2624] sm:$0x1]
        %v2627 = vlaneseq
        %v2628 = vshrl.u32 %v2627, 7
        %v2629 = vsub.s32 0, %v2628
        %v2630 = vrot.slane %v2625, %v2629
        %v2636 = vunpack.c.l.b16 %v2620
        %v2637 = vunpack.c.l.b16 %v2621
        %v2638 = vunpack.c.l.b16 %v2622
        %v2639 = vunpack.c.l.b16 %v2623
        %v2640 = vpack.c.b16 %v2637, %v2636
        %v2641 = vpack.c.b16 %v2639, %v2638
        %2644 = vmatprep.subr.bf16.mxu0 0
        %2645 = vmatpush1.bf16.msra.mxu0 %v2640
        %2646 = vmatprep.subr.bf16.mxu0 0
        %2647 = vmatpush1.bf16.msra.mxu0 %v2641
        %2648 = vmatprep.subr.bf16.mxu0 0
        %2649 = vmatpush1.bf16.msra.mxu0 0
        %2650 = vmatprep.subr.bf16.mxu0 0
        %2651 = vmatpush1.bf16.msra.mxu0 0
        %2652 = vmatprep.subr.bf16.mxu0 0
        %2653 = vmatpush1.bf16.msra.mxu0 0
        %2654 = vmatprep.subr.bf16.mxu0 0
        %2655 = vmatpush1.bf16.msra.mxu0 0
        %2656 = vmatprep.subr.bf16.mxu0 0
        %2657 = vmatpush1.bf16.msra.mxu0 0
        %2658 = vmatprep.subr.bf16.mxu0 0
        %2659 = vmatpush1.bf16.msra.mxu0 0
        %2660 = vmatprep.subr.bf16.mxu0 0
        %2661 = vmatpush1.bf16.msra.mxu0 0
        %2662 = vmatprep.subr.bf16.mxu0 0
        %2663 = vmatpush1.bf16.msra.mxu0 0
        %2664 = vmatprep.subr.bf16.mxu0 0
        %2665 = vmatpush1.bf16.msra.mxu0 0
        %2666 = vmatprep.subr.bf16.mxu0 0
        %2667 = vmatpush1.bf16.msra.mxu0 0
        %2668 = vmatprep.subr.bf16.mxu0 0
        %2669 = vmatpush1.bf16.msra.mxu0 0
        %2670 = vmatprep.subr.bf16.mxu0 0
        %2671 = vmatpush1.bf16.msra.mxu0 0
        %2672 = vmatprep.subr.bf16.mxu0 0
        %2673 = vmatpush1.bf16.msra.mxu0 0
        %2674 = vmatprep.subr.bf16.mxu0 0
        %2675 = vmatpush1.bf16.msra.mxu0 0
        %2676 = vmatprep.mubr.bf16.mxu0 0
        %2677 = vmatmul.mubr.bf16.gmra.mrb[0].mxu0 %v519
        %v2678 = vpop.f32.mrb[0].mxu0
        %v2679 = vadd.f32 %v2630, %v2678
        %v2680 = vpop.f32.mrb[0].mxu0
        %v2681 = vpop.f32.mrb[0].mxu0
        %v2682 = vadd.f32 %v2630, %v2681
        %v2683 = vpop.f32.mrb[0].mxu0
        %2684 = vmatprep.mubr.bf16.mxu0 0
        %2685 = vmatmul.mubr.bf16.gmra.mrb[0].mxu0 %v522
        %v2686 = vpop.f32.mrb[0].mxu0
        %v2687 = vadd.f32 %v2630, %v2686
        %v2688 = vpop.f32.mrb[0].mxu0
        %v2689 = vpop.f32.mrb[0].mxu0
        %v2690 = vadd.f32 %v2630, %v2689
        %v2691 = vpop.f32.mrb[0].mxu0
        %2692 = vmatprep.mubr.bf16.mxu0 0
        %2693 = vmatmul.mubr.bf16.gmra.mrb[0].mxu0 %v525
        %v2694 = vpop.f32.mrb[0].mxu0
        %v2695 = vadd.f32 %v2630, %v2694
        %v2696 = vpop.f32.mrb[0].mxu0
        %v2697 = vpop.f32.mrb[0].mxu0
        %v2698 = vadd.f32 %v2630, %v2697
        %v2699 = vpop.f32.mrb[0].mxu0
        %2700 = vmatprep.mubr.bf16.mxu0 0
        %2701 = vmatmul.mubr.bf16.gmra.mrb[0].mxu0 %v528
        %v2702 = vpop.f32.mrb[0].mxu0
        %v2703 = vadd.f32 %v2630, %v2702
        %v2704 = vpop.f32.mrb[0].mxu0
        %v2705 = vpop.f32.mrb[0].mxu0
        %v2706 = vadd.f32 %v2630, %v2705
        %v2707 = vpop.f32.mrb[0].mxu0
        %2708 = vdwg.mxu0
        %v2709 = vpack.c.bf16 %v2502, %v2499
        %v2710 = vpack.c.bf16 %v2510, %v2507
        %v2711 = vpack.c.bf16 %v2518, %v2515
        %v2712 = vpack.c.bf16 %v2526, %v2523
        %v2713 = vpack.c.bf16 %v2592, %v2589
        %v2714 = vpack.c.bf16 %v2600, %v2597
        %v2715 = vpack.c.bf16 %v2608, %v2605
        %v2716 = vpack.c.bf16 %v2616, %v2613
        %s2717 = scalar_lea.vmem %s7, 96
        %v2718 = vld [vmem:[%s2717] sm:$0xf]
        %v2719 = vld [vmem:[%s2717 + $0x4] sm:$0xf]
        %v2720 = vld [vmem:[%s2717 + $0x8] sm:$0xf]
        %v2721 = vld [vmem:[%s2717 + $0xc] sm:$0xf]
        %v2722 = vld [vmem:[%s2717 + $0x10] sm:$0xf]
        %v2723 = vld [vmem:[%s2717 + $0x14] sm:$0xf]
        %v2724 = vld [vmem:[%s2717 + $0x18] sm:$0xf]
        %v2725 = vld [vmem:[%s2717 + $0x1c] sm:$0xf]
        %v2726 = vunpack.c.l.bf16 %v2718
        %v2727 = vunpack.c.l.bf16 %v2719
        %v2728 = vunpack.c.l.bf16 %v2720
        %v2729 = vunpack.c.l.bf16 %v2721
        %v2730 = vunpack.c.l.bf16 %v2722
        %v2731 = vunpack.c.l.bf16 %v2723
        %v2732 = vunpack.c.l.bf16 %v2724
        %v2733 = vunpack.c.l.bf16 %v2725
        %v2735 = vsel %vm795, %v2709, 0
        %v2738 = vsel %vm795, %v2710, 0
        %v2741 = vsel %vm795, %v2711, 0
        %v2744 = vsel %vm795, %v2712, 0
        %v2747 = vsel %vm795, %v2713, 0
        %v2750 = vsel %vm795, %v2714, 0
        %v2753 = vsel %vm795, %v2715, 0
        %v2756 = vsel %vm795, %v2716, 0
        %2758 = vmatprep.subr.bf16.mxu0 0
        %2759 = vmatpush1.bf16.xpose.msra.mxu0 %v2747
        %2760 = vmatprep.subr.bf16.mxu0 0
        %2761 = vmatpush1.bf16.xpose.msra.mxu0 %v2750
        %2762 = vmatprep.subr.bf16.mxu0 0
        %2763 = vmatpush1.bf16.xpose.msra.mxu0 %v2753
        %2764 = vmatprep.subr.bf16.mxu0 0
        %2765 = vmatpush1.bf16.xpose.msra.mxu0 %v2756
        %2766 = vmatprep.subr.bf16.mxu0 0
        %2767 = vmatpush1.bf16.xpose.msra.mxu0 0
        %2768 = vmatprep.subr.bf16.mxu0 0
        %2769 = vmatpush1.bf16.xpose.msra.mxu0 0
        %2770 = vmatprep.subr.bf16.mxu0 0
        %2771 = vmatpush1.bf16.xpose.msra.mxu0 0
        %2772 = vmatprep.subr.bf16.mxu0 0
        %2773 = vmatpush1.bf16.xpose.msra.mxu0 0
        %2774 = vmatprep.subr.bf16.mxu0 0
        %2775 = vmatpush1.bf16.xpose.msra.mxu0 0
        %2776 = vmatprep.subr.bf16.mxu0 0
        %2777 = vmatpush1.bf16.xpose.msra.mxu0 0
        %2778 = vmatprep.subr.bf16.mxu0 0
        %2779 = vmatpush1.bf16.xpose.msra.mxu0 0
        %2780 = vmatprep.subr.bf16.mxu0 0
        %2781 = vmatpush1.bf16.xpose.msra.mxu0 0
        %2782 = vmatprep.subr.bf16.mxu0 0
        %2783 = vmatpush1.bf16.xpose.msra.mxu0 0
        %2784 = vmatprep.subr.bf16.mxu0 0
        %2785 = vmatpush1.bf16.xpose.msra.mxu0 0
        %2786 = vmatprep.subr.bf16.mxu0 0
        %2787 = vmatpush1.bf16.xpose.msra.mxu0 0
        %2788 = vmatprep.subr.bf16.mxu0 0
        %2789 = vmatpush1.bf16.xpose.msra.mxu0 0
        %2790 = vmatprep.mubr.bf16.mxu0 0
        %2791 = vmatmul.mubr.bf16.gmra.mrb[0].mxu0 %v2735
        %v2792 = vpop.f32.mrb[0].mxu0
        %v2793 = vadd.f32 %v2726, %v2792
        %v2794 = vpop.f32.mrb[0].mxu0
        %v2795 = vpop.f32.mrb[0].mxu0
        %v2796 = vadd.f32 %v2727, %v2795
        %v2797 = vpop.f32.mrb[0].mxu0
        %2798 = vmatprep.mubr.bf16.mxu0 0
        %2799 = vmatmul.mubr.bf16.gmra.mrb[0].mxu0 %v2738
        %v2800 = vpop.f32.mrb[0].mxu0
        %v2801 = vadd.f32 %v2728, %v2800
        %v2802 = vpop.f32.mrb[0].mxu0
        %v2803 = vpop.f32.mrb[0].mxu0
        %v2804 = vadd.f32 %v2729, %v2803
        %v2805 = vpop.f32.mrb[0].mxu0
        %2806 = vmatprep.mubr.bf16.mxu0 0
        %2807 = vmatmul.mubr.bf16.gmra.mrb[0].mxu0 %v2741
        %v2808 = vpop.f32.mrb[0].mxu0
        %v2809 = vadd.f32 %v2730, %v2808
        %v2810 = vpop.f32.mrb[0].mxu0
        %v2811 = vpop.f32.mrb[0].mxu0
        %v2812 = vadd.f32 %v2731, %v2811
        %v2813 = vpop.f32.mrb[0].mxu0
        %2814 = vmatprep.mubr.bf16.mxu0 0
        %2815 = vmatmul.mubr.bf16.gmra.mrb[0].mxu0 %v2744
        %v2816 = vpop.f32.mrb[0].mxu0
        %v2817 = vadd.f32 %v2732, %v2816
        %v2818 = vpop.f32.mrb[0].mxu0
        %v2819 = vpop.f32.mrb[0].mxu0
        %v2820 = vadd.f32 %v2733, %v2819
        %v2821 = vpop.f32.mrb[0].mxu0
        %2822 = vdwg.mxu0
        %v2823 = vsel %vm885, %v2793, -inf
        %2824 = vmax.xlane.f32.xlu0 %v2823
        %v2825 = vpop.xlane.xlu0 %2824
        %v2826 = vsel %vm885, %v2796, -inf
        %2827 = vmax.xlane.f32.xlu0 %v2826
        %v2828 = vpop.xlane.xlu0 %2827
        %v2829 = vsel %vm885, %v2801, -inf
        %2830 = vmax.xlane.f32.xlu0 %v2829
        %v2831 = vpop.xlane.xlu0 %2830
        %v2832 = vsel %vm885, %v2804, -inf
        %2833 = vmax.xlane.f32.xlu0 %v2832
        %v2834 = vpop.xlane.xlu0 %2833
        %v2835 = vsel %vm885, %v2809, -inf
        %2836 = vmax.xlane.f32.xlu0 %v2835
        %v2837 = vpop.xlane.xlu0 %2836
        %v2838 = vsel %vm885, %v2812, -inf
        %2839 = vmax.xlane.f32.xlu0 %v2838
        %v2840 = vpop.xlane.xlu0 %2839
        %v2841 = vsel %vm885, %v2817, -inf
        %2842 = vmax.xlane.f32.xlu0 %v2841
        %v2843 = vpop.xlane.xlu0 %2842
        %v2844 = vsel %vm885, %v2820, -inf
        %2845 = vmax.xlane.f32.xlu0 %v2844
        %v2846 = vpop.xlane.xlu0 %2845
        %v2847 = vsub.f32 %v2793, %v2825
        %v2848 = vsub.f32 %v2796, %v2828
        %v2849 = vsub.f32 %v2801, %v2831
        %v2850 = vsub.f32 %v2804, %v2834
        %v2851 = vsub.f32 %v2809, %v2837
        %v2852 = vsub.f32 %v2812, %v2840
        %v2853 = vsub.f32 %v2817, %v2843
        %v2854 = vsub.f32 %v2820, %v2846
        %v2855 = vmul.f32 %v2847, 1.442695
        %v2856 = vpow.pop %v2855
        %v2857 = vmul.f32 %v2848, 1.442695
        %v2858 = vpow.pop %v2857
        %v2859 = vmul.f32 %v2849, 1.442695
        %v2860 = vpow.pop %v2859
        %v2861 = vmul.f32 %v2850, 1.442695
        %v2862 = vpow.pop %v2861
        %v2863 = vmul.f32 %v2851, 1.442695
        %v2864 = vpow.pop %v2863
        %v2865 = vmul.f32 %v2852, 1.442695
        %v2866 = vpow.pop %v2865
        %v2867 = vmul.f32 %v2853, 1.442695
        %v2868 = vpow.pop %v2867
        %v2869 = vmul.f32 %v2854, 1.442695
        %v2870 = vpow.pop %v2869
        %v2871 = vsel %vm885, %v2856, 0.0
        %2872 = vadd.xlane.f32.xlu0 %v2871
        %v2873 = vpop.xlane.xlu0 %2872
        %v2874 = vsel %vm885, %v2858, 0.0
        %2875 = vadd.xlane.f32.xlu0 %v2874
        %v2876 = vpop.xlane.xlu0 %2875
        %v2877 = vsel %vm885, %v2860, 0.0
        %2878 = vadd.xlane.f32.xlu0 %v2877
        %v2879 = vpop.xlane.xlu0 %2878
        %v2880 = vsel %vm885, %v2862, 0.0
        %2881 = vadd.xlane.f32.xlu0 %v2880
        %v2882 = vpop.xlane.xlu0 %2881
        %v2883 = vsel %vm885, %v2864, 0.0
        %2884 = vadd.xlane.f32.xlu0 %v2883
        %v2885 = vpop.xlane.xlu0 %2884
        %v2886 = vsel %vm885, %v2866, 0.0
        %2887 = vadd.xlane.f32.xlu0 %v2886
        %v2888 = vpop.xlane.xlu0 %2887
        %v2889 = vsel %vm885, %v2868, 0.0
        %2890 = vadd.xlane.f32.xlu0 %v2889
        %v2891 = vpop.xlane.xlu0 %2890
        %v2892 = vsel %vm885, %v2870, 0.0
        %2893 = vadd.xlane.f32.xlu0 %v2892
        %v2894 = vpop.xlane.xlu0 %2893
        %v2895 = vrcp.pop %v2873
        %v2896 = vrcp.pop %v2876
        %v2897 = vrcp.pop %v2879
        %v2898 = vrcp.pop %v2882
        %v2899 = vrcp.pop %v2885
        %v2900 = vrcp.pop %v2888
        %v2901 = vrcp.pop %v2891
        %v2902 = vrcp.pop %v2894
        %v2903 = vmul.f32 %v2856, %v2895
        %v2904 = vmul.f32 %v2858, %v2896
        %v2905 = vmul.f32 %v2860, %v2897
        %v2906 = vmul.f32 %v2862, %v2898
        %v2907 = vmul.f32 %v2864, %v2899
        %v2908 = vmul.f32 %v2866, %v2900
        %v2909 = vmul.f32 %v2868, %v2901
        %v2910 = vmul.f32 %v2870, %v2902
        %v2911 = vpack.c.bf16 %v2904, %v2903
        %v2912 = vpack.c.bf16 %v2906, %v2905
        %v2913 = vpack.c.bf16 %v2908, %v2907
        %v2914 = vpack.c.bf16 %v2910, %v2909
        %v2915 = vpack.c.bf16 %v2682, %v2679
        %v2916 = vpack.c.bf16 %v2690, %v2687
        %v2917 = vpack.c.bf16 %v2698, %v2695
        %v2918 = vpack.c.bf16 %v2706, %v2703
        %v2920 = vsel %vm885, %v2911, 0
        %v2923 = vsel %vm885, %v2912, 0
        %v2926 = vsel %vm885, %v2913, 0
        %v2929 = vsel %vm885, %v2914, 0
        %2931 = vmatprep.subr.bf16.mxu0 0
        %2932 = vmatpush1.bf16.msra.mxu0 %v2915
        %2933 = vmatprep.subr.bf16.mxu0 0
        %2934 = vmatpush1.bf16.msra.mxu0 %v2916
        %2935 = vmatprep.subr.bf16.mxu0 0
        %2936 = vmatpush1.bf16.msra.mxu0 %v2917
        %2937 = vmatprep.subr.bf16.mxu0 0
        %2938 = vmatpush1.bf16.msra.mxu0 %v2918
        %2939 = vmatprep.subr.bf16.mxu0 0
        %2940 = vmatpush1.bf16.msra.mxu0 0
        %2941 = vmatprep.subr.bf16.mxu0 0
        %2942 = vmatpush1.bf16.msra.mxu0 0
        %2943 = vmatprep.subr.bf16.mxu0 0
        %2944 = vmatpush1.bf16.msra.mxu0 0
        %2945 = vmatprep.subr.bf16.mxu0 0
        %2946 = vmatpush1.bf16.msra.mxu0 0
        %2947 = vmatprep.subr.bf16.mxu0 0
        %2948 = vmatpush1.bf16.msra.mxu0 0
        %2949 = vmatprep.subr.bf16.mxu0 0
        %2950 = vmatpush1.bf16.msra.mxu0 0
        %2951 = vmatprep.subr.bf16.mxu0 0
        %2952 = vmatpush1.bf16.msra.mxu0 0
        %2953 = vmatprep.subr.bf16.mxu0 0
        %2954 = vmatpush1.bf16.msra.mxu0 0
        %2955 = vmatprep.subr.bf16.mxu0 0
        %2956 = vmatpush1.bf16.msra.mxu0 0
        %2957 = vmatprep.subr.bf16.mxu0 0
        %2958 = vmatpush1.bf16.msra.mxu0 0
        %2959 = vmatprep.subr.bf16.mxu0 0
        %2960 = vmatpush1.bf16.msra.mxu0 0
        %2961 = vmatprep.subr.bf16.mxu0 0
        %2962 = vmatpush1.bf16.msra.mxu0 0
        %2963 = vmatprep.mubr.bf16.mxu0 0
        %2964 = vmatmul.mubr.bf16.gmra.mrb[0].mxu0 %v2920
        %v2965 = vpop.f32.mrb[0].mxu0
        %v2966 = vadd.f32 0.0, %v2965
        %v2967 = vpop.f32.mrb[0].mxu0
        %v2968 = vpop.f32.mrb[0].mxu0
        %v2969 = vadd.f32 0.0, %v2968
        %v2970 = vpop.f32.mrb[0].mxu0
        %2971 = vmatprep.mubr.bf16.mxu0 0
        %2972 = vmatmul.mubr.bf16.gmra.mrb[0].mxu0 %v2923
        %v2973 = vpop.f32.mrb[0].mxu0
        %v2974 = vadd.f32 0.0, %v2973
        %v2975 = vpop.f32.mrb[0].mxu0
        %v2976 = vpop.f32.mrb[0].mxu0
        %v2977 = vadd.f32 0.0, %v2976
        %v2978 = vpop.f32.mrb[0].mxu0
        %2979 = vmatprep.mubr.bf16.mxu0 0
        %2980 = vmatmul.mubr.bf16.gmra.mrb[0].mxu0 %v2926
        %v2981 = vpop.f32.mrb[0].mxu0
        %v2982 = vadd.f32 0.0, %v2981
        %v2983 = vpop.f32.mrb[0].mxu0
        %v2984 = vpop.f32.mrb[0].mxu0
        %v2985 = vadd.f32 0.0, %v2984
        %v2986 = vpop.f32.mrb[0].mxu0
        %2987 = vmatprep.mubr.bf16.mxu0 0
        %2988 = vmatmul.mubr.bf16.gmra.mrb[0].mxu0 %v2929
        %v2989 = vpop.f32.mrb[0].mxu0
        %v2990 = vadd.f32 0.0, %v2989
        %v2991 = vpop.f32.mrb[0].mxu0
        %v2992 = vpop.f32.mrb[0].mxu0
        %v2993 = vadd.f32 0.0, %v2992
        %v2994 = vpop.f32.mrb[0].mxu0
        %2995 = vdwg.mxu0
        %v2996 = vpack.c.bf16 %v2969, %v2966
        %v2997 = vpack.c.bf16 %v2977, %v2974
        %v2998 = vpack.c.bf16 %v2985, %v2982
        %v2999 = vpack.c.bf16 %v2993, %v2990
        %s3000 = scalar_lea.vmem %s8, 12
        %v3001 = vld [vmem:[%s3000] sm:$0xf]
        %v3003 = vsel %vm795, %v2996, 0
        %v3006 = vsel %vm795, %v2997, 0
        %v3009 = vsel %vm795, %v2998, 0
        %v3012 = vsel %vm795, %v2999, 0
        %v3015 = vsel %vm1639, %v3001, 0
        %3017 = vmatprep.subr.bf16.mxu0 0
        %3018 = vmatpush1.bf16.msra.mxu0 %v3015
        %3019 = vmatprep.subr.bf16.mxu0 0
        %3020 = vmatpush1.bf16.msra.mxu0 0
        %3021 = vmatprep.subr.bf16.mxu0 0
        %3022 = vmatpush1.bf16.msra.mxu0 0
        %3023 = vmatprep.subr.bf16.mxu0 0
        %3024 = vmatpush1.bf16.msra.mxu0 0
        %3025 = vmatprep.subr.bf16.mxu0 0
        %3026 = vmatpush1.bf16.msra.mxu0 0
        %3027 = vmatprep.subr.bf16.mxu0 0
        %3028 = vmatpush1.bf16.msra.mxu0 0
        %3029 = vmatprep.subr.bf16.mxu0 0
        %3030 = vmatpush1.bf16.msra.mxu0 0
        %3031 = vmatprep.subr.bf16.mxu0 0
        %3032 = vmatpush1.bf16.msra.mxu0 0
        %3033 = vmatprep.subr.bf16.mxu0 0
        %3034 = vmatpush1.bf16.msra.mxu0 0
        %3035 = vmatprep.subr.bf16.mxu0 0
        %3036 = vmatpush1.bf16.msra.mxu0 0
        %3037 = vmatprep.subr.bf16.mxu0 0
        %3038 = vmatpush1.bf16.msra.mxu0 0
        %3039 = vmatprep.subr.bf16.mxu0 0
        %3040 = vmatpush1.bf16.msra.mxu0 0
        %3041 = vmatprep.subr.bf16.mxu0 0
        %3042 = vmatpush1.bf16.msra.mxu0 0
        %3043 = vmatprep.subr.bf16.mxu0 0
        %3044 = vmatpush1.bf16.msra.mxu0 0
        %3045 = vmatprep.subr.bf16.mxu0 0
        %3046 = vmatpush1.bf16.msra.mxu0 0
        %3047 = vmatprep.subr.bf16.mxu0 0
        %3048 = vmatpush1.bf16.msra.mxu0 0
        %3049 = vmatprep.mubr.bf16.mxu0 0
        %3050 = vmatmul.mubr.bf16.gmra.mrb[0].mxu0 %v3003
        %v3051 = vpop.f32.mrb[0].mxu0
        %v3052 = vadd.f32 0.0, %v3051
        %v3053 = vpop.f32.mrb[0].mxu0
        %v3054 = vpop.f32.mrb[0].mxu0
        %v3055 = vadd.f32 0.0, %v3054
        %v3056 = vpop.f32.mrb[0].mxu0
        %3057 = vmatprep.mubr.bf16.mxu0 0
        %3058 = vmatmul.mubr.bf16.gmra.mrb[0].mxu0 %v3006
        %v3059 = vpop.f32.mrb[0].mxu0
        %v3060 = vadd.f32 0.0, %v3059
        %v3061 = vpop.f32.mrb[0].mxu0
        %v3062 = vpop.f32.mrb[0].mxu0
        %v3063 = vadd.f32 0.0, %v3062
        %v3064 = vpop.f32.mrb[0].mxu0
        %3065 = vmatprep.mubr.bf16.mxu0 0
        %3066 = vmatmul.mubr.bf16.gmra.mrb[0].mxu0 %v3009
        %v3067 = vpop.f32.mrb[0].mxu0
        %v3068 = vadd.f32 0.0, %v3067
        %v3069 = vpop.f32.mrb[0].mxu0
        %v3070 = vpop.f32.mrb[0].mxu0
        %v3071 = vadd.f32 0.0, %v3070
        %v3072 = vpop.f32.mrb[0].mxu0
        %3073 = vmatprep.mubr.bf16.mxu0 0
        %3074 = vmatmul.mubr.bf16.gmra.mrb[0].mxu0 %v3012
        %v3075 = vpop.f32.mrb[0].mxu0
        %v3076 = vadd.f32 0.0, %v3075
        %v3077 = vpop.f32.mrb[0].mxu0
        %v3078 = vpop.f32.mrb[0].mxu0
        %v3079 = vadd.f32 0.0, %v3078
        %v3080 = vpop.f32.mrb[0].mxu0
        %3081 = vdwg.mxu0
        %v3082 = vadd.f32 %v2431, %v3052
        %v3083 = vadd.f32 %v2432, %v3055
        %v3084 = vadd.f32 %v2433, %v3060
        %v3085 = vadd.f32 %v2434, %v3063
        %v3086 = vadd.f32 %v2435, %v3068
        %v3087 = vadd.f32 %v2436, %v3071
        %v3088 = vadd.f32 %v2437, %v3076
        %v3089 = vadd.f32 %v2438, %v3079
        %v3090 = vld [vmem:[%s9] sm:$0x1]
        %v3092 = vlaneseq
        %v3093 = vshrl.u32 %v3092, 7
        %v3094 = vsub.s32 0, %v3093
        %v3095 = vrot.slane %v3090, %v3094
        %v3097 = vadd.f32 %v3082, %v3095
        %v3098 = vadd.f32 %v3083, %v3095
        %v3099 = vadd.f32 %v3084, %v3095
        %v3100 = vadd.f32 %v3085, %v3095
        %v3101 = vadd.f32 %v3086, %v3095
        %v3102 = vadd.f32 %v3087, %v3095
        %v3103 = vadd.f32 %v3088, %v3095
        %v3104 = vadd.f32 %v3089, %v3095
        %v3105 = vpack.c.bf16 %v3098, %v3097
        %v3106 = vpack.c.bf16 %v3100, %v3099
        %v3107 = vpack.c.bf16 %v3102, %v3101
        %v3108 = vpack.c.bf16 %v3104, %v3103
        %s3109 = scalar_lea.vmem %s1, 64
        %v3110 = vld [vmem:[%s3109] sm:$0xf]
        %v3111 = vld [vmem:[%s3109 + $0x4] sm:$0xf]
        %v3112 = vld [vmem:[%s3109 + $0x8] sm:$0xf]
        %v3113 = vld [vmem:[%s3109 + $0xc] sm:$0xf]
        %s3114 = scalar_lea.vmem [#allocation2], 4
        %v3115 = vld [vmem:[%s3114] sm:$0x1]
        %v3117 = vlaneseq
        %v3118 = vshrl.u32 %v3117, 7
        %v3119 = vsub.s32 0, %v3118
        %v3120 = vrot.slane %v3115, %v3119
        %v3126 = vunpack.c.l.b16 %v3110
        %v3127 = vunpack.c.l.b16 %v3111
        %v3128 = vunpack.c.l.b16 %v3112
        %v3129 = vunpack.c.l.b16 %v3113
        %v3130 = vpack.c.b16 %v3127, %v3126
        %v3131 = vpack.c.b16 %v3129, %v3128
        %v3135 = vsel %vm517, %v3105, 0
        %v3138 = vsel %vm517, %v3106, 0
        %v3141 = vsel %vm517, %v3107, 0
        %v3144 = vsel %vm517, %v3108, 0
        %3146 = vmatprep.subr.bf16.mxu0 0
        %3147 = vmatpush1.bf16.msra.mxu0 %v3130
        %3148 = vmatprep.subr.bf16.mxu0 0
        %3149 = vmatpush1.bf16.msra.mxu0 %v3131
        %3150 = vmatprep.subr.bf16.mxu0 0
        %3151 = vmatpush1.bf16.msra.mxu0 0
        %3152 = vmatprep.subr.bf16.mxu0 0
        %3153 = vmatpush1.bf16.msra.mxu0 0
        %3154 = vmatprep.subr.bf16.mxu0 0
        %3155 = vmatpush1.bf16.msra.mxu0 0
        %3156 = vmatprep.subr.bf16.mxu0 0
        %3157 = vmatpush1.bf16.msra.mxu0 0
        %3158 = vmatprep.subr.bf16.mxu0 0
        %3159 = vmatpush1.bf16.msra.mxu0 0
        %3160 = vmatprep.subr.bf16.mxu0 0
        %3161 = vmatpush1.bf16.msra.mxu0 0
        %3162 = vmatprep.subr.bf16.mxu0 0
        %3163 = vmatpush1.bf16.msra.mxu0 0
        %3164 = vmatprep.subr.bf16.mxu0 0
        %3165 = vmatpush1.bf16.msra.mxu0 0
        %3166 = vmatprep.subr.bf16.mxu0 0
        %3167 = vmatpush1.bf16.msra.mxu0 0
        %3168 = vmatprep.subr.bf16.mxu0 0
        %3169 = vmatpush1.bf16.msra.mxu0 0
        %3170 = vmatprep.subr.bf16.mxu0 0
        %3171 = vmatpush1.bf16.msra.mxu0 0
        %3172 = vmatprep.subr.bf16.mxu0 0
        %3173 = vmatpush1.bf16.msra.mxu0 0
        %3174 = vmatprep.subr.bf16.mxu0 0
        %3175 = vmatpush1.bf16.msra.mxu0 0
        %3176 = vmatprep.subr.bf16.mxu0 0
        %3177 = vmatpush1.bf16.msra.mxu0 0
        %3178 = vmatprep.mubr.bf16.mxu0 0
        %3179 = vmatmul.mubr.bf16.gmra.mrb[0].mxu0 %v3135
        %v3180 = vpop.f32.mrb[0].mxu0
        %v3181 = vadd.f32 %v3120, %v3180
        %v3182 = vpop.f32.mrb[0].mxu0
        %v3183 = vpop.f32.mrb[0].mxu0
        %v3184 = vadd.f32 %v3120, %v3183
        %v3185 = vpop.f32.mrb[0].mxu0
        %3186 = vmatprep.mubr.bf16.mxu0 0
        %3187 = vmatmul.mubr.bf16.gmra.mrb[0].mxu0 %v3138
        %v3188 = vpop.f32.mrb[0].mxu0
        %v3189 = vadd.f32 %v3120, %v3188
        %v3190 = vpop.f32.mrb[0].mxu0
        %v3191 = vpop.f32.mrb[0].mxu0
        %v3192 = vadd.f32 %v3120, %v3191
        %v3193 = vpop.f32.mrb[0].mxu0
        %3194 = vmatprep.mubr.bf16.mxu0 0
        %3195 = vmatmul.mubr.bf16.gmra.mrb[0].mxu0 %v3141
        %v3196 = vpop.f32.mrb[0].mxu0
        %v3197 = vadd.f32 %v3120, %v3196
        %v3198 = vpop.f32.mrb[0].mxu0
        %v3199 = vpop.f32.mrb[0].mxu0
        %v3200 = vadd.f32 %v3120, %v3199
        %v3201 = vpop.f32.mrb[0].mxu0
        %3202 = vmatprep.mubr.bf16.mxu0 0
        %3203 = vmatmul.mubr.bf16.gmra.mrb[0].mxu0 %v3144
        %v3204 = vpop.f32.mrb[0].mxu0
        %v3205 = vadd.f32 %v3120, %v3204
        %v3206 = vpop.f32.mrb[0].mxu0
        %v3207 = vpop.f32.mrb[0].mxu0
        %v3208 = vadd.f32 %v3120, %v3207
        %v3209 = vpop.f32.mrb[0].mxu0
        %3210 = vdwg.mxu0
        %s3211 = scalar_lea.vmem %s2, 64
        %v3212 = vld [vmem:[%s3211] sm:$0xf]
        %v3213 = vld [vmem:[%s3211 + $0x4] sm:$0xf]
        %v3214 = vld [vmem:[%s3211 + $0x8] sm:$0xf]
        %v3215 = vld [vmem:[%s3211 + $0xc] sm:$0xf]
        %s3216 = scalar_lea.vmem [#allocation5], 4
        %v3217 = vld [vmem:[%s3216] sm:$0x1]
        %v3219 = vlaneseq
        %v3220 = vshrl.u32 %v3219, 7
        %v3221 = vsub.s32 0, %v3220
        %v3222 = vrot.slane %v3217, %v3221
        %v3228 = vunpack.c.l.b16 %v3212
        %v3229 = vunpack.c.l.b16 %v3213
        %v3230 = vunpack.c.l.b16 %v3214
        %v3231 = vunpack.c.l.b16 %v3215
        %v3232 = vpack.c.b16 %v3229, %v3228
        %v3233 = vpack.c.b16 %v3231, %v3230
        %3236 = vmatprep.subr.bf16.mxu0 0
        %3237 = vmatpush1.bf16.msra.mxu0 %v3232
        %3238 = vmatprep.subr.bf16.mxu0 0
        %3239 = vmatpush1.bf16.msra.mxu0 %v3233
        %3240 = vmatprep.subr.bf16.mxu0 0
        %3241 = vmatpush1.bf16.msra.mxu0 0
        %3242 = vmatprep.subr.bf16.mxu0 0
        %3243 = vmatpush1.bf16.msra.mxu0 0
        %3244 = vmatprep.subr.bf16.mxu0 0
        %3245 = vmatpush1.bf16.msra.mxu0 0
        %3246 = vmatprep.subr.bf16.mxu0 0
        %3247 = vmatpush1.bf16.msra.mxu0 0
        %3248 = vmatprep.subr.bf16.mxu0 0
        %3249 = vmatpush1.bf16.msra.mxu0 0
        %3250 = vmatprep.subr.bf16.mxu0 0
        %3251 = vmatpush1.bf16.msra.mxu0 0
        %3252 = vmatprep.subr.bf16.mxu0 0
        %3253 = vmatpush1.bf16.msra.mxu0 0
        %3254 = vmatprep.subr.bf16.mxu0 0
        %3255 = vmatpush1.bf16.msra.mxu0 0
        %3256 = vmatprep.subr.bf16.mxu0 0
        %3257 = vmatpush1.bf16.msra.mxu0 0
        %3258 = vmatprep.subr.bf16.mxu0 0
        %3259 = vmatpush1.bf16.msra.mxu0 0
        %3260 = vmatprep.subr.bf16.mxu0 0
        %3261 = vmatpush1.bf16.msra.mxu0 0
        %3262 = vmatprep.subr.bf16.mxu0 0
        %3263 = vmatpush1.bf16.msra.mxu0 0
        %3264 = vmatprep.subr.bf16.mxu0 0
        %3265 = vmatpush1.bf16.msra.mxu0 0
        %3266 = vmatprep.subr.bf16.mxu0 0
        %3267 = vmatpush1.bf16.msra.mxu0 0
        %3268 = vmatprep.mubr.bf16.mxu0 0
        %3269 = vmatmul.mubr.bf16.gmra.mrb[0].mxu0 %v3135
        %v3270 = vpop.f32.mrb[0].mxu0
        %v3271 = vadd.f32 %v3222, %v3270
        %v3272 = vpop.f32.mrb[0].mxu0
        %v3273 = vpop.f32.mrb[0].mxu0
        %v3274 = vadd.f32 %v3222, %v3273
        %v3275 = vpop.f32.mrb[0].mxu0
        %3276 = vmatprep.mubr.bf16.mxu0 0
        %3277 = vmatmul.mubr.bf16.gmra.mrb[0].mxu0 %v3138
        %v3278 = vpop.f32.mrb[0].mxu0
        %v3279 = vadd.f32 %v3222, %v3278
        %v3280 = vpop.f32.mrb[0].mxu0
        %v3281 = vpop.f32.mrb[0].mxu0
        %v3282 = vadd.f32 %v3222, %v3281
        %v3283 = vpop.f32.mrb[0].mxu0
        %3284 = vmatprep.mubr.bf16.mxu0 0
        %3285 = vmatmul.mubr.bf16.gmra.mrb[0].mxu0 %v3141
        %v3286 = vpop.f32.mrb[0].mxu0
        %v3287 = vadd.f32 %v3222, %v3286
        %v3288 = vpop.f32.mrb[0].mxu0
        %v3289 = vpop.f32.mrb[0].mxu0
        %v3290 = vadd.f32 %v3222, %v3289
        %v3291 = vpop.f32.mrb[0].mxu0
        %3292 = vmatprep.mubr.bf16.mxu0 0
        %3293 = vmatmul.mubr.bf16.gmra.mrb[0].mxu0 %v3144
        %v3294 = vpop.f32.mrb[0].mxu0
        %v3295 = vadd.f32 %v3222, %v3294
        %v3296 = vpop.f32.mrb[0].mxu0
        %v3297 = vpop.f32.mrb[0].mxu0
        %v3298 = vadd.f32 %v3222, %v3297
        %v3299 = vpop.f32.mrb[0].mxu0
        %3300 = vdwg.mxu0
        %s3301 = scalar_lea.vmem %s3, 64
        %v3302 = vld [vmem:[%s3301] sm:$0xf]
        %v3303 = vld [vmem:[%s3301 + $0x4] sm:$0xf]
        %v3304 = vld [vmem:[%s3301 + $0x8] sm:$0xf]
        %v3305 = vld [vmem:[%s3301 + $0xc] sm:$0xf]
        %s3306 = scalar_lea.vmem [#allocation7], 4
        %v3307 = vld [vmem:[%s3306] sm:$0x1]
        %v3309 = vlaneseq
        %v3310 = vshrl.u32 %v3309, 7
        %v3311 = vsub.s32 0, %v3310
        %v3312 = vrot.slane %v3307, %v3311
        %v3318 = vunpack.c.l.b16 %v3302
        %v3319 = vunpack.c.l.b16 %v3303
        %v3320 = vunpack.c.l.b16 %v3304
        %v3321 = vunpack.c.l.b16 %v3305
        %v3322 = vpack.c.b16 %v3319, %v3318
        %v3323 = vpack.c.b16 %v3321, %v3320
        %3326 = vmatprep.subr.bf16.mxu0 0
        %3327 = vmatpush1.bf16.msra.mxu0 %v3322
        %3328 = vmatprep.subr.bf16.mxu0 0
        %3329 = vmatpush1.bf16.msra.mxu0 %v3323
        %3330 = vmatprep.subr.bf16.mxu0 0
        %3331 = vmatpush1.bf16.msra.mxu0 0
        %3332 = vmatprep.subr.bf16.mxu0 0
        %3333 = vmatpush1.bf16.msra.mxu0 0
        %3334 = vmatprep.subr.bf16.mxu0 0
        %3335 = vmatpush1.bf16.msra.mxu0 0
        %3336 = vmatprep.subr.bf16.mxu0 0
        %3337 = vmatpush1.bf16.msra.mxu0 0
        %3338 = vmatprep.subr.bf16.mxu0 0
        %3339 = vmatpush1.bf16.msra.mxu0 0
        %3340 = vmatprep.subr.bf16.mxu0 0
        %3341 = vmatpush1.bf16.msra.mxu0 0
        %3342 = vmatprep.subr.bf16.mxu0 0
        %3343 = vmatpush1.bf16.msra.mxu0 0
        %3344 = vmatprep.subr.bf16.mxu0 0
        %3345 = vmatpush1.bf16.msra.mxu0 0
        %3346 = vmatprep.subr.bf16.mxu0 0
        %3347 = vmatpush1.bf16.msra.mxu0 0
        %3348 = vmatprep.subr.bf16.mxu0 0
        %3349 = vmatpush1.bf16.msra.mxu0 0
        %3350 = vmatprep.subr.bf16.mxu0 0
        %3351 = vmatpush1.bf16.msra.mxu0 0
        %3352 = vmatprep.subr.bf16.mxu0 0
        %3353 = vmatpush1.bf16.msra.mxu0 0
        %3354 = vmatprep.subr.bf16.mxu0 0
        %3355 = vmatpush1.bf16.msra.mxu0 0
        %3356 = vmatprep.subr.bf16.mxu0 0
        %3357 = vmatpush1.bf16.msra.mxu0 0
        %3358 = vmatprep.mubr.bf16.mxu0 0
        %3359 = vmatmul.mubr.bf16.gmra.mrb[0].mxu0 %v3135
        %v3360 = vpop.f32.mrb[0].mxu0
        %v3361 = vadd.f32 %v3312, %v3360
        %v3362 = vpop.f32.mrb[0].mxu0
        %v3363 = vpop.f32.mrb[0].mxu0
        %v3364 = vadd.f32 %v3312, %v3363
        %v3365 = vpop.f32.mrb[0].mxu0
        %3366 = vmatprep.mubr.bf16.mxu0 0
        %3367 = vmatmul.mubr.bf16.gmra.mrb[0].mxu0 %v3138
        %v3368 = vpop.f32.mrb[0].mxu0
        %v3369 = vadd.f32 %v3312, %v3368
        %v3370 = vpop.f32.mrb[0].mxu0
        %v3371 = vpop.f32.mrb[0].mxu0
        %v3372 = vadd.f32 %v3312, %v3371
        %v3373 = vpop.f32.mrb[0].mxu0
        %3374 = vmatprep.mubr.bf16.mxu0 0
        %3375 = vmatmul.mubr.bf16.gmra.mrb[0].mxu0 %v3141
        %v3376 = vpop.f32.mrb[0].mxu0
        %v3377 = vadd.f32 %v3312, %v3376
        %v3378 = vpop.f32.mrb[0].mxu0
        %v3379 = vpop.f32.mrb[0].mxu0
        %v3380 = vadd.f32 %v3312, %v3379
        %v3381 = vpop.f32.mrb[0].mxu0
        %3382 = vmatprep.mubr.bf16.mxu0 0
        %3383 = vmatmul.mubr.bf16.gmra.mrb[0].mxu0 %v3144
        %v3384 = vpop.f32.mrb[0].mxu0
        %v3385 = vadd.f32 %v3312, %v3384
        %v3386 = vpop.f32.mrb[0].mxu0
        %v3387 = vpop.f32.mrb[0].mxu0
        %v3388 = vadd.f32 %v3312, %v3387
        %v3389 = vpop.f32.mrb[0].mxu0
        %3390 = vdwg.mxu0
        %v3391 = vpack.c.bf16 %v3184, %v3181
        %v3392 = vpack.c.bf16 %v3192, %v3189
        %v3393 = vpack.c.bf16 %v3200, %v3197
        %v3394 = vpack.c.bf16 %v3208, %v3205
        %v3395 = vpack.c.bf16 %v3274, %v3271
        %v3396 = vpack.c.bf16 %v3282, %v3279
        %v3397 = vpack.c.bf16 %v3290, %v3287
        %v3398 = vpack.c.bf16 %v3298, %v3295
        %s3399 = scalar_lea.vmem %s7, 128
        %v3400 = vld [vmem:[%s3399] sm:$0xf]
        %v3401 = vld [vmem:[%s3399 + $0x4] sm:$0xf]
        %v3402 = vld [vmem:[%s3399 + $0x8] sm:$0xf]
        %v3403 = vld [vmem:[%s3399 + $0xc] sm:$0xf]
        %v3404 = vld [vmem:[%s3399 + $0x10] sm:$0xf]
        %v3405 = vld [vmem:[%s3399 + $0x14] sm:$0xf]
        %v3406 = vld [vmem:[%s3399 + $0x18] sm:$0xf]
        %v3407 = vld [vmem:[%s3399 + $0x1c] sm:$0xf]
        %v3408 = vunpack.c.l.bf16 %v3400
        %v3409 = vunpack.c.l.bf16 %v3401
        %v3410 = vunpack.c.l.bf16 %v3402
        %v3411 = vunpack.c.l.bf16 %v3403
        %v3412 = vunpack.c.l.bf16 %v3404
        %v3413 = vunpack.c.l.bf16 %v3405
        %v3414 = vunpack.c.l.bf16 %v3406
        %v3415 = vunpack.c.l.bf16 %v3407
        %v3417 = vsel %vm795, %v3391, 0
        %v3420 = vsel %vm795, %v3392, 0
        %v3423 = vsel %vm795, %v3393, 0
        %v3426 = vsel %vm795, %v3394, 0
        %v3429 = vsel %vm795, %v3395, 0
        %v3432 = vsel %vm795, %v3396, 0
        %v3435 = vsel %vm795, %v3397, 0
        %v3438 = vsel %vm795, %v3398, 0
        %3440 = vmatprep.subr.bf16.mxu0 0
        %3441 = vmatpush1.bf16.xpose.msra.mxu0 %v3429
        %3442 = vmatprep.subr.bf16.mxu0 0
        %3443 = vmatpush1.bf16.xpose.msra.mxu0 %v3432
        %3444 = vmatprep.subr.bf16.mxu0 0
        %3445 = vmatpush1.bf16.xpose.msra.mxu0 %v3435
        %3446 = vmatprep.subr.bf16.mxu0 0
        %3447 = vmatpush1.bf16.xpose.msra.mxu0 %v3438
        %3448 = vmatprep.subr.bf16.mxu0 0
        %3449 = vmatpush1.bf16.xpose.msra.mxu0 0
        %3450 = vmatprep.subr.bf16.mxu0 0
        %3451 = vmatpush1.bf16.xpose.msra.mxu0 0
        %3452 = vmatprep.subr.bf16.mxu0 0
        %3453 = vmatpush1.bf16.xpose.msra.mxu0 0
        %3454 = vmatprep.subr.bf16.mxu0 0
        %3455 = vmatpush1.bf16.xpose.msra.mxu0 0
        %3456 = vmatprep.subr.bf16.mxu0 0
        %3457 = vmatpush1.bf16.xpose.msra.mxu0 0
        %3458 = vmatprep.subr.bf16.mxu0 0
        %3459 = vmatpush1.bf16.xpose.msra.mxu0 0
        %3460 = vmatprep.subr.bf16.mxu0 0
        %3461 = vmatpush1.bf16.xpose.msra.mxu0 0
        %3462 = vmatprep.subr.bf16.mxu0 0
        %3463 = vmatpush1.bf16.xpose.msra.mxu0 0
        %3464 = vmatprep.subr.bf16.mxu0 0
        %3465 = vmatpush1.bf16.xpose.msra.mxu0 0
        %3466 = vmatprep.subr.bf16.mxu0 0
        %3467 = vmatpush1.bf16.xpose.msra.mxu0 0
        %3468 = vmatprep.subr.bf16.mxu0 0
        %3469 = vmatpush1.bf16.xpose.msra.mxu0 0
        %3470 = vmatprep.subr.bf16.mxu0 0
        %3471 = vmatpush1.bf16.xpose.msra.mxu0 0
        %3472 = vmatprep.mubr.bf16.mxu0 0
        %3473 = vmatmul.mubr.bf16.gmra.mrb[0].mxu0 %v3417
        %v3474 = vpop.f32.mrb[0].mxu0
        %v3475 = vadd.f32 %v3408, %v3474
        %v3476 = vpop.f32.mrb[0].mxu0
        %v3477 = vpop.f32.mrb[0].mxu0
        %v3478 = vadd.f32 %v3409, %v3477
        %v3479 = vpop.f32.mrb[0].mxu0
        %3480 = vmatprep.mubr.bf16.mxu0 0
        %3481 = vmatmul.mubr.bf16.gmra.mrb[0].mxu0 %v3420
        %v3482 = vpop.f32.mrb[0].mxu0
        %v3483 = vadd.f32 %v3410, %v3482
        %v3484 = vpop.f32.mrb[0].mxu0
        %v3485 = vpop.f32.mrb[0].mxu0
        %v3486 = vadd.f32 %v3411, %v3485
        %v3487 = vpop.f32.mrb[0].mxu0
        %3488 = vmatprep.mubr.bf16.mxu0 0
        %3489 = vmatmul.mubr.bf16.gmra.mrb[0].mxu0 %v3423
        %v3490 = vpop.f32.mrb[0].mxu0
        %v3491 = vadd.f32 %v3412, %v3490
        %v3492 = vpop.f32.mrb[0].mxu0
        %v3493 = vpop.f32.mrb[0].mxu0
        %v3494 = vadd.f32 %v3413, %v3493
        %v3495 = vpop.f32.mrb[0].mxu0
        %3496 = vmatprep.mubr.bf16.mxu0 0
        %3497 = vmatmul.mubr.bf16.gmra.mrb[0].mxu0 %v3426
        %v3498 = vpop.f32.mrb[0].mxu0
        %v3499 = vadd.f32 %v3414, %v3498
        %v3500 = vpop.f32.mrb[0].mxu0
        %v3501 = vpop.f32.mrb[0].mxu0
        %v3502 = vadd.f32 %v3415, %v3501
        %v3503 = vpop.f32.mrb[0].mxu0
        %3504 = vdwg.mxu0
        %v3505 = vsel %vm885, %v3475, -inf
        %3506 = vmax.xlane.f32.xlu0 %v3505
        %v3507 = vpop.xlane.xlu0 %3506
        %v3508 = vsel %vm885, %v3478, -inf
        %3509 = vmax.xlane.f32.xlu0 %v3508
        %v3510 = vpop.xlane.xlu0 %3509
        %v3511 = vsel %vm885, %v3483, -inf
        %3512 = vmax.xlane.f32.xlu0 %v3511
        %v3513 = vpop.xlane.xlu0 %3512
        %v3514 = vsel %vm885, %v3486, -inf
        %3515 = vmax.xlane.f32.xlu0 %v3514
        %v3516 = vpop.xlane.xlu0 %3515
        %v3517 = vsel %vm885, %v3491, -inf
        %3518 = vmax.xlane.f32.xlu0 %v3517
        %v3519 = vpop.xlane.xlu0 %3518
        %v3520 = vsel %vm885, %v3494, -inf
        %3521 = vmax.xlane.f32.xlu0 %v3520
        %v3522 = vpop.xlane.xlu0 %3521
        %v3523 = vsel %vm885, %v3499, -inf
        %3524 = vmax.xlane.f32.xlu0 %v3523
        %v3525 = vpop.xlane.xlu0 %3524
        %v3526 = vsel %vm885, %v3502, -inf
        %3527 = vmax.xlane.f32.xlu0 %v3526
        %v3528 = vpop.xlane.xlu0 %3527
        %v3529 = vsub.f32 %v3475, %v3507
        %v3530 = vsub.f32 %v3478, %v3510
        %v3531 = vsub.f32 %v3483, %v3513
        %v3532 = vsub.f32 %v3486, %v3516
        %v3533 = vsub.f32 %v3491, %v3519
        %v3534 = vsub.f32 %v3494, %v3522
        %v3535 = vsub.f32 %v3499, %v3525
        %v3536 = vsub.f32 %v3502, %v3528
        %v3537 = vmul.f32 %v3529, 1.442695
        %v3538 = vpow.pop %v3537
        %v3539 = vmul.f32 %v3530, 1.442695
        %v3540 = vpow.pop %v3539
        %v3541 = vmul.f32 %v3531, 1.442695
        %v3542 = vpow.pop %v3541
        %v3543 = vmul.f32 %v3532, 1.442695
        %v3544 = vpow.pop %v3543
        %v3545 = vmul.f32 %v3533, 1.442695
        %v3546 = vpow.pop %v3545
        %v3547 = vmul.f32 %v3534, 1.442695
        %v3548 = vpow.pop %v3547
        %v3549 = vmul.f32 %v3535, 1.442695
        %v3550 = vpow.pop %v3549
        %v3551 = vmul.f32 %v3536, 1.442695
        %v3552 = vpow.pop %v3551
        %v3553 = vsel %vm885, %v3538, 0.0
        %3554 = vadd.xlane.f32.xlu0 %v3553
        %v3555 = vpop.xlane.xlu0 %3554
        %v3556 = vsel %vm885, %v3540, 0.0
        %3557 = vadd.xlane.f32.xlu0 %v3556
        %v3558 = vpop.xlane.xlu0 %3557
        %v3559 = vsel %vm885, %v3542, 0.0
        %3560 = vadd.xlane.f32.xlu0 %v3559
        %v3561 = vpop.xlane.xlu0 %3560
        %v3562 = vsel %vm885, %v3544, 0.0
        %3563 = vadd.xlane.f32.xlu0 %v3562
        %v3564 = vpop.xlane.xlu0 %3563
        %v3565 = vsel %vm885, %v3546, 0.0
        %3566 = vadd.xlane.f32.xlu0 %v3565
        %v3567 = vpop.xlane.xlu0 %3566
        %v3568 = vsel %vm885, %v3548, 0.0
        %3569 = vadd.xlane.f32.xlu0 %v3568
        %v3570 = vpop.xlane.xlu0 %3569
        %v3571 = vsel %vm885, %v3550, 0.0
        %3572 = vadd.xlane.f32.xlu0 %v3571
        %v3573 = vpop.xlane.xlu0 %3572
        %v3574 = vsel %vm885, %v3552, 0.0
        %3575 = vadd.xlane.f32.xlu0 %v3574
        %v3576 = vpop.xlane.xlu0 %3575
        %v3577 = vrcp.pop %v3555
        %v3578 = vrcp.pop %v3558
        %v3579 = vrcp.pop %v3561
        %v3580 = vrcp.pop %v3564
        %v3581 = vrcp.pop %v3567
        %v3582 = vrcp.pop %v3570
        %v3583 = vrcp.pop %v3573
        %v3584 = vrcp.pop %v3576
        %v3585 = vmul.f32 %v3538, %v3577
        %v3586 = vmul.f32 %v3540, %v3578
        %v3587 = vmul.f32 %v3542, %v3579
        %v3588 = vmul.f32 %v3544, %v3580
        %v3589 = vmul.f32 %v3546, %v3581
        %v3590 = vmul.f32 %v3548, %v3582
        %v3591 = vmul.f32 %v3550, %v3583
        %v3592 = vmul.f32 %v3552, %v3584
        %v3593 = vpack.c.bf16 %v3586, %v3585
        %v3594 = vpack.c.bf16 %v3588, %v3587
        %v3595 = vpack.c.bf16 %v3590, %v3589
        %v3596 = vpack.c.bf16 %v3592, %v3591
        %v3597 = vpack.c.bf16 %v3364, %v3361
        %v3598 = vpack.c.bf16 %v3372, %v3369
        %v3599 = vpack.c.bf16 %v3380, %v3377
        %v3600 = vpack.c.bf16 %v3388, %v3385
        %v3602 = vsel %vm885, %v3593, 0
        %v3605 = vsel %vm885, %v3594, 0
        %v3608 = vsel %vm885, %v3595, 0
        %v3611 = vsel %vm885, %v3596, 0
        %3613 = vmatprep.subr.bf16.mxu0 0
        %3614 = vmatpush1.bf16.msra.mxu0 %v3597
        %3615 = vmatprep.subr.bf16.mxu0 0
        %3616 = vmatpush1.bf16.msra.mxu0 %v3598
        %3617 = vmatprep.subr.bf16.mxu0 0
        %3618 = vmatpush1.bf16.msra.mxu0 %v3599
        %3619 = vmatprep.subr.bf16.mxu0 0
        %3620 = vmatpush1.bf16.msra.mxu0 %v3600
        %3621 = vmatprep.subr.bf16.mxu0 0
        %3622 = vmatpush1.bf16.msra.mxu0 0
        %3623 = vmatprep.subr.bf16.mxu0 0
        %3624 = vmatpush1.bf16.msra.mxu0 0
        %3625 = vmatprep.subr.bf16.mxu0 0
        %3626 = vmatpush1.bf16.msra.mxu0 0
        %3627 = vmatprep.subr.bf16.mxu0 0
        %3628 = vmatpush1.bf16.msra.mxu0 0
        %3629 = vmatprep.subr.bf16.mxu0 0
        %3630 = vmatpush1.bf16.msra.mxu0 0
        %3631 = vmatprep.subr.bf16.mxu0 0
        %3632 = vmatpush1.bf16.msra.mxu0 0
        %3633 = vmatprep.subr.bf16.mxu0 0
        %3634 = vmatpush1.bf16.msra.mxu0 0
        %3635 = vmatprep.subr.bf16.mxu0 0
        %3636 = vmatpush1.bf16.msra.mxu0 0
        %3637 = vmatprep.subr.bf16.mxu0 0
        %3638 = vmatpush1.bf16.msra.mxu0 0
        %3639 = vmatprep.subr.bf16.mxu0 0
        %3640 = vmatpush1.bf16.msra.mxu0 0
        %3641 = vmatprep.subr.bf16.mxu0 0
        %3642 = vmatpush1.bf16.msra.mxu0 0
        %3643 = vmatprep.subr.bf16.mxu0 0
        %3644 = vmatpush1.bf16.msra.mxu0 0
        %3645 = vmatprep.mubr.bf16.mxu0 0
        %3646 = vmatmul.mubr.bf16.gmra.mrb[0].mxu0 %v3602
        %v3647 = vpop.f32.mrb[0].mxu0
        %v3648 = vadd.f32 0.0, %v3647
        %v3649 = vpop.f32.mrb[0].mxu0
        %v3650 = vpop.f32.mrb[0].mxu0
        %v3651 = vadd.f32 0.0, %v3650
        %v3652 = vpop.f32.mrb[0].mxu0
        %3653 = vmatprep.mubr.bf16.mxu0 0
        %3654 = vmatmul.mubr.bf16.gmra.mrb[0].mxu0 %v3605
        %v3655 = vpop.f32.mrb[0].mxu0
        %v3656 = vadd.f32 0.0, %v3655
        %v3657 = vpop.f32.mrb[0].mxu0
        %v3658 = vpop.f32.mrb[0].mxu0
        %v3659 = vadd.f32 0.0, %v3658
        %v3660 = vpop.f32.mrb[0].mxu0
        %3661 = vmatprep.mubr.bf16.mxu0 0
        %3662 = vmatmul.mubr.bf16.gmra.mrb[0].mxu0 %v3608
        %v3663 = vpop.f32.mrb[0].mxu0
        %v3664 = vadd.f32 0.0, %v3663
        %v3665 = vpop.f32.mrb[0].mxu0
        %v3666 = vpop.f32.mrb[0].mxu0
        %v3667 = vadd.f32 0.0, %v3666
        %v3668 = vpop.f32.mrb[0].mxu0
        %3669 = vmatprep.mubr.bf16.mxu0 0
        %3670 = vmatmul.mubr.bf16.gmra.mrb[0].mxu0 %v3611
        %v3671 = vpop.f32.mrb[0].mxu0
        %v3672 = vadd.f32 0.0, %v3671
        %v3673 = vpop.f32.mrb[0].mxu0
        %v3674 = vpop.f32.mrb[0].mxu0
        %v3675 = vadd.f32 0.0, %v3674
        %v3676 = vpop.f32.mrb[0].mxu0
        %3677 = vdwg.mxu0
        %v3678 = vpack.c.bf16 %v3651, %v3648
        %v3679 = vpack.c.bf16 %v3659, %v3656
        %v3680 = vpack.c.bf16 %v3667, %v3664
        %v3681 = vpack.c.bf16 %v3675, %v3672
        %s3682 = scalar_lea.vmem %s8, 16
        %v3683 = vld [vmem:[%s3682] sm:$0xf]
        %s3684 = scalar_lea.vmem %s1, 80
        %v3685 = vld [vmem:[%s3684] sm:$0xf]
        %v3686 = vld [vmem:[%s3684 + $0x4] sm:$0xf]
        %v3687 = vld [vmem:[%s3684 + $0x8] sm:$0xf]
        %v3688 = vld [vmem:[%s3684 + $0xc] sm:$0xf]
        %s3689 = scalar_lea.vmem [#allocation2], 5
        %v3690 = vld [vmem:[%s3689] sm:$0x1]
        %v3692 = vlaneseq
        %v3693 = vshrl.u32 %v3692, 7
        %v3694 = vsub.s32 0, %v3693
        %v3695 = vrot.slane %v3690, %v3694
        %v3701 = vunpack.c.l.b16 %v3685
        %v3702 = vunpack.c.l.b16 %v3686
        %v3703 = vunpack.c.l.b16 %v3687
        %v3704 = vunpack.c.l.b16 %v3688
        %v3705 = vpack.c.b16 %v3702, %v3701
        %v3706 = vpack.c.b16 %v3704, %v3703
        %3709 = vmatprep.subr.bf16.mxu0 0
        %3710 = vmatpush1.bf16.msra.mxu0 %v3705
        %3711 = vmatprep.subr.bf16.mxu0 0
        %3712 = vmatpush1.bf16.msra.mxu0 %v3706
        %3713 = vmatprep.subr.bf16.mxu0 0
        %3714 = vmatpush1.bf16.msra.mxu0 0
        %3715 = vmatprep.subr.bf16.mxu0 0
        %3716 = vmatpush1.bf16.msra.mxu0 0
        %3717 = vmatprep.subr.bf16.mxu0 0
        %3718 = vmatpush1.bf16.msra.mxu0 0
        %3719 = vmatprep.subr.bf16.mxu0 0
        %3720 = vmatpush1.bf16.msra.mxu0 0
        %3721 = vmatprep.subr.bf16.mxu0 0
        %3722 = vmatpush1.bf16.msra.mxu0 0
        %3723 = vmatprep.subr.bf16.mxu0 0
        %3724 = vmatpush1.bf16.msra.mxu0 0
        %3725 = vmatprep.subr.bf16.mxu0 0
        %3726 = vmatpush1.bf16.msra.mxu0 0
        %3727 = vmatprep.subr.bf16.mxu0 0
        %3728 = vmatpush1.bf16.msra.mxu0 0
        %3729 = vmatprep.subr.bf16.mxu0 0
        %3730 = vmatpush1.bf16.msra.mxu0 0
        %3731 = vmatprep.subr.bf16.mxu0 0
        %3732 = vmatpush1.bf16.msra.mxu0 0
        %3733 = vmatprep.subr.bf16.mxu0 0
        %3734 = vmatpush1.bf16.msra.mxu0 0
        %3735 = vmatprep.subr.bf16.mxu0 0
        %3736 = vmatpush1.bf16.msra.mxu0 0
        %3737 = vmatprep.subr.bf16.mxu0 0
        %3738 = vmatpush1.bf16.msra.mxu0 0
        %3739 = vmatprep.subr.bf16.mxu0 0
        %3740 = vmatpush1.bf16.msra.mxu0 0
        %3741 = vmatprep.mubr.bf16.mxu0 0
        %3742 = vmatmul.mubr.bf16.gmra.mrb[0].mxu0 %v3135
        %v3743 = vpop.f32.mrb[0].mxu0
        %v3744 = vadd.f32 %v3695, %v3743
        %v3745 = vpop.f32.mrb[0].mxu0
        %v3746 = vpop.f32.mrb[0].mxu0
        %v3747 = vadd.f32 %v3695, %v3746
        %v3748 = vpop.f32.mrb[0].mxu0
        %3749 = vmatprep.mubr.bf16.mxu0 0
        %3750 = vmatmul.mubr.bf16.gmra.mrb[0].mxu0 %v3138
        %v3751 = vpop.f32.mrb[0].mxu0
        %v3752 = vadd.f32 %v3695, %v3751
        %v3753 = vpop.f32.mrb[0].mxu0
        %v3754 = vpop.f32.mrb[0].mxu0
        %v3755 = vadd.f32 %v3695, %v3754
        %v3756 = vpop.f32.mrb[0].mxu0
        %3757 = vmatprep.mubr.bf16.mxu0 0
        %3758 = vmatmul.mubr.bf16.gmra.mrb[0].mxu0 %v3141
        %v3759 = vpop.f32.mrb[0].mxu0
        %v3760 = vadd.f32 %v3695, %v3759
        %v3761 = vpop.f32.mrb[0].mxu0
        %v3762 = vpop.f32.mrb[0].mxu0
        %v3763 = vadd.f32 %v3695, %v3762
        %v3764 = vpop.f32.mrb[0].mxu0
        %3765 = vmatprep.mubr.bf16.mxu0 0
        %3766 = vmatmul.mubr.bf16.gmra.mrb[0].mxu0 %v3144
        %v3767 = vpop.f32.mrb[0].mxu0
        %v3768 = vadd.f32 %v3695, %v3767
        %v3769 = vpop.f32.mrb[0].mxu0
        %v3770 = vpop.f32.mrb[0].mxu0
        %v3771 = vadd.f32 %v3695, %v3770
        %v3772 = vpop.f32.mrb[0].mxu0
        %3773 = vdwg.mxu0
        %s3774 = scalar_lea.vmem %s2, 80
        %v3775 = vld [vmem:[%s3774] sm:$0xf]
        %v3776 = vld [vmem:[%s3774 + $0x4] sm:$0xf]
        %v3777 = vld [vmem:[%s3774 + $0x8] sm:$0xf]
        %v3778 = vld [vmem:[%s3774 + $0xc] sm:$0xf]
        %s3779 = scalar_lea.vmem [#allocation5], 5
        %v3780 = vld [vmem:[%s3779] sm:$0x1]
        %v3782 = vlaneseq
        %v3783 = vshrl.u32 %v3782, 7
        %v3784 = vsub.s32 0, %v3783
        %v3785 = vrot.slane %v3780, %v3784
        %v3791 = vunpack.c.l.b16 %v3775
        %v3792 = vunpack.c.l.b16 %v3776
        %v3793 = vunpack.c.l.b16 %v3777
        %v3794 = vunpack.c.l.b16 %v3778
        %v3795 = vpack.c.b16 %v3792, %v3791
        %v3796 = vpack.c.b16 %v3794, %v3793
        %3799 = vmatprep.subr.bf16.mxu0 0
        %3800 = vmatpush1.bf16.msra.mxu0 %v3795
        %3801 = vmatprep.subr.bf16.mxu0 0
        %3802 = vmatpush1.bf16.msra.mxu0 %v3796
        %3803 = vmatprep.subr.bf16.mxu0 0
        %3804 = vmatpush1.bf16.msra.mxu0 0
        %3805 = vmatprep.subr.bf16.mxu0 0
        %3806 = vmatpush1.bf16.msra.mxu0 0
        %3807 = vmatprep.subr.bf16.mxu0 0
        %3808 = vmatpush1.bf16.msra.mxu0 0
        %3809 = vmatprep.subr.bf16.mxu0 0
        %3810 = vmatpush1.bf16.msra.mxu0 0
        %3811 = vmatprep.subr.bf16.mxu0 0
        %3812 = vmatpush1.bf16.msra.mxu0 0
        %3813 = vmatprep.subr.bf16.mxu0 0
        %3814 = vmatpush1.bf16.msra.mxu0 0
        %3815 = vmatprep.subr.bf16.mxu0 0
        %3816 = vmatpush1.bf16.msra.mxu0 0
        %3817 = vmatprep.subr.bf16.mxu0 0
        %3818 = vmatpush1.bf16.msra.mxu0 0
        %3819 = vmatprep.subr.bf16.mxu0 0
        %3820 = vmatpush1.bf16.msra.mxu0 0
        %3821 = vmatprep.subr.bf16.mxu0 0
        %3822 = vmatpush1.bf16.msra.mxu0 0
        %3823 = vmatprep.subr.bf16.mxu0 0
        %3824 = vmatpush1.bf16.msra.mxu0 0
        %3825 = vmatprep.subr.bf16.mxu0 0
        %3826 = vmatpush1.bf16.msra.mxu0 0
        %3827 = vmatprep.subr.bf16.mxu0 0
        %3828 = vmatpush1.bf16.msra.mxu0 0
        %3829 = vmatprep.subr.bf16.mxu0 0
        %3830 = vmatpush1.bf16.msra.mxu0 0
        %3831 = vmatprep.mubr.bf16.mxu0 0
        %3832 = vmatmul.mubr.bf16.gmra.mrb[0].mxu0 %v3135
        %v3833 = vpop.f32.mrb[0].mxu0
        %v3834 = vadd.f32 %v3785, %v3833
        %v3835 = vpop.f32.mrb[0].mxu0
        %v3836 = vpop.f32.mrb[0].mxu0
        %v3837 = vadd.f32 %v3785, %v3836
        %v3838 = vpop.f32.mrb[0].mxu0
        %3839 = vmatprep.mubr.bf16.mxu0 0
        %3840 = vmatmul.mubr.bf16.gmra.mrb[0].mxu0 %v3138
        %v3841 = vpop.f32.mrb[0].mxu0
        %v3842 = vadd.f32 %v3785, %v3841
        %v3843 = vpop.f32.mrb[0].mxu0
        %v3844 = vpop.f32.mrb[0].mxu0
        %v3845 = vadd.f32 %v3785, %v3844
        %v3846 = vpop.f32.mrb[0].mxu0
        %3847 = vmatprep.mubr.bf16.mxu0 0
        %3848 = vmatmul.mubr.bf16.gmra.mrb[0].mxu0 %v3141
        %v3849 = vpop.f32.mrb[0].mxu0
        %v3850 = vadd.f32 %v3785, %v3849
        %v3851 = vpop.f32.mrb[0].mxu0
        %v3852 = vpop.f32.mrb[0].mxu0
        %v3853 = vadd.f32 %v3785, %v3852
        %v3854 = vpop.f32.mrb[0].mxu0
        %3855 = vmatprep.mubr.bf16.mxu0 0
        %3856 = vmatmul.mubr.bf16.gmra.mrb[0].mxu0 %v3144
        %v3857 = vpop.f32.mrb[0].mxu0
        %v3858 = vadd.f32 %v3785, %v3857
        %v3859 = vpop.f32.mrb[0].mxu0
        %v3860 = vpop.f32.mrb[0].mxu0
        %v3861 = vadd.f32 %v3785, %v3860
        %v3862 = vpop.f32.mrb[0].mxu0
        %3863 = vdwg.mxu0
        %s3864 = scalar_lea.vmem %s3, 80
        %v3865 = vld [vmem:[%s3864] sm:$0xf]
        %v3866 = vld [vmem:[%s3864 + $0x4] sm:$0xf]
        %v3867 = vld [vmem:[%s3864 + $0x8] sm:$0xf]
        %v3868 = vld [vmem:[%s3864 + $0xc] sm:$0xf]
        %s3869 = scalar_lea.vmem [#allocation7], 5
        %v3870 = vld [vmem:[%s3869] sm:$0x1]
        %v3872 = vlaneseq
        %v3873 = vshrl.u32 %v3872, 7
        %v3874 = vsub.s32 0, %v3873
        %v3875 = vrot.slane %v3870, %v3874
        %v3881 = vunpack.c.l.b16 %v3865
        %v3882 = vunpack.c.l.b16 %v3866
        %v3883 = vunpack.c.l.b16 %v3867
        %v3884 = vunpack.c.l.b16 %v3868
        %v3885 = vpack.c.b16 %v3882, %v3881
        %v3886 = vpack.c.b16 %v3884, %v3883
        %3889 = vmatprep.subr.bf16.mxu0 0
        %3890 = vmatpush1.bf16.msra.mxu0 %v3885
        %3891 = vmatprep.subr.bf16.mxu0 0
        %3892 = vmatpush1.bf16.msra.mxu0 %v3886
        %3893 = vmatprep.subr.bf16.mxu0 0
        %3894 = vmatpush1.bf16.msra.mxu0 0
        %3895 = vmatprep.subr.bf16.mxu0 0
        %3896 = vmatpush1.bf16.msra.mxu0 0
        %3897 = vmatprep.subr.bf16.mxu0 0
        %3898 = vmatpush1.bf16.msra.mxu0 0
        %3899 = vmatprep.subr.bf16.mxu0 0
        %3900 = vmatpush1.bf16.msra.mxu0 0
        %3901 = vmatprep.subr.bf16.mxu0 0
        %3902 = vmatpush1.bf16.msra.mxu0 0
        %3903 = vmatprep.subr.bf16.mxu0 0
        %3904 = vmatpush1.bf16.msra.mxu0 0
        %3905 = vmatprep.subr.bf16.mxu0 0
        %3906 = vmatpush1.bf16.msra.mxu0 0
        %3907 = vmatprep.subr.bf16.mxu0 0
        %3908 = vmatpush1.bf16.msra.mxu0 0
        %3909 = vmatprep.subr.bf16.mxu0 0
        %3910 = vmatpush1.bf16.msra.mxu0 0
        %3911 = vmatprep.subr.bf16.mxu0 0
        %3912 = vmatpush1.bf16.msra.mxu0 0
        %3913 = vmatprep.subr.bf16.mxu0 0
        %3914 = vmatpush1.bf16.msra.mxu0 0
        %3915 = vmatprep.subr.bf16.mxu0 0
        %3916 = vmatpush1.bf16.msra.mxu0 0
        %3917 = vmatprep.subr.bf16.mxu0 0
        %3918 = vmatpush1.bf16.msra.mxu0 0
        %3919 = vmatprep.subr.bf16.mxu0 0
        %3920 = vmatpush1.bf16.msra.mxu0 0
        %3921 = vmatprep.mubr.bf16.mxu0 0
        %3922 = vmatmul.mubr.bf16.gmra.mrb[0].mxu0 %v3135
        %v3923 = vpop.f32.mrb[0].mxu0
        %v3924 = vadd.f32 %v3875, %v3923
        %v3925 = vpop.f32.mrb[0].mxu0
        %v3926 = vpop.f32.mrb[0].mxu0
        %v3927 = vadd.f32 %v3875, %v3926
        %v3928 = vpop.f32.mrb[0].mxu0
        %3929 = vmatprep.mubr.bf16.mxu0 0
        %3930 = vmatmul.mubr.bf16.gmra.mrb[0].mxu0 %v3138
        %v3931 = vpop.f32.mrb[0].mxu0
        %v3932 = vadd.f32 %v3875, %v3931
        %v3933 = vpop.f32.mrb[0].mxu0
        %v3934 = vpop.f32.mrb[0].mxu0
        %v3935 = vadd.f32 %v3875, %v3934
        %v3936 = vpop.f32.mrb[0].mxu0
        %3937 = vmatprep.mubr.bf16.mxu0 0
        %3938 = vmatmul.mubr.bf16.gmra.mrb[0].mxu0 %v3141
        %v3939 = vpop.f32.mrb[0].mxu0
        %v3940 = vadd.f32 %v3875, %v3939
        %v3941 = vpop.f32.mrb[0].mxu0
        %v3942 = vpop.f32.mrb[0].mxu0
        %v3943 = vadd.f32 %v3875, %v3942
        %v3944 = vpop.f32.mrb[0].mxu0
        %3945 = vmatprep.mubr.bf16.mxu0 0
        %3946 = vmatmul.mubr.bf16.gmra.mrb[0].mxu0 %v3144
        %v3947 = vpop.f32.mrb[0].mxu0
        %v3948 = vadd.f32 %v3875, %v3947
        %v3949 = vpop.f32.mrb[0].mxu0
        %v3950 = vpop.f32.mrb[0].mxu0
        %v3951 = vadd.f32 %v3875, %v3950
        %v3952 = vpop.f32.mrb[0].mxu0
        %3953 = vdwg.mxu0
        %v3954 = vpack.c.bf16 %v3747, %v3744
        %v3955 = vpack.c.bf16 %v3755, %v3752
        %v3956 = vpack.c.bf16 %v3763, %v3760
        %v3957 = vpack.c.bf16 %v3771, %v3768
        %v3958 = vpack.c.bf16 %v3837, %v3834
        %v3959 = vpack.c.bf16 %v3845, %v3842
        %v3960 = vpack.c.bf16 %v3853, %v3850
        %v3961 = vpack.c.bf16 %v3861, %v3858
        %s3962 = scalar_lea.vmem %s7, 160
        %v3963 = vld [vmem:[%s3962] sm:$0xf]
        %v3964 = vld [vmem:[%s3962 + $0x4] sm:$0xf]
        %v3965 = vld [vmem:[%s3962 + $0x8] sm:$0xf]
        %v3966 = vld [vmem:[%s3962 + $0xc] sm:$0xf]
        %v3967 = vld [vmem:[%s3962 + $0x10] sm:$0xf]
        %v3968 = vld [vmem:[%s3962 + $0x14] sm:$0xf]
        %v3969 = vld [vmem:[%s3962 + $0x18] sm:$0xf]
        %v3970 = vld [vmem:[%s3962 + $0x1c] sm:$0xf]
        %v3971 = vunpack.c.l.bf16 %v3963
        %v3972 = vunpack.c.l.bf16 %v3964
        %v3973 = vunpack.c.l.bf16 %v3965
        %v3974 = vunpack.c.l.bf16 %v3966
        %v3975 = vunpack.c.l.bf16 %v3967
        %v3976 = vunpack.c.l.bf16 %v3968
        %v3977 = vunpack.c.l.bf16 %v3969
        %v3978 = vunpack.c.l.bf16 %v3970
        %v3980 = vsel %vm795, %v3954, 0
        %v3983 = vsel %vm795, %v3955, 0
        %v3986 = vsel %vm795, %v3956, 0
        %v3989 = vsel %vm795, %v3957, 0
        %v3992 = vsel %vm795, %v3958, 0
        %v3995 = vsel %vm795, %v3959, 0
        %v3998 = vsel %vm795, %v3960, 0
        %v4001 = vsel %vm795, %v3961, 0
        %4003 = vmatprep.subr.bf16.mxu0 0
        %4004 = vmatpush1.bf16.xpose.msra.mxu0 %v3992
        %4005 = vmatprep.subr.bf16.mxu0 0
        %4006 = vmatpush1.bf16.xpose.msra.mxu0 %v3995
        %4007 = vmatprep.subr.bf16.mxu0 0
        %4008 = vmatpush1.bf16.xpose.msra.mxu0 %v3998
        %4009 = vmatprep.subr.bf16.mxu0 0
        %4010 = vmatpush1.bf16.xpose.msra.mxu0 %v4001
        %4011 = vmatprep.subr.bf16.mxu0 0
        %4012 = vmatpush1.bf16.xpose.msra.mxu0 0
        %4013 = vmatprep.subr.bf16.mxu0 0
        %4014 = vmatpush1.bf16.xpose.msra.mxu0 0
        %4015 = vmatprep.subr.bf16.mxu0 0
        %4016 = vmatpush1.bf16.xpose.msra.mxu0 0
        %4017 = vmatprep.subr.bf16.mxu0 0
        %4018 = vmatpush1.bf16.xpose.msra.mxu0 0
        %4019 = vmatprep.subr.bf16.mxu0 0
        %4020 = vmatpush1.bf16.xpose.msra.mxu0 0
        %4021 = vmatprep.subr.bf16.mxu0 0
        %4022 = vmatpush1.bf16.xpose.msra.mxu0 0
        %4023 = vmatprep.subr.bf16.mxu0 0
        %4024 = vmatpush1.bf16.xpose.msra.mxu0 0
        %4025 = vmatprep.subr.bf16.mxu0 0
        %4026 = vmatpush1.bf16.xpose.msra.mxu0 0
        %4027 = vmatprep.subr.bf16.mxu0 0
        %4028 = vmatpush1.bf16.xpose.msra.mxu0 0
        %4029 = vmatprep.subr.bf16.mxu0 0
        %4030 = vmatpush1.bf16.xpose.msra.mxu0 0
        %4031 = vmatprep.subr.bf16.mxu0 0
        %4032 = vmatpush1.bf16.xpose.msra.mxu0 0
        %4033 = vmatprep.subr.bf16.mxu0 0
        %4034 = vmatpush1.bf16.xpose.msra.mxu0 0
        %4035 = vmatprep.mubr.bf16.mxu0 0
        %4036 = vmatmul.mubr.bf16.gmra.mrb[0].mxu0 %v3980
        %v4037 = vpop.f32.mrb[0].mxu0
        %v4038 = vadd.f32 %v3971, %v4037
        %v4039 = vpop.f32.mrb[0].mxu0
        %v4040 = vpop.f32.mrb[0].mxu0
        %v4041 = vadd.f32 %v3972, %v4040
        %v4042 = vpop.f32.mrb[0].mxu0
        %4043 = vmatprep.mubr.bf16.mxu0 0
        %4044 = vmatmul.mubr.bf16.gmra.mrb[0].mxu0 %v3983
        %v4045 = vpop.f32.mrb[0].mxu0
        %v4046 = vadd.f32 %v3973, %v4045
        %v4047 = vpop.f32.mrb[0].mxu0
        %v4048 = vpop.f32.mrb[0].mxu0
        %v4049 = vadd.f32 %v3974, %v4048
        %v4050 = vpop.f32.mrb[0].mxu0
        %4051 = vmatprep.mubr.bf16.mxu0 0
        %4052 = vmatmul.mubr.bf16.gmra.mrb[0].mxu0 %v3986
        %v4053 = vpop.f32.mrb[0].mxu0
        %v4054 = vadd.f32 %v3975, %v4053
        %v4055 = vpop.f32.mrb[0].mxu0
        %v4056 = vpop.f32.mrb[0].mxu0
        %v4057 = vadd.f32 %v3976, %v4056
        %v4058 = vpop.f32.mrb[0].mxu0
        %4059 = vmatprep.mubr.bf16.mxu0 0
        %4060 = vmatmul.mubr.bf16.gmra.mrb[0].mxu0 %v3989
        %v4061 = vpop.f32.mrb[0].mxu0
        %v4062 = vadd.f32 %v3977, %v4061
        %v4063 = vpop.f32.mrb[0].mxu0
        %v4064 = vpop.f32.mrb[0].mxu0
        %v4065 = vadd.f32 %v3978, %v4064
        %v4066 = vpop.f32.mrb[0].mxu0
        %4067 = vdwg.mxu0
        %v4068 = vsel %vm885, %v4038, -inf
        %4069 = vmax.xlane.f32.xlu0 %v4068
        %v4070 = vpop.xlane.xlu0 %4069
        %v4071 = vsel %vm885, %v4041, -inf
        %4072 = vmax.xlane.f32.xlu0 %v4071
        %v4073 = vpop.xlane.xlu0 %4072
        %v4074 = vsel %vm885, %v4046, -inf
        %4075 = vmax.xlane.f32.xlu0 %v4074
        %v4076 = vpop.xlane.xlu0 %4075
        %v4077 = vsel %vm885, %v4049, -inf
        %4078 = vmax.xlane.f32.xlu0 %v4077
        %v4079 = vpop.xlane.xlu0 %4078
        %v4080 = vsel %vm885, %v4054, -inf
        %4081 = vmax.xlane.f32.xlu0 %v4080
        %v4082 = vpop.xlane.xlu0 %4081
        %v4083 = vsel %vm885, %v4057, -inf
        %4084 = vmax.xlane.f32.xlu0 %v4083
        %v4085 = vpop.xlane.xlu0 %4084
        %v4086 = vsel %vm885, %v4062, -inf
        %4087 = vmax.xlane.f32.xlu0 %v4086
        %v4088 = vpop.xlane.xlu0 %4087
        %v4089 = vsel %vm885, %v4065, -inf
        %4090 = vmax.xlane.f32.xlu0 %v4089
        %v4091 = vpop.xlane.xlu0 %4090
        %v4092 = vsub.f32 %v4038, %v4070
        %v4093 = vsub.f32 %v4041, %v4073
        %v4094 = vsub.f32 %v4046, %v4076
        %v4095 = vsub.f32 %v4049, %v4079
        %v4096 = vsub.f32 %v4054, %v4082
        %v4097 = vsub.f32 %v4057, %v4085
        %v4098 = vsub.f32 %v4062, %v4088
        %v4099 = vsub.f32 %v4065, %v4091
        %v4100 = vmul.f32 %v4092, 1.442695
        %v4101 = vpow.pop %v4100
        %v4102 = vmul.f32 %v4093, 1.442695
        %v4103 = vpow.pop %v4102
        %v4104 = vmul.f32 %v4094, 1.442695
        %v4105 = vpow.pop %v4104
        %v4106 = vmul.f32 %v4095, 1.442695
        %v4107 = vpow.pop %v4106
        %v4108 = vmul.f32 %v4096, 1.442695
        %v4109 = vpow.pop %v4108
        %v4110 = vmul.f32 %v4097, 1.442695
        %v4111 = vpow.pop %v4110
        %v4112 = vmul.f32 %v4098, 1.442695
        %v4113 = vpow.pop %v4112
        %v4114 = vmul.f32 %v4099, 1.442695
        %v4115 = vpow.pop %v4114
        %v4116 = vsel %vm885, %v4101, 0.0
        %4117 = vadd.xlane.f32.xlu0 %v4116
        %v4118 = vpop.xlane.xlu0 %4117
        %v4119 = vsel %vm885, %v4103, 0.0
        %4120 = vadd.xlane.f32.xlu0 %v4119
        %v4121 = vpop.xlane.xlu0 %4120
        %v4122 = vsel %vm885, %v4105, 0.0
        %4123 = vadd.xlane.f32.xlu0 %v4122
        %v4124 = vpop.xlane.xlu0 %4123
        %v4125 = vsel %vm885, %v4107, 0.0
        %4126 = vadd.xlane.f32.xlu0 %v4125
        %v4127 = vpop.xlane.xlu0 %4126
        %v4128 = vsel %vm885, %v4109, 0.0
        %4129 = vadd.xlane.f32.xlu0 %v4128
        %v4130 = vpop.xlane.xlu0 %4129
        %v4131 = vsel %vm885, %v4111, 0.0
        %4132 = vadd.xlane.f32.xlu0 %v4131
        %v4133 = vpop.xlane.xlu0 %4132
        %v4134 = vsel %vm885, %v4113, 0.0
        %4135 = vadd.xlane.f32.xlu0 %v4134
        %v4136 = vpop.xlane.xlu0 %4135
        %v4137 = vsel %vm885, %v4115, 0.0
        %4138 = vadd.xlane.f32.xlu0 %v4137
        %v4139 = vpop.xlane.xlu0 %4138
        %v4140 = vrcp.pop %v4118
        %v4141 = vrcp.pop %v4121
        %v4142 = vrcp.pop %v4124
        %v4143 = vrcp.pop %v4127
        %v4144 = vrcp.pop %v4130
        %v4145 = vrcp.pop %v4133
        %v4146 = vrcp.pop %v4136
        %v4147 = vrcp.pop %v4139
        %v4148 = vmul.f32 %v4101, %v4140
        %v4149 = vmul.f32 %v4103, %v4141
        %v4150 = vmul.f32 %v4105, %v4142
        %v4151 = vmul.f32 %v4107, %v4143
        %v4152 = vmul.f32 %v4109, %v4144
        %v4153 = vmul.f32 %v4111, %v4145
        %v4154 = vmul.f32 %v4113, %v4146
        %v4155 = vmul.f32 %v4115, %v4147
        %v4156 = vpack.c.bf16 %v4149, %v4148
        %v4157 = vpack.c.bf16 %v4151, %v4150
        %v4158 = vpack.c.bf16 %v4153, %v4152
        %v4159 = vpack.c.bf16 %v4155, %v4154
        %v4160 = vpack.c.bf16 %v3927, %v3924
        %v4161 = vpack.c.bf16 %v3935, %v3932
        %v4162 = vpack.c.bf16 %v3943, %v3940
        %v4163 = vpack.c.bf16 %v3951, %v3948
        %v4165 = vsel %vm885, %v4156, 0
        %v4168 = vsel %vm885, %v4157, 0
        %v4171 = vsel %vm885, %v4158, 0
        %v4174 = vsel %vm885, %v4159, 0
        %4176 = vmatprep.subr.bf16.mxu0 0
        %4177 = vmatpush1.bf16.msra.mxu0 %v4160
        %4178 = vmatprep.subr.bf16.mxu0 0
        %4179 = vmatpush1.bf16.msra.mxu0 %v4161
        %4180 = vmatprep.subr.bf16.mxu0 0
        %4181 = vmatpush1.bf16.msra.mxu0 %v4162
        %4182 = vmatprep.subr.bf16.mxu0 0
        %4183 = vmatpush1.bf16.msra.mxu0 %v4163
        %4184 = vmatprep.subr.bf16.mxu0 0
        %4185 = vmatpush1.bf16.msra.mxu0 0
        %4186 = vmatprep.subr.bf16.mxu0 0
        %4187 = vmatpush1.bf16.msra.mxu0 0
        %4188 = vmatprep.subr.bf16.mxu0 0
        %4189 = vmatpush1.bf16.msra.mxu0 0
        %4190 = vmatprep.subr.bf16.mxu0 0
        %4191 = vmatpush1.bf16.msra.mxu0 0
        %4192 = vmatprep.subr.bf16.mxu0 0
        %4193 = vmatpush1.bf16.msra.mxu0 0
        %4194 = vmatprep.subr.bf16.mxu0 0
        %4195 = vmatpush1.bf16.msra.mxu0 0
        %4196 = vmatprep.subr.bf16.mxu0 0
        %4197 = vmatpush1.bf16.msra.mxu0 0
        %4198 = vmatprep.subr.bf16.mxu0 0
        %4199 = vmatpush1.bf16.msra.mxu0 0
        %4200 = vmatprep.subr.bf16.mxu0 0
        %4201 = vmatpush1.bf16.msra.mxu0 0
        %4202 = vmatprep.subr.bf16.mxu0 0
        %4203 = vmatpush1.bf16.msra.mxu0 0
        %4204 = vmatprep.subr.bf16.mxu0 0
        %4205 = vmatpush1.bf16.msra.mxu0 0
        %4206 = vmatprep.subr.bf16.mxu0 0
        %4207 = vmatpush1.bf16.msra.mxu0 0
        %4208 = vmatprep.mubr.bf16.mxu0 0
        %4209 = vmatmul.mubr.bf16.gmra.mrb[0].mxu0 %v4165
        %v4210 = vpop.f32.mrb[0].mxu0
        %v4211 = vadd.f32 0.0, %v4210
        %v4212 = vpop.f32.mrb[0].mxu0
        %v4213 = vpop.f32.mrb[0].mxu0
        %v4214 = vadd.f32 0.0, %v4213
        %v4215 = vpop.f32.mrb[0].mxu0
        %4216 = vmatprep.mubr.bf16.mxu0 0
        %4217 = vmatmul.mubr.bf16.gmra.mrb[0].mxu0 %v4168
        %v4218 = vpop.f32.mrb[0].mxu0
        %v4219 = vadd.f32 0.0, %v4218
        %v4220 = vpop.f32.mrb[0].mxu0
        %v4221 = vpop.f32.mrb[0].mxu0
        %v4222 = vadd.f32 0.0, %v4221
        %v4223 = vpop.f32.mrb[0].mxu0
        %4224 = vmatprep.mubr.bf16.mxu0 0
        %4225 = vmatmul.mubr.bf16.gmra.mrb[0].mxu0 %v4171
        %v4226 = vpop.f32.mrb[0].mxu0
        %v4227 = vadd.f32 0.0, %v4226
        %v4228 = vpop.f32.mrb[0].mxu0
        %v4229 = vpop.f32.mrb[0].mxu0
        %v4230 = vadd.f32 0.0, %v4229
        %v4231 = vpop.f32.mrb[0].mxu0
        %4232 = vmatprep.mubr.bf16.mxu0 0
        %4233 = vmatmul.mubr.bf16.gmra.mrb[0].mxu0 %v4174
        %v4234 = vpop.f32.mrb[0].mxu0
        %v4235 = vadd.f32 0.0, %v4234
        %v4236 = vpop.f32.mrb[0].mxu0
        %v4237 = vpop.f32.mrb[0].mxu0
        %v4238 = vadd.f32 0.0, %v4237
        %v4239 = vpop.f32.mrb[0].mxu0
        %4240 = vdwg.mxu0
        %v4241 = vpack.c.bf16 %v4214, %v4211
        %v4242 = vpack.c.bf16 %v4222, %v4219
        %v4243 = vpack.c.bf16 %v4230, %v4227
        %v4244 = vpack.c.bf16 %v4238, %v4235
        %s4245 = scalar_lea.vmem %s8, 20
        %v4246 = vld [vmem:[%s4245] sm:$0xf]
        %v4248 = vsel %vm795, %v4241, 0
        %v4251 = vsel %vm795, %v4242, 0
        %v4254 = vsel %vm795, %v4243, 0
        %v4257 = vsel %vm795, %v4244, 0
        %v4260 = vsel %vm1639, %v4246, 0
        %4262 = vmatprep.subr.bf16.mxu0 0
        %4263 = vmatpush1.bf16.msra.mxu0 %v4260
        %4264 = vmatprep.subr.bf16.mxu0 0
        %4265 = vmatpush1.bf16.msra.mxu0 0
        %4266 = vmatprep.subr.bf16.mxu0 0
        %4267 = vmatpush1.bf16.msra.mxu0 0
        %4268 = vmatprep.subr.bf16.mxu0 0
        %4269 = vmatpush1.bf16.msra.mxu0 0
        %4270 = vmatprep.subr.bf16.mxu0 0
        %4271 = vmatpush1.bf16.msra.mxu0 0
        %4272 = vmatprep.subr.bf16.mxu0 0
        %4273 = vmatpush1.bf16.msra.mxu0 0
        %4274 = vmatprep.subr.bf16.mxu0 0
        %4275 = vmatpush1.bf16.msra.mxu0 0
        %4276 = vmatprep.subr.bf16.mxu0 0
        %4277 = vmatpush1.bf16.msra.mxu0 0
        %4278 = vmatprep.subr.bf16.mxu0 0
        %4279 = vmatpush1.bf16.msra.mxu0 0
        %4280 = vmatprep.subr.bf16.mxu0 0
        %4281 = vmatpush1.bf16.msra.mxu0 0
        %4282 = vmatprep.subr.bf16.mxu0 0
        %4283 = vmatpush1.bf16.msra.mxu0 0
        %4284 = vmatprep.subr.bf16.mxu0 0
        %4285 = vmatpush1.bf16.msra.mxu0 0
        %4286 = vmatprep.subr.bf16.mxu0 0
        %4287 = vmatpush1.bf16.msra.mxu0 0
        %4288 = vmatprep.subr.bf16.mxu0 0
        %4289 = vmatpush1.bf16.msra.mxu0 0
        %4290 = vmatprep.subr.bf16.mxu0 0
        %4291 = vmatpush1.bf16.msra.mxu0 0
        %4292 = vmatprep.subr.bf16.mxu0 0
        %4293 = vmatpush1.bf16.msra.mxu0 0
        %4294 = vmatprep.mubr.bf16.mxu0 0
        %4295 = vmatmul.mubr.bf16.gmra.mrb[0].mxu0 %v4248
        %v4296 = vpop.f32.mrb[0].mxu0
        %v4297 = vadd.f32 0.0, %v4296
        %v4298 = vpop.f32.mrb[0].mxu0
        %v4299 = vpop.f32.mrb[0].mxu0
        %v4300 = vadd.f32 0.0, %v4299
        %v4301 = vpop.f32.mrb[0].mxu0
        %4302 = vmatprep.mubr.bf16.mxu0 0
        %4303 = vmatmul.mubr.bf16.gmra.mrb[0].mxu0 %v4251
        %v4304 = vpop.f32.mrb[0].mxu0
        %v4305 = vadd.f32 0.0, %v4304
        %v4306 = vpop.f32.mrb[0].mxu0
        %v4307 = vpop.f32.mrb[0].mxu0
        %v4308 = vadd.f32 0.0, %v4307
        %v4309 = vpop.f32.mrb[0].mxu0
        %4310 = vmatprep.mubr.bf16.mxu0 0
        %4311 = vmatmul.mubr.bf16.gmra.mrb[0].mxu0 %v4254
        %v4312 = vpop.f32.mrb[0].mxu0
        %v4313 = vadd.f32 0.0, %v4312
        %v4314 = vpop.f32.mrb[0].mxu0
        %v4315 = vpop.f32.mrb[0].mxu0
        %v4316 = vadd.f32 0.0, %v4315
        %v4317 = vpop.f32.mrb[0].mxu0
        %4318 = vmatprep.mubr.bf16.mxu0 0
        %4319 = vmatmul.mubr.bf16.gmra.mrb[0].mxu0 %v4257
        %v4320 = vpop.f32.mrb[0].mxu0
        %v4321 = vadd.f32 0.0, %v4320
        %v4322 = vpop.f32.mrb[0].mxu0
        %v4323 = vpop.f32.mrb[0].mxu0
        %v4324 = vadd.f32 0.0, %v4323
        %v4325 = vpop.f32.mrb[0].mxu0
        %4326 = vdwg.mxu0
        %v4328 = vsel %vm795, %v3678, 0
        %v4331 = vsel %vm795, %v3679, 0
        %v4334 = vsel %vm795, %v3680, 0
        %v4337 = vsel %vm795, %v3681, 0
        %v4340 = vsel %vm1639, %v3683, 0
        %4342 = vmatprep.subr.bf16.mxu0 0
        %4343 = vmatpush1.bf16.msra.mxu0 %v4340
        %4344 = vmatprep.subr.bf16.mxu0 0
        %4345 = vmatpush1.bf16.msra.mxu0 0
        %4346 = vmatprep.subr.bf16.mxu0 0
        %4347 = vmatpush1.bf16.msra.mxu0 0
        %4348 = vmatprep.subr.bf16.mxu0 0
        %4349 = vmatpush1.bf16.msra.mxu0 0
        %4350 = vmatprep.subr.bf16.mxu0 0
        %4351 = vmatpush1.bf16.msra.mxu0 0
        %4352 = vmatprep.subr.bf16.mxu0 0
        %4353 = vmatpush1.bf16.msra.mxu0 0
        %4354 = vmatprep.subr.bf16.mxu0 0
        %4355 = vmatpush1.bf16.msra.mxu0 0
        %4356 = vmatprep.subr.bf16.mxu0 0
        %4357 = vmatpush1.bf16.msra.mxu0 0
        %4358 = vmatprep.subr.bf16.mxu0 0
        %4359 = vmatpush1.bf16.msra.mxu0 0
        %4360 = vmatprep.subr.bf16.mxu0 0
        %4361 = vmatpush1.bf16.msra.mxu0 0
        %4362 = vmatprep.subr.bf16.mxu0 0
        %4363 = vmatpush1.bf16.msra.mxu0 0
        %4364 = vmatprep.subr.bf16.mxu0 0
        %4365 = vmatpush1.bf16.msra.mxu0 0
        %4366 = vmatprep.subr.bf16.mxu0 0
        %4367 = vmatpush1.bf16.msra.mxu0 0
        %4368 = vmatprep.subr.bf16.mxu0 0
        %4369 = vmatpush1.bf16.msra.mxu0 0
        %4370 = vmatprep.subr.bf16.mxu0 0
        %4371 = vmatpush1.bf16.msra.mxu0 0
        %4372 = vmatprep.subr.bf16.mxu0 0
        %4373 = vmatpush1.bf16.msra.mxu0 0
        %4374 = vmatprep.mubr.bf16.mxu0 0
        %4375 = vmatmul.mubr.bf16.gmra.mrb[0].mxu0 %v4328
        %v4376 = vpop.f32.mrb[0].mxu0
        %v4377 = vadd.f32 %v4297, %v4376
        %v4378 = vpop.f32.mrb[0].mxu0
        %v4379 = vpop.f32.mrb[0].mxu0
        %v4380 = vadd.f32 %v4300, %v4379
        %v4381 = vpop.f32.mrb[0].mxu0
        %4382 = vmatprep.mubr.bf16.mxu0 0
        %4383 = vmatmul.mubr.bf16.gmra.mrb[0].mxu0 %v4331
        %v4384 = vpop.f32.mrb[0].mxu0
        %v4385 = vadd.f32 %v4305, %v4384
        %v4386 = vpop.f32.mrb[0].mxu0
        %v4387 = vpop.f32.mrb[0].mxu0
        %v4388 = vadd.f32 %v4308, %v4387
        %v4389 = vpop.f32.mrb[0].mxu0
        %4390 = vmatprep.mubr.bf16.mxu0 0
        %4391 = vmatmul.mubr.bf16.gmra.mrb[0].mxu0 %v4334
        %v4392 = vpop.f32.mrb[0].mxu0
        %v4393 = vadd.f32 %v4313, %v4392
        %v4394 = vpop.f32.mrb[0].mxu0
        %v4395 = vpop.f32.mrb[0].mxu0
        %v4396 = vadd.f32 %v4316, %v4395
        %v4397 = vpop.f32.mrb[0].mxu0
        %4398 = vmatprep.mubr.bf16.mxu0 0
        %4399 = vmatmul.mubr.bf16.gmra.mrb[0].mxu0 %v4337
        %v4400 = vpop.f32.mrb[0].mxu0
        %v4401 = vadd.f32 %v4321, %v4400
        %v4402 = vpop.f32.mrb[0].mxu0
        %v4403 = vpop.f32.mrb[0].mxu0
        %v4404 = vadd.f32 %v4324, %v4403
        %v4405 = vpop.f32.mrb[0].mxu0
        %4406 = vdwg.mxu0
        %s4407 = scalar_lea.vmem %s1, 96
        %v4408 = vld [vmem:[%s4407] sm:$0xf]
        %v4409 = vld [vmem:[%s4407 + $0x4] sm:$0xf]
        %v4410 = vld [vmem:[%s4407 + $0x8] sm:$0xf]
        %v4411 = vld [vmem:[%s4407 + $0xc] sm:$0xf]
        %s4412 = scalar_lea.vmem [#allocation2], 6
        %v4413 = vld [vmem:[%s4412] sm:$0x1]
        %v4415 = vlaneseq
        %v4416 = vshrl.u32 %v4415, 7
        %v4417 = vsub.s32 0, %v4416
        %v4418 = vrot.slane %v4413, %v4417
        %v4424 = vunpack.c.l.b16 %v4408
        %v4425 = vunpack.c.l.b16 %v4409
        %v4426 = vunpack.c.l.b16 %v4410
        %v4427 = vunpack.c.l.b16 %v4411
        %v4428 = vpack.c.b16 %v4425, %v4424
        %v4429 = vpack.c.b16 %v4427, %v4426
        %4432 = vmatprep.subr.bf16.mxu0 0
        %4433 = vmatpush1.bf16.msra.mxu0 %v4428
        %4434 = vmatprep.subr.bf16.mxu0 0
        %4435 = vmatpush1.bf16.msra.mxu0 %v4429
        %4436 = vmatprep.subr.bf16.mxu0 0
        %4437 = vmatpush1.bf16.msra.mxu0 0
        %4438 = vmatprep.subr.bf16.mxu0 0
        %4439 = vmatpush1.bf16.msra.mxu0 0
        %4440 = vmatprep.subr.bf16.mxu0 0
        %4441 = vmatpush1.bf16.msra.mxu0 0
        %4442 = vmatprep.subr.bf16.mxu0 0
        %4443 = vmatpush1.bf16.msra.mxu0 0
        %4444 = vmatprep.subr.bf16.mxu0 0
        %4445 = vmatpush1.bf16.msra.mxu0 0
        %4446 = vmatprep.subr.bf16.mxu0 0
        %4447 = vmatpush1.bf16.msra.mxu0 0
        %4448 = vmatprep.subr.bf16.mxu0 0
        %4449 = vmatpush1.bf16.msra.mxu0 0
        %4450 = vmatprep.subr.bf16.mxu0 0
        %4451 = vmatpush1.bf16.msra.mxu0 0
        %4452 = vmatprep.subr.bf16.mxu0 0
        %4453 = vmatpush1.bf16.msra.mxu0 0
        %4454 = vmatprep.subr.bf16.mxu0 0
        %4455 = vmatpush1.bf16.msra.mxu0 0
        %4456 = vmatprep.subr.bf16.mxu0 0
        %4457 = vmatpush1.bf16.msra.mxu0 0
        %4458 = vmatprep.subr.bf16.mxu0 0
        %4459 = vmatpush1.bf16.msra.mxu0 0
        %4460 = vmatprep.subr.bf16.mxu0 0
        %4461 = vmatpush1.bf16.msra.mxu0 0
        %4462 = vmatprep.subr.bf16.mxu0 0
        %4463 = vmatpush1.bf16.msra.mxu0 0
        %4464 = vmatprep.mubr.bf16.mxu0 0
        %4465 = vmatmul.mubr.bf16.gmra.mrb[0].mxu0 %v3135
        %v4466 = vpop.f32.mrb[0].mxu0
        %v4467 = vadd.f32 %v4418, %v4466
        %v4468 = vpop.f32.mrb[0].mxu0
        %v4469 = vpop.f32.mrb[0].mxu0
        %v4470 = vadd.f32 %v4418, %v4469
        %v4471 = vpop.f32.mrb[0].mxu0
        %4472 = vmatprep.mubr.bf16.mxu0 0
        %4473 = vmatmul.mubr.bf16.gmra.mrb[0].mxu0 %v3138
        %v4474 = vpop.f32.mrb[0].mxu0
        %v4475 = vadd.f32 %v4418, %v4474
        %v4476 = vpop.f32.mrb[0].mxu0
        %v4477 = vpop.f32.mrb[0].mxu0
        %v4478 = vadd.f32 %v4418, %v4477
        %v4479 = vpop.f32.mrb[0].mxu0
        %4480 = vmatprep.mubr.bf16.mxu0 0
        %4481 = vmatmul.mubr.bf16.gmra.mrb[0].mxu0 %v3141
        %v4482 = vpop.f32.mrb[0].mxu0
        %v4483 = vadd.f32 %v4418, %v4482
        %v4484 = vpop.f32.mrb[0].mxu0
        %v4485 = vpop.f32.mrb[0].mxu0
        %v4486 = vadd.f32 %v4418, %v4485
        %v4487 = vpop.f32.mrb[0].mxu0
        %4488 = vmatprep.mubr.bf16.mxu0 0
        %4489 = vmatmul.mubr.bf16.gmra.mrb[0].mxu0 %v3144
        %v4490 = vpop.f32.mrb[0].mxu0
        %v4491 = vadd.f32 %v4418, %v4490
        %v4492 = vpop.f32.mrb[0].mxu0
        %v4493 = vpop.f32.mrb[0].mxu0
        %v4494 = vadd.f32 %v4418, %v4493
        %v4495 = vpop.f32.mrb[0].mxu0
        %4496 = vdwg.mxu0
        %s4497 = scalar_lea.vmem %s2, 96
        %v4498 = vld [vmem:[%s4497] sm:$0xf]
        %v4499 = vld [vmem:[%s4497 + $0x4] sm:$0xf]
        %v4500 = vld [vmem:[%s4497 + $0x8] sm:$0xf]
        %v4501 = vld [vmem:[%s4497 + $0xc] sm:$0xf]
        %s4502 = scalar_lea.vmem [#allocation5], 6
        %v4503 = vld [vmem:[%s4502] sm:$0x1]
        %v4505 = vlaneseq
        %v4506 = vshrl.u32 %v4505, 7
        %v4507 = vsub.s32 0, %v4506
        %v4508 = vrot.slane %v4503, %v4507
        %v4514 = vunpack.c.l.b16 %v4498
        %v4515 = vunpack.c.l.b16 %v4499
        %v4516 = vunpack.c.l.b16 %v4500
        %v4517 = vunpack.c.l.b16 %v4501
        %v4518 = vpack.c.b16 %v4515, %v4514
        %v4519 = vpack.c.b16 %v4517, %v4516
        %4522 = vmatprep.subr.bf16.mxu0 0
        %4523 = vmatpush1.bf16.msra.mxu0 %v4518
        %4524 = vmatprep.subr.bf16.mxu0 0
        %4525 = vmatpush1.bf16.msra.mxu0 %v4519
        %4526 = vmatprep.subr.bf16.mxu0 0
        %4527 = vmatpush1.bf16.msra.mxu0 0
        %4528 = vmatprep.subr.bf16.mxu0 0
        %4529 = vmatpush1.bf16.msra.mxu0 0
        %4530 = vmatprep.subr.bf16.mxu0 0
        %4531 = vmatpush1.bf16.msra.mxu0 0
        %4532 = vmatprep.subr.bf16.mxu0 0
        %4533 = vmatpush1.bf16.msra.mxu0 0
        %4534 = vmatprep.subr.bf16.mxu0 0
        %4535 = vmatpush1.bf16.msra.mxu0 0
        %4536 = vmatprep.subr.bf16.mxu0 0
        %4537 = vmatpush1.bf16.msra.mxu0 0
        %4538 = vmatprep.subr.bf16.mxu0 0
        %4539 = vmatpush1.bf16.msra.mxu0 0
        %4540 = vmatprep.subr.bf16.mxu0 0
        %4541 = vmatpush1.bf16.msra.mxu0 0
        %4542 = vmatprep.subr.bf16.mxu0 0
        %4543 = vmatpush1.bf16.msra.mxu0 0
        %4544 = vmatprep.subr.bf16.mxu0 0
        %4545 = vmatpush1.bf16.msra.mxu0 0
        %4546 = vmatprep.subr.bf16.mxu0 0
        %4547 = vmatpush1.bf16.msra.mxu0 0
        %4548 = vmatprep.subr.bf16.mxu0 0
        %4549 = vmatpush1.bf16.msra.mxu0 0
        %4550 = vmatprep.subr.bf16.mxu0 0
        %4551 = vmatpush1.bf16.msra.mxu0 0
        %4552 = vmatprep.subr.bf16.mxu0 0
        %4553 = vmatpush1.bf16.msra.mxu0 0
        %4554 = vmatprep.mubr.bf16.mxu0 0
        %4555 = vmatmul.mubr.bf16.gmra.mrb[0].mxu0 %v3135
        %v4556 = vpop.f32.mrb[0].mxu0
        %v4557 = vadd.f32 %v4508, %v4556
        %v4558 = vpop.f32.mrb[0].mxu0
        %v4559 = vpop.f32.mrb[0].mxu0
        %v4560 = vadd.f32 %v4508, %v4559
        %v4561 = vpop.f32.mrb[0].mxu0
        %4562 = vmatprep.mubr.bf16.mxu0 0
        %4563 = vmatmul.mubr.bf16.gmra.mrb[0].mxu0 %v3138
        %v4564 = vpop.f32.mrb[0].mxu0
        %v4565 = vadd.f32 %v4508, %v4564
        %v4566 = vpop.f32.mrb[0].mxu0
        %v4567 = vpop.f32.mrb[0].mxu0
        %v4568 = vadd.f32 %v4508, %v4567
        %v4569 = vpop.f32.mrb[0].mxu0
        %4570 = vmatprep.mubr.bf16.mxu0 0
        %4571 = vmatmul.mubr.bf16.gmra.mrb[0].mxu0 %v3141
        %v4572 = vpop.f32.mrb[0].mxu0
        %v4573 = vadd.f32 %v4508, %v4572
        %v4574 = vpop.f32.mrb[0].mxu0
        %v4575 = vpop.f32.mrb[0].mxu0
        %v4576 = vadd.f32 %v4508, %v4575
        %v4577 = vpop.f32.mrb[0].mxu0
        %4578 = vmatprep.mubr.bf16.mxu0 0
        %4579 = vmatmul.mubr.bf16.gmra.mrb[0].mxu0 %v3144
        %v4580 = vpop.f32.mrb[0].mxu0
        %v4581 = vadd.f32 %v4508, %v4580
        %v4582 = vpop.f32.mrb[0].mxu0
        %v4583 = vpop.f32.mrb[0].mxu0
        %v4584 = vadd.f32 %v4508, %v4583
        %v4585 = vpop.f32.mrb[0].mxu0
        %4586 = vdwg.mxu0
        %s4587 = scalar_lea.vmem %s3, 96
        %v4588 = vld [vmem:[%s4587] sm:$0xf]
        %v4589 = vld [vmem:[%s4587 + $0x4] sm:$0xf]
        %v4590 = vld [vmem:[%s4587 + $0x8] sm:$0xf]
        %v4591 = vld [vmem:[%s4587 + $0xc] sm:$0xf]
        %s4592 = scalar_lea.vmem [#allocation7], 6
        %v4593 = vld [vmem:[%s4592] sm:$0x1]
        %v4595 = vlaneseq
        %v4596 = vshrl.u32 %v4595, 7
        %v4597 = vsub.s32 0, %v4596
        %v4598 = vrot.slane %v4593, %v4597
        %v4604 = vunpack.c.l.b16 %v4588
        %v4605 = vunpack.c.l.b16 %v4589
        %v4606 = vunpack.c.l.b16 %v4590
        %v4607 = vunpack.c.l.b16 %v4591
        %v4608 = vpack.c.b16 %v4605, %v4604
        %v4609 = vpack.c.b16 %v4607, %v4606
        %4612 = vmatprep.subr.bf16.mxu0 0
        %4613 = vmatpush1.bf16.msra.mxu0 %v4608
        %4614 = vmatprep.subr.bf16.mxu0 0
        %4615 = vmatpush1.bf16.msra.mxu0 %v4609
        %4616 = vmatprep.subr.bf16.mxu0 0
        %4617 = vmatpush1.bf16.msra.mxu0 0
        %4618 = vmatprep.subr.bf16.mxu0 0
        %4619 = vmatpush1.bf16.msra.mxu0 0
        %4620 = vmatprep.subr.bf16.mxu0 0
        %4621 = vmatpush1.bf16.msra.mxu0 0
        %4622 = vmatprep.subr.bf16.mxu0 0
        %4623 = vmatpush1.bf16.msra.mxu0 0
        %4624 = vmatprep.subr.bf16.mxu0 0
        %4625 = vmatpush1.bf16.msra.mxu0 0
        %4626 = vmatprep.subr.bf16.mxu0 0
        %4627 = vmatpush1.bf16.msra.mxu0 0
        %4628 = vmatprep.subr.bf16.mxu0 0
        %4629 = vmatpush1.bf16.msra.mxu0 0
        %4630 = vmatprep.subr.bf16.mxu0 0
        %4631 = vmatpush1.bf16.msra.mxu0 0
        %4632 = vmatprep.subr.bf16.mxu0 0
        %4633 = vmatpush1.bf16.msra.mxu0 0
        %4634 = vmatprep.subr.bf16.mxu0 0
        %4635 = vmatpush1.bf16.msra.mxu0 0
        %4636 = vmatprep.subr.bf16.mxu0 0
        %4637 = vmatpush1.bf16.msra.mxu0 0
        %4638 = vmatprep.subr.bf16.mxu0 0
        %4639 = vmatpush1.bf16.msra.mxu0 0
        %4640 = vmatprep.subr.bf16.mxu0 0
        %4641 = vmatpush1.bf16.msra.mxu0 0
        %4642 = vmatprep.subr.bf16.mxu0 0
        %4643 = vmatpush1.bf16.msra.mxu0 0
        %4644 = vmatprep.mubr.bf16.mxu0 0
        %4645 = vmatmul.mubr.bf16.gmra.mrb[0].mxu0 %v3135
        %v4646 = vpop.f32.mrb[0].mxu0
        %v4647 = vadd.f32 %v4598, %v4646
        %v4648 = vpop.f32.mrb[0].mxu0
        %v4649 = vpop.f32.mrb[0].mxu0
        %v4650 = vadd.f32 %v4598, %v4649
        %v4651 = vpop.f32.mrb[0].mxu0
        %4652 = vmatprep.mubr.bf16.mxu0 0
        %4653 = vmatmul.mubr.bf16.gmra.mrb[0].mxu0 %v3138
        %v4654 = vpop.f32.mrb[0].mxu0
        %v4655 = vadd.f32 %v4598, %v4654
        %v4656 = vpop.f32.mrb[0].mxu0
        %v4657 = vpop.f32.mrb[0].mxu0
        %v4658 = vadd.f32 %v4598, %v4657
        %v4659 = vpop.f32.mrb[0].mxu0
        %4660 = vmatprep.mubr.bf16.mxu0 0
        %4661 = vmatmul.mubr.bf16.gmra.mrb[0].mxu0 %v3141
        %v4662 = vpop.f32.mrb[0].mxu0
        %v4663 = vadd.f32 %v4598, %v4662
        %v4664 = vpop.f32.mrb[0].mxu0
        %v4665 = vpop.f32.mrb[0].mxu0
        %v4666 = vadd.f32 %v4598, %v4665
        %v4667 = vpop.f32.mrb[0].mxu0
        %4668 = vmatprep.mubr.bf16.mxu0 0
        %4669 = vmatmul.mubr.bf16.gmra.mrb[0].mxu0 %v3144
        %v4670 = vpop.f32.mrb[0].mxu0
        %v4671 = vadd.f32 %v4598, %v4670
        %v4672 = vpop.f32.mrb[0].mxu0
        %v4673 = vpop.f32.mrb[0].mxu0
        %v4674 = vadd.f32 %v4598, %v4673
        %v4675 = vpop.f32.mrb[0].mxu0
        %4676 = vdwg.mxu0
        %v4677 = vpack.c.bf16 %v4470, %v4467
        %v4678 = vpack.c.bf16 %v4478, %v4475
        %v4679 = vpack.c.bf16 %v4486, %v4483
        %v4680 = vpack.c.bf16 %v4494, %v4491
        %v4681 = vpack.c.bf16 %v4560, %v4557
        %v4682 = vpack.c.bf16 %v4568, %v4565
        %v4683 = vpack.c.bf16 %v4576, %v4573
        %v4684 = vpack.c.bf16 %v4584, %v4581
        %s4685 = scalar_lea.vmem %s7, 192
        %v4686 = vld [vmem:[%s4685] sm:$0xf]
        %v4687 = vld [vmem:[%s4685 + $0x4] sm:$0xf]
        %v4688 = vld [vmem:[%s4685 + $0x8] sm:$0xf]
        %v4689 = vld [vmem:[%s4685 + $0xc] sm:$0xf]
        %v4690 = vld [vmem:[%s4685 + $0x10] sm:$0xf]
        %v4691 = vld [vmem:[%s4685 + $0x14] sm:$0xf]
        %v4692 = vld [vmem:[%s4685 + $0x18] sm:$0xf]
        %v4693 = vld [vmem:[%s4685 + $0x1c] sm:$0xf]
        %v4694 = vunpack.c.l.bf16 %v4686
        %v4695 = vunpack.c.l.bf16 %v4687
        %v4696 = vunpack.c.l.bf16 %v4688
        %v4697 = vunpack.c.l.bf16 %v4689
        %v4698 = vunpack.c.l.bf16 %v4690
        %v4699 = vunpack.c.l.bf16 %v4691
        %v4700 = vunpack.c.l.bf16 %v4692
        %v4701 = vunpack.c.l.bf16 %v4693
        %v4703 = vsel %vm795, %v4677, 0
        %v4706 = vsel %vm795, %v4678, 0
        %v4709 = vsel %vm795, %v4679, 0
        %v4712 = vsel %vm795, %v4680, 0
        %v4715 = vsel %vm795, %v4681, 0
        %v4718 = vsel %vm795, %v4682, 0
        %v4721 = vsel %vm795, %v4683, 0
        %v4724 = vsel %vm795, %v4684, 0
        %4726 = vmatprep.subr.bf16.mxu0 0
        %4727 = vmatpush1.bf16.xpose.msra.mxu0 %v4715
        %4728 = vmatprep.subr.bf16.mxu0 0
        %4729 = vmatpush1.bf16.xpose.msra.mxu0 %v4718
        %4730 = vmatprep.subr.bf16.mxu0 0
        %4731 = vmatpush1.bf16.xpose.msra.mxu0 %v4721
        %4732 = vmatprep.subr.bf16.mxu0 0
        %4733 = vmatpush1.bf16.xpose.msra.mxu0 %v4724
        %4734 = vmatprep.subr.bf16.mxu0 0
        %4735 = vmatpush1.bf16.xpose.msra.mxu0 0
        %4736 = vmatprep.subr.bf16.mxu0 0
        %4737 = vmatpush1.bf16.xpose.msra.mxu0 0
        %4738 = vmatprep.subr.bf16.mxu0 0
        %4739 = vmatpush1.bf16.xpose.msra.mxu0 0
        %4740 = vmatprep.subr.bf16.mxu0 0
        %4741 = vmatpush1.bf16.xpose.msra.mxu0 0
        %4742 = vmatprep.subr.bf16.mxu0 0
        %4743 = vmatpush1.bf16.xpose.msra.mxu0 0
        %4744 = vmatprep.subr.bf16.mxu0 0
        %4745 = vmatpush1.bf16.xpose.msra.mxu0 0
        %4746 = vmatprep.subr.bf16.mxu0 0
        %4747 = vmatpush1.bf16.xpose.msra.mxu0 0
        %4748 = vmatprep.subr.bf16.mxu0 0
        %4749 = vmatpush1.bf16.xpose.msra.mxu0 0
        %4750 = vmatprep.subr.bf16.mxu0 0
        %4751 = vmatpush1.bf16.xpose.msra.mxu0 0
        %4752 = vmatprep.subr.bf16.mxu0 0
        %4753 = vmatpush1.bf16.xpose.msra.mxu0 0
        %4754 = vmatprep.subr.bf16.mxu0 0
        %4755 = vmatpush1.bf16.xpose.msra.mxu0 0
        %4756 = vmatprep.subr.bf16.mxu0 0
        %4757 = vmatpush1.bf16.xpose.msra.mxu0 0
        %4758 = vmatprep.mubr.bf16.mxu0 0
        %4759 = vmatmul.mubr.bf16.gmra.mrb[0].mxu0 %v4703
        %v4760 = vpop.f32.mrb[0].mxu0
        %v4761 = vadd.f32 %v4694, %v4760
        %v4762 = vpop.f32.mrb[0].mxu0
        %v4763 = vpop.f32.mrb[0].mxu0
        %v4764 = vadd.f32 %v4695, %v4763
        %v4765 = vpop.f32.mrb[0].mxu0
        %4766 = vmatprep.mubr.bf16.mxu0 0
        %4767 = vmatmul.mubr.bf16.gmra.mrb[0].mxu0 %v4706
        %v4768 = vpop.f32.mrb[0].mxu0
        %v4769 = vadd.f32 %v4696, %v4768
        %v4770 = vpop.f32.mrb[0].mxu0
        %v4771 = vpop.f32.mrb[0].mxu0
        %v4772 = vadd.f32 %v4697, %v4771
        %v4773 = vpop.f32.mrb[0].mxu0
        %4774 = vmatprep.mubr.bf16.mxu0 0
        %4775 = vmatmul.mubr.bf16.gmra.mrb[0].mxu0 %v4709
        %v4776 = vpop.f32.mrb[0].mxu0
        %v4777 = vadd.f32 %v4698, %v4776
        %v4778 = vpop.f32.mrb[0].mxu0
        %v4779 = vpop.f32.mrb[0].mxu0
        %v4780 = vadd.f32 %v4699, %v4779
        %v4781 = vpop.f32.mrb[0].mxu0
        %4782 = vmatprep.mubr.bf16.mxu0 0
        %4783 = vmatmul.mubr.bf16.gmra.mrb[0].mxu0 %v4712
        %v4784 = vpop.f32.mrb[0].mxu0
        %v4785 = vadd.f32 %v4700, %v4784
        %v4786 = vpop.f32.mrb[0].mxu0
        %v4787 = vpop.f32.mrb[0].mxu0
        %v4788 = vadd.f32 %v4701, %v4787
        %v4789 = vpop.f32.mrb[0].mxu0
        %4790 = vdwg.mxu0
        %v4791 = vsel %vm885, %v4761, -inf
        %4792 = vmax.xlane.f32.xlu0 %v4791
        %v4793 = vpop.xlane.xlu0 %4792
        %v4794 = vsel %vm885, %v4764, -inf
        %4795 = vmax.xlane.f32.xlu0 %v4794
        %v4796 = vpop.xlane.xlu0 %4795
        %v4797 = vsel %vm885, %v4769, -inf
        %4798 = vmax.xlane.f32.xlu0 %v4797
        %v4799 = vpop.xlane.xlu0 %4798
        %v4800 = vsel %vm885, %v4772, -inf
        %4801 = vmax.xlane.f32.xlu0 %v4800
        %v4802 = vpop.xlane.xlu0 %4801
        %v4803 = vsel %vm885, %v4777, -inf
        %4804 = vmax.xlane.f32.xlu0 %v4803
        %v4805 = vpop.xlane.xlu0 %4804
        %v4806 = vsel %vm885, %v4780, -inf
        %4807 = vmax.xlane.f32.xlu0 %v4806
        %v4808 = vpop.xlane.xlu0 %4807
        %v4809 = vsel %vm885, %v4785, -inf
        %4810 = vmax.xlane.f32.xlu0 %v4809
        %v4811 = vpop.xlane.xlu0 %4810
        %v4812 = vsel %vm885, %v4788, -inf
        %4813 = vmax.xlane.f32.xlu0 %v4812
        %v4814 = vpop.xlane.xlu0 %4813
        %v4815 = vsub.f32 %v4761, %v4793
        %v4816 = vsub.f32 %v4764, %v4796
        %v4817 = vsub.f32 %v4769, %v4799
        %v4818 = vsub.f32 %v4772, %v4802
        %v4819 = vsub.f32 %v4777, %v4805
        %v4820 = vsub.f32 %v4780, %v4808
        %v4821 = vsub.f32 %v4785, %v4811
        %v4822 = vsub.f32 %v4788, %v4814
        %v4823 = vmul.f32 %v4815, 1.442695
        %v4824 = vpow.pop %v4823
        %v4825 = vmul.f32 %v4816, 1.442695
        %v4826 = vpow.pop %v4825
        %v4827 = vmul.f32 %v4817, 1.442695
        %v4828 = vpow.pop %v4827
        %v4829 = vmul.f32 %v4818, 1.442695
        %v4830 = vpow.pop %v4829
        %v4831 = vmul.f32 %v4819, 1.442695
        %v4832 = vpow.pop %v4831
        %v4833 = vmul.f32 %v4820, 1.442695
        %v4834 = vpow.pop %v4833
        %v4835 = vmul.f32 %v4821, 1.442695
        %v4836 = vpow.pop %v4835
        %v4837 = vmul.f32 %v4822, 1.442695
        %v4838 = vpow.pop %v4837
        %v4839 = vsel %vm885, %v4824, 0.0
        %4840 = vadd.xlane.f32.xlu0 %v4839
        %v4841 = vpop.xlane.xlu0 %4840
        %v4842 = vsel %vm885, %v4826, 0.0
        %4843 = vadd.xlane.f32.xlu0 %v4842
        %v4844 = vpop.xlane.xlu0 %4843
        %v4845 = vsel %vm885, %v4828, 0.0
        %4846 = vadd.xlane.f32.xlu0 %v4845
        %v4847 = vpop.xlane.xlu0 %4846
        %v4848 = vsel %vm885, %v4830, 0.0
        %4849 = vadd.xlane.f32.xlu0 %v4848
        %v4850 = vpop.xlane.xlu0 %4849
        %v4851 = vsel %vm885, %v4832, 0.0
        %4852 = vadd.xlane.f32.xlu0 %v4851
        %v4853 = vpop.xlane.xlu0 %4852
        %v4854 = vsel %vm885, %v4834, 0.0
        %4855 = vadd.xlane.f32.xlu0 %v4854
        %v4856 = vpop.xlane.xlu0 %4855
        %v4857 = vsel %vm885, %v4836, 0.0
        %4858 = vadd.xlane.f32.xlu0 %v4857
        %v4859 = vpop.xlane.xlu0 %4858
        %v4860 = vsel %vm885, %v4838, 0.0
        %4861 = vadd.xlane.f32.xlu0 %v4860
        %v4862 = vpop.xlane.xlu0 %4861
        %v4863 = vrcp.pop %v4841
        %v4864 = vrcp.pop %v4844
        %v4865 = vrcp.pop %v4847
        %v4866 = vrcp.pop %v4850
        %v4867 = vrcp.pop %v4853
        %v4868 = vrcp.pop %v4856
        %v4869 = vrcp.pop %v4859
        %v4870 = vrcp.pop %v4862
        %v4871 = vmul.f32 %v4824, %v4863
        %v4872 = vmul.f32 %v4826, %v4864
        %v4873 = vmul.f32 %v4828, %v4865
        %v4874 = vmul.f32 %v4830, %v4866
        %v4875 = vmul.f32 %v4832, %v4867
        %v4876 = vmul.f32 %v4834, %v4868
        %v4877 = vmul.f32 %v4836, %v4869
        %v4878 = vmul.f32 %v4838, %v4870
        %v4879 = vpack.c.bf16 %v4872, %v4871
        %v4880 = vpack.c.bf16 %v4874, %v4873
        %v4881 = vpack.c.bf16 %v4876, %v4875
        %v4882 = vpack.c.bf16 %v4878, %v4877
        %v4883 = vpack.c.bf16 %v4650, %v4647
        %v4884 = vpack.c.bf16 %v4658, %v4655
        %v4885 = vpack.c.bf16 %v4666, %v4663
        %v4886 = vpack.c.bf16 %v4674, %v4671
        %v4888 = vsel %vm885, %v4879, 0
        %v4891 = vsel %vm885, %v4880, 0
        %v4894 = vsel %vm885, %v4881, 0
        %v4897 = vsel %vm885, %v4882, 0
        %4899 = vmatprep.subr.bf16.mxu0 0
        %4900 = vmatpush1.bf16.msra.mxu0 %v4883
        %4901 = vmatprep.subr.bf16.mxu0 0
        %4902 = vmatpush1.bf16.msra.mxu0 %v4884
        %4903 = vmatprep.subr.bf16.mxu0 0
        %4904 = vmatpush1.bf16.msra.mxu0 %v4885
        %4905 = vmatprep.subr.bf16.mxu0 0
        %4906 = vmatpush1.bf16.msra.mxu0 %v4886
        %4907 = vmatprep.subr.bf16.mxu0 0
        %4908 = vmatpush1.bf16.msra.mxu0 0
        %4909 = vmatprep.subr.bf16.mxu0 0
        %4910 = vmatpush1.bf16.msra.mxu0 0
        %4911 = vmatprep.subr.bf16.mxu0 0
        %4912 = vmatpush1.bf16.msra.mxu0 0
        %4913 = vmatprep.subr.bf16.mxu0 0
        %4914 = vmatpush1.bf16.msra.mxu0 0
        %4915 = vmatprep.subr.bf16.mxu0 0
        %4916 = vmatpush1.bf16.msra.mxu0 0
        %4917 = vmatprep.subr.bf16.mxu0 0
        %4918 = vmatpush1.bf16.msra.mxu0 0
        %4919 = vmatprep.subr.bf16.mxu0 0
        %4920 = vmatpush1.bf16.msra.mxu0 0
        %4921 = vmatprep.subr.bf16.mxu0 0
        %4922 = vmatpush1.bf16.msra.mxu0 0
        %4923 = vmatprep.subr.bf16.mxu0 0
        %4924 = vmatpush1.bf16.msra.mxu0 0
        %4925 = vmatprep.subr.bf16.mxu0 0
        %4926 = vmatpush1.bf16.msra.mxu0 0
        %4927 = vmatprep.subr.bf16.mxu0 0
        %4928 = vmatpush1.bf16.msra.mxu0 0
        %4929 = vmatprep.subr.bf16.mxu0 0
        %4930 = vmatpush1.bf16.msra.mxu0 0
        %4931 = vmatprep.mubr.bf16.mxu0 0
        %4932 = vmatmul.mubr.bf16.gmra.mrb[0].mxu0 %v4888
        %v4933 = vpop.f32.mrb[0].mxu0
        %v4934 = vadd.f32 0.0, %v4933
        %v4935 = vpop.f32.mrb[0].mxu0
        %v4936 = vpop.f32.mrb[0].mxu0
        %v4937 = vadd.f32 0.0, %v4936
        %v4938 = vpop.f32.mrb[0].mxu0
        %4939 = vmatprep.mubr.bf16.mxu0 0
        %4940 = vmatmul.mubr.bf16.gmra.mrb[0].mxu0 %v4891
        %v4941 = vpop.f32.mrb[0].mxu0
        %v4942 = vadd.f32 0.0, %v4941
        %v4943 = vpop.f32.mrb[0].mxu0
        %v4944 = vpop.f32.mrb[0].mxu0
        %v4945 = vadd.f32 0.0, %v4944
        %v4946 = vpop.f32.mrb[0].mxu0
        %4947 = vmatprep.mubr.bf16.mxu0 0
        %4948 = vmatmul.mubr.bf16.gmra.mrb[0].mxu0 %v4894
        %v4949 = vpop.f32.mrb[0].mxu0
        %v4950 = vadd.f32 0.0, %v4949
        %v4951 = vpop.f32.mrb[0].mxu0
        %v4952 = vpop.f32.mrb[0].mxu0
        %v4953 = vadd.f32 0.0, %v4952
        %v4954 = vpop.f32.mrb[0].mxu0
        %4955 = vmatprep.mubr.bf16.mxu0 0
        %4956 = vmatmul.mubr.bf16.gmra.mrb[0].mxu0 %v4897
        %v4957 = vpop.f32.mrb[0].mxu0
        %v4958 = vadd.f32 0.0, %v4957
        %v4959 = vpop.f32.mrb[0].mxu0
        %v4960 = vpop.f32.mrb[0].mxu0
        %v4961 = vadd.f32 0.0, %v4960
        %v4962 = vpop.f32.mrb[0].mxu0
        %4963 = vdwg.mxu0
        %v4964 = vpack.c.bf16 %v4937, %v4934
        %v4965 = vpack.c.bf16 %v4945, %v4942
        %v4966 = vpack.c.bf16 %v4953, %v4950
        %v4967 = vpack.c.bf16 %v4961, %v4958
        %s4968 = scalar_lea.vmem %s8, 24
        %v4969 = vld [vmem:[%s4968] sm:$0xf]
        %v4971 = vsel %vm795, %v4964, 0
        %v4974 = vsel %vm795, %v4965, 0
        %v4977 = vsel %vm795, %v4966, 0
        %v4980 = vsel %vm795, %v4967, 0
        %v4983 = vsel %vm1639, %v4969, 0
        %4985 = vmatprep.subr.bf16.mxu0 0
        %4986 = vmatpush1.bf16.msra.mxu0 %v4983
        %4987 = vmatprep.subr.bf16.mxu0 0
        %4988 = vmatpush1.bf16.msra.mxu0 0
        %4989 = vmatprep.subr.bf16.mxu0 0
        %4990 = vmatpush1.bf16.msra.mxu0 0
        %4991 = vmatprep.subr.bf16.mxu0 0
        %4992 = vmatpush1.bf16.msra.mxu0 0
        %4993 = vmatprep.subr.bf16.mxu0 0
        %4994 = vmatpush1.bf16.msra.mxu0 0
        %4995 = vmatprep.subr.bf16.mxu0 0
        %4996 = vmatpush1.bf16.msra.mxu0 0
        %4997 = vmatprep.subr.bf16.mxu0 0
        %4998 = vmatpush1.bf16.msra.mxu0 0
        %4999 = vmatprep.subr.bf16.mxu0 0
        %5000 = vmatpush1.bf16.msra.mxu0 0
        %5001 = vmatprep.subr.bf16.mxu0 0
        %5002 = vmatpush1.bf16.msra.mxu0 0
        %5003 = vmatprep.subr.bf16.mxu0 0
        %5004 = vmatpush1.bf16.msra.mxu0 0
        %5005 = vmatprep.subr.bf16.mxu0 0
        %5006 = vmatpush1.bf16.msra.mxu0 0
        %5007 = vmatprep.subr.bf16.mxu0 0
        %5008 = vmatpush1.bf16.msra.mxu0 0
        %5009 = vmatprep.subr.bf16.mxu0 0
        %5010 = vmatpush1.bf16.msra.mxu0 0
        %5011 = vmatprep.subr.bf16.mxu0 0
        %5012 = vmatpush1.bf16.msra.mxu0 0
        %5013 = vmatprep.subr.bf16.mxu0 0
        %5014 = vmatpush1.bf16.msra.mxu0 0
        %5015 = vmatprep.subr.bf16.mxu0 0
        %5016 = vmatpush1.bf16.msra.mxu0 0
        %5017 = vmatprep.mubr.bf16.mxu0 0
        %5018 = vmatmul.mubr.bf16.gmra.mrb[0].mxu0 %v4971
        %v5019 = vpop.f32.mrb[0].mxu0
        %v5020 = vadd.f32 0.0, %v5019
        %v5021 = vpop.f32.mrb[0].mxu0
        %v5022 = vpop.f32.mrb[0].mxu0
        %v5023 = vadd.f32 0.0, %v5022
        %v5024 = vpop.f32.mrb[0].mxu0
        %5025 = vmatprep.mubr.bf16.mxu0 0
        %5026 = vmatmul.mubr.bf16.gmra.mrb[0].mxu0 %v4974
        %v5027 = vpop.f32.mrb[0].mxu0
        %v5028 = vadd.f32 0.0, %v5027
        %v5029 = vpop.f32.mrb[0].mxu0
        %v5030 = vpop.f32.mrb[0].mxu0
        %v5031 = vadd.f32 0.0, %v5030
        %v5032 = vpop.f32.mrb[0].mxu0
        %5033 = vmatprep.mubr.bf16.mxu0 0
        %5034 = vmatmul.mubr.bf16.gmra.mrb[0].mxu0 %v4977
        %v5035 = vpop.f32.mrb[0].mxu0
        %v5036 = vadd.f32 0.0, %v5035
        %v5037 = vpop.f32.mrb[0].mxu0
        %v5038 = vpop.f32.mrb[0].mxu0
        %v5039 = vadd.f32 0.0, %v5038
        %v5040 = vpop.f32.mrb[0].mxu0
        %5041 = vmatprep.mubr.bf16.mxu0 0
        %5042 = vmatmul.mubr.bf16.gmra.mrb[0].mxu0 %v4980
        %v5043 = vpop.f32.mrb[0].mxu0
        %v5044 = vadd.f32 0.0, %v5043
        %v5045 = vpop.f32.mrb[0].mxu0
        %v5046 = vpop.f32.mrb[0].mxu0
        %v5047 = vadd.f32 0.0, %v5046
        %v5048 = vpop.f32.mrb[0].mxu0
        %5049 = vdwg.mxu0
        %v5050 = vadd.f32 %v4377, %v5020
        %v5051 = vadd.f32 %v4380, %v5023
        %v5052 = vadd.f32 %v4385, %v5028
        %v5053 = vadd.f32 %v4388, %v5031
        %v5054 = vadd.f32 %v4393, %v5036
        %v5055 = vadd.f32 %v4396, %v5039
        %v5056 = vadd.f32 %v4401, %v5044
        %v5057 = vadd.f32 %v4404, %v5047
        %s5058 = scalar_lea.vmem %s1, 112
        %v5059 = vld [vmem:[%s5058] sm:$0xf]
        %v5060 = vld [vmem:[%s5058 + $0x4] sm:$0xf]
        %v5061 = vld [vmem:[%s5058 + $0x8] sm:$0xf]
        %v5062 = vld [vmem:[%s5058 + $0xc] sm:$0xf]
        %s5063 = scalar_lea.vmem [#allocation2], 7
        %v5064 = vld [vmem:[%s5063] sm:$0x1]
        %v5066 = vlaneseq
        %v5067 = vshrl.u32 %v5066, 7
        %v5068 = vsub.s32 0, %v5067
        %v5069 = vrot.slane %v5064, %v5068
        %v5075 = vunpack.c.l.b16 %v5059
        %v5076 = vunpack.c.l.b16 %v5060
        %v5077 = vunpack.c.l.b16 %v5061
        %v5078 = vunpack.c.l.b16 %v5062
        %v5079 = vpack.c.b16 %v5076, %v5075
        %v5080 = vpack.c.b16 %v5078, %v5077
        %5083 = vmatprep.subr.bf16.mxu0 0
        %5084 = vmatpush1.bf16.msra.mxu0 %v5079
        %5085 = vmatprep.subr.bf16.mxu0 0
        %5086 = vmatpush1.bf16.msra.mxu0 %v5080
        %5087 = vmatprep.subr.bf16.mxu0 0
        %5088 = vmatpush1.bf16.msra.mxu0 0
        %5089 = vmatprep.subr.bf16.mxu0 0
        %5090 = vmatpush1.bf16.msra.mxu0 0
        %5091 = vmatprep.subr.bf16.mxu0 0
        %5092 = vmatpush1.bf16.msra.mxu0 0
        %5093 = vmatprep.subr.bf16.mxu0 0
        %5094 = vmatpush1.bf16.msra.mxu0 0
        %5095 = vmatprep.subr.bf16.mxu0 0
        %5096 = vmatpush1.bf16.msra.mxu0 0
        %5097 = vmatprep.subr.bf16.mxu0 0
        %5098 = vmatpush1.bf16.msra.mxu0 0
        %5099 = vmatprep.subr.bf16.mxu0 0
        %5100 = vmatpush1.bf16.msra.mxu0 0
        %5101 = vmatprep.subr.bf16.mxu0 0
        %5102 = vmatpush1.bf16.msra.mxu0 0
        %5103 = vmatprep.subr.bf16.mxu0 0
        %5104 = vmatpush1.bf16.msra.mxu0 0
        %5105 = vmatprep.subr.bf16.mxu0 0
        %5106 = vmatpush1.bf16.msra.mxu0 0
        %5107 = vmatprep.subr.bf16.mxu0 0
        %5108 = vmatpush1.bf16.msra.mxu0 0
        %5109 = vmatprep.subr.bf16.mxu0 0
        %5110 = vmatpush1.bf16.msra.mxu0 0
        %5111 = vmatprep.subr.bf16.mxu0 0
        %5112 = vmatpush1.bf16.msra.mxu0 0
        %5113 = vmatprep.subr.bf16.mxu0 0
        %5114 = vmatpush1.bf16.msra.mxu0 0
        %5115 = vmatprep.mubr.bf16.mxu0 0
        %5116 = vmatmul.mubr.bf16.gmra.mrb[0].mxu0 %v3135
        %v5117 = vpop.f32.mrb[0].mxu0
        %v5118 = vadd.f32 %v5069, %v5117
        %v5119 = vpop.f32.mrb[0].mxu0
        %v5120 = vpop.f32.mrb[0].mxu0
        %v5121 = vadd.f32 %v5069, %v5120
        %v5122 = vpop.f32.mrb[0].mxu0
        %5123 = vmatprep.mubr.bf16.mxu0 0
        %5124 = vmatmul.mubr.bf16.gmra.mrb[0].mxu0 %v3138
        %v5125 = vpop.f32.mrb[0].mxu0
        %v5126 = vadd.f32 %v5069, %v5125
        %v5127 = vpop.f32.mrb[0].mxu0
        %v5128 = vpop.f32.mrb[0].mxu0
        %v5129 = vadd.f32 %v5069, %v5128
        %v5130 = vpop.f32.mrb[0].mxu0
        %5131 = vmatprep.mubr.bf16.mxu0 0
        %5132 = vmatmul.mubr.bf16.gmra.mrb[0].mxu0 %v3141
        %v5133 = vpop.f32.mrb[0].mxu0
        %v5134 = vadd.f32 %v5069, %v5133
        %v5135 = vpop.f32.mrb[0].mxu0
        %v5136 = vpop.f32.mrb[0].mxu0
        %v5137 = vadd.f32 %v5069, %v5136
        %v5138 = vpop.f32.mrb[0].mxu0
        %5139 = vmatprep.mubr.bf16.mxu0 0
        %5140 = vmatmul.mubr.bf16.gmra.mrb[0].mxu0 %v3144
        %v5141 = vpop.f32.mrb[0].mxu0
        %v5142 = vadd.f32 %v5069, %v5141
        %v5143 = vpop.f32.mrb[0].mxu0
        %v5144 = vpop.f32.mrb[0].mxu0
        %v5145 = vadd.f32 %v5069, %v5144
        %v5146 = vpop.f32.mrb[0].mxu0
        %5147 = vdwg.mxu0
        %s5148 = scalar_lea.vmem %s2, 112
        %v5149 = vld [vmem:[%s5148] sm:$0xf]
        %v5150 = vld [vmem:[%s5148 + $0x4] sm:$0xf]
        %v5151 = vld [vmem:[%s5148 + $0x8] sm:$0xf]
        %v5152 = vld [vmem:[%s5148 + $0xc] sm:$0xf]
        %s5153 = scalar_lea.vmem [#allocation5], 7
        %v5154 = vld [vmem:[%s5153] sm:$0x1]
        %v5156 = vlaneseq
        %v5157 = vshrl.u32 %v5156, 7
        %v5158 = vsub.s32 0, %v5157
        %v5159 = vrot.slane %v5154, %v5158
        %v5165 = vunpack.c.l.b16 %v5149
        %v5166 = vunpack.c.l.b16 %v5150
        %v5167 = vunpack.c.l.b16 %v5151
        %v5168 = vunpack.c.l.b16 %v5152
        %v5169 = vpack.c.b16 %v5166, %v5165
        %v5170 = vpack.c.b16 %v5168, %v5167
        %5173 = vmatprep.subr.bf16.mxu0 0
        %5174 = vmatpush1.bf16.msra.mxu0 %v5169
        %5175 = vmatprep.subr.bf16.mxu0 0
        %5176 = vmatpush1.bf16.msra.mxu0 %v5170
        %5177 = vmatprep.subr.bf16.mxu0 0
        %5178 = vmatpush1.bf16.msra.mxu0 0
        %5179 = vmatprep.subr.bf16.mxu0 0
        %5180 = vmatpush1.bf16.msra.mxu0 0
        %5181 = vmatprep.subr.bf16.mxu0 0
        %5182 = vmatpush1.bf16.msra.mxu0 0
        %5183 = vmatprep.subr.bf16.mxu0 0
        %5184 = vmatpush1.bf16.msra.mxu0 0
        %5185 = vmatprep.subr.bf16.mxu0 0
        %5186 = vmatpush1.bf16.msra.mxu0 0
        %5187 = vmatprep.subr.bf16.mxu0 0
        %5188 = vmatpush1.bf16.msra.mxu0 0
        %5189 = vmatprep.subr.bf16.mxu0 0
        %5190 = vmatpush1.bf16.msra.mxu0 0
        %5191 = vmatprep.subr.bf16.mxu0 0
        %5192 = vmatpush1.bf16.msra.mxu0 0
        %5193 = vmatprep.subr.bf16.mxu0 0
        %5194 = vmatpush1.bf16.msra.mxu0 0
        %5195 = vmatprep.subr.bf16.mxu0 0
        %5196 = vmatpush1.bf16.msra.mxu0 0
        %5197 = vmatprep.subr.bf16.mxu0 0
        %5198 = vmatpush1.bf16.msra.mxu0 0
        %5199 = vmatprep.subr.bf16.mxu0 0
        %5200 = vmatpush1.bf16.msra.mxu0 0
        %5201 = vmatprep.subr.bf16.mxu0 0
        %5202 = vmatpush1.bf16.msra.mxu0 0
        %5203 = vmatprep.subr.bf16.mxu0 0
        %5204 = vmatpush1.bf16.msra.mxu0 0
        %5205 = vmatprep.mubr.bf16.mxu0 0
        %5206 = vmatmul.mubr.bf16.gmra.mrb[0].mxu0 %v3135
        %v5207 = vpop.f32.mrb[0].mxu0
        %v5208 = vadd.f32 %v5159, %v5207
        %v5209 = vpop.f32.mrb[0].mxu0
        %v5210 = vpop.f32.mrb[0].mxu0
        %v5211 = vadd.f32 %v5159, %v5210
        %v5212 = vpop.f32.mrb[0].mxu0
        %5213 = vmatprep.mubr.bf16.mxu0 0
        %5214 = vmatmul.mubr.bf16.gmra.mrb[0].mxu0 %v3138
        %v5215 = vpop.f32.mrb[0].mxu0
        %v5216 = vadd.f32 %v5159, %v5215
        %v5217 = vpop.f32.mrb[0].mxu0
        %v5218 = vpop.f32.mrb[0].mxu0
        %v5219 = vadd.f32 %v5159, %v5218
        %v5220 = vpop.f32.mrb[0].mxu0
        %5221 = vmatprep.mubr.bf16.mxu0 0
        %5222 = vmatmul.mubr.bf16.gmra.mrb[0].mxu0 %v3141
        %v5223 = vpop.f32.mrb[0].mxu0
        %v5224 = vadd.f32 %v5159, %v5223
        %v5225 = vpop.f32.mrb[0].mxu0
        %v5226 = vpop.f32.mrb[0].mxu0
        %v5227 = vadd.f32 %v5159, %v5226
        %v5228 = vpop.f32.mrb[0].mxu0
        %5229 = vmatprep.mubr.bf16.mxu0 0
        %5230 = vmatmul.mubr.bf16.gmra.mrb[0].mxu0 %v3144
        %v5231 = vpop.f32.mrb[0].mxu0
        %v5232 = vadd.f32 %v5159, %v5231
        %v5233 = vpop.f32.mrb[0].mxu0
        %v5234 = vpop.f32.mrb[0].mxu0
        %v5235 = vadd.f32 %v5159, %v5234
        %v5236 = vpop.f32.mrb[0].mxu0
        %5237 = vdwg.mxu0
        %s5238 = scalar_lea.vmem %s3, 112
        %v5239 = vld [vmem:[%s5238] sm:$0xf]
        %v5240 = vld [vmem:[%s5238 + $0x4] sm:$0xf]
        %v5241 = vld [vmem:[%s5238 + $0x8] sm:$0xf]
        %v5242 = vld [vmem:[%s5238 + $0xc] sm:$0xf]
        %s5243 = scalar_lea.vmem [#allocation7], 7
        %v5244 = vld [vmem:[%s5243] sm:$0x1]
        %v5246 = vlaneseq
        %v5247 = vshrl.u32 %v5246, 7
        %v5248 = vsub.s32 0, %v5247
        %v5249 = vrot.slane %v5244, %v5248
        %v5255 = vunpack.c.l.b16 %v5239
        %v5256 = vunpack.c.l.b16 %v5240
        %v5257 = vunpack.c.l.b16 %v5241
        %v5258 = vunpack.c.l.b16 %v5242
        %v5259 = vpack.c.b16 %v5256, %v5255
        %v5260 = vpack.c.b16 %v5258, %v5257
        %5263 = vmatprep.subr.bf16.mxu0 0
        %5264 = vmatpush1.bf16.msra.mxu0 %v5259
        %5265 = vmatprep.subr.bf16.mxu0 0
        %5266 = vmatpush1.bf16.msra.mxu0 %v5260
        %5267 = vmatprep.subr.bf16.mxu0 0
        %5268 = vmatpush1.bf16.msra.mxu0 0
        %5269 = vmatprep.subr.bf16.mxu0 0
        %5270 = vmatpush1.bf16.msra.mxu0 0
        %5271 = vmatprep.subr.bf16.mxu0 0
        %5272 = vmatpush1.bf16.msra.mxu0 0
        %5273 = vmatprep.subr.bf16.mxu0 0
        %5274 = vmatpush1.bf16.msra.mxu0 0
        %5275 = vmatprep.subr.bf16.mxu0 0
        %5276 = vmatpush1.bf16.msra.mxu0 0
        %5277 = vmatprep.subr.bf16.mxu0 0
        %5278 = vmatpush1.bf16.msra.mxu0 0
        %5279 = vmatprep.subr.bf16.mxu0 0
        %5280 = vmatpush1.bf16.msra.mxu0 0
        %5281 = vmatprep.subr.bf16.mxu0 0
        %5282 = vmatpush1.bf16.msra.mxu0 0
        %5283 = vmatprep.subr.bf16.mxu0 0
        %5284 = vmatpush1.bf16.msra.mxu0 0
        %5285 = vmatprep.subr.bf16.mxu0 0
        %5286 = vmatpush1.bf16.msra.mxu0 0
        %5287 = vmatprep.subr.bf16.mxu0 0
        %5288 = vmatpush1.bf16.msra.mxu0 0
        %5289 = vmatprep.subr.bf16.mxu0 0
        %5290 = vmatpush1.bf16.msra.mxu0 0
        %5291 = vmatprep.subr.bf16.mxu0 0
        %5292 = vmatpush1.bf16.msra.mxu0 0
        %5293 = vmatprep.subr.bf16.mxu0 0
        %5294 = vmatpush1.bf16.msra.mxu0 0
        %5295 = vmatprep.mubr.bf16.mxu0 0
        %5296 = vmatmul.mubr.bf16.gmra.mrb[0].mxu0 %v3135
        %v5297 = vpop.f32.mrb[0].mxu0
        %v5298 = vadd.f32 %v5249, %v5297
        %v5299 = vpop.f32.mrb[0].mxu0
        %v5300 = vpop.f32.mrb[0].mxu0
        %v5301 = vadd.f32 %v5249, %v5300
        %v5302 = vpop.f32.mrb[0].mxu0
        %5303 = vmatprep.mubr.bf16.mxu0 0
        %5304 = vmatmul.mubr.bf16.gmra.mrb[0].mxu0 %v3138
        %v5305 = vpop.f32.mrb[0].mxu0
        %v5306 = vadd.f32 %v5249, %v5305
        %v5307 = vpop.f32.mrb[0].mxu0
        %v5308 = vpop.f32.mrb[0].mxu0
        %v5309 = vadd.f32 %v5249, %v5308
        %v5310 = vpop.f32.mrb[0].mxu0
        %5311 = vmatprep.mubr.bf16.mxu0 0
        %5312 = vmatmul.mubr.bf16.gmra.mrb[0].mxu0 %v3141
        %v5313 = vpop.f32.mrb[0].mxu0
        %v5314 = vadd.f32 %v5249, %v5313
        %v5315 = vpop.f32.mrb[0].mxu0
        %v5316 = vpop.f32.mrb[0].mxu0
        %v5317 = vadd.f32 %v5249, %v5316
        %v5318 = vpop.f32.mrb[0].mxu0
        %5319 = vmatprep.mubr.bf16.mxu0 0
        %5320 = vmatmul.mubr.bf16.gmra.mrb[0].mxu0 %v3144
        %v5321 = vpop.f32.mrb[0].mxu0
        %v5322 = vadd.f32 %v5249, %v5321
        %v5323 = vpop.f32.mrb[0].mxu0
        %v5324 = vpop.f32.mrb[0].mxu0
        %v5325 = vadd.f32 %v5249, %v5324
        %v5326 = vpop.f32.mrb[0].mxu0
        %5327 = vdwg.mxu0
        %v5328 = vpack.c.bf16 %v5121, %v5118
        %v5329 = vpack.c.bf16 %v5129, %v5126
        %v5330 = vpack.c.bf16 %v5137, %v5134
        %v5331 = vpack.c.bf16 %v5145, %v5142
        %v5332 = vpack.c.bf16 %v5211, %v5208
        %v5333 = vpack.c.bf16 %v5219, %v5216
        %v5334 = vpack.c.bf16 %v5227, %v5224
        %v5335 = vpack.c.bf16 %v5235, %v5232
        %s5336 = scalar_lea.vmem %s7, 224
        %v5337 = vld [vmem:[%s5336] sm:$0xf]
        %v5338 = vld [vmem:[%s5336 + $0x4] sm:$0xf]
        %v5339 = vld [vmem:[%s5336 + $0x8] sm:$0xf]
        %v5340 = vld [vmem:[%s5336 + $0xc] sm:$0xf]
        %v5341 = vld [vmem:[%s5336 + $0x10] sm:$0xf]
        %v5342 = vld [vmem:[%s5336 + $0x14] sm:$0xf]
        %v5343 = vld [vmem:[%s5336 + $0x18] sm:$0xf]
        %v5344 = vld [vmem:[%s5336 + $0x1c] sm:$0xf]
        %v5345 = vunpack.c.l.bf16 %v5337
        %v5346 = vunpack.c.l.bf16 %v5338
        %v5347 = vunpack.c.l.bf16 %v5339
        %v5348 = vunpack.c.l.bf16 %v5340
        %v5349 = vunpack.c.l.bf16 %v5341
        %v5350 = vunpack.c.l.bf16 %v5342
        %v5351 = vunpack.c.l.bf16 %v5343
        %v5352 = vunpack.c.l.bf16 %v5344
        %v5354 = vsel %vm795, %v5328, 0
        %v5357 = vsel %vm795, %v5329, 0
        %v5360 = vsel %vm795, %v5330, 0
        %v5363 = vsel %vm795, %v5331, 0
        %v5366 = vsel %vm795, %v5332, 0
        %v5369 = vsel %vm795, %v5333, 0
        %v5372 = vsel %vm795, %v5334, 0
        %v5375 = vsel %vm795, %v5335, 0
        %5377 = vmatprep.subr.bf16.mxu0 0
        %5378 = vmatpush1.bf16.xpose.msra.mxu0 %v5366
        %5379 = vmatprep.subr.bf16.mxu0 0
        %5380 = vmatpush1.bf16.xpose.msra.mxu0 %v5369
        %5381 = vmatprep.subr.bf16.mxu0 0
        %5382 = vmatpush1.bf16.xpose.msra.mxu0 %v5372
        %5383 = vmatprep.subr.bf16.mxu0 0
        %5384 = vmatpush1.bf16.xpose.msra.mxu0 %v5375
        %5385 = vmatprep.subr.bf16.mxu0 0
        %5386 = vmatpush1.bf16.xpose.msra.mxu0 0
        %5387 = vmatprep.subr.bf16.mxu0 0
        %5388 = vmatpush1.bf16.xpose.msra.mxu0 0
        %5389 = vmatprep.subr.bf16.mxu0 0
        %5390 = vmatpush1.bf16.xpose.msra.mxu0 0
        %5391 = vmatprep.subr.bf16.mxu0 0
        %5392 = vmatpush1.bf16.xpose.msra.mxu0 0
        %5393 = vmatprep.subr.bf16.mxu0 0
        %5394 = vmatpush1.bf16.xpose.msra.mxu0 0
        %5395 = vmatprep.subr.bf16.mxu0 0
        %5396 = vmatpush1.bf16.xpose.msra.mxu0 0
        %5397 = vmatprep.subr.bf16.mxu0 0
        %5398 = vmatpush1.bf16.xpose.msra.mxu0 0
        %5399 = vmatprep.subr.bf16.mxu0 0
        %5400 = vmatpush1.bf16.xpose.msra.mxu0 0
        %5401 = vmatprep.subr.bf16.mxu0 0
        %5402 = vmatpush1.bf16.xpose.msra.mxu0 0
        %5403 = vmatprep.subr.bf16.mxu0 0
        %5404 = vmatpush1.bf16.xpose.msra.mxu0 0
        %5405 = vmatprep.subr.bf16.mxu0 0
        %5406 = vmatpush1.bf16.xpose.msra.mxu0 0
        %5407 = vmatprep.subr.bf16.mxu0 0
        %5408 = vmatpush1.bf16.xpose.msra.mxu0 0
        %5409 = vmatprep.mubr.bf16.mxu0 0
        %5410 = vmatmul.mubr.bf16.gmra.mrb[0].mxu0 %v5354
        %v5411 = vpop.f32.mrb[0].mxu0
        %v5412 = vadd.f32 %v5345, %v5411
        %v5413 = vpop.f32.mrb[0].mxu0
        %v5414 = vpop.f32.mrb[0].mxu0
        %v5415 = vadd.f32 %v5346, %v5414
        %v5416 = vpop.f32.mrb[0].mxu0
        %5417 = vmatprep.mubr.bf16.mxu0 0
        %5418 = vmatmul.mubr.bf16.gmra.mrb[0].mxu0 %v5357
        %v5419 = vpop.f32.mrb[0].mxu0
        %v5420 = vadd.f32 %v5347, %v5419
        %v5421 = vpop.f32.mrb[0].mxu0
        %v5422 = vpop.f32.mrb[0].mxu0
        %v5423 = vadd.f32 %v5348, %v5422
        %v5424 = vpop.f32.mrb[0].mxu0
        %5425 = vmatprep.mubr.bf16.mxu0 0
        %5426 = vmatmul.mubr.bf16.gmra.mrb[0].mxu0 %v5360
        %v5427 = vpop.f32.mrb[0].mxu0
        %v5428 = vadd.f32 %v5349, %v5427
        %v5429 = vpop.f32.mrb[0].mxu0
        %v5430 = vpop.f32.mrb[0].mxu0
        %v5431 = vadd.f32 %v5350, %v5430
        %v5432 = vpop.f32.mrb[0].mxu0
        %5433 = vmatprep.mubr.bf16.mxu0 0
        %5434 = vmatmul.mubr.bf16.gmra.mrb[0].mxu0 %v5363
        %v5435 = vpop.f32.mrb[0].mxu0
        %v5436 = vadd.f32 %v5351, %v5435
        %v5437 = vpop.f32.mrb[0].mxu0
        %v5438 = vpop.f32.mrb[0].mxu0
        %v5439 = vadd.f32 %v5352, %v5438
        %v5440 = vpop.f32.mrb[0].mxu0
        %5441 = vdwg.mxu0
        %v5442 = vsel %vm885, %v5412, -inf
        %5443 = vmax.xlane.f32.xlu0 %v5442
        %v5444 = vpop.xlane.xlu0 %5443
        %v5445 = vsel %vm885, %v5415, -inf
        %5446 = vmax.xlane.f32.xlu0 %v5445
        %v5447 = vpop.xlane.xlu0 %5446
        %v5448 = vsel %vm885, %v5420, -inf
        %5449 = vmax.xlane.f32.xlu0 %v5448
        %v5450 = vpop.xlane.xlu0 %5449
        %v5451 = vsel %vm885, %v5423, -inf
        %5452 = vmax.xlane.f32.xlu0 %v5451
        %v5453 = vpop.xlane.xlu0 %5452
        %v5454 = vsel %vm885, %v5428, -inf
        %5455 = vmax.xlane.f32.xlu0 %v5454
        %v5456 = vpop.xlane.xlu0 %5455
        %v5457 = vsel %vm885, %v5431, -inf
        %5458 = vmax.xlane.f32.xlu0 %v5457
        %v5459 = vpop.xlane.xlu0 %5458
        %v5460 = vsel %vm885, %v5436, -inf
        %5461 = vmax.xlane.f32.xlu0 %v5460
        %v5462 = vpop.xlane.xlu0 %5461
        %v5463 = vsel %vm885, %v5439, -inf
        %5464 = vmax.xlane.f32.xlu0 %v5463
        %v5465 = vpop.xlane.xlu0 %5464
        %v5466 = vsub.f32 %v5412, %v5444
        %v5467 = vsub.f32 %v5415, %v5447
        %v5468 = vsub.f32 %v5420, %v5450
        %v5469 = vsub.f32 %v5423, %v5453
        %v5470 = vsub.f32 %v5428, %v5456
        %v5471 = vsub.f32 %v5431, %v5459
        %v5472 = vsub.f32 %v5436, %v5462
        %v5473 = vsub.f32 %v5439, %v5465
        %v5474 = vmul.f32 %v5466, 1.442695
        %v5475 = vpow.pop %v5474
        %v5476 = vmul.f32 %v5467, 1.442695
        %v5477 = vpow.pop %v5476
        %v5478 = vmul.f32 %v5468, 1.442695
        %v5479 = vpow.pop %v5478
        %v5480 = vmul.f32 %v5469, 1.442695
        %v5481 = vpow.pop %v5480
        %v5482 = vmul.f32 %v5470, 1.442695
        %v5483 = vpow.pop %v5482
        %v5484 = vmul.f32 %v5471, 1.442695
        %v5485 = vpow.pop %v5484
        %v5486 = vmul.f32 %v5472, 1.442695
        %v5487 = vpow.pop %v5486
        %v5488 = vmul.f32 %v5473, 1.442695
        %v5489 = vpow.pop %v5488
        %v5490 = vsel %vm885, %v5475, 0.0
        %5491 = vadd.xlane.f32.xlu0 %v5490
        %v5492 = vpop.xlane.xlu0 %5491
        %v5493 = vsel %vm885, %v5477, 0.0
        %5494 = vadd.xlane.f32.xlu0 %v5493
        %v5495 = vpop.xlane.xlu0 %5494
        %v5496 = vsel %vm885, %v5479, 0.0
        %5497 = vadd.xlane.f32.xlu0 %v5496
        %v5498 = vpop.xlane.xlu0 %5497
        %v5499 = vsel %vm885, %v5481, 0.0
        %5500 = vadd.xlane.f32.xlu0 %v5499
        %v5501 = vpop.xlane.xlu0 %5500
        %v5502 = vsel %vm885, %v5483, 0.0
        %5503 = vadd.xlane.f32.xlu0 %v5502
        %v5504 = vpop.xlane.xlu0 %5503
        %v5505 = vsel %vm885, %v5485, 0.0
        %5506 = vadd.xlane.f32.xlu0 %v5505
        %v5507 = vpop.xlane.xlu0 %5506
        %v5508 = vsel %vm885, %v5487, 0.0
        %5509 = vadd.xlane.f32.xlu0 %v5508
        %v5510 = vpop.xlane.xlu0 %5509
        %v5511 = vsel %vm885, %v5489, 0.0
        %5512 = vadd.xlane.f32.xlu0 %v5511
        %v5513 = vpop.xlane.xlu0 %5512
        %v5514 = vrcp.pop %v5492
        %v5515 = vrcp.pop %v5495
        %v5516 = vrcp.pop %v5498
        %v5517 = vrcp.pop %v5501
        %v5518 = vrcp.pop %v5504
        %v5519 = vrcp.pop %v5507
        %v5520 = vrcp.pop %v5510
        %v5521 = vrcp.pop %v5513
        %v5522 = vmul.f32 %v5475, %v5514
        %v5523 = vmul.f32 %v5477, %v5515
        %v5524 = vmul.f32 %v5479, %v5516
        %v5525 = vmul.f32 %v5481, %v5517
        %v5526 = vmul.f32 %v5483, %v5518
        %v5527 = vmul.f32 %v5485, %v5519
        %v5528 = vmul.f32 %v5487, %v5520
        %v5529 = vmul.f32 %v5489, %v5521
        %v5530 = vpack.c.bf16 %v5523, %v5522
        %v5531 = vpack.c.bf16 %v5525, %v5524
        %v5532 = vpack.c.bf16 %v5527, %v5526
        %v5533 = vpack.c.bf16 %v5529, %v5528
        %v5534 = vpack.c.bf16 %v5301, %v5298
        %v5535 = vpack.c.bf16 %v5309, %v5306
        %v5536 = vpack.c.bf16 %v5317, %v5314
        %v5537 = vpack.c.bf16 %v5325, %v5322
        %v5539 = vsel %vm885, %v5530, 0
        %v5542 = vsel %vm885, %v5531, 0
        %v5545 = vsel %vm885, %v5532, 0
        %v5548 = vsel %vm885, %v5533, 0
        %5550 = vmatprep.subr.bf16.mxu0 0
        %5551 = vmatpush1.bf16.msra.mxu0 %v5534
        %5552 = vmatprep.subr.bf16.mxu0 0
        %5553 = vmatpush1.bf16.msra.mxu0 %v5535
        %5554 = vmatprep.subr.bf16.mxu0 0
        %5555 = vmatpush1.bf16.msra.mxu0 %v5536
        %5556 = vmatprep.subr.bf16.mxu0 0
        %5557 = vmatpush1.bf16.msra.mxu0 %v5537
        %5558 = vmatprep.subr.bf16.mxu0 0
        %5559 = vmatpush1.bf16.msra.mxu0 0
        %5560 = vmatprep.subr.bf16.mxu0 0
        %5561 = vmatpush1.bf16.msra.mxu0 0
        %5562 = vmatprep.subr.bf16.mxu0 0
        %5563 = vmatpush1.bf16.msra.mxu0 0
        %5564 = vmatprep.subr.bf16.mxu0 0
        %5565 = vmatpush1.bf16.msra.mxu0 0
        %5566 = vmatprep.subr.bf16.mxu0 0
        %5567 = vmatpush1.bf16.msra.mxu0 0
        %5568 = vmatprep.subr.bf16.mxu0 0
        %5569 = vmatpush1.bf16.msra.mxu0 0
        %5570 = vmatprep.subr.bf16.mxu0 0
        %5571 = vmatpush1.bf16.msra.mxu0 0
        %5572 = vmatprep.subr.bf16.mxu0 0
        %5573 = vmatpush1.bf16.msra.mxu0 0
        %5574 = vmatprep.subr.bf16.mxu0 0
        %5575 = vmatpush1.bf16.msra.mxu0 0
        %5576 = vmatprep.subr.bf16.mxu0 0
        %5577 = vmatpush1.bf16.msra.mxu0 0
        %5578 = vmatprep.subr.bf16.mxu0 0
        %5579 = vmatpush1.bf16.msra.mxu0 0
        %5580 = vmatprep.subr.bf16.mxu0 0
        %5581 = vmatpush1.bf16.msra.mxu0 0
        %5582 = vmatprep.mubr.bf16.mxu0 0
        %5583 = vmatmul.mubr.bf16.gmra.mrb[0].mxu0 %v5539
        %v5584 = vpop.f32.mrb[0].mxu0
        %v5585 = vadd.f32 0.0, %v5584
        %v5586 = vpop.f32.mrb[0].mxu0
        %v5587 = vpop.f32.mrb[0].mxu0
        %v5588 = vadd.f32 0.0, %v5587
        %v5589 = vpop.f32.mrb[0].mxu0
        %5590 = vmatprep.mubr.bf16.mxu0 0
        %5591 = vmatmul.mubr.bf16.gmra.mrb[0].mxu0 %v5542
        %v5592 = vpop.f32.mrb[0].mxu0
        %v5593 = vadd.f32 0.0, %v5592
        %v5594 = vpop.f32.mrb[0].mxu0
        %v5595 = vpop.f32.mrb[0].mxu0
        %v5596 = vadd.f32 0.0, %v5595
        %v5597 = vpop.f32.mrb[0].mxu0
        %5598 = vmatprep.mubr.bf16.mxu0 0
        %5599 = vmatmul.mubr.bf16.gmra.mrb[0].mxu0 %v5545
        %v5600 = vpop.f32.mrb[0].mxu0
        %v5601 = vadd.f32 0.0, %v5600
        %v5602 = vpop.f32.mrb[0].mxu0
        %v5603 = vpop.f32.mrb[0].mxu0
        %v5604 = vadd.f32 0.0, %v5603
        %v5605 = vpop.f32.mrb[0].mxu0
        %5606 = vmatprep.mubr.bf16.mxu0 0
        %5607 = vmatmul.mubr.bf16.gmra.mrb[0].mxu0 %v5548
        %v5608 = vpop.f32.mrb[0].mxu0
        %v5609 = vadd.f32 0.0, %v5608
        %v5610 = vpop.f32.mrb[0].mxu0
        %v5611 = vpop.f32.mrb[0].mxu0
        %v5612 = vadd.f32 0.0, %v5611
        %v5613 = vpop.f32.mrb[0].mxu0
        %5614 = vdwg.mxu0
        %v5615 = vpack.c.bf16 %v5588, %v5585
        %v5616 = vpack.c.bf16 %v5596, %v5593
        %v5617 = vpack.c.bf16 %v5604, %v5601
        %v5618 = vpack.c.bf16 %v5612, %v5609
        %s5619 = scalar_lea.vmem %s8, 28
        %v5620 = vld [vmem:[%s5619] sm:$0xf]
        %v5622 = vsel %vm795, %v5615, 0
        %v5625 = vsel %vm795, %v5616, 0
        %v5628 = vsel %vm795, %v5617, 0
        %v5631 = vsel %vm795, %v5618, 0
        %v5634 = vsel %vm1639, %v5620, 0
        %5636 = vmatprep.subr.bf16.mxu0 0
        %5637 = vmatpush1.bf16.msra.mxu0 %v5634
        %5638 = vmatprep.subr.bf16.mxu0 0
        %5639 = vmatpush1.bf16.msra.mxu0 0
        %5640 = vmatprep.subr.bf16.mxu0 0
        %5641 = vmatpush1.bf16.msra.mxu0 0
        %5642 = vmatprep.subr.bf16.mxu0 0
        %5643 = vmatpush1.bf16.msra.mxu0 0
        %5644 = vmatprep.subr.bf16.mxu0 0
        %5645 = vmatpush1.bf16.msra.mxu0 0
        %5646 = vmatprep.subr.bf16.mxu0 0
        %5647 = vmatpush1.bf16.msra.mxu0 0
        %5648 = vmatprep.subr.bf16.mxu0 0
        %5649 = vmatpush1.bf16.msra.mxu0 0
        %5650 = vmatprep.subr.bf16.mxu0 0
        %5651 = vmatpush1.bf16.msra.mxu0 0
        %5652 = vmatprep.subr.bf16.mxu0 0
        %5653 = vmatpush1.bf16.msra.mxu0 0
        %5654 = vmatprep.subr.bf16.mxu0 0
        %5655 = vmatpush1.bf16.msra.mxu0 0
        %5656 = vmatprep.subr.bf16.mxu0 0
        %5657 = vmatpush1.bf16.msra.mxu0 0
        %5658 = vmatprep.subr.bf16.mxu0 0
        %5659 = vmatpush1.bf16.msra.mxu0 0
        %5660 = vmatprep.subr.bf16.mxu0 0
        %5661 = vmatpush1.bf16.msra.mxu0 0
        %5662 = vmatprep.subr.bf16.mxu0 0
        %5663 = vmatpush1.bf16.msra.mxu0 0
        %5664 = vmatprep.subr.bf16.mxu0 0
        %5665 = vmatpush1.bf16.msra.mxu0 0
        %5666 = vmatprep.subr.bf16.mxu0 0
        %5667 = vmatpush1.bf16.msra.mxu0 0
        %5668 = vmatprep.mubr.bf16.mxu0 0
        %5669 = vmatmul.mubr.bf16.gmra.mrb[0].mxu0 %v5622
        %v5670 = vpop.f32.mrb[0].mxu0
        %v5671 = vadd.f32 0.0, %v5670
        %v5672 = vpop.f32.mrb[0].mxu0
        %v5673 = vpop.f32.mrb[0].mxu0
        %v5674 = vadd.f32 0.0, %v5673
        %v5675 = vpop.f32.mrb[0].mxu0
        %5676 = vmatprep.mubr.bf16.mxu0 0
        %5677 = vmatmul.mubr.bf16.gmra.mrb[0].mxu0 %v5625
        %v5678 = vpop.f32.mrb[0].mxu0
        %v5679 = vadd.f32 0.0, %v5678
        %v5680 = vpop.f32.mrb[0].mxu0
        %v5681 = vpop.f32.mrb[0].mxu0
        %v5682 = vadd.f32 0.0, %v5681
        %v5683 = vpop.f32.mrb[0].mxu0
        %5684 = vmatprep.mubr.bf16.mxu0 0
        %5685 = vmatmul.mubr.bf16.gmra.mrb[0].mxu0 %v5628
        %v5686 = vpop.f32.mrb[0].mxu0
        %v5687 = vadd.f32 0.0, %v5686
        %v5688 = vpop.f32.mrb[0].mxu0
        %v5689 = vpop.f32.mrb[0].mxu0
        %v5690 = vadd.f32 0.0, %v5689
        %v5691 = vpop.f32.mrb[0].mxu0
        %5692 = vmatprep.mubr.bf16.mxu0 0
        %5693 = vmatmul.mubr.bf16.gmra.mrb[0].mxu0 %v5631
        %v5694 = vpop.f32.mrb[0].mxu0
        %v5695 = vadd.f32 0.0, %v5694
        %v5696 = vpop.f32.mrb[0].mxu0
        %v5697 = vpop.f32.mrb[0].mxu0
        %v5698 = vadd.f32 0.0, %v5697
        %v5699 = vpop.f32.mrb[0].mxu0
        %5700 = vdwg.mxu0
        %v5701 = vadd.f32 %v5050, %v5671
        %v5702 = vadd.f32 %v5051, %v5674
        %v5703 = vadd.f32 %v5052, %v5679
        %v5704 = vadd.f32 %v5053, %v5682
        %v5705 = vadd.f32 %v5054, %v5687
        %v5706 = vadd.f32 %v5055, %v5690
        %v5707 = vadd.f32 %v5056, %v5695
        %v5708 = vadd.f32 %v5057, %v5698
        %s5709 = scalar_lea.vmem %s9, 1
        %v5710 = vld [vmem:[%s5709] sm:$0x1]
        %v5712 = vlaneseq
        %v5713 = vshrl.u32 %v5712, 7
        %v5714 = vsub.s32 0, %v5713
        %v5715 = vrot.slane %v5710, %v5714
        %v5717 = vadd.f32 %v5701, %v5715
        %v5718 = vadd.f32 %v5702, %v5715
        %v5719 = vadd.f32 %v5703, %v5715
        %v5720 = vadd.f32 %v5704, %v5715
        %v5721 = vadd.f32 %v5705, %v5715
        %v5722 = vadd.f32 %v5706, %v5715
        %v5723 = vadd.f32 %v5707, %v5715
        %v5724 = vadd.f32 %v5708, %v5715
        %v5725 = vsel %vm517, %v5717, 0.0
        %5726 = vadd.xlane.f32.xlu0 %v5725
        %v5727 = vpop.xlane.xlu0 %5726
        %v5728 = vsel %vm517, %v5718, 0.0
        %5729 = vadd.xlane.f32.xlu0 %v5728
        %v5730 = vpop.xlane.xlu0 %5729
        %v5731 = vsel %vm517, %v5719, 0.0
        %5732 = vadd.xlane.f32.xlu0 %v5731
        %v5733 = vpop.xlane.xlu0 %5732
        %v5734 = vsel %vm517, %v5720, 0.0
        %5735 = vadd.xlane.f32.xlu0 %v5734
        %v5736 = vpop.xlane.xlu0 %5735
        %v5737 = vsel %vm517, %v5721, 0.0
        %5738 = vadd.xlane.f32.xlu0 %v5737
        %v5739 = vpop.xlane.xlu0 %5738
        %v5740 = vsel %vm517, %v5722, 0.0
        %5741 = vadd.xlane.f32.xlu0 %v5740
        %v5742 = vpop.xlane.xlu0 %5741
        %v5743 = vsel %vm517, %v5723, 0.0
        %5744 = vadd.xlane.f32.xlu0 %v5743
        %v5745 = vpop.xlane.xlu0 %5744
        %v5746 = vsel %vm517, %v5724, 0.0
        %5747 = vadd.xlane.f32.xlu0 %v5746
        %v5748 = vpop.xlane.xlu0 %5747
        %v5749 = vrcp.pop 32.0
        %v5750 = vmul.f32 %v5727, %v5749
        %v5751 = vmul.f32 %v5730, %v5749
        %v5752 = vmul.f32 %v5733, %v5749
        %v5753 = vmul.f32 %v5736, %v5749
        %v5754 = vmul.f32 %v5739, %v5749
        %v5755 = vmul.f32 %v5742, %v5749
        %v5756 = vmul.f32 %v5745, %v5749
        %v5757 = vmul.f32 %v5748, %v5749
        %v5758 = vsub.f32 %v5717, %v5750
        %v5759 = vsub.f32 %v5718, %v5751
        %v5760 = vsub.f32 %v5719, %v5752
        %v5761 = vsub.f32 %v5720, %v5753
        %v5762 = vsub.f32 %v5721, %v5754
        %v5763 = vsub.f32 %v5722, %v5755
        %v5764 = vsub.f32 %v5723, %v5756
        %v5765 = vsub.f32 %v5724, %v5757
        %v5766 = vmul.f32 %v5758, %v5758
        %v5767 = vmul.f32 %v5759, %v5759
        %v5768 = vmul.f32 %v5760, %v5760
        %v5769 = vmul.f32 %v5761, %v5761
        %v5770 = vmul.f32 %v5762, %v5762
        %v5771 = vmul.f32 %v5763, %v5763
        %v5772 = vmul.f32 %v5764, %v5764
        %v5773 = vmul.f32 %v5765, %v5765
        %v5774 = vsel %vm517, %v5766, 0.0
        %5775 = vadd.xlane.f32.xlu0 %v5774
        %v5776 = vpop.xlane.xlu0 %5775
        %v5777 = vsel %vm517, %v5767, 0.0
        %5778 = vadd.xlane.f32.xlu0 %v5777
        %v5779 = vpop.xlane.xlu0 %5778
        %v5780 = vsel %vm517, %v5768, 0.0
        %5781 = vadd.xlane.f32.xlu0 %v5780
        %v5782 = vpop.xlane.xlu0 %5781
        %v5783 = vsel %vm517, %v5769, 0.0
        %5784 = vadd.xlane.f32.xlu0 %v5783
        %v5785 = vpop.xlane.xlu0 %5784
        %v5786 = vsel %vm517, %v5770, 0.0
        %5787 = vadd.xlane.f32.xlu0 %v5786
        %v5788 = vpop.xlane.xlu0 %5787
        %v5789 = vsel %vm517, %v5771, 0.0
        %5790 = vadd.xlane.f32.xlu0 %v5789
        %v5791 = vpop.xlane.xlu0 %5790
        %v5792 = vsel %vm517, %v5772, 0.0
        %5793 = vadd.xlane.f32.xlu0 %v5792
        %v5794 = vpop.xlane.xlu0 %5793
        %v5795 = vsel %vm517, %v5773, 0.0
        %5796 = vadd.xlane.f32.xlu0 %v5795
        %v5797 = vpop.xlane.xlu0 %5796
        %v5798 = vmul.f32 %v5776, %v5749
        %v5799 = vmul.f32 %v5779, %v5749
        %v5800 = vmul.f32 %v5782, %v5749
        %v5801 = vmul.f32 %v5785, %v5749
        %v5802 = vmul.f32 %v5788, %v5749
        %v5803 = vmul.f32 %v5791, %v5749
        %v5804 = vmul.f32 %v5794, %v5749
        %v5805 = vmul.f32 %v5797, %v5749
        %v5806 = vadd.f32 %v5798, 1e-05
        %v5807 = vadd.f32 %v5799, 1e-05
        %v5808 = vadd.f32 %v5800, 1e-05
        %v5809 = vadd.f32 %v5801, 1e-05
        %v5810 = vadd.f32 %v5802, 1e-05
        %v5811 = vadd.f32 %v5803, 1e-05
        %v5812 = vadd.f32 %v5804, 1e-05
        %v5813 = vadd.f32 %v5805, 1e-05
        %v5814 = vrsqrt.pop %v5806
        %v5815 = vrsqrt.pop %v5807
        %v5816 = vrsqrt.pop %v5808
        %v5817 = vrsqrt.pop %v5809
        %v5818 = vrsqrt.pop %v5810
        %v5819 = vrsqrt.pop %v5811
        %v5820 = vrsqrt.pop %v5812
        %v5821 = vrsqrt.pop %v5813
        %v5822 = vmul.f32 %v5758, %v5814
        %v5823 = vmul.f32 %v5759, %v5815
        %v5824 = vmul.f32 %v5760, %v5816
        %v5825 = vmul.f32 %v5761, %v5817
        %v5826 = vmul.f32 %v5762, %v5818
        %v5827 = vmul.f32 %v5763, %v5819
        %v5828 = vmul.f32 %v5764, %v5820
        %v5829 = vmul.f32 %v5765, %v5821
        %v5830 = vld [vmem:[#allocation8] sm:$0x1]
        %v5832 = vlaneseq
        %v5833 = vshrl.u32 %v5832, 7
        %v5834 = vsub.s32 0, %v5833
        %v5835 = vrot.slane %v5830, %v5834
        %v5837 = vmul.f32 %v5822, %v5835
        %v5838 = vmul.f32 %v5823, %v5835
        %v5839 = vmul.f32 %v5824, %v5835
        %v5840 = vmul.f32 %v5825, %v5835
        %v5841 = vmul.f32 %v5826, %v5835
        %v5842 = vmul.f32 %v5827, %v5835
        %v5843 = vmul.f32 %v5828, %v5835
        %v5844 = vmul.f32 %v5829, %v5835
        %v5845 = vld [vmem:[#allocation10] sm:$0x1]
        %v5847 = vlaneseq
        %v5848 = vshrl.u32 %v5847, 7
        %v5849 = vsub.s32 0, %v5848
        %v5850 = vrot.slane %v5845, %v5849
        %v5852 = vadd.f32 %v5837, %v5850
        %v5853 = vadd.f32 %v5838, %v5850
        %v5854 = vadd.f32 %v5839, %v5850
        %v5855 = vadd.f32 %v5840, %v5850
        %v5856 = vadd.f32 %v5841, %v5850
        %v5857 = vadd.f32 %v5842, %v5850
        %v5858 = vadd.f32 %v5843, %v5850
        %v5859 = vadd.f32 %v5844, %v5850
        %5860 = vst.msk [vmem:[%s475] sm:$0xff] %vm517, %v5852
        %5861 = vst.msk [vmem:[%s475 + $0x8] sm:$0xff] %vm517, %v5853
        %5862 = vst.msk [vmem:[%s475 + $0x10] sm:$0xff] %vm517, %v5854
        %5863 = vst.msk [vmem:[%s475 + $0x18] sm:$0xff] %vm517, %v5855
        %5864 = vst.msk [vmem:[%s475 + $0x20] sm:$0xff] %vm517, %v5856
        %5865 = vst.msk [vmem:[%s475 + $0x28] sm:$0xff] %vm517, %v5857
        %5866 = vst.msk [vmem:[%s475 + $0x30] sm:$0xff] %vm517, %v5858
        %5867 = vst.msk [vmem:[%s475 + $0x38] sm:$0xff] %vm517, %v5859
        %s5868 = sand.u32 %s294, 1
        %s5869 = scalar_lea.sflag [#allocation4], %s5868
        %s5870 = sand.u32 %s294, 1
        %s5871 = smul.addr %s5870, 64
        %s5872 = scalar_lea.vmem [#allocation11], %s5871
        // Predicated region
        $region89: #{attention_block.1} parent=67 // pred_check
          %p5873 = pneg %p304
        $region90: #{attention_block.1} parent=67 // pred_check_branch
          %5875 = sbr.rel (%p5873) target = $region92
        $region91: #{attention_block.1} parent=67 // pred_region
          %s5877 = ssub.s32 1024, 1024
          %5878 = vsyncadd %s5869, %s5877
          %s5879 = smul.addr %s29, 8
          %s5880 = smul.addr %s5879, 128
          %s5881 = scalar_lea.hbm %s12, %s5880
          %s5882 = sshll.u32 %s5872, 4
          %s5883 = int_to_ptr.vmem [resolvable:$true] %s5882
          %5888 = dma.vmem_to_hbm [thread:$0]  %s5883, 1024, %s5881, %s5869, 128, 128, 8
        $region92: #{attention_block.1} parent=67 // pred_fallthru
          _
      $region68: #{attention_block.1} parent=5 // pred_fallthru
        _
      %p5889 = scmp.le.s32.totalorder 2, %s24
      // Predicated region
      $region93: #{attention_block.1} parent=5 // pred_check
        %p5890 = pneg %p5889
      $region94: #{attention_block.1} parent=5 // pred_check_branch
        %5892 = sbr.rel (%p5890) target = $region96
      $region95: #{attention_block.1} parent=5 // pred_region
        %s5893 = ssub.s32 %s24, 2
        // Predicated region
        $region97: #{attention_block.1} parent=95 // pred_check
          %p5894 = pneg %p310
        $region98: #{attention_block.1} parent=95 // pred_check_branch
          %5896 = sbr.rel (%p5894) target = $region100
        $region99: #{attention_block.1} parent=95 // pred_region
          %s5897 = sand.u32 %s295, 1
          %s5898 = scalar_lea.sflag [#allocation4], %s5897
          %s5899 = sand.u32 %s295, 1
          %s5900 = smul.addr %s5899, 64
          %s5901 = scalar_lea.vmem [#allocation11], %s5900
          %5902 = dma.done %s5898, 1024
        $region100: #{attention_block.1} parent=95 // pred_fallthru
          _
      $region96: #{attention_block.1} parent=5 // pred_fallthru
        _
    $region6: #{attention_block.1} parent=1 // loop_footer
      %s28 = sadd.s32 1, %s24
    $region7: #{attention_block.1} parent=1 // loop_footer_branch
      %23 = sbr.rel target = $region3
    $region8: #{attention_block.1} parent=1 // loop_exit
      _
    %5903 = vsyncpa [#allocation3], 1
    %s5904 = scalar_lea.sflag [#allocation3], 1
    %5905 = vsyncpa %s5904, 1
    %5906 = vsyncpa [#allocation6], 1
    %5907 = vsyncpa [#allocation9], 1
    %5908 = vsyncpa [#allocation4], 1
    %s5909 = scalar_lea.sflag [#allocation4], 1
    %5910 = vsyncpa %s5909, 1

</llo_original>
